<compile_context>
chip_gen: v7x
topology: tpu7x:2x2x1
jax: 0.10.0
libtpu: 0.0.40
codegen_flags: <defaults>
</compile_context>

<pallas_src>
import math

import numpy as np
import jax
import jax.numpy as jnp
from jax.experimental import pallas as pl
from jax.experimental.pallas import tpu as pltpu


# ----------------------------------------------------------------------------
# One-time weight preparation (outside the hot path)
# ----------------------------------------------------------------------------
def _conv_tap_mats(weight, size_in, pad):
    """3x3 stride-2 Conv2d -> per-tap lane-mixing matrices M[kh]:[Win*Cin, OW*Cout]."""
    cout, cin, k, _ = weight.shape
    size_out = (size_in + 2 * pad - k) // 2 + 1
    sel = np.zeros((k, size_in, size_out), np.float32)
    for kt in range(k):
        for o in range(size_out):
            i = 2 * o + kt - pad
            if 0 <= i < size_in:
                sel[kt, i, o] = 1.0
    # M[kh, w*Cin+ci, ow*Cout+co] = sum_kw sel[kw, w, ow] * W[co, ci, kh, kw]
    return jnp.einsum("kwo,cihk->hwioc", sel, weight).reshape(
        k, size_in * cin, size_out * cout)


def _deconv_tap_mats(weight, size_in, pad, out_pad):
    """3x3 stride-2 ConvTranspose2d -> per-tap M[kt]:[Win*Cin, OW*Cout] (flipped)."""
    cin, cout, k, _ = weight.shape
    size_out = (size_in - 1) * 2 - 2 * pad + k + out_pad
    lo = k - 1 - pad
    wflip = jnp.transpose(weight, (1, 0, 2, 3))[:, :, ::-1, ::-1]   # [Cout, Cin, kh, kw]
    sel = np.zeros((k, size_in, size_out), np.float32)
    for kt in range(k):
        for o in range(size_out):
            t = o + kt - lo
            if t % 2 == 0:
                i = t // 2
                if 0 <= i < size_in:
                    sel[kt, i, o] = 1.0
    return jnp.einsum("kwo,cihk->hwioc", sel, wflip).reshape(
        k, size_in * cin, size_out * cout)


def prepare_params(p, compute_dtype=jnp.bfloat16):
    """One-time re-layout of PyTorch-style params into kernel constants."""
    latent = p["fc_enc_w"].shape[0]
    cdt = compute_dtype
    m1 = _conv_tap_mats(p["enc1_w"], 28, 1)          # 28x28x1  -> 14x14x16
    m2 = _conv_tap_mats(p["enc2_w"], 14, 1)          # 14x14x16 ->  7x7x32
    m3 = _conv_tap_mats(p["enc3_w"], 7, 0)           #  7x7x32  ->  3x3x64
    dm1 = _deconv_tap_mats(p["dec1_w"], 3, 0, 0)     # 3x3x64   ->  7x7x32
    dm2 = _deconv_tap_mats(p["dec2_w"], 7, 1, 1)     # 7x7x32   -> 14x14x16
    dm3 = _deconv_tap_mats(p["dec3_w"], 14, 1, 1)    # 14x14x16 -> 28x28x1
    # fc weights: permuted from PyTorch (c,h,w) flatten order to (h, w*64+c) lanes.
    fce_w = jnp.transpose(p["fc_enc_w"].reshape(latent, 64, 3, 3),
                          (2, 3, 1, 0)).reshape(3, 192, latent)
    fcd_w = jnp.transpose(p["fc_dec_w"].reshape(64, 3, 3, latent),
                          (1, 3, 2, 0)).reshape(3, latent, 192)
    fcd_b = jnp.transpose(p["fc_dec_b"].reshape(64, 3, 3), (1, 2, 0)).reshape(3, 1, 192)
    return dict(
        m1=m1.astype(cdt), b1=jnp.tile(p["enc1_b"], 14).reshape(1, -1),
        m2=m2.astype(cdt), b2=jnp.tile(p["enc2_b"], 7).reshape(1, -1),
        m3=m3.astype(cdt), b3=jnp.tile(p["enc3_b"], 3).reshape(1, -1),
        fce_w=fce_w.astype(cdt), fce_b=p["fc_enc_b"].reshape(1, latent),
        fcd_w=fcd_w.astype(cdt), fcd_b=fcd_b,
        dm1=dm1.astype(cdt), db1=jnp.tile(p["dec1_b"], 7).reshape(1, -1),
        dm2=dm2.astype(cdt), db2=jnp.tile(p["dec2_b"], 14).reshape(1, -1),
        dm3=dm3.astype(cdt), db3=jnp.tile(p["dec3_b"], 28).reshape(1, -1),
    )


# ----------------------------------------------------------------------------
# In-kernel layer helpers (batched, h-major layout: list of per-h [nb, W*C] blocks)
# ----------------------------------------------------------------------------
def _conv_layer(blocks, h_in, pad, m_ref, b_ref, act):
    """k=3 stride-2 conv:  out[oh] = act(b + sum_kh X[2*oh+kh-pad] @ M[kh])."""
    nb = blocks[0].shape[0]
    oh_n = (h_in + 2 * pad - 3) // 2 + 1
    cdt = m_ref.dtype
    bias = b_ref[...]
    taps = []
    for kh in range(3):
        ohs = [o for o in range(oh_n) if 0 <= 2 * o + kh - pad < h_in]
        rows = [blocks[2 * o + kh - pad] for o in ohs]          # nb-aligned row blocks
        g = rows[0] if len(rows) == 1 else jnp.concatenate(rows, axis=0)
        p = jnp.dot(g.astype(cdt), m_ref[kh], preferred_element_type=jnp.float32)
        taps.append((ohs[0], ohs[-1] + 1, p))
    out = []
    for o in range(oh_n):
        acc = bias
        for lo, hi, p in taps:
            if lo <= o < hi:
                acc = acc + p[(o - lo) * nb:(o - lo + 1) * nb]
        out.append(act(acc))
    return out


def _deconv_layer(blocks, h_in, pad, out_pad, m_ref, b_ref, act):
    """k=3 stride-2 ConvTranspose: out[o] = act(b + sum_valid X[(o+kt-lo)/2] @ M[kt])."""
    nb = blocks[0].shape[0]
    oh_n = (h_in - 1) * 2 - 2 * pad + 3 + out_pad
    lo = 2 - pad
    cdt = m_ref.dtype
    bias = b_ref[...]
    x_all = (blocks[0].astype(cdt) if len(blocks) == 1
             else jnp.concatenate([b.astype(cdt) for b in blocks], axis=0))
    a = [jnp.dot(x_all, m_ref[kt], preferred_element_type=jnp.float32)
         for kt in range(3)]
    out = []
    for o in range(oh_n):
        acc = bias
        for kt in range(3):
            t = o + kt - lo
            if t % 2 == 0:
                i = t // 2
                if 0 <= i < h_in:
                    acc = acc + a[kt][i * nb:(i + 1) * nb]
        out.append(act(acc))
    return out


# ----------------------------------------------------------------------------
# Fused Pallas kernel (whole forward pass, one batch block per grid step)
# ----------------------------------------------------------------------------
def _autoencoder_kernel(x_ref,
                        m1, b1, m2, b2, m3, b3,
                        fce_w, fce_b, fcd_w, fcd_b,
                        dm1, db1, dm2, db2, dm3, db3,
                        recon_ref, z_ref):
    cdt = m1.dtype
    relu = lambda v: jnp.maximum(v, 0.0).astype(cdt)
    sig = lambda v: 0.5 * (jnp.tanh(0.5 * v) + 1.0)     # EUP-resident, bounded [0,1]

    # ------------------------------ encoder ------------------------------
    xv = x_ref[...].astype(cdt)                         # [28, nb, 28] h-major
    h = [xv[i] for i in range(28)]                      # 28 x [nb, 28]
    h = _conv_layer(h, 28, 1, m1, b1, relu)             # 14 x [nb, 224]
    h = _conv_layer(h, 14, 1, m2, b2, relu)             #  7 x [nb, 224]
    h = _conv_layer(h, 7, 0, m3, b3, relu)              #  3 x [nb, 192]

    z = fce_b[...]                                      # [1, latent]
    for r in range(3):                                  # fc_enc, M = nb per matmul
        z = z + jnp.dot(h[r], fce_w[r], preferred_element_type=jnp.float32)
    z_ref[...] = z                                      # [nb, latent] f32

    # ------------------------------ decoder ------------------------------
    zc = z.astype(cdt)
    d = [jnp.dot(zc, fcd_w[r], preferred_element_type=jnp.float32) + fcd_b[r]
         for r in range(3)]                             #  3 x [nb, 192]
    d = _deconv_layer(d, 3, 0, 0, dm1, db1, relu)       #  7 x [nb, 224]
    d = _deconv_layer(d, 7, 1, 1, dm2, db2, relu)       # 14 x [nb, 224]
    d = _deconv_layer(d, 14, 1, 1, dm3, db3, sig)       # 28 x [nb, 28]  f32
    for i in range(28):
        recon_ref[i] = d[i]


def _round_up(a, b):
    return (a + b - 1) // b * b


def conv_autoencoder_forward(prep, x, *, block_batch=256):
    """x: [N, 1, 28, 28] -> (recon [N, 1, 28, 28], z [N, latent]).

    block_batch: samples per grid step (rounded to a multiple of 16).  256 fits
    comfortably in v7x's 64 MiB VMEM; v5e/v6e can go higher.  On v7x keep at least
    two grid steps (block_batch <= N/2) so the parallel axis covers both TCs.
    """
    n = x.shape[0]
    latent = prep["fce_b"].shape[-1]
    nb = _round_up(min(block_batch, n), 16)
    n_pad = _round_up(n, nb)
    xin = x.astype(jnp.float32).reshape(n, 28, 28)
    if n_pad != n:
        xin = jnp.concatenate(
            [xin, jnp.zeros((n_pad - n, 28, 28), jnp.float32)], axis=0)
    x_hm = jnp.transpose(xin, (1, 0, 2))                # [28, n_pad, 28] h-major

    weight_order = ("m1", "b1", "m2", "b2", "m3", "b3",
                    "fce_w", "fce_b", "fcd_w", "fcd_b",
                    "dm1", "db1", "dm2", "db2", "dm3", "db3")
    weights = tuple(prep[k] for k in weight_order)

    def _const_spec(a):  # full array, VMEM-resident across all grid steps
        return pl.BlockSpec(a.shape, lambda b, nd=a.ndim: (0,) * nd)

    recon_hm, z = pl.pallas_call(
        _autoencoder_kernel,
        out_shape=(jax.ShapeDtypeStruct((28, n_pad, 28), jnp.float32),
                   jax.ShapeDtypeStruct((n_pad, latent), jnp.float32)),
        grid=(n_pad // nb,),
        in_specs=[pl.BlockSpec((28, nb, 28), lambda b: (0, b, 0))]
                 + [_const_spec(w) for w in weights],
        out_specs=(pl.BlockSpec((28, nb, 28), lambda b: (0, b, 0)),
                   pl.BlockSpec((nb, latent), lambda b: (b, 0))),
        compiler_params=pltpu.CompilerParams(
            dimension_semantics=("parallel",),          # batch axis -> megacore/2 TCs
            vmem_limit_bytes=48 * 1024 * 1024),         # sized for v7x's 64 MiB VMEM
    )(x_hm, *weights)

    recon = jnp.transpose(recon_hm, (1, 0, 2))[:n].reshape(n, 1, 28, 28)
    return recon, z[:n]


# ----------------------------------------------------------------------------
# Parameters (deterministic, PyTorch-default-style uniform init, PyTorch layouts)
# ----------------------------------------------------------------------------
def init_params(key, latent_dim=64):
    keys = jax.random.split(key, 16)

    def uni(k, shape, fan_in):
        b = 1.0 / math.sqrt(fan_in)
        return jax.random.uniform(k, shape, jnp.float32, -b, b)

    p = {}
    p["enc1_w"] = uni(keys[0], (16, 1, 3, 3), 1 * 9)
    p["enc1_b"] = uni(keys[1], (16,), 1 * 9)
    p["enc2_w"] = uni(keys[2], (32, 16, 3, 3), 16 * 9)
    p["enc2_b"] = uni(keys[3], (32,), 16 * 9)
    p["enc3_w"] = uni(keys[4], (64, 32, 3, 3), 32 * 9)
    p["enc3_b"] = uni(keys[5], (64,), 32 * 9)
    p["fc_enc_w"] = uni(keys[6], (latent_dim, 64 * 9), 64 * 9)
    p["fc_enc_b"] = uni(keys[7], (latent_dim,), 64 * 9)
    p["fc_dec_w"] = uni(keys[8], (64 * 9, latent_dim), latent_dim)
    p["fc_dec_b"] = uni(keys[9], (64 * 9,), latent_dim)
    p["dec1_w"] = uni(keys[10], (64, 32, 3, 3), 32 * 9)
    p["dec1_b"] = uni(keys[11], (32,), 32 * 9)
    p["dec2_w"] = uni(keys[12], (32, 16, 3, 3), 16 * 9)
    p["dec2_b"] = uni(keys[13], (16,), 16 * 9)
    p["dec3_w"] = uni(keys[14], (16, 1, 3, 3), 1 * 9)
    p["dec3_b"] = uni(keys[15], (1,), 1 * 9)
    return p


# ----------------------------------------------------------------------------
# Pure-JAX reference (matches the PyTorch module) for a correctness check
# ----------------------------------------------------------------------------
def _reference_forward(p, x):
    hp = jax.lax.Precision.HIGHEST
    dn = ("NCHW", "OIHW", "NCHW")

    def conv(v, w, b, stride, pad):
        y = jax.lax.conv_general_dilated(v, w, (stride, stride),
                                         [(pad, pad), (pad, pad)],
                                         dimension_numbers=dn, precision=hp)
        return y + b.reshape(1, -1, 1, 1)

    def deconv(v, w, b, stride, pad, out_pad):
        wf = jnp.transpose(w, (1, 0, 2, 3))[:, :, ::-1, ::-1]
        lo = 3 - 1 - pad
        hi = lo + out_pad
        y = jax.lax.conv_general_dilated(v, wf, (1, 1), [(lo, hi), (lo, hi)],
                                         lhs_dilation=(stride, stride),
                                         dimension_numbers=dn, precision=hp)
        return y + b.reshape(1, -1, 1, 1)

    n = x.shape[0]
    h = jax.nn.relu(conv(x, p["enc1_w"], p["enc1_b"], 2, 1))
    h = jax.nn.relu(conv(h, p["enc2_w"], p["enc2_b"], 2, 1))
    h = jax.nn.relu(conv(h, p["enc3_w"], p["enc3_b"], 2, 0))
    h = h.reshape(n, -1)
    z = jnp.dot(h, p["fc_enc_w"].T, precision=hp) + p["fc_enc_b"]
    d = jnp.dot(z, p["fc_dec_w"].T, precision=hp) + p["fc_dec_b"]
    d = d.reshape(n, 64, 3, 3)
    d = jax.nn.relu(deconv(d, p["dec1_w"], p["dec1_b"], 2, 0, 0))
    d = jax.nn.relu(deconv(d, p["dec2_w"], p["dec2_b"], 2, 1, 1))
    recon = jax.nn.sigmoid(deconv(d, p["dec3_w"], p["dec3_b"], 2, 1, 1))
    return recon, z


if __name__ == "__main__":
    key = jax.random.PRNGKey(0)
    pkey, xkey = jax.random.split(key)
    params = init_params(pkey, latent_dim=64)

    # input consistent with the module: 1-channel 28x28 (so the encoder yields 64*3*3)
    x = jax.random.uniform(xkey, (2, 1, 28, 28), jnp.float32)

    fwd = jax.jit(conv_autoencoder_forward)

    # exact f32 path: validates the batched tap decomposition against the reference
    prep32 = prepare_params(params, compute_dtype=jnp.float32)
    recon32, z32 = fwd(prep32, x)
    jax.block_until_ready((recon32, z32))

    # default bf16 (MXU-native) path: same kernel, half-width weights/activations
    prep16 = prepare_params(params, compute_dtype=jnp.bfloat16)
    recon16, z16 = fwd(prep16, x)
    jax.block_until_ready((recon16, z16))

    assert recon32.shape == (2, 1, 28, 28) and recon16.shape == (2, 1, 28, 28)
    assert z32.shape == (2, 64) and z16.shape == (2, 64)
    assert recon32.dtype == jnp.float32 and z32.dtype == jnp.float32
    assert bool(jnp.all(recon16 >= 0.0)) and bool(jnp.all(recon16 <= 1.0))

    ref_recon, ref_z = _reference_forward(params, x)
    err_r32 = float(jnp.max(jnp.abs(recon32 - ref_recon)))
    err_z32 = float(jnp.max(jnp.abs(z32 - ref_z)))
    assert err_r32 < 2e-3 and err_z32 < 2e-3, (err_r32, err_z32)

    err_r16 = float(jnp.max(jnp.abs(recon16 - ref_recon)))
    err_z16 = float(jnp.max(jnp.abs(z16 - ref_z)))
    assert err_r16 < 3e-2 and err_z16 < 3e-2, (err_r16, err_z16)

    print("KERNEL_OK")
</pallas_src>

<mosaic_0001>
module attributes {stable_mosaic.version = 11 : i64} {
  func.func @_autoencoder_kernel(%arg0: i32, %arg1: memref<28x16x28xf32, #tpu.memory_space<vmem>>, %arg2: memref<3x28x224xf32, #tpu.memory_space<vmem>>, %arg3: memref<1x224xf32, #tpu.memory_space<vmem>>, %arg4: memref<3x224x224xf32, #tpu.memory_space<vmem>>, %arg5: memref<1x224xf32, #tpu.memory_space<vmem>>, %arg6: memref<3x224x192xf32, #tpu.memory_space<vmem>>, %arg7: memref<1x192xf32, #tpu.memory_space<vmem>>, %arg8: memref<3x192x64xf32, #tpu.memory_space<vmem>>, %arg9: memref<1x64xf32, #tpu.memory_space<vmem>>, %arg10: memref<3x64x192xf32, #tpu.memory_space<vmem>>, %arg11: memref<3x1x192xf32, #tpu.memory_space<vmem>>, %arg12: memref<3x192x224xf32, #tpu.memory_space<vmem>>, %arg13: memref<1x224xf32, #tpu.memory_space<vmem>>, %arg14: memref<3x224x224xf32, #tpu.memory_space<vmem>>, %arg15: memref<1x224xf32, #tpu.memory_space<vmem>>, %arg16: memref<3x224x28xf32, #tpu.memory_space<vmem>>, %arg17: memref<1x28xf32, #tpu.memory_space<vmem>>, %arg18: memref<28x16x28xf32, #tpu.memory_space<vmem>>, %arg19: memref<16x64xf32, #tpu.memory_space<vmem>>) attributes {dimension_semantics = [#tpu.dimension_semantics<parallel>], iteration_bounds = array<i64: 1>, scalar_prefetch = 0 : i64, scratch_operands = 0 : i64, tpu.core_type = #tpu.core_type<tc>, window_params = [{transform_indices = @transform_0, window_bounds = array<i64: 28, 16, 28>}, {pipeline_mode = #tpu.pipeline_mode<synchronous>, transform_indices = @transform_1, window_bounds = array<i64: 3, 28, 224>}, {pipeline_mode = #tpu.pipeline_mode<synchronous>, transform_indices = @transform_2, window_bounds = array<i64: 1, 224>}, {pipeline_mode = #tpu.pipeline_mode<synchronous>, transform_indices = @transform_3, window_bounds = array<i64: 3, 224, 224>}, {pipeline_mode = #tpu.pipeline_mode<synchronous>, transform_indices = @transform_4, window_bounds = array<i64: 1, 224>}, {pipeline_mode = #tpu.pipeline_mode<synchronous>, transform_indices = @transform_5, window_bounds = array<i64: 3, 224, 192>}, {pipeline_mode = #tpu.pipeline_mode<synchronous>, transform_indices = @transform_6, window_bounds = array<i64: 1, 192>}, {pipeline_mode = #tpu.pipeline_mode<synchronous>, transform_indices = @transform_7, window_bounds = array<i64: 3, 192, 64>}, {pipeline_mode = #tpu.pipeline_mode<synchronous>, transform_indices = @transform_8, window_bounds = array<i64: 1, 64>}, {pipeline_mode = #tpu.pipeline_mode<synchronous>, transform_indices = @transform_9, window_bounds = array<i64: 3, 64, 192>}, {pipeline_mode = #tpu.pipeline_mode<synchronous>, transform_indices = @transform_10, window_bounds = array<i64: 3, 1, 192>}, {pipeline_mode = #tpu.pipeline_mode<synchronous>, transform_indices = @transform_11, window_bounds = array<i64: 3, 192, 224>}, {pipeline_mode = #tpu.pipeline_mode<synchronous>, transform_indices = @transform_12, window_bounds = array<i64: 1, 224>}, {pipeline_mode = #tpu.pipeline_mode<synchronous>, transform_indices = @transform_13, window_bounds = array<i64: 3, 224, 224>}, {pipeline_mode = #tpu.pipeline_mode<synchronous>, transform_indices = @transform_14, window_bounds = array<i64: 1, 224>}, {pipeline_mode = #tpu.pipeline_mode<synchronous>, transform_indices = @transform_15, window_bounds = array<i64: 3, 224, 28>}, {pipeline_mode = #tpu.pipeline_mode<synchronous>, transform_indices = @transform_16, window_bounds = array<i64: 1, 28>}, {transform_indices = @transform_17, window_bounds = array<i64: 28, 16, 28>}, {transform_indices = @transform_18, window_bounds = array<i64: 16, 64>}]} {
    %c0 = arith.constant 0 : index
    %c0_0 = arith.constant 0 : index
    %c0_1 = arith.constant 0 : index
    %0 = vector.load %arg1[%c0, %c0_0, %c0_1] : memref<28x16x28xf32, #tpu.memory_space<vmem>>, vector<28x16x28xf32>
    %1 = vector.extract_strided_slice %0 {offsets = [0, 0, 0], sizes = [1, 16, 28], strides = [1, 1, 1]} : vector<28x16x28xf32> to vector<1x16x28xf32>
    %2 = vector.shape_cast %1 : vector<1x16x28xf32> to vector<16x28xf32>
    %3 = vector.extract_strided_slice %0 {offsets = [1, 0, 0], sizes = [1, 16, 28], strides = [1, 1, 1]} : vector<28x16x28xf32> to vector<1x16x28xf32>
    %4 = vector.shape_cast %3 : vector<1x16x28xf32> to vector<16x28xf32>
    %5 = vector.extract_strided_slice %0 {offsets = [2, 0, 0], sizes = [1, 16, 28], strides = [1, 1, 1]} : vector<28x16x28xf32> to vector<1x16x28xf32>
    %6 = vector.shape_cast %5 : vector<1x16x28xf32> to vector<16x28xf32>
    %7 = vector.extract_strided_slice %0 {offsets = [3, 0, 0], sizes = [1, 16, 28], strides = [1, 1, 1]} : vector<28x16x28xf32> to vector<1x16x28xf32>
    %8 = vector.shape_cast %7 : vector<1x16x28xf32> to vector<16x28xf32>
    %9 = vector.extract_strided_slice %0 {offsets = [4, 0, 0], sizes = [1, 16, 28], strides = [1, 1, 1]} : vector<28x16x28xf32> to vector<1x16x28xf32>
    %10 = vector.shape_cast %9 : vector<1x16x28xf32> to vector<16x28xf32>
    %11 = vector.extract_strided_slice %0 {offsets = [5, 0, 0], sizes = [1, 16, 28], strides = [1, 1, 1]} : vector<28x16x28xf32> to vector<1x16x28xf32>
    %12 = vector.shape_cast %11 : vector<1x16x28xf32> to vector<16x28xf32>
    %13 = vector.extract_strided_slice %0 {offsets = [6, 0, 0], sizes = [1, 16, 28], strides = [1, 1, 1]} : vector<28x16x28xf32> to vector<1x16x28xf32>
    %14 = vector.shape_cast %13 : vector<1x16x28xf32> to vector<16x28xf32>
    %15 = vector.extract_strided_slice %0 {offsets = [7, 0, 0], sizes = [1, 16, 28], strides = [1, 1, 1]} : vector<28x16x28xf32> to vector<1x16x28xf32>
    %16 = vector.shape_cast %15 : vector<1x16x28xf32> to vector<16x28xf32>
    %17 = vector.extract_strided_slice %0 {offsets = [8, 0, 0], sizes = [1, 16, 28], strides = [1, 1, 1]} : vector<28x16x28xf32> to vector<1x16x28xf32>
    %18 = vector.shape_cast %17 : vector<1x16x28xf32> to vector<16x28xf32>
    %19 = vector.extract_strided_slice %0 {offsets = [9, 0, 0], sizes = [1, 16, 28], strides = [1, 1, 1]} : vector<28x16x28xf32> to vector<1x16x28xf32>
    %20 = vector.shape_cast %19 : vector<1x16x28xf32> to vector<16x28xf32>
    %21 = vector.extract_strided_slice %0 {offsets = [10, 0, 0], sizes = [1, 16, 28], strides = [1, 1, 1]} : vector<28x16x28xf32> to vector<1x16x28xf32>
    %22 = vector.shape_cast %21 : vector<1x16x28xf32> to vector<16x28xf32>
    %23 = vector.extract_strided_slice %0 {offsets = [11, 0, 0], sizes = [1, 16, 28], strides = [1, 1, 1]} : vector<28x16x28xf32> to vector<1x16x28xf32>
    %24 = vector.shape_cast %23 : vector<1x16x28xf32> to vector<16x28xf32>
    %25 = vector.extract_strided_slice %0 {offsets = [12, 0, 0], sizes = [1, 16, 28], strides = [1, 1, 1]} : vector<28x16x28xf32> to vector<1x16x28xf32>
    %26 = vector.shape_cast %25 : vector<1x16x28xf32> to vector<16x28xf32>
    %27 = vector.extract_strided_slice %0 {offsets = [13, 0, 0], sizes = [1, 16, 28], strides = [1, 1, 1]} : vector<28x16x28xf32> to vector<1x16x28xf32>
    %28 = vector.shape_cast %27 : vector<1x16x28xf32> to vector<16x28xf32>
    %29 = vector.extract_strided_slice %0 {offsets = [14, 0, 0], sizes = [1, 16, 28], strides = [1, 1, 1]} : vector<28x16x28xf32> to vector<1x16x28xf32>
    %30 = vector.shape_cast %29 : vector<1x16x28xf32> to vector<16x28xf32>
    %31 = vector.extract_strided_slice %0 {offsets = [15, 0, 0], sizes = [1, 16, 28], strides = [1, 1, 1]} : vector<28x16x28xf32> to vector<1x16x28xf32>
    %32 = vector.shape_cast %31 : vector<1x16x28xf32> to vector<16x28xf32>
    %33 = vector.extract_strided_slice %0 {offsets = [16, 0, 0], sizes = [1, 16, 28], strides = [1, 1, 1]} : vector<28x16x28xf32> to vector<1x16x28xf32>
    %34 = vector.shape_cast %33 : vector<1x16x28xf32> to vector<16x28xf32>
    %35 = vector.extract_strided_slice %0 {offsets = [17, 0, 0], sizes = [1, 16, 28], strides = [1, 1, 1]} : vector<28x16x28xf32> to vector<1x16x28xf32>
    %36 = vector.shape_cast %35 : vector<1x16x28xf32> to vector<16x28xf32>
    %37 = vector.extract_strided_slice %0 {offsets = [18, 0, 0], sizes = [1, 16, 28], strides = [1, 1, 1]} : vector<28x16x28xf32> to vector<1x16x28xf32>
    %38 = vector.shape_cast %37 : vector<1x16x28xf32> to vector<16x28xf32>
    %39 = vector.extract_strided_slice %0 {offsets = [19, 0, 0], sizes = [1, 16, 28], strides = [1, 1, 1]} : vector<28x16x28xf32> to vector<1x16x28xf32>
    %40 = vector.shape_cast %39 : vector<1x16x28xf32> to vector<16x28xf32>
    %41 = vector.extract_strided_slice %0 {offsets = [20, 0, 0], sizes = [1, 16, 28], strides = [1, 1, 1]} : vector<28x16x28xf32> to vector<1x16x28xf32>
    %42 = vector.shape_cast %41 : vector<1x16x28xf32> to vector<16x28xf32>
    %43 = vector.extract_strided_slice %0 {offsets = [21, 0, 0], sizes = [1, 16, 28], strides = [1, 1, 1]} : vector<28x16x28xf32> to vector<1x16x28xf32>
    %44 = vector.shape_cast %43 : vector<1x16x28xf32> to vector<16x28xf32>
    %45 = vector.extract_strided_slice %0 {offsets = [22, 0, 0], sizes = [1, 16, 28], strides = [1, 1, 1]} : vector<28x16x28xf32> to vector<1x16x28xf32>
    %46 = vector.shape_cast %45 : vector<1x16x28xf32> to vector<16x28xf32>
    %47 = vector.extract_strided_slice %0 {offsets = [23, 0, 0], sizes = [1, 16, 28], strides = [1, 1, 1]} : vector<28x16x28xf32> to vector<1x16x28xf32>
    %48 = vector.shape_cast %47 : vector<1x16x28xf32> to vector<16x28xf32>
    %49 = vector.extract_strided_slice %0 {offsets = [24, 0, 0], sizes = [1, 16, 28], strides = [1, 1, 1]} : vector<28x16x28xf32> to vector<1x16x28xf32>
    %50 = vector.shape_cast %49 : vector<1x16x28xf32> to vector<16x28xf32>
    %51 = vector.extract_strided_slice %0 {offsets = [25, 0, 0], sizes = [1, 16, 28], strides = [1, 1, 1]} : vector<28x16x28xf32> to vector<1x16x28xf32>
    %52 = vector.shape_cast %51 : vector<1x16x28xf32> to vector<16x28xf32>
    %53 = vector.extract_strided_slice %0 {offsets = [26, 0, 0], sizes = [1, 16, 28], strides = [1, 1, 1]} : vector<28x16x28xf32> to vector<1x16x28xf32>
    %54 = vector.shape_cast %53 : vector<1x16x28xf32> to vector<16x28xf32>
    %55 = vector.extract_strided_slice %0 {offsets = [27, 0, 0], sizes = [1, 16, 28], strides = [1, 1, 1]} : vector<28x16x28xf32> to vector<1x16x28xf32>
    %56 = vector.shape_cast %55 : vector<1x16x28xf32> to vector<16x28xf32>
    %c0_2 = arith.constant 0 : index
    %c0_3 = arith.constant 0 : index
    %57 = vector.load %arg3[%c0_2, %c0_3] : memref<1x224xf32, #tpu.memory_space<vmem>>, vector<1x224xf32>
    %58 = tpu.concatenate %4, %8, %12, %16, %20, %24, %28, %32, %36, %40, %44, %48, %52 in 0 : vector<16x28xf32>, vector<16x28xf32>, vector<16x28xf32>, vector<16x28xf32>, vector<16x28xf32>, vector<16x28xf32>, vector<16x28xf32>, vector<16x28xf32>, vector<16x28xf32>, vector<16x28xf32>, vector<16x28xf32>, vector<16x28xf32>, vector<16x28xf32> -> vector<208x28xf32>
    %c0_4 = arith.constant 0 : index
    %c0_5 = arith.constant 0 : index
    %c0_6 = arith.constant 0 : index
    %59 = vector.load %arg2[%c0_4, %c0_5, %c0_6] : memref<3x28x224xf32, #tpu.memory_space<vmem>>, vector<1x28x224xf32>
    %60 = vector.shape_cast %59 : vector<1x28x224xf32> to vector<28x224xf32>
    %cst = arith.constant dense<0.000000e+00> : vector<208x224xf32>
    %61 = tpu.matmul %58, %60, %cst {dimension_numbers = #tpu.dot_dimension_numbers<[1], [0], [0], [1], [0, 0, 1, 1], [], []>} : vector<208x28xf32>, vector<28x224xf32>, vector<208x224xf32> -> vector<208x224xf32>
    %62 = tpu.concatenate %2, %6, %10, %14, %18, %22, %26, %30, %34, %38, %42, %46, %50, %54 in 0 : vector<16x28xf32>, vector<16x28xf32>, vector<16x28xf32>, vector<16x28xf32>, vector<16x28xf32>, vector<16x28xf32>, vector<16x28xf32>, vector<16x28xf32>, vector<16x28xf32>, vector<16x28xf32>, vector<16x28xf32>, vector<16x28xf32>, vector<16x28xf32>, vector<16x28xf32> -> vector<224x28xf32>
    %c1 = arith.constant 1 : index
    %c0_7 = arith.constant 0 : index
    %c0_8 = arith.constant 0 : index
    %63 = vector.load %arg2[%c1, %c0_7, %c0_8] : memref<3x28x224xf32, #tpu.memory_space<vmem>>, vector<1x28x224xf32>
    %64 = vector.shape_cast %63 : vector<1x28x224xf32> to vector<28x224xf32>
    %cst_9 = arith.constant dense<0.000000e+00> : vector<224x224xf32>
    %65 = tpu.matmul %62, %64, %cst_9 {dimension_numbers = #tpu.dot_dimension_numbers<[1], [0], [0], [1], [0, 0, 1, 1], [], []>} : vector<224x28xf32>, vector<28x224xf32>, vector<224x224xf32> -> vector<224x224xf32>
    %66 = tpu.concatenate %4, %8, %12, %16, %20, %24, %28, %32, %36, %40, %44, %48, %52, %56 in 0 : vector<16x28xf32>, vector<16x28xf32>, vector<16x28xf32>, vector<16x28xf32>, vector<16x28xf32>, vector<16x28xf32>, vector<16x28xf32>, vector<16x28xf32>, vector<16x28xf32>, vector<16x28xf32>, vector<16x28xf32>, vector<16x28xf32>, vector<16x28xf32>, vector<16x28xf32> -> vector<224x28xf32>
    %c2 = arith.constant 2 : index
    %c0_10 = arith.constant 0 : index
    %c0_11 = arith.constant 0 : index
    %67 = vector.load %arg2[%c2, %c0_10, %c0_11] : memref<3x28x224xf32, #tpu.memory_space<vmem>>, vector<1x28x224xf32>
    %68 = vector.shape_cast %67 : vector<1x28x224xf32> to vector<28x224xf32>
    %cst_12 = arith.constant dense<0.000000e+00> : vector<224x224xf32>
    %69 = tpu.matmul %66, %68, %cst_12 {dimension_numbers = #tpu.dot_dimension_numbers<[1], [0], [0], [1], [0, 0, 1, 1], [], []>} : vector<224x28xf32>, vector<28x224xf32>, vector<224x224xf32> -> vector<224x224xf32>
    %70 = vector.extract_strided_slice %65 {offsets = [0, 0], sizes = [16, 224], strides = [1, 1]} : vector<224x224xf32> to vector<16x224xf32>
    %71 = vector.broadcast %57 : vector<1x224xf32> to vector<16x224xf32>
    %72 = arith.addf %71, %70 : vector<16x224xf32>
    %73 = vector.extract_strided_slice %69 {offsets = [0, 0], sizes = [16, 224], strides = [1, 1]} : vector<224x224xf32> to vector<16x224xf32>
    %74 = arith.addf %72, %73 : vector<16x224xf32>
    %cst_13 = arith.constant 0.000000e+00 : f32
    %75 = vector.broadcast %cst_13 : f32 to vector<16x224xf32>
    %76 = arith.maximumf %74, %75 : vector<16x224xf32>
    %77 = vector.extract_strided_slice %61 {offsets = [0, 0], sizes = [16, 224], strides = [1, 1]} : vector<208x224xf32> to vector<16x224xf32>
    %78 = vector.broadcast %57 : vector<1x224xf32> to vector<16x224xf32>
    %79 = arith.addf %78, %77 : vector<16x224xf32>
    %80 = vector.extract_strided_slice %65 {offsets = [16, 0], sizes = [16, 224], strides = [1, 1]} : vector<224x224xf32> to vector<16x224xf32>
    %81 = arith.addf %79, %80 : vector<16x224xf32>
    %82 = vector.extract_strided_slice %69 {offsets = [16, 0], sizes = [16, 224], strides = [1, 1]} : vector<224x224xf32> to vector<16x224xf32>
    %83 = arith.addf %81, %82 : vector<16x224xf32>
    %cst_14 = arith.constant 0.000000e+00 : f32
    %84 = vector.broadcast %cst_14 : f32 to vector<16x224xf32>
    %85 = arith.maximumf %83, %84 : vector<16x224xf32>
    %86 = vector.extract_strided_slice %61 {offsets = [16, 0], sizes = [16, 224], strides = [1, 1]} : vector<208x224xf32> to vector<16x224xf32>
    %87 = vector.broadcast %57 : vector<1x224xf32> to vector<16x224xf32>
    %88 = arith.addf %87, %86 : vector<16x224xf32>
    %89 = vector.extract_strided_slice %65 {offsets = [32, 0], sizes = [16, 224], strides = [1, 1]} : vector<224x224xf32> to vector<16x224xf32>
    %90 = arith.addf %88, %89 : vector<16x224xf32>
    %91 = vector.extract_strided_slice %69 {offsets = [32, 0], sizes = [16, 224], strides = [1, 1]} : vector<224x224xf32> to vector<16x224xf32>
    %92 = arith.addf %90, %91 : vector<16x224xf32>
    %cst_15 = arith.constant 0.000000e+00 : f32
    %93 = vector.broadcast %cst_15 : f32 to vector<16x224xf32>
    %94 = arith.maximumf %92, %93 : vector<16x224xf32>
    %95 = vector.extract_strided_slice %61 {offsets = [32, 0], sizes = [16, 224], strides = [1, 1]} : vector<208x224xf32> to vector<16x224xf32>
    %96 = vector.broadcast %57 : vector<1x224xf32> to vector<16x224xf32>
    %97 = arith.addf %96, %95 : vector<16x224xf32>
    %98 = vector.extract_strided_slice %65 {offsets = [48, 0], sizes = [16, 224], strides = [1, 1]} : vector<224x224xf32> to vector<16x224xf32>
    %99 = arith.addf %97, %98 : vector<16x224xf32>
    %100 = vector.extract_strided_slice %69 {offsets = [48, 0], sizes = [16, 224], strides = [1, 1]} : vector<224x224xf32> to vector<16x224xf32>
    %101 = arith.addf %99, %100 : vector<16x224xf32>
    %cst_16 = arith.constant 0.000000e+00 : f32
    %102 = vector.broadcast %cst_16 : f32 to vector<16x224xf32>
    %103 = arith.maximumf %101, %102 : vector<16x224xf32>
    %104 = vector.extract_strided_slice %61 {offsets = [48, 0], sizes = [16, 224], strides = [1, 1]} : vector<208x224xf32> to vector<16x224xf32>
    %105 = vector.broadcast %57 : vector<1x224xf32> to vector<16x224xf32>
    %106 = arith.addf %105, %104 : vector<16x224xf32>
    %107 = vector.extract_strided_slice %65 {offsets = [64, 0], sizes = [16, 224], strides = [1, 1]} : vector<224x224xf32> to vector<16x224xf32>
    %108 = arith.addf %106, %107 : vector<16x224xf32>
    %109 = vector.extract_strided_slice %69 {offsets = [64, 0], sizes = [16, 224], strides = [1, 1]} : vector<224x224xf32> to vector<16x224xf32>
    %110 = arith.addf %108, %109 : vector<16x224xf32>
    %cst_17 = arith.constant 0.000000e+00 : f32
    %111 = vector.broadcast %cst_17 : f32 to vector<16x224xf32>
    %112 = arith.maximumf %110, %111 : vector<16x224xf32>
    %113 = vector.extract_strided_slice %61 {offsets = [64, 0], sizes = [16, 224], strides = [1, 1]} : vector<208x224xf32> to vector<16x224xf32>
    %114 = vector.broadcast %57 : vector<1x224xf32> to vector<16x224xf32>
    %115 = arith.addf %114, %113 : vector<16x224xf32>
    %116 = vector.extract_strided_slice %65 {offsets = [80, 0], sizes = [16, 224], strides = [1, 1]} : vector<224x224xf32> to vector<16x224xf32>
    %117 = arith.addf %115, %116 : vector<16x224xf32>
    %118 = vector.extract_strided_slice %69 {offsets = [80, 0], sizes = [16, 224], strides = [1, 1]} : vector<224x224xf32> to vector<16x224xf32>
    %119 = arith.addf %117, %118 : vector<16x224xf32>
    %cst_18 = arith.constant 0.000000e+00 : f32
    %120 = vector.broadcast %cst_18 : f32 to vector<16x224xf32>
    %121 = arith.maximumf %119, %120 : vector<16x224xf32>
    %122 = vector.extract_strided_slice %61 {offsets = [80, 0], sizes = [16, 224], strides = [1, 1]} : vector<208x224xf32> to vector<16x224xf32>
    %123 = vector.broadcast %57 : vector<1x224xf32> to vector<16x224xf32>
    %124 = arith.addf %123, %122 : vector<16x224xf32>
    %125 = vector.extract_strided_slice %65 {offsets = [96, 0], sizes = [16, 224], strides = [1, 1]} : vector<224x224xf32> to vector<16x224xf32>
    %126 = arith.addf %124, %125 : vector<16x224xf32>
    %127 = vector.extract_strided_slice %69 {offsets = [96, 0], sizes = [16, 224], strides = [1, 1]} : vector<224x224xf32> to vector<16x224xf32>
    %128 = arith.addf %126, %127 : vector<16x224xf32>
    %cst_19 = arith.constant 0.000000e+00 : f32
    %129 = vector.broadcast %cst_19 : f32 to vector<16x224xf32>
    %130 = arith.maximumf %128, %129 : vector<16x224xf32>
    %131 = vector.extract_strided_slice %61 {offsets = [96, 0], sizes = [16, 224], strides = [1, 1]} : vector<208x224xf32> to vector<16x224xf32>
    %132 = vector.broadcast %57 : vector<1x224xf32> to vector<16x224xf32>
    %133 = arith.addf %132, %131 : vector<16x224xf32>
    %134 = vector.extract_strided_slice %65 {offsets = [112, 0], sizes = [16, 224], strides = [1, 1]} : vector<224x224xf32> to vector<16x224xf32>
    %135 = arith.addf %133, %134 : vector<16x224xf32>
    %136 = vector.extract_strided_slice %69 {offsets = [112, 0], sizes = [16, 224], strides = [1, 1]} : vector<224x224xf32> to vector<16x224xf32>
    %137 = arith.addf %135, %136 : vector<16x224xf32>
    %cst_20 = arith.constant 0.000000e+00 : f32
    %138 = vector.broadcast %cst_20 : f32 to vector<16x224xf32>
    %139 = arith.maximumf %137, %138 : vector<16x224xf32>
    %140 = vector.extract_strided_slice %61 {offsets = [112, 0], sizes = [16, 224], strides = [1, 1]} : vector<208x224xf32> to vector<16x224xf32>
    %141 = vector.broadcast %57 : vector<1x224xf32> to vector<16x224xf32>
    %142 = arith.addf %141, %140 : vector<16x224xf32>
    %143 = vector.extract_strided_slice %65 {offsets = [128, 0], sizes = [16, 224], strides = [1, 1]} : vector<224x224xf32> to vector<16x224xf32>
    %144 = arith.addf %142, %143 : vector<16x224xf32>
    %145 = vector.extract_strided_slice %69 {offsets = [128, 0], sizes = [16, 224], strides = [1, 1]} : vector<224x224xf32> to vector<16x224xf32>
    %146 = arith.addf %144, %145 : vector<16x224xf32>
    %cst_21 = arith.constant 0.000000e+00 : f32
    %147 = vector.broadcast %cst_21 : f32 to vector<16x224xf32>
    %148 = arith.maximumf %146, %147 : vector<16x224xf32>
    %149 = vector.extract_strided_slice %61 {offsets = [128, 0], sizes = [16, 224], strides = [1, 1]} : vector<208x224xf32> to vector<16x224xf32>
    %150 = vector.broadcast %57 : vector<1x224xf32> to vector<16x224xf32>
    %151 = arith.addf %150, %149 : vector<16x224xf32>
    %152 = vector.extract_strided_slice %65 {offsets = [144, 0], sizes = [16, 224], strides = [1, 1]} : vector<224x224xf32> to vector<16x224xf32>
    %153 = arith.addf %151, %152 : vector<16x224xf32>
    %154 = vector.extract_strided_slice %69 {offsets = [144, 0], sizes = [16, 224], strides = [1, 1]} : vector<224x224xf32> to vector<16x224xf32>
    %155 = arith.addf %153, %154 : vector<16x224xf32>
    %cst_22 = arith.constant 0.000000e+00 : f32
    %156 = vector.broadcast %cst_22 : f32 to vector<16x224xf32>
    %157 = arith.maximumf %155, %156 : vector<16x224xf32>
    %158 = vector.extract_strided_slice %61 {offsets = [144, 0], sizes = [16, 224], strides = [1, 1]} : vector<208x224xf32> to vector<16x224xf32>
    %159 = vector.broadcast %57 : vector<1x224xf32> to vector<16x224xf32>
    %160 = arith.addf %159, %158 : vector<16x224xf32>
    %161 = vector.extract_strided_slice %65 {offsets = [160, 0], sizes = [16, 224], strides = [1, 1]} : vector<224x224xf32> to vector<16x224xf32>
    %162 = arith.addf %160, %161 : vector<16x224xf32>
    %163 = vector.extract_strided_slice %69 {offsets = [160, 0], sizes = [16, 224], strides = [1, 1]} : vector<224x224xf32> to vector<16x224xf32>
    %164 = arith.addf %162, %163 : vector<16x224xf32>
    %cst_23 = arith.constant 0.000000e+00 : f32
    %165 = vector.broadcast %cst_23 : f32 to vector<16x224xf32>
    %166 = arith.maximumf %164, %165 : vector<16x224xf32>
    %167 = vector.extract_strided_slice %61 {offsets = [160, 0], sizes = [16, 224], strides = [1, 1]} : vector<208x224xf32> to vector<16x224xf32>
    %168 = vector.broadcast %57 : vector<1x224xf32> to vector<16x224xf32>
    %169 = arith.addf %168, %167 : vector<16x224xf32>
    %170 = vector.extract_strided_slice %65 {offsets = [176, 0], sizes = [16, 224], strides = [1, 1]} : vector<224x224xf32> to vector<16x224xf32>
    %171 = arith.addf %169, %170 : vector<16x224xf32>
    %172 = vector.extract_strided_slice %69 {offsets = [176, 0], sizes = [16, 224], strides = [1, 1]} : vector<224x224xf32> to vector<16x224xf32>
    %173 = arith.addf %171, %172 : vector<16x224xf32>
    %cst_24 = arith.constant 0.000000e+00 : f32
    %174 = vector.broadcast %cst_24 : f32 to vector<16x224xf32>
    %175 = arith.maximumf %173, %174 : vector<16x224xf32>
    %176 = vector.extract_strided_slice %61 {offsets = [176, 0], sizes = [16, 224], strides = [1, 1]} : vector<208x224xf32> to vector<16x224xf32>
    %177 = vector.broadcast %57 : vector<1x224xf32> to vector<16x224xf32>
    %178 = arith.addf %177, %176 : vector<16x224xf32>
    %179 = vector.extract_strided_slice %65 {offsets = [192, 0], sizes = [16, 224], strides = [1, 1]} : vector<224x224xf32> to vector<16x224xf32>
    %180 = arith.addf %178, %179 : vector<16x224xf32>
    %181 = vector.extract_strided_slice %69 {offsets = [192, 0], sizes = [16, 224], strides = [1, 1]} : vector<224x224xf32> to vector<16x224xf32>
    %182 = arith.addf %180, %181 : vector<16x224xf32>
    %cst_25 = arith.constant 0.000000e+00 : f32
    %183 = vector.broadcast %cst_25 : f32 to vector<16x224xf32>
    %184 = arith.maximumf %182, %183 : vector<16x224xf32>
    %185 = vector.extract_strided_slice %61 {offsets = [192, 0], sizes = [16, 224], strides = [1, 1]} : vector<208x224xf32> to vector<16x224xf32>
    %186 = vector.broadcast %57 : vector<1x224xf32> to vector<16x224xf32>
    %187 = arith.addf %186, %185 : vector<16x224xf32>
    %188 = vector.extract_strided_slice %65 {offsets = [208, 0], sizes = [16, 224], strides = [1, 1]} : vector<224x224xf32> to vector<16x224xf32>
    %189 = arith.addf %187, %188 : vector<16x224xf32>
    %190 = vector.extract_strided_slice %69 {offsets = [208, 0], sizes = [16, 224], strides = [1, 1]} : vector<224x224xf32> to vector<16x224xf32>
    %191 = arith.addf %189, %190 : vector<16x224xf32>
    %cst_26 = arith.constant 0.000000e+00 : f32
    %192 = vector.broadcast %cst_26 : f32 to vector<16x224xf32>
    %193 = arith.maximumf %191, %192 : vector<16x224xf32>
    %c0_27 = arith.constant 0 : index
    %c0_28 = arith.constant 0 : index
    %194 = vector.load %arg5[%c0_27, %c0_28] : memref<1x224xf32, #tpu.memory_space<vmem>>, vector<1x224xf32>
    %195 = tpu.concatenate %85, %103, %121, %139, %157, %175 in 0 : vector<16x224xf32>, vector<16x224xf32>, vector<16x224xf32>, vector<16x224xf32>, vector<16x224xf32>, vector<16x224xf32> -> vector<96x224xf32>
    %c0_29 = arith.constant 0 : index
    %c0_30 = arith.constant 0 : index
    %c0_31 = arith.constant 0 : index
    %196 = vector.load %arg4[%c0_29, %c0_30, %c0_31] : memref<3x224x224xf32, #tpu.memory_space<vmem>>, vector<1x224x224xf32>
    %197 = vector.shape_cast %196 : vector<1x224x224xf32> to vector<224x224xf32>
    %cst_32 = arith.constant dense<0.000000e+00> : vector<96x224xf32>
    %198 = tpu.matmul %195, %197, %cst_32 {dimension_numbers = #tpu.dot_dimension_numbers<[1], [0], [0], [1], [0, 0, 1, 1], [], []>} : vector<96x224xf32>, vector<224x224xf32>, vector<96x224xf32> -> vector<96x224xf32>
    %199 = tpu.concatenate %76, %94, %112, %130, %148, %166, %184 in 0 : vector<16x224xf32>, vector<16x224xf32>, vector<16x224xf32>, vector<16x224xf32>, vector<16x224xf32>, vector<16x224xf32>, vector<16x224xf32> -> vector<112x224xf32>
    %c1_33 = arith.constant 1 : index
    %c0_34 = arith.constant 0 : index
    %c0_35 = arith.constant 0 : index
    %200 = vector.load %arg4[%c1_33, %c0_34, %c0_35] : memref<3x224x224xf32, #tpu.memory_space<vmem>>, vector<1x224x224xf32>
    %201 = vector.shape_cast %200 : vector<1x224x224xf32> to vector<224x224xf32>
    %cst_36 = arith.constant dense<0.000000e+00> : vector<112x224xf32>
    %202 = tpu.matmul %199, %201, %cst_36 {dimension_numbers = #tpu.dot_dimension_numbers<[1], [0], [0], [1], [0, 0, 1, 1], [], []>} : vector<112x224xf32>, vector<224x224xf32>, vector<112x224xf32> -> vector<112x224xf32>
    %203 = tpu.concatenate %85, %103, %121, %139, %157, %175, %193 in 0 : vector<16x224xf32>, vector<16x224xf32>, vector<16x224xf32>, vector<16x224xf32>, vector<16x224xf32>, vector<16x224xf32>, vector<16x224xf32> -> vector<112x224xf32>
    %c2_37 = arith.constant 2 : index
    %c0_38 = arith.constant 0 : index
    %c0_39 = arith.constant 0 : index
    %204 = vector.load %arg4[%c2_37, %c0_38, %c0_39] : memref<3x224x224xf32, #tpu.memory_space<vmem>>, vector<1x224x224xf32>
    %205 = vector.shape_cast %204 : vector<1x224x224xf32> to vector<224x224xf32>
    %cst_40 = arith.constant dense<0.000000e+00> : vector<112x224xf32>
    %206 = tpu.matmul %203, %205, %cst_40 {dimension_numbers = #tpu.dot_dimension_numbers<[1], [0], [0], [1], [0, 0, 1, 1], [], []>} : vector<112x224xf32>, vector<224x224xf32>, vector<112x224xf32> -> vector<112x224xf32>
    %207 = vector.extract_strided_slice %202 {offsets = [0, 0], sizes = [16, 224], strides = [1, 1]} : vector<112x224xf32> to vector<16x224xf32>
    %208 = vector.broadcast %194 : vector<1x224xf32> to vector<16x224xf32>
    %209 = arith.addf %208, %207 : vector<16x224xf32>
    %210 = vector.extract_strided_slice %206 {offsets = [0, 0], sizes = [16, 224], strides = [1, 1]} : vector<112x224xf32> to vector<16x224xf32>
    %211 = arith.addf %209, %210 : vector<16x224xf32>
    %cst_41 = arith.constant 0.000000e+00 : f32
    %212 = vector.broadcast %cst_41 : f32 to vector<16x224xf32>
    %213 = arith.maximumf %211, %212 : vector<16x224xf32>
    %214 = vector.extract_strided_slice %198 {offsets = [0, 0], sizes = [16, 224], strides = [1, 1]} : vector<96x224xf32> to vector<16x224xf32>
    %215 = vector.broadcast %194 : vector<1x224xf32> to vector<16x224xf32>
    %216 = arith.addf %215, %214 : vector<16x224xf32>
    %217 = vector.extract_strided_slice %202 {offsets = [16, 0], sizes = [16, 224], strides = [1, 1]} : vector<112x224xf32> to vector<16x224xf32>
    %218 = arith.addf %216, %217 : vector<16x224xf32>
    %219 = vector.extract_strided_slice %206 {offsets = [16, 0], sizes = [16, 224], strides = [1, 1]} : vector<112x224xf32> to vector<16x224xf32>
    %220 = arith.addf %218, %219 : vector<16x224xf32>
    %cst_42 = arith.constant 0.000000e+00 : f32
    %221 = vector.broadcast %cst_42 : f32 to vector<16x224xf32>
    %222 = arith.maximumf %220, %221 : vector<16x224xf32>
    %223 = vector.extract_strided_slice %198 {offsets = [16, 0], sizes = [16, 224], strides = [1, 1]} : vector<96x224xf32> to vector<16x224xf32>
    %224 = vector.broadcast %194 : vector<1x224xf32> to vector<16x224xf32>
    %225 = arith.addf %224, %223 : vector<16x224xf32>
    %226 = vector.extract_strided_slice %202 {offsets = [32, 0], sizes = [16, 224], strides = [1, 1]} : vector<112x224xf32> to vector<16x224xf32>
    %227 = arith.addf %225, %226 : vector<16x224xf32>
    %228 = vector.extract_strided_slice %206 {offsets = [32, 0], sizes = [16, 224], strides = [1, 1]} : vector<112x224xf32> to vector<16x224xf32>
    %229 = arith.addf %227, %228 : vector<16x224xf32>
    %cst_43 = arith.constant 0.000000e+00 : f32
    %230 = vector.broadcast %cst_43 : f32 to vector<16x224xf32>
    %231 = arith.maximumf %229, %230 : vector<16x224xf32>
    %232 = vector.extract_strided_slice %198 {offsets = [32, 0], sizes = [16, 224], strides = [1, 1]} : vector<96x224xf32> to vector<16x224xf32>
    %233 = vector.broadcast %194 : vector<1x224xf32> to vector<16x224xf32>
    %234 = arith.addf %233, %232 : vector<16x224xf32>
    %235 = vector.extract_strided_slice %202 {offsets = [48, 0], sizes = [16, 224], strides = [1, 1]} : vector<112x224xf32> to vector<16x224xf32>
    %236 = arith.addf %234, %235 : vector<16x224xf32>
    %237 = vector.extract_strided_slice %206 {offsets = [48, 0], sizes = [16, 224], strides = [1, 1]} : vector<112x224xf32> to vector<16x224xf32>
    %238 = arith.addf %236, %237 : vector<16x224xf32>
    %cst_44 = arith.constant 0.000000e+00 : f32
    %239 = vector.broadcast %cst_44 : f32 to vector<16x224xf32>
    %240 = arith.maximumf %238, %239 : vector<16x224xf32>
    %241 = vector.extract_strided_slice %198 {offsets = [48, 0], sizes = [16, 224], strides = [1, 1]} : vector<96x224xf32> to vector<16x224xf32>
    %242 = vector.broadcast %194 : vector<1x224xf32> to vector<16x224xf32>
    %243 = arith.addf %242, %241 : vector<16x224xf32>
    %244 = vector.extract_strided_slice %202 {offsets = [64, 0], sizes = [16, 224], strides = [1, 1]} : vector<112x224xf32> to vector<16x224xf32>
    %245 = arith.addf %243, %244 : vector<16x224xf32>
    %246 = vector.extract_strided_slice %206 {offsets = [64, 0], sizes = [16, 224], strides = [1, 1]} : vector<112x224xf32> to vector<16x224xf32>
    %247 = arith.addf %245, %246 : vector<16x224xf32>
    %cst_45 = arith.constant 0.000000e+00 : f32
    %248 = vector.broadcast %cst_45 : f32 to vector<16x224xf32>
    %249 = arith.maximumf %247, %248 : vector<16x224xf32>
    %250 = vector.extract_strided_slice %198 {offsets = [64, 0], sizes = [16, 224], strides = [1, 1]} : vector<96x224xf32> to vector<16x224xf32>
    %251 = vector.broadcast %194 : vector<1x224xf32> to vector<16x224xf32>
    %252 = arith.addf %251, %250 : vector<16x224xf32>
    %253 = vector.extract_strided_slice %202 {offsets = [80, 0], sizes = [16, 224], strides = [1, 1]} : vector<112x224xf32> to vector<16x224xf32>
    %254 = arith.addf %252, %253 : vector<16x224xf32>
    %255 = vector.extract_strided_slice %206 {offsets = [80, 0], sizes = [16, 224], strides = [1, 1]} : vector<112x224xf32> to vector<16x224xf32>
    %256 = arith.addf %254, %255 : vector<16x224xf32>
    %cst_46 = arith.constant 0.000000e+00 : f32
    %257 = vector.broadcast %cst_46 : f32 to vector<16x224xf32>
    %258 = arith.maximumf %256, %257 : vector<16x224xf32>
    %259 = vector.extract_strided_slice %198 {offsets = [80, 0], sizes = [16, 224], strides = [1, 1]} : vector<96x224xf32> to vector<16x224xf32>
    %260 = vector.broadcast %194 : vector<1x224xf32> to vector<16x224xf32>
    %261 = arith.addf %260, %259 : vector<16x224xf32>
    %262 = vector.extract_strided_slice %202 {offsets = [96, 0], sizes = [16, 224], strides = [1, 1]} : vector<112x224xf32> to vector<16x224xf32>
    %263 = arith.addf %261, %262 : vector<16x224xf32>
    %264 = vector.extract_strided_slice %206 {offsets = [96, 0], sizes = [16, 224], strides = [1, 1]} : vector<112x224xf32> to vector<16x224xf32>
    %265 = arith.addf %263, %264 : vector<16x224xf32>
    %cst_47 = arith.constant 0.000000e+00 : f32
    %266 = vector.broadcast %cst_47 : f32 to vector<16x224xf32>
    %267 = arith.maximumf %265, %266 : vector<16x224xf32>
    %c0_48 = arith.constant 0 : index
    %c0_49 = arith.constant 0 : index
    %268 = vector.load %arg7[%c0_48, %c0_49] : memref<1x192xf32, #tpu.memory_space<vmem>>, vector<1x192xf32>
    %269 = tpu.concatenate %213, %231, %249 in 0 : vector<16x224xf32>, vector<16x224xf32>, vector<16x224xf32> -> vector<48x224xf32>
    %c0_50 = arith.constant 0 : index
    %c0_51 = arith.constant 0 : index
    %c0_52 = arith.constant 0 : index
    %270 = vector.load %arg6[%c0_50, %c0_51, %c0_52] : memref<3x224x192xf32, #tpu.memory_space<vmem>>, vector<1x224x192xf32>
    %271 = vector.shape_cast %270 : vector<1x224x192xf32> to vector<224x192xf32>
    %cst_53 = arith.constant dense<0.000000e+00> : vector<48x192xf32>
    %272 = tpu.matmul %269, %271, %cst_53 {dimension_numbers = #tpu.dot_dimension_numbers<[1], [0], [0], [1], [0, 0, 1, 1], [], []>} : vector<48x224xf32>, vector<224x192xf32>, vector<48x192xf32> -> vector<48x192xf32>
    %273 = tpu.concatenate %222, %240, %258 in 0 : vector<16x224xf32>, vector<16x224xf32>, vector<16x224xf32> -> vector<48x224xf32>
    %c1_54 = arith.constant 1 : index
    %c0_55 = arith.constant 0 : index
    %c0_56 = arith.constant 0 : index
    %274 = vector.load %arg6[%c1_54, %c0_55, %c0_56] : memref<3x224x192xf32, #tpu.memory_space<vmem>>, vector<1x224x192xf32>
    %275 = vector.shape_cast %274 : vector<1x224x192xf32> to vector<224x192xf32>
    %cst_57 = arith.constant dense<0.000000e+00> : vector<48x192xf32>
    %276 = tpu.matmul %273, %275, %cst_57 {dimension_numbers = #tpu.dot_dimension_numbers<[1], [0], [0], [1], [0, 0, 1, 1], [], []>} : vector<48x224xf32>, vector<224x192xf32>, vector<48x192xf32> -> vector<48x192xf32>
    %277 = tpu.concatenate %231, %249, %267 in 0 : vector<16x224xf32>, vector<16x224xf32>, vector<16x224xf32> -> vector<48x224xf32>
    %c2_58 = arith.constant 2 : index
    %c0_59 = arith.constant 0 : index
    %c0_60 = arith.constant 0 : index
    %278 = vector.load %arg6[%c2_58, %c0_59, %c0_60] : memref<3x224x192xf32, #tpu.memory_space<vmem>>, vector<1x224x192xf32>
    %279 = vector.shape_cast %278 : vector<1x224x192xf32> to vector<224x192xf32>
    %cst_61 = arith.constant dense<0.000000e+00> : vector<48x192xf32>
    %280 = tpu.matmul %277, %279, %cst_61 {dimension_numbers = #tpu.dot_dimension_numbers<[1], [0], [0], [1], [0, 0, 1, 1], [], []>} : vector<48x224xf32>, vector<224x192xf32>, vector<48x192xf32> -> vector<48x192xf32>
    %281 = vector.extract_strided_slice %272 {offsets = [0, 0], sizes = [16, 192], strides = [1, 1]} : vector<48x192xf32> to vector<16x192xf32>
    %282 = vector.broadcast %268 : vector<1x192xf32> to vector<16x192xf32>
    %283 = arith.addf %282, %281 : vector<16x192xf32>
    %284 = vector.extract_strided_slice %276 {offsets = [0, 0], sizes = [16, 192], strides = [1, 1]} : vector<48x192xf32> to vector<16x192xf32>
    %285 = arith.addf %283, %284 : vector<16x192xf32>
    %286 = vector.extract_strided_slice %280 {offsets = [0, 0], sizes = [16, 192], strides = [1, 1]} : vector<48x192xf32> to vector<16x192xf32>
    %287 = arith.addf %285, %286 : vector<16x192xf32>
    %cst_62 = arith.constant 0.000000e+00 : f32
    %288 = vector.broadcast %cst_62 : f32 to vector<16x192xf32>
    %289 = arith.maximumf %287, %288 : vector<16x192xf32>
    %290 = vector.extract_strided_slice %272 {offsets = [16, 0], sizes = [16, 192], strides = [1, 1]} : vector<48x192xf32> to vector<16x192xf32>
    %291 = vector.broadcast %268 : vector<1x192xf32> to vector<16x192xf32>
    %292 = arith.addf %291, %290 : vector<16x192xf32>
    %293 = vector.extract_strided_slice %276 {offsets = [16, 0], sizes = [16, 192], strides = [1, 1]} : vector<48x192xf32> to vector<16x192xf32>
    %294 = arith.addf %292, %293 : vector<16x192xf32>
    %295 = vector.extract_strided_slice %280 {offsets = [16, 0], sizes = [16, 192], strides = [1, 1]} : vector<48x192xf32> to vector<16x192xf32>
    %296 = arith.addf %294, %295 : vector<16x192xf32>
    %cst_63 = arith.constant 0.000000e+00 : f32
    %297 = vector.broadcast %cst_63 : f32 to vector<16x192xf32>
    %298 = arith.maximumf %296, %297 : vector<16x192xf32>
    %299 = vector.extract_strided_slice %272 {offsets = [32, 0], sizes = [16, 192], strides = [1, 1]} : vector<48x192xf32> to vector<16x192xf32>
    %300 = vector.broadcast %268 : vector<1x192xf32> to vector<16x192xf32>
    %301 = arith.addf %300, %299 : vector<16x192xf32>
    %302 = vector.extract_strided_slice %276 {offsets = [32, 0], sizes = [16, 192], strides = [1, 1]} : vector<48x192xf32> to vector<16x192xf32>
    %303 = arith.addf %301, %302 : vector<16x192xf32>
    %304 = vector.extract_strided_slice %280 {offsets = [32, 0], sizes = [16, 192], strides = [1, 1]} : vector<48x192xf32> to vector<16x192xf32>
    %305 = arith.addf %303, %304 : vector<16x192xf32>
    %cst_64 = arith.constant 0.000000e+00 : f32
    %306 = vector.broadcast %cst_64 : f32 to vector<16x192xf32>
    %307 = arith.maximumf %305, %306 : vector<16x192xf32>
    %c0_65 = arith.constant 0 : index
    %c0_66 = arith.constant 0 : index
    %308 = vector.load %arg9[%c0_65, %c0_66] : memref<1x64xf32, #tpu.memory_space<vmem>>, vector<1x64xf32>
    %c0_67 = arith.constant 0 : index
    %c0_68 = arith.constant 0 : index
    %c0_69 = arith.constant 0 : index
    %309 = vector.load %arg8[%c0_67, %c0_68, %c0_69] : memref<3x192x64xf32, #tpu.memory_space<vmem>>, vector<1x192x64xf32>
    %310 = vector.shape_cast %309 : vector<1x192x64xf32> to vector<192x64xf32>
    %cst_70 = arith.constant dense<0.000000e+00> : vector<16x64xf32>
    %311 = tpu.matmul %289, %310, %cst_70 {dimension_numbers = #tpu.dot_dimension_numbers<[1], [0], [0], [1], [0, 0, 1, 1], [], []>} : vector<16x192xf32>, vector<192x64xf32>, vector<16x64xf32> -> vector<16x64xf32>
    %312 = vector.broadcast %308 : vector<1x64xf32> to vector<16x64xf32>
    %313 = arith.addf %312, %311 : vector<16x64xf32>
    %c1_71 = arith.constant 1 : index
    %c0_72 = arith.constant 0 : index
    %c0_73 = arith.constant 0 : index
    %314 = vector.load %arg8[%c1_71, %c0_72, %c0_73] : memref<3x192x64xf32, #tpu.memory_space<vmem>>, vector<1x192x64xf32>
    %315 = vector.shape_cast %314 : vector<1x192x64xf32> to vector<192x64xf32>
    %cst_74 = arith.constant dense<0.000000e+00> : vector<16x64xf32>
    %316 = tpu.matmul %298, %315, %cst_74 {dimension_numbers = #tpu.dot_dimension_numbers<[1], [0], [0], [1], [0, 0, 1, 1], [], []>} : vector<16x192xf32>, vector<192x64xf32>, vector<16x64xf32> -> vector<16x64xf32>
    %317 = arith.addf %313, %316 : vector<16x64xf32>
    %c2_75 = arith.constant 2 : index
    %c0_76 = arith.constant 0 : index
    %c0_77 = arith.constant 0 : index
    %318 = vector.load %arg8[%c2_75, %c0_76, %c0_77] : memref<3x192x64xf32, #tpu.memory_space<vmem>>, vector<1x192x64xf32>
    %319 = vector.shape_cast %318 : vector<1x192x64xf32> to vector<192x64xf32>
    %cst_78 = arith.constant dense<0.000000e+00> : vector<16x64xf32>
    %320 = tpu.matmul %307, %319, %cst_78 {dimension_numbers = #tpu.dot_dimension_numbers<[1], [0], [0], [1], [0, 0, 1, 1], [], []>} : vector<16x192xf32>, vector<192x64xf32>, vector<16x64xf32> -> vector<16x64xf32>
    %321 = arith.addf %317, %320 : vector<16x64xf32>
    %c0_79 = arith.constant 0 : index
    %c0_80 = arith.constant 0 : index
    %322 = vector.load %arg19[%c0_79, %c0_80] : memref<16x64xf32, #tpu.memory_space<vmem>>, vector<16x64xf32>
    tpu.vector_store %arg19[%c0_79, %c0_80], %321 {strides = array<i32>} : memref<16x64xf32, #tpu.memory_space<vmem>>, vector<16x64xf32>,
    %c0_81 = arith.constant 0 : index
    %c0_82 = arith.constant 0 : index
    %c0_83 = arith.constant 0 : index
    %323 = vector.load %arg10[%c0_81, %c0_82, %c0_83] : memref<3x64x192xf32, #tpu.memory_space<vmem>>, vector<1x64x192xf32>
    %324 = vector.shape_cast %323 : vector<1x64x192xf32> to vector<64x192xf32>
    %cst_84 = arith.constant dense<0.000000e+00> : vector<16x192xf32>
    %325 = tpu.matmul %321, %324, %cst_84 {dimension_numbers = #tpu.dot_dimension_numbers<[1], [0], [0], [1], [0, 0, 1, 1], [], []>} : vector<16x64xf32>, vector<64x192xf32>, vector<16x192xf32> -> vector<16x192xf32>
    %c0_85 = arith.constant 0 : index
    %c0_86 = arith.constant 0 : index
    %c0_87 = arith.constant 0 : index
    %326 = vector.load %arg11[%c0_85, %c0_86, %c0_87] : memref<3x1x192xf32, #tpu.memory_space<vmem>>, vector<1x1x192xf32>
    %327 = vector.shape_cast %326 : vector<1x1x192xf32> to vector<1x192xf32>
    %328 = vector.broadcast %327 : vector<1x192xf32> to vector<16x192xf32>
    %329 = arith.addf %325, %328 : vector<16x192xf32>
    %c1_88 = arith.constant 1 : index
    %c0_89 = arith.constant 0 : index
    %c0_90 = arith.constant 0 : index
    %330 = vector.load %arg10[%c1_88, %c0_89, %c0_90] : memref<3x64x192xf32, #tpu.memory_space<vmem>>, vector<1x64x192xf32>
    %331 = vector.shape_cast %330 : vector<1x64x192xf32> to vector<64x192xf32>
    %cst_91 = arith.constant dense<0.000000e+00> : vector<16x192xf32>
    %332 = tpu.matmul %321, %331, %cst_91 {dimension_numbers = #tpu.dot_dimension_numbers<[1], [0], [0], [1], [0, 0, 1, 1], [], []>} : vector<16x64xf32>, vector<64x192xf32>, vector<16x192xf32> -> vector<16x192xf32>
    %c1_92 = arith.constant 1 : index
    %c0_93 = arith.constant 0 : index
    %c0_94 = arith.constant 0 : index
    %333 = vector.load %arg11[%c1_92, %c0_93, %c0_94] : memref<3x1x192xf32, #tpu.memory_space<vmem>>, vector<1x1x192xf32>
    %334 = vector.shape_cast %333 : vector<1x1x192xf32> to vector<1x192xf32>
    %335 = vector.broadcast %334 : vector<1x192xf32> to vector<16x192xf32>
    %336 = arith.addf %332, %335 : vector<16x192xf32>
    %c2_95 = arith.constant 2 : index
    %c0_96 = arith.constant 0 : index
    %c0_97 = arith.constant 0 : index
    %337 = vector.load %arg10[%c2_95, %c0_96, %c0_97] : memref<3x64x192xf32, #tpu.memory_space<vmem>>, vector<1x64x192xf32>
    %338 = vector.shape_cast %337 : vector<1x64x192xf32> to vector<64x192xf32>
    %cst_98 = arith.constant dense<0.000000e+00> : vector<16x192xf32>
    %339 = tpu.matmul %321, %338, %cst_98 {dimension_numbers = #tpu.dot_dimension_numbers<[1], [0], [0], [1], [0, 0, 1, 1], [], []>} : vector<16x64xf32>, vector<64x192xf32>, vector<16x192xf32> -> vector<16x192xf32>
    %c2_99 = arith.constant 2 : index
    %c0_100 = arith.constant 0 : index
    %c0_101 = arith.constant 0 : index
    %340 = vector.load %arg11[%c2_99, %c0_100, %c0_101] : memref<3x1x192xf32, #tpu.memory_space<vmem>>, vector<1x1x192xf32>
    %341 = vector.shape_cast %340 : vector<1x1x192xf32> to vector<1x192xf32>
    %342 = vector.broadcast %341 : vector<1x192xf32> to vector<16x192xf32>
    %343 = arith.addf %339, %342 : vector<16x192xf32>
    %c0_102 = arith.constant 0 : index
    %c0_103 = arith.constant 0 : index
    %344 = vector.load %arg13[%c0_102, %c0_103] : memref<1x224xf32, #tpu.memory_space<vmem>>, vector<1x224xf32>
    %345 = tpu.concatenate %329, %336, %343 in 0 : vector<16x192xf32>, vector<16x192xf32>, vector<16x192xf32> -> vector<48x192xf32>
    %c0_104 = arith.constant 0 : index
    %c0_105 = arith.constant 0 : index
    %c0_106 = arith.constant 0 : index
    %346 = vector.load %arg12[%c0_104, %c0_105, %c0_106] : memref<3x192x224xf32, #tpu.memory_space<vmem>>, vector<1x192x224xf32>
    %347 = vector.shape_cast %346 : vector<1x192x224xf32> to vector<192x224xf32>
    %cst_107 = arith.constant dense<0.000000e+00> : vector<48x224xf32>
    %348 = tpu.matmul %345, %347, %cst_107 {dimension_numbers = #tpu.dot_dimension_numbers<[1], [0], [0], [1], [0, 0, 1, 1], [], []>} : vector<48x192xf32>, vector<192x224xf32>, vector<48x224xf32> -> vector<48x224xf32>
    %c1_108 = arith.constant 1 : index
    %c0_109 = arith.constant 0 : index
    %c0_110 = arith.constant 0 : index
    %349 = vector.load %arg12[%c1_108, %c0_109, %c0_110] : memref<3x192x224xf32, #tpu.memory_space<vmem>>, vector<1x192x224xf32>
    %350 = vector.shape_cast %349 : vector<1x192x224xf32> to vector<192x224xf32>
    %cst_111 = arith.constant dense<0.000000e+00> : vector<48x224xf32>
    %351 = tpu.matmul %345, %350, %cst_111 {dimension_numbers = #tpu.dot_dimension_numbers<[1], [0], [0], [1], [0, 0, 1, 1], [], []>} : vector<48x192xf32>, vector<192x224xf32>, vector<48x224xf32> -> vector<48x224xf32>
    %c2_112 = arith.constant 2 : index
    %c0_113 = arith.constant 0 : index
    %c0_114 = arith.constant 0 : index
    %352 = vector.load %arg12[%c2_112, %c0_113, %c0_114] : memref<3x192x224xf32, #tpu.memory_space<vmem>>, vector<1x192x224xf32>
    %353 = vector.shape_cast %352 : vector<1x192x224xf32> to vector<192x224xf32>
    %cst_115 = arith.constant dense<0.000000e+00> : vector<48x224xf32>
    %354 = tpu.matmul %345, %353, %cst_115 {dimension_numbers = #tpu.dot_dimension_numbers<[1], [0], [0], [1], [0, 0, 1, 1], [], []>} : vector<48x192xf32>, vector<192x224xf32>, vector<48x224xf32> -> vector<48x224xf32>
    %355 = vector.extract_strided_slice %354 {offsets = [0, 0], sizes = [16, 224], strides = [1, 1]} : vector<48x224xf32> to vector<16x224xf32>
    %356 = vector.broadcast %344 : vector<1x224xf32> to vector<16x224xf32>
    %357 = arith.addf %356, %355 : vector<16x224xf32>
    %cst_116 = arith.constant 0.000000e+00 : f32
    %358 = vector.broadcast %cst_116 : f32 to vector<16x224xf32>
    %359 = arith.maximumf %357, %358 : vector<16x224xf32>
    %360 = vector.extract_strided_slice %351 {offsets = [0, 0], sizes = [16, 224], strides = [1, 1]} : vector<48x224xf32> to vector<16x224xf32>
    %361 = vector.broadcast %344 : vector<1x224xf32> to vector<16x224xf32>
    %362 = arith.addf %361, %360 : vector<16x224xf32>
    %cst_117 = arith.constant 0.000000e+00 : f32
    %363 = vector.broadcast %cst_117 : f32 to vector<16x224xf32>
    %364 = arith.maximumf %362, %363 : vector<16x224xf32>
    %365 = vector.extract_strided_slice %348 {offsets = [0, 0], sizes = [16, 224], strides = [1, 1]} : vector<48x224xf32> to vector<16x224xf32>
    %366 = vector.broadcast %344 : vector<1x224xf32> to vector<16x224xf32>
    %367 = arith.addf %366, %365 : vector<16x224xf32>
    %368 = vector.extract_strided_slice %354 {offsets = [16, 0], sizes = [16, 224], strides = [1, 1]} : vector<48x224xf32> to vector<16x224xf32>
    %369 = arith.addf %367, %368 : vector<16x224xf32>
    %cst_118 = arith.constant 0.000000e+00 : f32
    %370 = vector.broadcast %cst_118 : f32 to vector<16x224xf32>
    %371 = arith.maximumf %369, %370 : vector<16x224xf32>
    %372 = vector.extract_strided_slice %351 {offsets = [16, 0], sizes = [16, 224], strides = [1, 1]} : vector<48x224xf32> to vector<16x224xf32>
    %373 = vector.broadcast %344 : vector<1x224xf32> to vector<16x224xf32>
    %374 = arith.addf %373, %372 : vector<16x224xf32>
    %cst_119 = arith.constant 0.000000e+00 : f32
    %375 = vector.broadcast %cst_119 : f32 to vector<16x224xf32>
    %376 = arith.maximumf %374, %375 : vector<16x224xf32>
    %377 = vector.extract_strided_slice %348 {offsets = [16, 0], sizes = [16, 224], strides = [1, 1]} : vector<48x224xf32> to vector<16x224xf32>
    %378 = vector.broadcast %344 : vector<1x224xf32> to vector<16x224xf32>
    %379 = arith.addf %378, %377 : vector<16x224xf32>
    %380 = vector.extract_strided_slice %354 {offsets = [32, 0], sizes = [16, 224], strides = [1, 1]} : vector<48x224xf32> to vector<16x224xf32>
    %381 = arith.addf %379, %380 : vector<16x224xf32>
    %cst_120 = arith.constant 0.000000e+00 : f32
    %382 = vector.broadcast %cst_120 : f32 to vector<16x224xf32>
    %383 = arith.maximumf %381, %382 : vector<16x224xf32>
    %384 = vector.extract_strided_slice %351 {offsets = [32, 0], sizes = [16, 224], strides = [1, 1]} : vector<48x224xf32> to vector<16x224xf32>
    %385 = vector.broadcast %344 : vector<1x224xf32> to vector<16x224xf32>
    %386 = arith.addf %385, %384 : vector<16x224xf32>
    %cst_121 = arith.constant 0.000000e+00 : f32
    %387 = vector.broadcast %cst_121 : f32 to vector<16x224xf32>
    %388 = arith.maximumf %386, %387 : vector<16x224xf32>
    %389 = vector.extract_strided_slice %348 {offsets = [32, 0], sizes = [16, 224], strides = [1, 1]} : vector<48x224xf32> to vector<16x224xf32>
    %390 = vector.broadcast %344 : vector<1x224xf32> to vector<16x224xf32>
    %391 = arith.addf %390, %389 : vector<16x224xf32>
    %cst_122 = arith.constant 0.000000e+00 : f32
    %392 = vector.broadcast %cst_122 : f32 to vector<16x224xf32>
    %393 = arith.maximumf %391, %392 : vector<16x224xf32>
    %c0_123 = arith.constant 0 : index
    %c0_124 = arith.constant 0 : index
    %394 = vector.load %arg15[%c0_123, %c0_124] : memref<1x224xf32, #tpu.memory_space<vmem>>, vector<1x224xf32>
    %395 = tpu.concatenate %359, %364, %371, %376, %383, %388, %393 in 0 : vector<16x224xf32>, vector<16x224xf32>, vector<16x224xf32>, vector<16x224xf32>, vector<16x224xf32>, vector<16x224xf32>, vector<16x224xf32> -> vector<112x224xf32>
    %c0_125 = arith.constant 0 : index
    %c0_126 = arith.constant 0 : index
    %c0_127 = arith.constant 0 : index
    %396 = vector.load %arg14[%c0_125, %c0_126, %c0_127] : memref<3x224x224xf32, #tpu.memory_space<vmem>>, vector<1x224x224xf32>
    %397 = vector.shape_cast %396 : vector<1x224x224xf32> to vector<224x224xf32>
    %cst_128 = arith.constant dense<0.000000e+00> : vector<112x224xf32>
    %398 = tpu.matmul %395, %397, %cst_128 {dimension_numbers = #tpu.dot_dimension_numbers<[1], [0], [0], [1], [0, 0, 1, 1], [], []>} : vector<112x224xf32>, vector<224x224xf32>, vector<112x224xf32> -> vector<112x224xf32>
    %c1_129 = arith.constant 1 : index
    %c0_130 = arith.constant 0 : index
    %c0_131 = arith.constant 0 : index
    %399 = vector.load %arg14[%c1_129, %c0_130, %c0_131] : memref<3x224x224xf32, #tpu.memory_space<vmem>>, vector<1x224x224xf32>
    %400 = vector.shape_cast %399 : vector<1x224x224xf32> to vector<224x224xf32>
    %cst_132 = arith.constant dense<0.000000e+00> : vector<112x224xf32>
    %401 = tpu.matmul %395, %400, %cst_132 {dimension_numbers = #tpu.dot_dimension_numbers<[1], [0], [0], [1], [0, 0, 1, 1], [], []>} : vector<112x224xf32>, vector<224x224xf32>, vector<112x224xf32> -> vector<112x224xf32>
    %c2_133 = arith.constant 2 : index
    %c0_134 = arith.constant 0 : index
    %c0_135 = arith.constant 0 : index
    %402 = vector.load %arg14[%c2_133, %c0_134, %c0_135] : memref<3x224x224xf32, #tpu.memory_space<vmem>>, vector<1x224x224xf32>
    %403 = vector.shape_cast %402 : vector<1x224x224xf32> to vector<224x224xf32>
    %cst_136 = arith.constant dense<0.000000e+00> : vector<112x224xf32>
    %404 = tpu.matmul %395, %403, %cst_136 {dimension_numbers = #tpu.dot_dimension_numbers<[1], [0], [0], [1], [0, 0, 1, 1], [], []>} : vector<112x224xf32>, vector<224x224xf32>, vector<112x224xf32> -> vector<112x224xf32>
    %405 = vector.extract_strided_slice %401 {offsets = [0, 0], sizes = [16, 224], strides = [1, 1]} : vector<112x224xf32> to vector<16x224xf32>
    %406 = vector.broadcast %394 : vector<1x224xf32> to vector<16x224xf32>
    %407 = arith.addf %406, %405 : vector<16x224xf32>
    %cst_137 = arith.constant 0.000000e+00 : f32
    %408 = vector.broadcast %cst_137 : f32 to vector<16x224xf32>
    %409 = arith.maximumf %407, %408 : vector<16x224xf32>
    %410 = vector.extract_strided_slice %398 {offsets = [0, 0], sizes = [16, 224], strides = [1, 1]} : vector<112x224xf32> to vector<16x224xf32>
    %411 = vector.broadcast %394 : vector<1x224xf32> to vector<16x224xf32>
    %412 = arith.addf %411, %410 : vector<16x224xf32>
    %413 = vector.extract_strided_slice %404 {offsets = [16, 0], sizes = [16, 224], strides = [1, 1]} : vector<112x224xf32> to vector<16x224xf32>
    %414 = arith.addf %412, %413 : vector<16x224xf32>
    %cst_138 = arith.constant 0.000000e+00 : f32
    %415 = vector.broadcast %cst_138 : f32 to vector<16x224xf32>
    %416 = arith.maximumf %414, %415 : vector<16x224xf32>
    %417 = vector.extract_strided_slice %401 {offsets = [16, 0], sizes = [16, 224], strides = [1, 1]} : vector<112x224xf32> to vector<16x224xf32>
    %418 = vector.broadcast %394 : vector<1x224xf32> to vector<16x224xf32>
    %419 = arith.addf %418, %417 : vector<16x224xf32>
    %cst_139 = arith.constant 0.000000e+00 : f32
    %420 = vector.broadcast %cst_139 : f32 to vector<16x224xf32>
    %421 = arith.maximumf %419, %420 : vector<16x224xf32>
    %422 = vector.extract_strided_slice %398 {offsets = [16, 0], sizes = [16, 224], strides = [1, 1]} : vector<112x224xf32> to vector<16x224xf32>
    %423 = vector.broadcast %394 : vector<1x224xf32> to vector<16x224xf32>
    %424 = arith.addf %423, %422 : vector<16x224xf32>
    %425 = vector.extract_strided_slice %404 {offsets = [32, 0], sizes = [16, 224], strides = [1, 1]} : vector<112x224xf32> to vector<16x224xf32>
    %426 = arith.addf %424, %425 : vector<16x224xf32>
    %cst_140 = arith.constant 0.000000e+00 : f32
    %427 = vector.broadcast %cst_140 : f32 to vector<16x224xf32>
    %428 = arith.maximumf %426, %427 : vector<16x224xf32>
    %429 = vector.extract_strided_slice %401 {offsets = [32, 0], sizes = [16, 224], strides = [1, 1]} : vector<112x224xf32> to vector<16x224xf32>
    %430 = vector.broadcast %394 : vector<1x224xf32> to vector<16x224xf32>
    %431 = arith.addf %430, %429 : vector<16x224xf32>
    %cst_141 = arith.constant 0.000000e+00 : f32
    %432 = vector.broadcast %cst_141 : f32 to vector<16x224xf32>
    %433 = arith.maximumf %431, %432 : vector<16x224xf32>
    %434 = vector.extract_strided_slice %398 {offsets = [32, 0], sizes = [16, 224], strides = [1, 1]} : vector<112x224xf32> to vector<16x224xf32>
    %435 = vector.broadcast %394 : vector<1x224xf32> to vector<16x224xf32>
    %436 = arith.addf %435, %434 : vector<16x224xf32>
    %437 = vector.extract_strided_slice %404 {offsets = [48, 0], sizes = [16, 224], strides = [1, 1]} : vector<112x224xf32> to vector<16x224xf32>
    %438 = arith.addf %436, %437 : vector<16x224xf32>
    %cst_142 = arith.constant 0.000000e+00 : f32
    %439 = vector.broadcast %cst_142 : f32 to vector<16x224xf32>
    %440 = arith.maximumf %438, %439 : vector<16x224xf32>
    %441 = vector.extract_strided_slice %401 {offsets = [48, 0], sizes = [16, 224], strides = [1, 1]} : vector<112x224xf32> to vector<16x224xf32>
    %442 = vector.broadcast %394 : vector<1x224xf32> to vector<16x224xf32>
    %443 = arith.addf %442, %441 : vector<16x224xf32>
    %cst_143 = arith.constant 0.000000e+00 : f32
    %444 = vector.broadcast %cst_143 : f32 to vector<16x224xf32>
    %445 = arith.maximumf %443, %444 : vector<16x224xf32>
    %446 = vector.extract_strided_slice %398 {offsets = [48, 0], sizes = [16, 224], strides = [1, 1]} : vector<112x224xf32> to vector<16x224xf32>
    %447 = vector.broadcast %394 : vector<1x224xf32> to vector<16x224xf32>
    %448 = arith.addf %447, %446 : vector<16x224xf32>
    %449 = vector.extract_strided_slice %404 {offsets = [64, 0], sizes = [16, 224], strides = [1, 1]} : vector<112x224xf32> to vector<16x224xf32>
    %450 = arith.addf %448, %449 : vector<16x224xf32>
    %cst_144 = arith.constant 0.000000e+00 : f32
    %451 = vector.broadcast %cst_144 : f32 to vector<16x224xf32>
    %452 = arith.maximumf %450, %451 : vector<16x224xf32>
    %453 = vector.extract_strided_slice %401 {offsets = [64, 0], sizes = [16, 224], strides = [1, 1]} : vector<112x224xf32> to vector<16x224xf32>
    %454 = vector.broadcast %394 : vector<1x224xf32> to vector<16x224xf32>
    %455 = arith.addf %454, %453 : vector<16x224xf32>
    %cst_145 = arith.constant 0.000000e+00 : f32
    %456 = vector.broadcast %cst_145 : f32 to vector<16x224xf32>
    %457 = arith.maximumf %455, %456 : vector<16x224xf32>
    %458 = vector.extract_strided_slice %398 {offsets = [64, 0], sizes = [16, 224], strides = [1, 1]} : vector<112x224xf32> to vector<16x224xf32>
    %459 = vector.broadcast %394 : vector<1x224xf32> to vector<16x224xf32>
    %460 = arith.addf %459, %458 : vector<16x224xf32>
    %461 = vector.extract_strided_slice %404 {offsets = [80, 0], sizes = [16, 224], strides = [1, 1]} : vector<112x224xf32> to vector<16x224xf32>
    %462 = arith.addf %460, %461 : vector<16x224xf32>
    %cst_146 = arith.constant 0.000000e+00 : f32
    %463 = vector.broadcast %cst_146 : f32 to vector<16x224xf32>
    %464 = arith.maximumf %462, %463 : vector<16x224xf32>
    %465 = vector.extract_strided_slice %401 {offsets = [80, 0], sizes = [16, 224], strides = [1, 1]} : vector<112x224xf32> to vector<16x224xf32>
    %466 = vector.broadcast %394 : vector<1x224xf32> to vector<16x224xf32>
    %467 = arith.addf %466, %465 : vector<16x224xf32>
    %cst_147 = arith.constant 0.000000e+00 : f32
    %468 = vector.broadcast %cst_147 : f32 to vector<16x224xf32>
    %469 = arith.maximumf %467, %468 : vector<16x224xf32>
    %470 = vector.extract_strided_slice %398 {offsets = [80, 0], sizes = [16, 224], strides = [1, 1]} : vector<112x224xf32> to vector<16x224xf32>
    %471 = vector.broadcast %394 : vector<1x224xf32> to vector<16x224xf32>
    %472 = arith.addf %471, %470 : vector<16x224xf32>
    %473 = vector.extract_strided_slice %404 {offsets = [96, 0], sizes = [16, 224], strides = [1, 1]} : vector<112x224xf32> to vector<16x224xf32>
    %474 = arith.addf %472, %473 : vector<16x224xf32>
    %cst_148 = arith.constant 0.000000e+00 : f32
    %475 = vector.broadcast %cst_148 : f32 to vector<16x224xf32>
    %476 = arith.maximumf %474, %475 : vector<16x224xf32>
    %477 = vector.extract_strided_slice %401 {offsets = [96, 0], sizes = [16, 224], strides = [1, 1]} : vector<112x224xf32> to vector<16x224xf32>
    %478 = vector.broadcast %394 : vector<1x224xf32> to vector<16x224xf32>
    %479 = arith.addf %478, %477 : vector<16x224xf32>
    %cst_149 = arith.constant 0.000000e+00 : f32
    %480 = vector.broadcast %cst_149 : f32 to vector<16x224xf32>
    %481 = arith.maximumf %479, %480 : vector<16x224xf32>
    %482 = vector.extract_strided_slice %398 {offsets = [96, 0], sizes = [16, 224], strides = [1, 1]} : vector<112x224xf32> to vector<16x224xf32>
    %483 = vector.broadcast %394 : vector<1x224xf32> to vector<16x224xf32>
    %484 = arith.addf %483, %482 : vector<16x224xf32>
    %cst_150 = arith.constant 0.000000e+00 : f32
    %485 = vector.broadcast %cst_150 : f32 to vector<16x224xf32>
    %486 = arith.maximumf %484, %485 : vector<16x224xf32>
    %c0_151 = arith.constant 0 : index
    %c0_152 = arith.constant 0 : index
    %487 = vector.load %arg17[%c0_151, %c0_152] : memref<1x28xf32, #tpu.memory_space<vmem>>, vector<1x28xf32>
    %488 = tpu.concatenate %409, %416, %421, %428, %433, %440, %445, %452, %457, %464, %469, %476, %481, %486 in 0 : vector<16x224xf32>, vector<16x224xf32>, vector<16x224xf32>, vector<16x224xf32>, vector<16x224xf32>, vector<16x224xf32>, vector<16x224xf32>, vector<16x224xf32>, vector<16x224xf32>, vector<16x224xf32>, vector<16x224xf32>, vector<16x224xf32>, vector<16x224xf32>, vector<16x224xf32> -> vector<224x224xf32>
    %c0_153 = arith.constant 0 : index
    %c0_154 = arith.constant 0 : index
    %c0_155 = arith.constant 0 : index
    %489 = vector.load %arg16[%c0_153, %c0_154, %c0_155] : memref<3x224x28xf32, #tpu.memory_space<vmem>>, vector<1x224x28xf32>
    %490 = vector.shape_cast %489 : vector<1x224x28xf32> to vector<224x28xf32>
    %cst_156 = arith.constant dense<0.000000e+00> : vector<224x28xf32>
    %491 = tpu.matmul %488, %490, %cst_156 {dimension_numbers = #tpu.dot_dimension_numbers<[1], [0], [0], [1], [0, 0, 1, 1], [], []>} : vector<224x224xf32>, vector<224x28xf32>, vector<224x28xf32> -> vector<224x28xf32>
    %c1_157 = arith.constant 1 : index
    %c0_158 = arith.constant 0 : index
    %c0_159 = arith.constant 0 : index
    %492 = vector.load %arg16[%c1_157, %c0_158, %c0_159] : memref<3x224x28xf32, #tpu.memory_space<vmem>>, vector<1x224x28xf32>
    %493 = vector.shape_cast %492 : vector<1x224x28xf32> to vector<224x28xf32>
    %cst_160 = arith.constant dense<0.000000e+00> : vector<224x28xf32>
    %494 = tpu.matmul %488, %493, %cst_160 {dimension_numbers = #tpu.dot_dimension_numbers<[1], [0], [0], [1], [0, 0, 1, 1], [], []>} : vector<224x224xf32>, vector<224x28xf32>, vector<224x28xf32> -> vector<224x28xf32>
    %c2_161 = arith.constant 2 : index
    %c0_162 = arith.constant 0 : index
    %c0_163 = arith.constant 0 : index
    %495 = vector.load %arg16[%c2_161, %c0_162, %c0_163] : memref<3x224x28xf32, #tpu.memory_space<vmem>>, vector<1x224x28xf32>
    %496 = vector.shape_cast %495 : vector<1x224x28xf32> to vector<224x28xf32>
    %cst_164 = arith.constant dense<0.000000e+00> : vector<224x28xf32>
    %497 = tpu.matmul %488, %496, %cst_164 {dimension_numbers = #tpu.dot_dimension_numbers<[1], [0], [0], [1], [0, 0, 1, 1], [], []>} : vector<224x224xf32>, vector<224x28xf32>, vector<224x28xf32> -> vector<224x28xf32>
    %498 = vector.extract_strided_slice %494 {offsets = [0, 0], sizes = [16, 28], strides = [1, 1]} : vector<224x28xf32> to vector<16x28xf32>
    %499 = vector.broadcast %487 : vector<1x28xf32> to vector<16x28xf32>
    %500 = arith.addf %499, %498 : vector<16x28xf32>
    %cst_165 = arith.constant 5.000000e-01 : f32
    %501 = vector.broadcast %cst_165 : f32 to vector<16x28xf32>
    %502 = arith.mulf %501, %500 : vector<16x28xf32>
    %503 = math.tanh %502 : vector<16x28xf32>
    %cst_166 = arith.constant 1.000000e+00 : f32
    %504 = vector.broadcast %cst_166 : f32 to vector<16x28xf32>
    %505 = arith.addf %503, %504 : vector<16x28xf32>
    %cst_167 = arith.constant 5.000000e-01 : f32
    %506 = vector.broadcast %cst_167 : f32 to vector<16x28xf32>
    %507 = arith.mulf %506, %505 : vector<16x28xf32>
    %508 = vector.extract_strided_slice %491 {offsets = [0, 0], sizes = [16, 28], strides = [1, 1]} : vector<224x28xf32> to vector<16x28xf32>
    %509 = vector.broadcast %487 : vector<1x28xf32> to vector<16x28xf32>
    %510 = arith.addf %509, %508 : vector<16x28xf32>
    %511 = vector.extract_strided_slice %497 {offsets = [16, 0], sizes = [16, 28], strides = [1, 1]} : vector<224x28xf32> to vector<16x28xf32>
    %512 = arith.addf %510, %511 : vector<16x28xf32>
    %cst_168 = arith.constant 5.000000e-01 : f32
    %513 = vector.broadcast %cst_168 : f32 to vector<16x28xf32>
    %514 = arith.mulf %513, %512 : vector<16x28xf32>
    %515 = math.tanh %514 : vector<16x28xf32>
    %cst_169 = arith.constant 1.000000e+00 : f32
    %516 = vector.broadcast %cst_169 : f32 to vector<16x28xf32>
    %517 = arith.addf %515, %516 : vector<16x28xf32>
    %cst_170 = arith.constant 5.000000e-01 : f32
    %518 = vector.broadcast %cst_170 : f32 to vector<16x28xf32>
    %519 = arith.mulf %518, %517 : vector<16x28xf32>
    %520 = vector.extract_strided_slice %494 {offsets = [16, 0], sizes = [16, 28], strides = [1, 1]} : vector<224x28xf32> to vector<16x28xf32>
    %521 = vector.broadcast %487 : vector<1x28xf32> to vector<16x28xf32>
    %522 = arith.addf %521, %520 : vector<16x28xf32>
    %cst_171 = arith.constant 5.000000e-01 : f32
    %523 = vector.broadcast %cst_171 : f32 to vector<16x28xf32>
    %524 = arith.mulf %523, %522 : vector<16x28xf32>
    %525 = math.tanh %524 : vector<16x28xf32>
    %cst_172 = arith.constant 1.000000e+00 : f32
    %526 = vector.broadcast %cst_172 : f32 to vector<16x28xf32>
    %527 = arith.addf %525, %526 : vector<16x28xf32>
    %cst_173 = arith.constant 5.000000e-01 : f32
    %528 = vector.broadcast %cst_173 : f32 to vector<16x28xf32>
    %529 = arith.mulf %528, %527 : vector<16x28xf32>
    %530 = vector.extract_strided_slice %491 {offsets = [16, 0], sizes = [16, 28], strides = [1, 1]} : vector<224x28xf32> to vector<16x28xf32>
    %531 = vector.broadcast %487 : vector<1x28xf32> to vector<16x28xf32>
    %532 = arith.addf %531, %530 : vector<16x28xf32>
    %533 = vector.extract_strided_slice %497 {offsets = [32, 0], sizes = [16, 28], strides = [1, 1]} : vector<224x28xf32> to vector<16x28xf32>
    %534 = arith.addf %532, %533 : vector<16x28xf32>
    %cst_174 = arith.constant 5.000000e-01 : f32
    %535 = vector.broadcast %cst_174 : f32 to vector<16x28xf32>
    %536 = arith.mulf %535, %534 : vector<16x28xf32>
    %537 = math.tanh %536 : vector<16x28xf32>
    %cst_175 = arith.constant 1.000000e+00 : f32
    %538 = vector.broadcast %cst_175 : f32 to vector<16x28xf32>
    %539 = arith.addf %537, %538 : vector<16x28xf32>
    %cst_176 = arith.constant 5.000000e-01 : f32
    %540 = vector.broadcast %cst_176 : f32 to vector<16x28xf32>
    %541 = arith.mulf %540, %539 : vector<16x28xf32>
    %542 = vector.extract_strided_slice %494 {offsets = [32, 0], sizes = [16, 28], strides = [1, 1]} : vector<224x28xf32> to vector<16x28xf32>
    %543 = vector.broadcast %487 : vector<1x28xf32> to vector<16x28xf32>
    %544 = arith.addf %543, %542 : vector<16x28xf32>
    %cst_177 = arith.constant 5.000000e-01 : f32
    %545 = vector.broadcast %cst_177 : f32 to vector<16x28xf32>
    %546 = arith.mulf %545, %544 : vector<16x28xf32>
    %547 = math.tanh %546 : vector<16x28xf32>
    %cst_178 = arith.constant 1.000000e+00 : f32
    %548 = vector.broadcast %cst_178 : f32 to vector<16x28xf32>
    %549 = arith.addf %547, %548 : vector<16x28xf32>
    %cst_179 = arith.constant 5.000000e-01 : f32
    %550 = vector.broadcast %cst_179 : f32 to vector<16x28xf32>
    %551 = arith.mulf %550, %549 : vector<16x28xf32>
    %552 = vector.extract_strided_slice %491 {offsets = [32, 0], sizes = [16, 28], strides = [1, 1]} : vector<224x28xf32> to vector<16x28xf32>
    %553 = vector.broadcast %487 : vector<1x28xf32> to vector<16x28xf32>
    %554 = arith.addf %553, %552 : vector<16x28xf32>
    %555 = vector.extract_strided_slice %497 {offsets = [48, 0], sizes = [16, 28], strides = [1, 1]} : vector<224x28xf32> to vector<16x28xf32>
    %556 = arith.addf %554, %555 : vector<16x28xf32>
    %cst_180 = arith.constant 5.000000e-01 : f32
    %557 = vector.broadcast %cst_180 : f32 to vector<16x28xf32>
    %558 = arith.mulf %557, %556 : vector<16x28xf32>
    %559 = math.tanh %558 : vector<16x28xf32>
    %cst_181 = arith.constant 1.000000e+00 : f32
    %560 = vector.broadcast %cst_181 : f32 to vector<16x28xf32>
    %561 = arith.addf %559, %560 : vector<16x28xf32>
    %cst_182 = arith.constant 5.000000e-01 : f32
    %562 = vector.broadcast %cst_182 : f32 to vector<16x28xf32>
    %563 = arith.mulf %562, %561 : vector<16x28xf32>
    %564 = vector.extract_strided_slice %494 {offsets = [48, 0], sizes = [16, 28], strides = [1, 1]} : vector<224x28xf32> to vector<16x28xf32>
    %565 = vector.broadcast %487 : vector<1x28xf32> to vector<16x28xf32>
    %566 = arith.addf %565, %564 : vector<16x28xf32>
    %cst_183 = arith.constant 5.000000e-01 : f32
    %567 = vector.broadcast %cst_183 : f32 to vector<16x28xf32>
    %568 = arith.mulf %567, %566 : vector<16x28xf32>
    %569 = math.tanh %568 : vector<16x28xf32>
    %cst_184 = arith.constant 1.000000e+00 : f32
    %570 = vector.broadcast %cst_184 : f32 to vector<16x28xf32>
    %571 = arith.addf %569, %570 : vector<16x28xf32>
    %cst_185 = arith.constant 5.000000e-01 : f32
    %572 = vector.broadcast %cst_185 : f32 to vector<16x28xf32>
    %573 = arith.mulf %572, %571 : vector<16x28xf32>
    %574 = vector.extract_strided_slice %491 {offsets = [48, 0], sizes = [16, 28], strides = [1, 1]} : vector<224x28xf32> to vector<16x28xf32>
    %575 = vector.broadcast %487 : vector<1x28xf32> to vector<16x28xf32>
    %576 = arith.addf %575, %574 : vector<16x28xf32>
    %577 = vector.extract_strided_slice %497 {offsets = [64, 0], sizes = [16, 28], strides = [1, 1]} : vector<224x28xf32> to vector<16x28xf32>
    %578 = arith.addf %576, %577 : vector<16x28xf32>
    %cst_186 = arith.constant 5.000000e-01 : f32
    %579 = vector.broadcast %cst_186 : f32 to vector<16x28xf32>
    %580 = arith.mulf %579, %578 : vector<16x28xf32>
    %581 = math.tanh %580 : vector<16x28xf32>
    %cst_187 = arith.constant 1.000000e+00 : f32
    %582 = vector.broadcast %cst_187 : f32 to vector<16x28xf32>
    %583 = arith.addf %581, %582 : vector<16x28xf32>
    %cst_188 = arith.constant 5.000000e-01 : f32
    %584 = vector.broadcast %cst_188 : f32 to vector<16x28xf32>
    %585 = arith.mulf %584, %583 : vector<16x28xf32>
    %586 = vector.extract_strided_slice %494 {offsets = [64, 0], sizes = [16, 28], strides = [1, 1]} : vector<224x28xf32> to vector<16x28xf32>
    %587 = vector.broadcast %487 : vector<1x28xf32> to vector<16x28xf32>
    %588 = arith.addf %587, %586 : vector<16x28xf32>
    %cst_189 = arith.constant 5.000000e-01 : f32
    %589 = vector.broadcast %cst_189 : f32 to vector<16x28xf32>
    %590 = arith.mulf %589, %588 : vector<16x28xf32>
    %591 = math.tanh %590 : vector<16x28xf32>
    %cst_190 = arith.constant 1.000000e+00 : f32
    %592 = vector.broadcast %cst_190 : f32 to vector<16x28xf32>
    %593 = arith.addf %591, %592 : vector<16x28xf32>
    %cst_191 = arith.constant 5.000000e-01 : f32
    %594 = vector.broadcast %cst_191 : f32 to vector<16x28xf32>
    %595 = arith.mulf %594, %593 : vector<16x28xf32>
    %596 = vector.extract_strided_slice %491 {offsets = [64, 0], sizes = [16, 28], strides = [1, 1]} : vector<224x28xf32> to vector<16x28xf32>
    %597 = vector.broadcast %487 : vector<1x28xf32> to vector<16x28xf32>
    %598 = arith.addf %597, %596 : vector<16x28xf32>
    %599 = vector.extract_strided_slice %497 {offsets = [80, 0], sizes = [16, 28], strides = [1, 1]} : vector<224x28xf32> to vector<16x28xf32>
    %600 = arith.addf %598, %599 : vector<16x28xf32>
    %cst_192 = arith.constant 5.000000e-01 : f32
    %601 = vector.broadcast %cst_192 : f32 to vector<16x28xf32>
    %602 = arith.mulf %601, %600 : vector<16x28xf32>
    %603 = math.tanh %602 : vector<16x28xf32>
    %cst_193 = arith.constant 1.000000e+00 : f32
    %604 = vector.broadcast %cst_193 : f32 to vector<16x28xf32>
    %605 = arith.addf %603, %604 : vector<16x28xf32>
    %cst_194 = arith.constant 5.000000e-01 : f32
    %606 = vector.broadcast %cst_194 : f32 to vector<16x28xf32>
    %607 = arith.mulf %606, %605 : vector<16x28xf32>
    %608 = vector.extract_strided_slice %494 {offsets = [80, 0], sizes = [16, 28], strides = [1, 1]} : vector<224x28xf32> to vector<16x28xf32>
    %609 = vector.broadcast %487 : vector<1x28xf32> to vector<16x28xf32>
    %610 = arith.addf %609, %608 : vector<16x28xf32>
    %cst_195 = arith.constant 5.000000e-01 : f32
    %611 = vector.broadcast %cst_195 : f32 to vector<16x28xf32>
    %612 = arith.mulf %611, %610 : vector<16x28xf32>
    %613 = math.tanh %612 : vector<16x28xf32>
    %cst_196 = arith.constant 1.000000e+00 : f32
    %614 = vector.broadcast %cst_196 : f32 to vector<16x28xf32>
    %615 = arith.addf %613, %614 : vector<16x28xf32>
    %cst_197 = arith.constant 5.000000e-01 : f32
    %616 = vector.broadcast %cst_197 : f32 to vector<16x28xf32>
    %617 = arith.mulf %616, %615 : vector<16x28xf32>
    %618 = vector.extract_strided_slice %491 {offsets = [80, 0], sizes = [16, 28], strides = [1, 1]} : vector<224x28xf32> to vector<16x28xf32>
    %619 = vector.broadcast %487 : vector<1x28xf32> to vector<16x28xf32>
    %620 = arith.addf %619, %618 : vector<16x28xf32>
    %621 = vector.extract_strided_slice %497 {offsets = [96, 0], sizes = [16, 28], strides = [1, 1]} : vector<224x28xf32> to vector<16x28xf32>
    %622 = arith.addf %620, %621 : vector<16x28xf32>
    %cst_198 = arith.constant 5.000000e-01 : f32
    %623 = vector.broadcast %cst_198 : f32 to vector<16x28xf32>
    %624 = arith.mulf %623, %622 : vector<16x28xf32>
    %625 = math.tanh %624 : vector<16x28xf32>
    %cst_199 = arith.constant 1.000000e+00 : f32
    %626 = vector.broadcast %cst_199 : f32 to vector<16x28xf32>
    %627 = arith.addf %625, %626 : vector<16x28xf32>
    %cst_200 = arith.constant 5.000000e-01 : f32
    %628 = vector.broadcast %cst_200 : f32 to vector<16x28xf32>
    %629 = arith.mulf %628, %627 : vector<16x28xf32>
    %630 = vector.extract_strided_slice %494 {offsets = [96, 0], sizes = [16, 28], strides = [1, 1]} : vector<224x28xf32> to vector<16x28xf32>
    %631 = vector.broadcast %487 : vector<1x28xf32> to vector<16x28xf32>
    %632 = arith.addf %631, %630 : vector<16x28xf32>
    %cst_201 = arith.constant 5.000000e-01 : f32
    %633 = vector.broadcast %cst_201 : f32 to vector<16x28xf32>
    %634 = arith.mulf %633, %632 : vector<16x28xf32>
    %635 = math.tanh %634 : vector<16x28xf32>
    %cst_202 = arith.constant 1.000000e+00 : f32
    %636 = vector.broadcast %cst_202 : f32 to vector<16x28xf32>
    %637 = arith.addf %635, %636 : vector<16x28xf32>
    %cst_203 = arith.constant 5.000000e-01 : f32
    %638 = vector.broadcast %cst_203 : f32 to vector<16x28xf32>
    %639 = arith.mulf %638, %637 : vector<16x28xf32>
    %640 = vector.extract_strided_slice %491 {offsets = [96, 0], sizes = [16, 28], strides = [1, 1]} : vector<224x28xf32> to vector<16x28xf32>
    %641 = vector.broadcast %487 : vector<1x28xf32> to vector<16x28xf32>
    %642 = arith.addf %641, %640 : vector<16x28xf32>
    %643 = vector.extract_strided_slice %497 {offsets = [112, 0], sizes = [16, 28], strides = [1, 1]} : vector<224x28xf32> to vector<16x28xf32>
    %644 = arith.addf %642, %643 : vector<16x28xf32>
    %cst_204 = arith.constant 5.000000e-01 : f32
    %645 = vector.broadcast %cst_204 : f32 to vector<16x28xf32>
    %646 = arith.mulf %645, %644 : vector<16x28xf32>
    %647 = math.tanh %646 : vector<16x28xf32>
    %cst_205 = arith.constant 1.000000e+00 : f32
    %648 = vector.broadcast %cst_205 : f32 to vector<16x28xf32>
    %649 = arith.addf %647, %648 : vector<16x28xf32>
    %cst_206 = arith.constant 5.000000e-01 : f32
    %650 = vector.broadcast %cst_206 : f32 to vector<16x28xf32>
    %651 = arith.mulf %650, %649 : vector<16x28xf32>
    %652 = vector.extract_strided_slice %494 {offsets = [112, 0], sizes = [16, 28], strides = [1, 1]} : vector<224x28xf32> to vector<16x28xf32>
    %653 = vector.broadcast %487 : vector<1x28xf32> to vector<16x28xf32>
    %654 = arith.addf %653, %652 : vector<16x28xf32>
    %cst_207 = arith.constant 5.000000e-01 : f32
    %655 = vector.broadcast %cst_207 : f32 to vector<16x28xf32>
    %656 = arith.mulf %655, %654 : vector<16x28xf32>
    %657 = math.tanh %656 : vector<16x28xf32>
    %cst_208 = arith.constant 1.000000e+00 : f32
    %658 = vector.broadcast %cst_208 : f32 to vector<16x28xf32>
    %659 = arith.addf %657, %658 : vector<16x28xf32>
    %cst_209 = arith.constant 5.000000e-01 : f32
    %660 = vector.broadcast %cst_209 : f32 to vector<16x28xf32>
    %661 = arith.mulf %660, %659 : vector<16x28xf32>
    %662 = vector.extract_strided_slice %491 {offsets = [112, 0], sizes = [16, 28], strides = [1, 1]} : vector<224x28xf32> to vector<16x28xf32>
    %663 = vector.broadcast %487 : vector<1x28xf32> to vector<16x28xf32>
    %664 = arith.addf %663, %662 : vector<16x28xf32>
    %665 = vector.extract_strided_slice %497 {offsets = [128, 0], sizes = [16, 28], strides = [1, 1]} : vector<224x28xf32> to vector<16x28xf32>
    %666 = arith.addf %664, %665 : vector<16x28xf32>
    %cst_210 = arith.constant 5.000000e-01 : f32
    %667 = vector.broadcast %cst_210 : f32 to vector<16x28xf32>
    %668 = arith.mulf %667, %666 : vector<16x28xf32>
    %669 = math.tanh %668 : vector<16x28xf32>
    %cst_211 = arith.constant 1.000000e+00 : f32
    %670 = vector.broadcast %cst_211 : f32 to vector<16x28xf32>
    %671 = arith.addf %669, %670 : vector<16x28xf32>
    %cst_212 = arith.constant 5.000000e-01 : f32
    %672 = vector.broadcast %cst_212 : f32 to vector<16x28xf32>
    %673 = arith.mulf %672, %671 : vector<16x28xf32>
    %674 = vector.extract_strided_slice %494 {offsets = [128, 0], sizes = [16, 28], strides = [1, 1]} : vector<224x28xf32> to vector<16x28xf32>
    %675 = vector.broadcast %487 : vector<1x28xf32> to vector<16x28xf32>
    %676 = arith.addf %675, %674 : vector<16x28xf32>
    %cst_213 = arith.constant 5.000000e-01 : f32
    %677 = vector.broadcast %cst_213 : f32 to vector<16x28xf32>
    %678 = arith.mulf %677, %676 : vector<16x28xf32>
    %679 = math.tanh %678 : vector<16x28xf32>
    %cst_214 = arith.constant 1.000000e+00 : f32
    %680 = vector.broadcast %cst_214 : f32 to vector<16x28xf32>
    %681 = arith.addf %679, %680 : vector<16x28xf32>
    %cst_215 = arith.constant 5.000000e-01 : f32
    %682 = vector.broadcast %cst_215 : f32 to vector<16x28xf32>
    %683 = arith.mulf %682, %681 : vector<16x28xf32>
    %684 = vector.extract_strided_slice %491 {offsets = [128, 0], sizes = [16, 28], strides = [1, 1]} : vector<224x28xf32> to vector<16x28xf32>
    %685 = vector.broadcast %487 : vector<1x28xf32> to vector<16x28xf32>
    %686 = arith.addf %685, %684 : vector<16x28xf32>
    %687 = vector.extract_strided_slice %497 {offsets = [144, 0], sizes = [16, 28], strides = [1, 1]} : vector<224x28xf32> to vector<16x28xf32>
    %688 = arith.addf %686, %687 : vector<16x28xf32>
    %cst_216 = arith.constant 5.000000e-01 : f32
    %689 = vector.broadcast %cst_216 : f32 to vector<16x28xf32>
    %690 = arith.mulf %689, %688 : vector<16x28xf32>
    %691 = math.tanh %690 : vector<16x28xf32>
    %cst_217 = arith.constant 1.000000e+00 : f32
    %692 = vector.broadcast %cst_217 : f32 to vector<16x28xf32>
    %693 = arith.addf %691, %692 : vector<16x28xf32>
    %cst_218 = arith.constant 5.000000e-01 : f32
    %694 = vector.broadcast %cst_218 : f32 to vector<16x28xf32>
    %695 = arith.mulf %694, %693 : vector<16x28xf32>
    %696 = vector.extract_strided_slice %494 {offsets = [144, 0], sizes = [16, 28], strides = [1, 1]} : vector<224x28xf32> to vector<16x28xf32>
    %697 = vector.broadcast %487 : vector<1x28xf32> to vector<16x28xf32>
    %698 = arith.addf %697, %696 : vector<16x28xf32>
    %cst_219 = arith.constant 5.000000e-01 : f32
    %699 = vector.broadcast %cst_219 : f32 to vector<16x28xf32>
    %700 = arith.mulf %699, %698 : vector<16x28xf32>
    %701 = math.tanh %700 : vector<16x28xf32>
    %cst_220 = arith.constant 1.000000e+00 : f32
    %702 = vector.broadcast %cst_220 : f32 to vector<16x28xf32>
    %703 = arith.addf %701, %702 : vector<16x28xf32>
    %cst_221 = arith.constant 5.000000e-01 : f32
    %704 = vector.broadcast %cst_221 : f32 to vector<16x28xf32>
    %705 = arith.mulf %704, %703 : vector<16x28xf32>
    %706 = vector.extract_strided_slice %491 {offsets = [144, 0], sizes = [16, 28], strides = [1, 1]} : vector<224x28xf32> to vector<16x28xf32>
    %707 = vector.broadcast %487 : vector<1x28xf32> to vector<16x28xf32>
    %708 = arith.addf %707, %706 : vector<16x28xf32>
    %709 = vector.extract_strided_slice %497 {offsets = [160, 0], sizes = [16, 28], strides = [1, 1]} : vector<224x28xf32> to vector<16x28xf32>
    %710 = arith.addf %708, %709 : vector<16x28xf32>
    %cst_222 = arith.constant 5.000000e-01 : f32
    %711 = vector.broadcast %cst_222 : f32 to vector<16x28xf32>
    %712 = arith.mulf %711, %710 : vector<16x28xf32>
    %713 = math.tanh %712 : vector<16x28xf32>
    %cst_223 = arith.constant 1.000000e+00 : f32
    %714 = vector.broadcast %cst_223 : f32 to vector<16x28xf32>
    %715 = arith.addf %713, %714 : vector<16x28xf32>
    %cst_224 = arith.constant 5.000000e-01 : f32
    %716 = vector.broadcast %cst_224 : f32 to vector<16x28xf32>
    %717 = arith.mulf %716, %715 : vector<16x28xf32>
    %718 = vector.extract_strided_slice %494 {offsets = [160, 0], sizes = [16, 28], strides = [1, 1]} : vector<224x28xf32> to vector<16x28xf32>
    %719 = vector.broadcast %487 : vector<1x28xf32> to vector<16x28xf32>
    %720 = arith.addf %719, %718 : vector<16x28xf32>
    %cst_225 = arith.constant 5.000000e-01 : f32
    %721 = vector.broadcast %cst_225 : f32 to vector<16x28xf32>
    %722 = arith.mulf %721, %720 : vector<16x28xf32>
    %723 = math.tanh %722 : vector<16x28xf32>
    %cst_226 = arith.constant 1.000000e+00 : f32
    %724 = vector.broadcast %cst_226 : f32 to vector<16x28xf32>
    %725 = arith.addf %723, %724 : vector<16x28xf32>
    %cst_227 = arith.constant 5.000000e-01 : f32
    %726 = vector.broadcast %cst_227 : f32 to vector<16x28xf32>
    %727 = arith.mulf %726, %725 : vector<16x28xf32>
    %728 = vector.extract_strided_slice %491 {offsets = [160, 0], sizes = [16, 28], strides = [1, 1]} : vector<224x28xf32> to vector<16x28xf32>
    %729 = vector.broadcast %487 : vector<1x28xf32> to vector<16x28xf32>
    %730 = arith.addf %729, %728 : vector<16x28xf32>
    %731 = vector.extract_strided_slice %497 {offsets = [176, 0], sizes = [16, 28], strides = [1, 1]} : vector<224x28xf32> to vector<16x28xf32>
    %732 = arith.addf %730, %731 : vector<16x28xf32>
    %cst_228 = arith.constant 5.000000e-01 : f32
    %733 = vector.broadcast %cst_228 : f32 to vector<16x28xf32>
    %734 = arith.mulf %733, %732 : vector<16x28xf32>
    %735 = math.tanh %734 : vector<16x28xf32>
    %cst_229 = arith.constant 1.000000e+00 : f32
    %736 = vector.broadcast %cst_229 : f32 to vector<16x28xf32>
    %737 = arith.addf %735, %736 : vector<16x28xf32>
    %cst_230 = arith.constant 5.000000e-01 : f32
    %738 = vector.broadcast %cst_230 : f32 to vector<16x28xf32>
    %739 = arith.mulf %738, %737 : vector<16x28xf32>
    %740 = vector.extract_strided_slice %494 {offsets = [176, 0], sizes = [16, 28], strides = [1, 1]} : vector<224x28xf32> to vector<16x28xf32>
    %741 = vector.broadcast %487 : vector<1x28xf32> to vector<16x28xf32>
    %742 = arith.addf %741, %740 : vector<16x28xf32>
    %cst_231 = arith.constant 5.000000e-01 : f32
    %743 = vector.broadcast %cst_231 : f32 to vector<16x28xf32>
    %744 = arith.mulf %743, %742 : vector<16x28xf32>
    %745 = math.tanh %744 : vector<16x28xf32>
    %cst_232 = arith.constant 1.000000e+00 : f32
    %746 = vector.broadcast %cst_232 : f32 to vector<16x28xf32>
    %747 = arith.addf %745, %746 : vector<16x28xf32>
    %cst_233 = arith.constant 5.000000e-01 : f32
    %748 = vector.broadcast %cst_233 : f32 to vector<16x28xf32>
    %749 = arith.mulf %748, %747 : vector<16x28xf32>
    %750 = vector.extract_strided_slice %491 {offsets = [176, 0], sizes = [16, 28], strides = [1, 1]} : vector<224x28xf32> to vector<16x28xf32>
    %751 = vector.broadcast %487 : vector<1x28xf32> to vector<16x28xf32>
    %752 = arith.addf %751, %750 : vector<16x28xf32>
    %753 = vector.extract_strided_slice %497 {offsets = [192, 0], sizes = [16, 28], strides = [1, 1]} : vector<224x28xf32> to vector<16x28xf32>
    %754 = arith.addf %752, %753 : vector<16x28xf32>
    %cst_234 = arith.constant 5.000000e-01 : f32
    %755 = vector.broadcast %cst_234 : f32 to vector<16x28xf32>
    %756 = arith.mulf %755, %754 : vector<16x28xf32>
    %757 = math.tanh %756 : vector<16x28xf32>
    %cst_235 = arith.constant 1.000000e+00 : f32
    %758 = vector.broadcast %cst_235 : f32 to vector<16x28xf32>
    %759 = arith.addf %757, %758 : vector<16x28xf32>
    %cst_236 = arith.constant 5.000000e-01 : f32
    %760 = vector.broadcast %cst_236 : f32 to vector<16x28xf32>
    %761 = arith.mulf %760, %759 : vector<16x28xf32>
    %762 = vector.extract_strided_slice %494 {offsets = [192, 0], sizes = [16, 28], strides = [1, 1]} : vector<224x28xf32> to vector<16x28xf32>
    %763 = vector.broadcast %487 : vector<1x28xf32> to vector<16x28xf32>
    %764 = arith.addf %763, %762 : vector<16x28xf32>
    %cst_237 = arith.constant 5.000000e-01 : f32
    %765 = vector.broadcast %cst_237 : f32 to vector<16x28xf32>
    %766 = arith.mulf %765, %764 : vector<16x28xf32>
    %767 = math.tanh %766 : vector<16x28xf32>
    %cst_238 = arith.constant 1.000000e+00 : f32
    %768 = vector.broadcast %cst_238 : f32 to vector<16x28xf32>
    %769 = arith.addf %767, %768 : vector<16x28xf32>
    %cst_239 = arith.constant 5.000000e-01 : f32
    %770 = vector.broadcast %cst_239 : f32 to vector<16x28xf32>
    %771 = arith.mulf %770, %769 : vector<16x28xf32>
    %772 = vector.extract_strided_slice %491 {offsets = [192, 0], sizes = [16, 28], strides = [1, 1]} : vector<224x28xf32> to vector<16x28xf32>
    %773 = vector.broadcast %487 : vector<1x28xf32> to vector<16x28xf32>
    %774 = arith.addf %773, %772 : vector<16x28xf32>
    %775 = vector.extract_strided_slice %497 {offsets = [208, 0], sizes = [16, 28], strides = [1, 1]} : vector<224x28xf32> to vector<16x28xf32>
    %776 = arith.addf %774, %775 : vector<16x28xf32>
    %cst_240 = arith.constant 5.000000e-01 : f32
    %777 = vector.broadcast %cst_240 : f32 to vector<16x28xf32>
    %778 = arith.mulf %777, %776 : vector<16x28xf32>
    %779 = math.tanh %778 : vector<16x28xf32>
    %cst_241 = arith.constant 1.000000e+00 : f32
    %780 = vector.broadcast %cst_241 : f32 to vector<16x28xf32>
    %781 = arith.addf %779, %780 : vector<16x28xf32>
    %cst_242 = arith.constant 5.000000e-01 : f32
    %782 = vector.broadcast %cst_242 : f32 to vector<16x28xf32>
    %783 = arith.mulf %782, %781 : vector<16x28xf32>
    %784 = vector.extract_strided_slice %494 {offsets = [208, 0], sizes = [16, 28], strides = [1, 1]} : vector<224x28xf32> to vector<16x28xf32>
    %785 = vector.broadcast %487 : vector<1x28xf32> to vector<16x28xf32>
    %786 = arith.addf %785, %784 : vector<16x28xf32>
    %cst_243 = arith.constant 5.000000e-01 : f32
    %787 = vector.broadcast %cst_243 : f32 to vector<16x28xf32>
    %788 = arith.mulf %787, %786 : vector<16x28xf32>
    %789 = math.tanh %788 : vector<16x28xf32>
    %cst_244 = arith.constant 1.000000e+00 : f32
    %790 = vector.broadcast %cst_244 : f32 to vector<16x28xf32>
    %791 = arith.addf %789, %790 : vector<16x28xf32>
    %cst_245 = arith.constant 5.000000e-01 : f32
    %792 = vector.broadcast %cst_245 : f32 to vector<16x28xf32>
    %793 = arith.mulf %792, %791 : vector<16x28xf32>
    %794 = vector.extract_strided_slice %491 {offsets = [208, 0], sizes = [16, 28], strides = [1, 1]} : vector<224x28xf32> to vector<16x28xf32>
    %795 = vector.broadcast %487 : vector<1x28xf32> to vector<16x28xf32>
    %796 = arith.addf %795, %794 : vector<16x28xf32>
    %cst_246 = arith.constant 5.000000e-01 : f32
    %797 = vector.broadcast %cst_246 : f32 to vector<16x28xf32>
    %798 = arith.mulf %797, %796 : vector<16x28xf32>
    %799 = math.tanh %798 : vector<16x28xf32>
    %cst_247 = arith.constant 1.000000e+00 : f32
    %800 = vector.broadcast %cst_247 : f32 to vector<16x28xf32>
    %801 = arith.addf %799, %800 : vector<16x28xf32>
    %cst_248 = arith.constant 5.000000e-01 : f32
    %802 = vector.broadcast %cst_248 : f32 to vector<16x28xf32>
    %803 = arith.mulf %802, %801 : vector<16x28xf32>
    %c0_249 = arith.constant 0 : index
    %c0_250 = arith.constant 0 : index
    %c0_251 = arith.constant 0 : index
    %804 = vector.load %arg18[%c0_249, %c0_250, %c0_251] : memref<28x16x28xf32, #tpu.memory_space<vmem>>, vector<1x16x28xf32>
    %805 = vector.shape_cast %804 : vector<1x16x28xf32> to vector<16x28xf32>
    %806 = vector.shape_cast %507 : vector<16x28xf32> to vector<1x16x28xf32>
    tpu.vector_store %arg18[%c0_249, %c0_250, %c0_251], %806 {strides = array<i32>} : memref<28x16x28xf32, #tpu.memory_space<vmem>>, vector<1x16x28xf32>,
    %c1_252 = arith.constant 1 : index
    %c0_253 = arith.constant 0 : index
    %c0_254 = arith.constant 0 : index
    %807 = vector.load %arg18[%c1_252, %c0_253, %c0_254] : memref<28x16x28xf32, #tpu.memory_space<vmem>>, vector<1x16x28xf32>
    %808 = vector.shape_cast %807 : vector<1x16x28xf32> to vector<16x28xf32>
    %809 = vector.shape_cast %519 : vector<16x28xf32> to vector<1x16x28xf32>
    tpu.vector_store %arg18[%c1_252, %c0_253, %c0_254], %809 {strides = array<i32>} : memref<28x16x28xf32, #tpu.memory_space<vmem>>, vector<1x16x28xf32>,
    %c2_255 = arith.constant 2 : index
    %c0_256 = arith.constant 0 : index
    %c0_257 = arith.constant 0 : index
    %810 = vector.load %arg18[%c2_255, %c0_256, %c0_257] : memref<28x16x28xf32, #tpu.memory_space<vmem>>, vector<1x16x28xf32>
    %811 = vector.shape_cast %810 : vector<1x16x28xf32> to vector<16x28xf32>
    %812 = vector.shape_cast %529 : vector<16x28xf32> to vector<1x16x28xf32>
    tpu.vector_store %arg18[%c2_255, %c0_256, %c0_257], %812 {strides = array<i32>} : memref<28x16x28xf32, #tpu.memory_space<vmem>>, vector<1x16x28xf32>,
    %c3 = arith.constant 3 : index
    %c0_258 = arith.constant 0 : index
    %c0_259 = arith.constant 0 : index
    %813 = vector.load %arg18[%c3, %c0_258, %c0_259] : memref<28x16x28xf32, #tpu.memory_space<vmem>>, vector<1x16x28xf32>
    %814 = vector.shape_cast %813 : vector<1x16x28xf32> to vector<16x28xf32>
    %815 = vector.shape_cast %541 : vector<16x28xf32> to vector<1x16x28xf32>
    tpu.vector_store %arg18[%c3, %c0_258, %c0_259], %815 {strides = array<i32>} : memref<28x16x28xf32, #tpu.memory_space<vmem>>, vector<1x16x28xf32>,
    %c4 = arith.constant 4 : index
    %c0_260 = arith.constant 0 : index
    %c0_261 = arith.constant 0 : index
    %816 = vector.load %arg18[%c4, %c0_260, %c0_261] : memref<28x16x28xf32, #tpu.memory_space<vmem>>, vector<1x16x28xf32>
    %817 = vector.shape_cast %816 : vector<1x16x28xf32> to vector<16x28xf32>
    %818 = vector.shape_cast %551 : vector<16x28xf32> to vector<1x16x28xf32>
    tpu.vector_store %arg18[%c4, %c0_260, %c0_261], %818 {strides = array<i32>} : memref<28x16x28xf32, #tpu.memory_space<vmem>>, vector<1x16x28xf32>,
    %c5 = arith.constant 5 : index
    %c0_262 = arith.constant 0 : index
    %c0_263 = arith.constant 0 : index
    %819 = vector.load %arg18[%c5, %c0_262, %c0_263] : memref<28x16x28xf32, #tpu.memory_space<vmem>>, vector<1x16x28xf32>
    %820 = vector.shape_cast %819 : vector<1x16x28xf32> to vector<16x28xf32>
    %821 = vector.shape_cast %563 : vector<16x28xf32> to vector<1x16x28xf32>
    tpu.vector_store %arg18[%c5, %c0_262, %c0_263], %821 {strides = array<i32>} : memref<28x16x28xf32, #tpu.memory_space<vmem>>, vector<1x16x28xf32>,
    %c6 = arith.constant 6 : index
    %c0_264 = arith.constant 0 : index
    %c0_265 = arith.constant 0 : index
    %822 = vector.load %arg18[%c6, %c0_264, %c0_265] : memref<28x16x28xf32, #tpu.memory_space<vmem>>, vector<1x16x28xf32>
    %823 = vector.shape_cast %822 : vector<1x16x28xf32> to vector<16x28xf32>
    %824 = vector.shape_cast %573 : vector<16x28xf32> to vector<1x16x28xf32>
    tpu.vector_store %arg18[%c6, %c0_264, %c0_265], %824 {strides = array<i32>} : memref<28x16x28xf32, #tpu.memory_space<vmem>>, vector<1x16x28xf32>,
    %c7 = arith.constant 7 : index
    %c0_266 = arith.constant 0 : index
    %c0_267 = arith.constant 0 : index
    %825 = vector.load %arg18[%c7, %c0_266, %c0_267] : memref<28x16x28xf32, #tpu.memory_space<vmem>>, vector<1x16x28xf32>
    %826 = vector.shape_cast %825 : vector<1x16x28xf32> to vector<16x28xf32>
    %827 = vector.shape_cast %585 : vector<16x28xf32> to vector<1x16x28xf32>
    tpu.vector_store %arg18[%c7, %c0_266, %c0_267], %827 {strides = array<i32>} : memref<28x16x28xf32, #tpu.memory_space<vmem>>, vector<1x16x28xf32>,
    %c8 = arith.constant 8 : index
    %c0_268 = arith.constant 0 : index
    %c0_269 = arith.constant 0 : index
    %828 = vector.load %arg18[%c8, %c0_268, %c0_269] : memref<28x16x28xf32, #tpu.memory_space<vmem>>, vector<1x16x28xf32>
    %829 = vector.shape_cast %828 : vector<1x16x28xf32> to vector<16x28xf32>
    %830 = vector.shape_cast %595 : vector<16x28xf32> to vector<1x16x28xf32>
    tpu.vector_store %arg18[%c8, %c0_268, %c0_269], %830 {strides = array<i32>} : memref<28x16x28xf32, #tpu.memory_space<vmem>>, vector<1x16x28xf32>,
    %c9 = arith.constant 9 : index
    %c0_270 = arith.constant 0 : index
    %c0_271 = arith.constant 0 : index
    %831 = vector.load %arg18[%c9, %c0_270, %c0_271] : memref<28x16x28xf32, #tpu.memory_space<vmem>>, vector<1x16x28xf32>
    %832 = vector.shape_cast %831 : vector<1x16x28xf32> to vector<16x28xf32>
    %833 = vector.shape_cast %607 : vector<16x28xf32> to vector<1x16x28xf32>
    tpu.vector_store %arg18[%c9, %c0_270, %c0_271], %833 {strides = array<i32>} : memref<28x16x28xf32, #tpu.memory_space<vmem>>, vector<1x16x28xf32>,
    %c10 = arith.constant 10 : index
    %c0_272 = arith.constant 0 : index
    %c0_273 = arith.constant 0 : index
    %834 = vector.load %arg18[%c10, %c0_272, %c0_273] : memref<28x16x28xf32, #tpu.memory_space<vmem>>, vector<1x16x28xf32>
    %835 = vector.shape_cast %834 : vector<1x16x28xf32> to vector<16x28xf32>
    %836 = vector.shape_cast %617 : vector<16x28xf32> to vector<1x16x28xf32>
    tpu.vector_store %arg18[%c10, %c0_272, %c0_273], %836 {strides = array<i32>} : memref<28x16x28xf32, #tpu.memory_space<vmem>>, vector<1x16x28xf32>,
    %c11 = arith.constant 11 : index
    %c0_274 = arith.constant 0 : index
    %c0_275 = arith.constant 0 : index
    %837 = vector.load %arg18[%c11, %c0_274, %c0_275] : memref<28x16x28xf32, #tpu.memory_space<vmem>>, vector<1x16x28xf32>
    %838 = vector.shape_cast %837 : vector<1x16x28xf32> to vector<16x28xf32>
    %839 = vector.shape_cast %629 : vector<16x28xf32> to vector<1x16x28xf32>
    tpu.vector_store %arg18[%c11, %c0_274, %c0_275], %839 {strides = array<i32>} : memref<28x16x28xf32, #tpu.memory_space<vmem>>, vector<1x16x28xf32>,
    %c12 = arith.constant 12 : index
    %c0_276 = arith.constant 0 : index
    %c0_277 = arith.constant 0 : index
    %840 = vector.load %arg18[%c12, %c0_276, %c0_277] : memref<28x16x28xf32, #tpu.memory_space<vmem>>, vector<1x16x28xf32>
    %841 = vector.shape_cast %840 : vector<1x16x28xf32> to vector<16x28xf32>
    %842 = vector.shape_cast %639 : vector<16x28xf32> to vector<1x16x28xf32>
    tpu.vector_store %arg18[%c12, %c0_276, %c0_277], %842 {strides = array<i32>} : memref<28x16x28xf32, #tpu.memory_space<vmem>>, vector<1x16x28xf32>,
    %c13 = arith.constant 13 : index
    %c0_278 = arith.constant 0 : index
    %c0_279 = arith.constant 0 : index
    %843 = vector.load %arg18[%c13, %c0_278, %c0_279] : memref<28x16x28xf32, #tpu.memory_space<vmem>>, vector<1x16x28xf32>
    %844 = vector.shape_cast %843 : vector<1x16x28xf32> to vector<16x28xf32>
    %845 = vector.shape_cast %651 : vector<16x28xf32> to vector<1x16x28xf32>
    tpu.vector_store %arg18[%c13, %c0_278, %c0_279], %845 {strides = array<i32>} : memref<28x16x28xf32, #tpu.memory_space<vmem>>, vector<1x16x28xf32>,
    %c14 = arith.constant 14 : index
    %c0_280 = arith.constant 0 : index
    %c0_281 = arith.constant 0 : index
    %846 = vector.load %arg18[%c14, %c0_280, %c0_281] : memref<28x16x28xf32, #tpu.memory_space<vmem>>, vector<1x16x28xf32>
    %847 = vector.shape_cast %846 : vector<1x16x28xf32> to vector<16x28xf32>
    %848 = vector.shape_cast %661 : vector<16x28xf32> to vector<1x16x28xf32>
    tpu.vector_store %arg18[%c14, %c0_280, %c0_281], %848 {strides = array<i32>} : memref<28x16x28xf32, #tpu.memory_space<vmem>>, vector<1x16x28xf32>,
    %c15 = arith.constant 15 : index
    %c0_282 = arith.constant 0 : index
    %c0_283 = arith.constant 0 : index
    %849 = vector.load %arg18[%c15, %c0_282, %c0_283] : memref<28x16x28xf32, #tpu.memory_space<vmem>>, vector<1x16x28xf32>
    %850 = vector.shape_cast %849 : vector<1x16x28xf32> to vector<16x28xf32>
    %851 = vector.shape_cast %673 : vector<16x28xf32> to vector<1x16x28xf32>
    tpu.vector_store %arg18[%c15, %c0_282, %c0_283], %851 {strides = array<i32>} : memref<28x16x28xf32, #tpu.memory_space<vmem>>, vector<1x16x28xf32>,
    %c16 = arith.constant 16 : index
    %c0_284 = arith.constant 0 : index
    %c0_285 = arith.constant 0 : index
    %852 = vector.load %arg18[%c16, %c0_284, %c0_285] : memref<28x16x28xf32, #tpu.memory_space<vmem>>, vector<1x16x28xf32>
    %853 = vector.shape_cast %852 : vector<1x16x28xf32> to vector<16x28xf32>
    %854 = vector.shape_cast %683 : vector<16x28xf32> to vector<1x16x28xf32>
    tpu.vector_store %arg18[%c16, %c0_284, %c0_285], %854 {strides = array<i32>} : memref<28x16x28xf32, #tpu.memory_space<vmem>>, vector<1x16x28xf32>,
    %c17 = arith.constant 17 : index
    %c0_286 = arith.constant 0 : index
    %c0_287 = arith.constant 0 : index
    %855 = vector.load %arg18[%c17, %c0_286, %c0_287] : memref<28x16x28xf32, #tpu.memory_space<vmem>>, vector<1x16x28xf32>
    %856 = vector.shape_cast %855 : vector<1x16x28xf32> to vector<16x28xf32>
    %857 = vector.shape_cast %695 : vector<16x28xf32> to vector<1x16x28xf32>
    tpu.vector_store %arg18[%c17, %c0_286, %c0_287], %857 {strides = array<i32>} : memref<28x16x28xf32, #tpu.memory_space<vmem>>, vector<1x16x28xf32>,
    %c18 = arith.constant 18 : index
    %c0_288 = arith.constant 0 : index
    %c0_289 = arith.constant 0 : index
    %858 = vector.load %arg18[%c18, %c0_288, %c0_289] : memref<28x16x28xf32, #tpu.memory_space<vmem>>, vector<1x16x28xf32>
    %859 = vector.shape_cast %858 : vector<1x16x28xf32> to vector<16x28xf32>
    %860 = vector.shape_cast %705 : vector<16x28xf32> to vector<1x16x28xf32>
    tpu.vector_store %arg18[%c18, %c0_288, %c0_289], %860 {strides = array<i32>} : memref<28x16x28xf32, #tpu.memory_space<vmem>>, vector<1x16x28xf32>,
    %c19 = arith.constant 19 : index
    %c0_290 = arith.constant 0 : index
    %c0_291 = arith.constant 0 : index
    %861 = vector.load %arg18[%c19, %c0_290, %c0_291] : memref<28x16x28xf32, #tpu.memory_space<vmem>>, vector<1x16x28xf32>
    %862 = vector.shape_cast %861 : vector<1x16x28xf32> to vector<16x28xf32>
    %863 = vector.shape_cast %717 : vector<16x28xf32> to vector<1x16x28xf32>
    tpu.vector_store %arg18[%c19, %c0_290, %c0_291], %863 {strides = array<i32>} : memref<28x16x28xf32, #tpu.memory_space<vmem>>, vector<1x16x28xf32>,
    %c20 = arith.constant 20 : index
    %c0_292 = arith.constant 0 : index
    %c0_293 = arith.constant 0 : index
    %864 = vector.load %arg18[%c20, %c0_292, %c0_293] : memref<28x16x28xf32, #tpu.memory_space<vmem>>, vector<1x16x28xf32>
    %865 = vector.shape_cast %864 : vector<1x16x28xf32> to vector<16x28xf32>
    %866 = vector.shape_cast %727 : vector<16x28xf32> to vector<1x16x28xf32>
    tpu.vector_store %arg18[%c20, %c0_292, %c0_293], %866 {strides = array<i32>} : memref<28x16x28xf32, #tpu.memory_space<vmem>>, vector<1x16x28xf32>,
    %c21 = arith.constant 21 : index
    %c0_294 = arith.constant 0 : index
    %c0_295 = arith.constant 0 : index
    %867 = vector.load %arg18[%c21, %c0_294, %c0_295] : memref<28x16x28xf32, #tpu.memory_space<vmem>>, vector<1x16x28xf32>
    %868 = vector.shape_cast %867 : vector<1x16x28xf32> to vector<16x28xf32>
    %869 = vector.shape_cast %739 : vector<16x28xf32> to vector<1x16x28xf32>
    tpu.vector_store %arg18[%c21, %c0_294, %c0_295], %869 {strides = array<i32>} : memref<28x16x28xf32, #tpu.memory_space<vmem>>, vector<1x16x28xf32>,
    %c22 = arith.constant 22 : index
    %c0_296 = arith.constant 0 : index
    %c0_297 = arith.constant 0 : index
    %870 = vector.load %arg18[%c22, %c0_296, %c0_297] : memref<28x16x28xf32, #tpu.memory_space<vmem>>, vector<1x16x28xf32>
    %871 = vector.shape_cast %870 : vector<1x16x28xf32> to vector<16x28xf32>
    %872 = vector.shape_cast %749 : vector<16x28xf32> to vector<1x16x28xf32>
    tpu.vector_store %arg18[%c22, %c0_296, %c0_297], %872 {strides = array<i32>} : memref<28x16x28xf32, #tpu.memory_space<vmem>>, vector<1x16x28xf32>,
    %c23 = arith.constant 23 : index
    %c0_298 = arith.constant 0 : index
    %c0_299 = arith.constant 0 : index
    %873 = vector.load %arg18[%c23, %c0_298, %c0_299] : memref<28x16x28xf32, #tpu.memory_space<vmem>>, vector<1x16x28xf32>
    %874 = vector.shape_cast %873 : vector<1x16x28xf32> to vector<16x28xf32>
    %875 = vector.shape_cast %761 : vector<16x28xf32> to vector<1x16x28xf32>
    tpu.vector_store %arg18[%c23, %c0_298, %c0_299], %875 {strides = array<i32>} : memref<28x16x28xf32, #tpu.memory_space<vmem>>, vector<1x16x28xf32>,
    %c24 = arith.constant 24 : index
    %c0_300 = arith.constant 0 : index
    %c0_301 = arith.constant 0 : index
    %876 = vector.load %arg18[%c24, %c0_300, %c0_301] : memref<28x16x28xf32, #tpu.memory_space<vmem>>, vector<1x16x28xf32>
    %877 = vector.shape_cast %876 : vector<1x16x28xf32> to vector<16x28xf32>
    %878 = vector.shape_cast %771 : vector<16x28xf32> to vector<1x16x28xf32>
    tpu.vector_store %arg18[%c24, %c0_300, %c0_301], %878 {strides = array<i32>} : memref<28x16x28xf32, #tpu.memory_space<vmem>>, vector<1x16x28xf32>,
    %c25 = arith.constant 25 : index
    %c0_302 = arith.constant 0 : index
    %c0_303 = arith.constant 0 : index
    %879 = vector.load %arg18[%c25, %c0_302, %c0_303] : memref<28x16x28xf32, #tpu.memory_space<vmem>>, vector<1x16x28xf32>
    %880 = vector.shape_cast %879 : vector<1x16x28xf32> to vector<16x28xf32>
    %881 = vector.shape_cast %783 : vector<16x28xf32> to vector<1x16x28xf32>
    tpu.vector_store %arg18[%c25, %c0_302, %c0_303], %881 {strides = array<i32>} : memref<28x16x28xf32, #tpu.memory_space<vmem>>, vector<1x16x28xf32>,
    %c26 = arith.constant 26 : index
    %c0_304 = arith.constant 0 : index
    %c0_305 = arith.constant 0 : index
    %882 = vector.load %arg18[%c26, %c0_304, %c0_305] : memref<28x16x28xf32, #tpu.memory_space<vmem>>, vector<1x16x28xf32>
    %883 = vector.shape_cast %882 : vector<1x16x28xf32> to vector<16x28xf32>
    %884 = vector.shape_cast %793 : vector<16x28xf32> to vector<1x16x28xf32>
    tpu.vector_store %arg18[%c26, %c0_304, %c0_305], %884 {strides = array<i32>} : memref<28x16x28xf32, #tpu.memory_space<vmem>>, vector<1x16x28xf32>,
    %c27 = arith.constant 27 : index
    %c0_306 = arith.constant 0 : index
    %c0_307 = arith.constant 0 : index
    %885 = vector.load %arg18[%c27, %c0_306, %c0_307] : memref<28x16x28xf32, #tpu.memory_space<vmem>>, vector<1x16x28xf32>
    %886 = vector.shape_cast %885 : vector<1x16x28xf32> to vector<16x28xf32>
    %887 = vector.shape_cast %803 : vector<16x28xf32> to vector<1x16x28xf32>
    tpu.vector_store %arg18[%c27, %c0_306, %c0_307], %887 {strides = array<i32>} : memref<28x16x28xf32, #tpu.memory_space<vmem>>, vector<1x16x28xf32>,
    return
  }
  func.func @transform_0(%arg0: i32) -> (i32, i32, i32) {
    %c0_i32 = arith.constant 0 : i32
    %c0_i32_0 = arith.constant 0 : i32
    %c0_i32_1 = arith.constant 0 : i32
    return %c0_i32, %arg0, %c0_i32_0 : i32, i32, i32
  }
  func.func @transform_1(%arg0: i32) -> (i32, i32, i32) {
    %c0_i32 = arith.constant 0 : i32
    %c0_i32_0 = arith.constant 0 : i32
    %c0_i32_1 = arith.constant 0 : i32
    %c0_i32_2 = arith.constant 0 : i32
    return %c0_i32, %c0_i32_0, %c0_i32_1 : i32, i32, i32
  }
  func.func @transform_2(%arg0: i32) -> (i32, i32) {
    %c0_i32 = arith.constant 0 : i32
    %c0_i32_0 = arith.constant 0 : i32
    %c0_i32_1 = arith.constant 0 : i32
    return %c0_i32, %c0_i32_0 : i32, i32
  }
  func.func @transform_3(%arg0: i32) -> (i32, i32, i32) {
    %c0_i32 = arith.constant 0 : i32
    %c0_i32_0 = arith.constant 0 : i32
    %c0_i32_1 = arith.constant 0 : i32
    %c0_i32_2 = arith.constant 0 : i32
    return %c0_i32, %c0_i32_0, %c0_i32_1 : i32, i32, i32
  }
  func.func @transform_4(%arg0: i32) -> (i32, i32) {
    %c0_i32 = arith.constant 0 : i32
    %c0_i32_0 = arith.constant 0 : i32
    %c0_i32_1 = arith.constant 0 : i32
    return %c0_i32, %c0_i32_0 : i32, i32
  }
  func.func @transform_5(%arg0: i32) -> (i32, i32, i32) {
    %c0_i32 = arith.constant 0 : i32
    %c0_i32_0 = arith.constant 0 : i32
    %c0_i32_1 = arith.constant 0 : i32
    %c0_i32_2 = arith.constant 0 : i32
    return %c0_i32, %c0_i32_0, %c0_i32_1 : i32, i32, i32
  }
  func.func @transform_6(%arg0: i32) -> (i32, i32) {
    %c0_i32 = arith.constant 0 : i32
    %c0_i32_0 = arith.constant 0 : i32
    %c0_i32_1 = arith.constant 0 : i32
    return %c0_i32, %c0_i32_0 : i32, i32
  }
  func.func @transform_7(%arg0: i32) -> (i32, i32, i32) {
    %c0_i32 = arith.constant 0 : i32
    %c0_i32_0 = arith.constant 0 : i32
    %c0_i32_1 = arith.constant 0 : i32
    %c0_i32_2 = arith.constant 0 : i32
    return %c0_i32, %c0_i32_0, %c0_i32_1 : i32, i32, i32
  }
  func.func @transform_8(%arg0: i32) -> (i32, i32) {
    %c0_i32 = arith.constant 0 : i32
    %c0_i32_0 = arith.constant 0 : i32
    %c0_i32_1 = arith.constant 0 : i32
    return %c0_i32, %c0_i32_0 : i32, i32
  }
  func.func @transform_9(%arg0: i32) -> (i32, i32, i32) {
    %c0_i32 = arith.constant 0 : i32
    %c0_i32_0 = arith.constant 0 : i32
    %c0_i32_1 = arith.constant 0 : i32
    %c0_i32_2 = arith.constant 0 : i32
    return %c0_i32, %c0_i32_0, %c0_i32_1 : i32, i32, i32
  }
  func.func @transform_10(%arg0: i32) -> (i32, i32, i32) {
    %c0_i32 = arith.constant 0 : i32
    %c0_i32_0 = arith.constant 0 : i32
    %c0_i32_1 = arith.constant 0 : i32
    %c0_i32_2 = arith.constant 0 : i32
    return %c0_i32, %c0_i32_0, %c0_i32_1 : i32, i32, i32
  }
  func.func @transform_11(%arg0: i32) -> (i32, i32, i32) {
    %c0_i32 = arith.constant 0 : i32
    %c0_i32_0 = arith.constant 0 : i32
    %c0_i32_1 = arith.constant 0 : i32
    %c0_i32_2 = arith.constant 0 : i32
    return %c0_i32, %c0_i32_0, %c0_i32_1 : i32, i32, i32
  }
  func.func @transform_12(%arg0: i32) -> (i32, i32) {
    %c0_i32 = arith.constant 0 : i32
    %c0_i32_0 = arith.constant 0 : i32
    %c0_i32_1 = arith.constant 0 : i32
    return %c0_i32, %c0_i32_0 : i32, i32
  }
  func.func @transform_13(%arg0: i32) -> (i32, i32, i32) {
    %c0_i32 = arith.constant 0 : i32
    %c0_i32_0 = arith.constant 0 : i32
    %c0_i32_1 = arith.constant 0 : i32
    %c0_i32_2 = arith.constant 0 : i32
    return %c0_i32, %c0_i32_0, %c0_i32_1 : i32, i32, i32
  }
  func.func @transform_14(%arg0: i32) -> (i32, i32) {
    %c0_i32 = arith.constant 0 : i32
    %c0_i32_0 = arith.constant 0 : i32
    %c0_i32_1 = arith.constant 0 : i32
    return %c0_i32, %c0_i32_0 : i32, i32
  }
  func.func @transform_15(%arg0: i32) -> (i32, i32, i32) {
    %c0_i32 = arith.constant 0 : i32
    %c0_i32_0 = arith.constant 0 : i32
    %c0_i32_1 = arith.constant 0 : i32
    %c0_i32_2 = arith.constant 0 : i32
    return %c0_i32, %c0_i32_0, %c0_i32_1 : i32, i32, i32
  }
  func.func @transform_16(%arg0: i32) -> (i32, i32) {
    %c0_i32 = arith.constant 0 : i32
    %c0_i32_0 = arith.constant 0 : i32
    %c0_i32_1 = arith.constant 0 : i32
    return %c0_i32, %c0_i32_0 : i32, i32
  }
  func.func @transform_17(%arg0: i32) -> (i32, i32, i32) {
    %c0_i32 = arith.constant 0 : i32
    %c0_i32_0 = arith.constant 0 : i32
    %c0_i32_1 = arith.constant 0 : i32
    return %c0_i32, %arg0, %c0_i32_0 : i32, i32, i32
  }
  func.func @transform_18(%arg0: i32) -> (i32, i32) {
    %c0_i32 = arith.constant 0 : i32
    %c0_i32_0 = arith.constant 0 : i32
    return %arg0, %c0_i32 : i32, i32
  }
}

</mosaic_0001>

<llo_original>
// kernel: conv_autoencoder_forward.1
$region0: #{conv_autoencoder_forward.1}
  #allocation0 [shape = 'u32[]', space=smem, size = 0x4, offset = 0x4, fixed_abs, tag = 'smem constant byte address 0x4 - core index']
  #allocation1 [shape = 'u32[144,128]{1,0:T(1,128)}', space=vmem, size = 0x12000, scoped, tag = 'internal scratch']
  %s0 = inlined_call_operand.vmem [shape: f32[28,16,28], index: 0, kind: input, shape index: {}]
  %s1 = inlined_call_operand.hbm [shape: f32[3,28,224], index: 1, kind: input, shape index: {}]
  %s2 = inlined_call_operand.vmem [shape: f32[1,224], index: 2, kind: input, shape index: {}]
  %s3 = inlined_call_operand.vmem [shape: f32[3,224,224], index: 3, kind: input, shape index: {}]
  %s4 = inlined_call_operand.vmem [shape: f32[1,224], index: 4, kind: input, shape index: {}]
  %s5 = inlined_call_operand.vmem [shape: f32[3,224,192], index: 5, kind: input, shape index: {}]
  %s6 = inlined_call_operand.vmem [shape: f32[1,192], index: 6, kind: input, shape index: {}]
  %s7 = inlined_call_operand.vmem [shape: f32[3,192,64], index: 7, kind: input, shape index: {}]
  %s8 = inlined_call_operand.vmem [shape: f32[1,64], index: 8, kind: input, shape index: {}]
  %s9 = inlined_call_operand.vmem [shape: f32[3,64,192], index: 9, kind: input, shape index: {}]
  %s10 = inlined_call_operand.vmem [shape: f32[3,1,192], index: 10, kind: input, shape index: {}]
  %s11 = inlined_call_operand.hbm [shape: f32[3,192,224], index: 11, kind: input, shape index: {}]
  %s12 = inlined_call_operand.vmem [shape: f32[1,224], index: 12, kind: input, shape index: {}]
  %s13 = inlined_call_operand.vmem [shape: f32[3,224,224], index: 13, kind: input, shape index: {}]
  %s14 = inlined_call_operand.vmem [shape: f32[1,224], index: 14, kind: input, shape index: {}]
  %s15 = inlined_call_operand.vmem [shape: f32[3,224,28], index: 15, kind: input, shape index: {}]
  %s16 = inlined_call_operand.vmem [shape: f32[1,28], index: 16, kind: input, shape index: {}]
  %s17 = inlined_call_operand.vmem [shape: f32[28,16,28], index: 17, kind: output, shape index: {0}]
  %s18 = inlined_call_operand.vmem [shape: f32[16,64], index: 18, kind: output, shape index: {1}]
  %19 = xla_tuple %s17, %s18
  %s20 = sld [smem:[#allocation0]]
  $region94: #{conv_autoencoder_forward.1} parent=0
    _
  %s22 = ssub.s32 1, %s20
  %s23 = scalar_select 0, %s22, %s20
  $region1: #{conv_autoencoder_forward.1} parent=0
    #allocation2 [shape = 'u8[98304]{0}', space=vmem, size = 0x18000, scoped, tag = 'input window, operand 1, single buffered']
    #allocation3 [shape = 's32[1]{0}', space=sflag, size = 0x4, scoped, tag = 'scoped memory for conv_autoencoder_forward.1']
    #allocation4 [shape = 'u8[589824]{0}', space=vmem, size = 0x90000, scoped, tag = 'input window, operand 11, single buffered']
    #allocation5 [shape = 's32[1]{0}', space=sflag, size = 0x4, scoped, tag = 'scoped memory for conv_autoencoder_forward.1']
    %24 = vsyncpa [#allocation3], 0
    %25 = vsyncpa [#allocation5], 0
    // Predicated region
    $region2: #{conv_autoencoder_forward.1} parent=1 // pred_check
      _
    $region3: #{conv_autoencoder_forward.1} parent=1 // pred_check_branch
      %27 = sbr.rel (0) target = $region5
    $region4: #{conv_autoencoder_forward.1} parent=1 // pred_region
      _
    $region5: #{conv_autoencoder_forward.1} parent=1 // pred_fallthru
      _
    // Predicated region
    $region6: #{conv_autoencoder_forward.1} parent=1 // pred_check
      _
    $region7: #{conv_autoencoder_forward.1} parent=1 // pred_check_branch
      %29 = sbr.rel (0) target = $region9
    $region8: #{conv_autoencoder_forward.1} parent=1 // pred_region
      %s31 = ssub.s32 3072, 3072
      %32 = vsyncadd [#allocation3], %s31
      %s33 = sshll.u32 [#allocation2], 4
      %s34 = int_to_ptr.vmem [resolvable:$true] %s33
      %39 = dma.hbm_to_vmem [thread:$0]  %s1, 3072, %s34, [#allocation3], 256, 256, 16
    $region9: #{conv_autoencoder_forward.1} parent=1 // pred_fallthru
      _
    // Predicated region
    $region10: #{conv_autoencoder_forward.1} parent=1 // pred_check
      _
    $region11: #{conv_autoencoder_forward.1} parent=1 // pred_check_branch
      %41 = sbr.rel (0) target = $region13
    $region12: #{conv_autoencoder_forward.1} parent=1 // pred_region
      _
    $region13: #{conv_autoencoder_forward.1} parent=1 // pred_fallthru
      _
    // Predicated region
    $region14: #{conv_autoencoder_forward.1} parent=1 // pred_check
      _
    $region15: #{conv_autoencoder_forward.1} parent=1 // pred_check_branch
      %43 = sbr.rel (0) target = $region17
    $region16: #{conv_autoencoder_forward.1} parent=1 // pred_region
      _
    $region17: #{conv_autoencoder_forward.1} parent=1 // pred_fallthru
      _
    // Predicated region
    $region18: #{conv_autoencoder_forward.1} parent=1 // pred_check
      _
    $region19: #{conv_autoencoder_forward.1} parent=1 // pred_check_branch
      %45 = sbr.rel (0) target = $region21
    $region20: #{conv_autoencoder_forward.1} parent=1 // pred_region
      _
    $region21: #{conv_autoencoder_forward.1} parent=1 // pred_fallthru
      _
    // Predicated region
    $region22: #{conv_autoencoder_forward.1} parent=1 // pred_check
      _
    $region23: #{conv_autoencoder_forward.1} parent=1 // pred_check_branch
      %47 = sbr.rel (0) target = $region25
    $region24: #{conv_autoencoder_forward.1} parent=1 // pred_region
      _
    $region25: #{conv_autoencoder_forward.1} parent=1 // pred_fallthru
      _
    // Predicated region
    $region26: #{conv_autoencoder_forward.1} parent=1 // pred_check
      _
    $region27: #{conv_autoencoder_forward.1} parent=1 // pred_check_branch
      %49 = sbr.rel (0) target = $region29
    $region28: #{conv_autoencoder_forward.1} parent=1 // pred_region
      _
    $region29: #{conv_autoencoder_forward.1} parent=1 // pred_fallthru
      _
    // Predicated region
    $region30: #{conv_autoencoder_forward.1} parent=1 // pred_check
      _
    $region31: #{conv_autoencoder_forward.1} parent=1 // pred_check_branch
      %51 = sbr.rel (0) target = $region33
    $region32: #{conv_autoencoder_forward.1} parent=1 // pred_region
      _
    $region33: #{conv_autoencoder_forward.1} parent=1 // pred_fallthru
      _
    // Predicated region
    $region34: #{conv_autoencoder_forward.1} parent=1 // pred_check
      _
    $region35: #{conv_autoencoder_forward.1} parent=1 // pred_check_branch
      %53 = sbr.rel (0) target = $region37
    $region36: #{conv_autoencoder_forward.1} parent=1 // pred_region
      _
    $region37: #{conv_autoencoder_forward.1} parent=1 // pred_fallthru
      _
    // Predicated region
    $region38: #{conv_autoencoder_forward.1} parent=1 // pred_check
      _
    $region39: #{conv_autoencoder_forward.1} parent=1 // pred_check_branch
      %55 = sbr.rel (0) target = $region41
    $region40: #{conv_autoencoder_forward.1} parent=1 // pred_region
      _
    $region41: #{conv_autoencoder_forward.1} parent=1 // pred_fallthru
      _
    // Predicated region
    $region42: #{conv_autoencoder_forward.1} parent=1 // pred_check
      _
    $region43: #{conv_autoencoder_forward.1} parent=1 // pred_check_branch
      %57 = sbr.rel (0) target = $region45
    $region44: #{conv_autoencoder_forward.1} parent=1 // pred_region
      _
    $region45: #{conv_autoencoder_forward.1} parent=1 // pred_fallthru
      _
    // Predicated region
    $region46: #{conv_autoencoder_forward.1} parent=1 // pred_check
      _
    $region47: #{conv_autoencoder_forward.1} parent=1 // pred_check_branch
      %59 = sbr.rel (0) target = $region49
    $region48: #{conv_autoencoder_forward.1} parent=1 // pred_region
      %s61 = ssub.s32 18432, 18432
      %62 = vsyncadd [#allocation5], %s61
      %s63 = sshll.u32 [#allocation4], 4
      %s64 = int_to_ptr.vmem [resolvable:$true] %s63
      %69 = dma.hbm_to_vmem [thread:$0]  %s11, 18432, %s64, [#allocation5], 256, 256, 16
    $region49: #{conv_autoencoder_forward.1} parent=1 // pred_fallthru
      _
    // Predicated region
    $region50: #{conv_autoencoder_forward.1} parent=1 // pred_check
      _
    $region51: #{conv_autoencoder_forward.1} parent=1 // pred_check_branch
      %71 = sbr.rel (0) target = $region53
    $region52: #{conv_autoencoder_forward.1} parent=1 // pred_region
      _
    $region53: #{conv_autoencoder_forward.1} parent=1 // pred_fallthru
      _
    // Predicated region
    $region54: #{conv_autoencoder_forward.1} parent=1 // pred_check
      _
    $region55: #{conv_autoencoder_forward.1} parent=1 // pred_check_branch
      %73 = sbr.rel (0) target = $region57
    $region56: #{conv_autoencoder_forward.1} parent=1 // pred_region
      _
    $region57: #{conv_autoencoder_forward.1} parent=1 // pred_fallthru
      _
    // Predicated region
    $region58: #{conv_autoencoder_forward.1} parent=1 // pred_check
      _
    $region59: #{conv_autoencoder_forward.1} parent=1 // pred_check_branch
      %75 = sbr.rel (0) target = $region61
    $region60: #{conv_autoencoder_forward.1} parent=1 // pred_region
      _
    $region61: #{conv_autoencoder_forward.1} parent=1 // pred_fallthru
      _
    // Predicated region
    $region62: #{conv_autoencoder_forward.1} parent=1 // pred_check
      _
    $region63: #{conv_autoencoder_forward.1} parent=1 // pred_check_branch
      %77 = sbr.rel (0) target = $region65
    $region64: #{conv_autoencoder_forward.1} parent=1 // pred_region
      _
    $region65: #{conv_autoencoder_forward.1} parent=1 // pred_fallthru
      _
    // Predicated region
    $region66: #{conv_autoencoder_forward.1} parent=1 // pred_check
      _
    $region67: #{conv_autoencoder_forward.1} parent=1 // pred_check_branch
      %79 = sbr.rel (0) target = $region69
    $region68: #{conv_autoencoder_forward.1} parent=1 // pred_region
      _
    $region69: #{conv_autoencoder_forward.1} parent=1 // pred_fallthru
      _
    // Predicated region
    $region70: #{conv_autoencoder_forward.1} parent=1 // pred_check
      _
    $region71: #{conv_autoencoder_forward.1} parent=1 // pred_check_branch
      %81 = sbr.rel (0) target = $region73
    $region72: #{conv_autoencoder_forward.1} parent=1 // pred_region
      %82 = dma.done [#allocation3], 3072
    $region73: #{conv_autoencoder_forward.1} parent=1 // pred_fallthru
      _
    // Predicated region
    $region74: #{conv_autoencoder_forward.1} parent=1 // pred_check
      _
    $region75: #{conv_autoencoder_forward.1} parent=1 // pred_check_branch
      %84 = sbr.rel (0) target = $region77
    $region76: #{conv_autoencoder_forward.1} parent=1 // pred_region
      %85 = dma.done [#allocation5], 18432
    $region77: #{conv_autoencoder_forward.1} parent=1 // pred_fallthru
      _
    %v86 = vld [vmem:[%s0] sm:$0xff]
    %v87 = vld [vmem:[%s0 + $0x8] sm:$0xff]
    %v88 = vld [vmem:[%s0 + $0x10] sm:$0xff]
    %v89 = vld [vmem:[%s0 + $0x18] sm:$0xff]
    %v90 = vld [vmem:[%s0 + $0x20] sm:$0xff]
    %v91 = vld [vmem:[%s0 + $0x28] sm:$0xff]
    %v92 = vld [vmem:[%s0 + $0x30] sm:$0xff]
    %v93 = vld [vmem:[%s0 + $0x38] sm:$0xff]
    %v94 = vld [vmem:[%s0 + $0x40] sm:$0xff]
    %v95 = vld [vmem:[%s0 + $0x48] sm:$0xff]
    %v96 = vld [vmem:[%s0 + $0x50] sm:$0xff]
    %v97 = vld [vmem:[%s0 + $0x58] sm:$0xff]
    %v98 = vld [vmem:[%s0 + $0x60] sm:$0xff]
    %v99 = vld [vmem:[%s0 + $0x68] sm:$0xff]
    %v100 = vld [vmem:[%s0 + $0x70] sm:$0xff]
    %v101 = vld [vmem:[%s0 + $0x78] sm:$0xff]
    %v102 = vld [vmem:[%s0 + $0x80] sm:$0xff]
    %v103 = vld [vmem:[%s0 + $0x88] sm:$0xff]
    %v104 = vld [vmem:[%s0 + $0x90] sm:$0xff]
    %v105 = vld [vmem:[%s0 + $0x98] sm:$0xff]
    %v106 = vld [vmem:[%s0 + $0xa0] sm:$0xff]
    %v107 = vld [vmem:[%s0 + $0xa8] sm:$0xff]
    %v108 = vld [vmem:[%s0 + $0xb0] sm:$0xff]
    %v109 = vld [vmem:[%s0 + $0xb8] sm:$0xff]
    %v110 = vld [vmem:[%s0 + $0xc0] sm:$0xff]
    %v111 = vld [vmem:[%s0 + $0xc8] sm:$0xff]
    %v112 = vld [vmem:[%s0 + $0xd0] sm:$0xff]
    %v113 = vld [vmem:[%s0 + $0xd8] sm:$0xff]
    %v114 = vld [vmem:[%s0 + $0xe0] sm:$0xff]
    %v115 = vld [vmem:[%s0 + $0xe8] sm:$0xff]
    %v116 = vld [vmem:[%s0 + $0xf0] sm:$0xff]
    %v117 = vld [vmem:[%s0 + $0xf8] sm:$0xff]
    %v118 = vld [vmem:[%s0 + $0x100] sm:$0xff]
    %v119 = vld [vmem:[%s0 + $0x108] sm:$0xff]
    %v120 = vld [vmem:[%s0 + $0x110] sm:$0xff]
    %v121 = vld [vmem:[%s0 + $0x118] sm:$0xff]
    %v122 = vld [vmem:[%s0 + $0x120] sm:$0xff]
    %v123 = vld [vmem:[%s0 + $0x128] sm:$0xff]
    %v124 = vld [vmem:[%s0 + $0x130] sm:$0xff]
    %v125 = vld [vmem:[%s0 + $0x138] sm:$0xff]
    %v126 = vld [vmem:[%s0 + $0x140] sm:$0xff]
    %v127 = vld [vmem:[%s0 + $0x148] sm:$0xff]
    %v128 = vld [vmem:[%s0 + $0x150] sm:$0xff]
    %v129 = vld [vmem:[%s0 + $0x158] sm:$0xff]
    %v130 = vld [vmem:[%s0 + $0x160] sm:$0xff]
    %v131 = vld [vmem:[%s0 + $0x168] sm:$0xff]
    %v132 = vld [vmem:[%s0 + $0x170] sm:$0xff]
    %v133 = vld [vmem:[%s0 + $0x178] sm:$0xff]
    %v134 = vld [vmem:[%s0 + $0x180] sm:$0xff]
    %v135 = vld [vmem:[%s0 + $0x188] sm:$0xff]
    %v136 = vld [vmem:[%s0 + $0x190] sm:$0xff]
    %v137 = vld [vmem:[%s0 + $0x198] sm:$0xff]
    %v138 = vld [vmem:[%s0 + $0x1a0] sm:$0xff]
    %v139 = vld [vmem:[%s0 + $0x1a8] sm:$0xff]
    %v140 = vld [vmem:[%s0 + $0x1b0] sm:$0xff]
    %v141 = vld [vmem:[%s0 + $0x1b8] sm:$0xff]
    %v142 = vld [vmem:[%s2] sm:$0x3]
    %v143 = vld [vmem:[#allocation2] sm:$0xff]
    %v144 = vld [vmem:[#allocation2 + $0x8] sm:$0xff]
    %v145 = vld [vmem:[#allocation2 + $0x10] sm:$0xff]
    %v146 = vld [vmem:[#allocation2 + $0x18] sm:$0xff]
    %v147 = vld [vmem:[#allocation2 + $0x20] sm:$0xff]
    %v148 = vld [vmem:[#allocation2 + $0x28] sm:$0xff]
    %v149 = vld [vmem:[#allocation2 + $0x30] sm:$0xf]
    %v150 = vld [vmem:[#allocation2 + $0x38] sm:$0xf]
    %vm151 = vcmask 228352
    %v153 = vsel %vm151, %v88, 0
    %v156 = vsel %vm151, %v89, 0
    %v159 = vsel %vm151, %v92, 0
    %v162 = vsel %vm151, %v93, 0
    %v165 = vsel %vm151, %v96, 0
    %v168 = vsel %vm151, %v97, 0
    %v171 = vsel %vm151, %v100, 0
    %v174 = vsel %vm151, %v101, 0
    %v177 = vsel %vm151, %v104, 0
    %v180 = vsel %vm151, %v105, 0
    %v183 = vsel %vm151, %v108, 0
    %v186 = vsel %vm151, %v109, 0
    %v189 = vsel %vm151, %v112, 0
    %v192 = vsel %vm151, %v113, 0
    %v195 = vsel %vm151, %v116, 0
    %v198 = vsel %vm151, %v117, 0
    %v201 = vsel %vm151, %v120, 0
    %v204 = vsel %vm151, %v121, 0
    %v207 = vsel %vm151, %v124, 0
    %v210 = vsel %vm151, %v125, 0
    %v213 = vsel %vm151, %v128, 0
    %v216 = vsel %vm151, %v129, 0
    %v219 = vsel %vm151, %v132, 0
    %v222 = vsel %vm151, %v133, 0
    %v225 = vsel %vm151, %v136, 0
    %v228 = vsel %vm151, %v137, 0
    %vm230 = vcmask 1043456
    %v232 = vsel %vm230, %v149, 0
    %v235 = vsel %vm230, %v150, 0
    %237 = vmatprep.subr.mxu0 %v144
    %238 = vmatpush1.msra.mxu0 %v143
    %239 = vmatprep.subr.mxu0 %v146
    %240 = vmatpush1.msra.mxu0 %v145
    %241 = vmatprep.subr.mxu0 %v148
    %242 = vmatpush1.msra.mxu0 %v147
    %243 = vmatprep.subr.mxu0 %v235
    %244 = vmatpush1.msra.mxu0 %v232
    %245 = vmatprep.subr.mxu0 0.0
    %246 = vmatpush1.msra.mxu0 0.0
    %247 = vmatprep.subr.mxu0 0.0
    %248 = vmatpush1.msra.mxu0 0.0
    %249 = vmatprep.subr.mxu0 0.0
    %250 = vmatpush1.msra.mxu0 0.0
    %251 = vmatprep.subr.mxu0 0.0
    %252 = vmatpush1.msra.mxu0 0.0
    %253 = vmatprep.subr.mxu0 0.0
    %254 = vmatpush1.msra.mxu0 0.0
    %255 = vmatprep.subr.mxu0 0.0
    %256 = vmatpush1.msra.mxu0 0.0
    %257 = vmatprep.subr.mxu0 0.0
    %258 = vmatpush1.msra.mxu0 0.0
    %259 = vmatprep.subr.mxu0 0.0
    %260 = vmatpush1.msra.mxu0 0.0
    %261 = vmatprep.subr.mxu0 0.0
    %262 = vmatpush1.msra.mxu0 0.0
    %263 = vmatprep.subr.mxu0 0.0
    %264 = vmatpush1.msra.mxu0 0.0
    %265 = vmatprep.subr.mxu0 0.0
    %266 = vmatpush1.msra.mxu0 0.0
    %267 = vmatprep.subr.mxu0 0.0
    %268 = vmatpush1.msra.mxu0 0.0
    %269 = vmatprep.subr.mxu0 0.0
    %270 = vmatpush1.msra.mxu0 0.0
    %271 = vmatprep.subr.mxu0 0.0
    %272 = vmatpush1.msra.mxu0 0.0
    %273 = vmatprep.subr.mxu0 0.0
    %274 = vmatpush1.msra.mxu0 0.0
    %275 = vmatprep.subr.mxu0 0.0
    %276 = vmatpush1.msra.mxu0 0.0
    %277 = vmatprep.subr.mxu0 0.0
    %278 = vmatpush1.msra.mxu0 0.0
    %279 = vmatprep.subr.mxu0 0.0
    %280 = vmatpush1.msra.mxu0 0.0
    %281 = vmatprep.subr.mxu0 0.0
    %282 = vmatpush1.msra.mxu0 0.0
    %283 = vmatprep.subr.mxu0 0.0
    %284 = vmatpush1.msra.mxu0 0.0
    %285 = vmatprep.subr.mxu0 0.0
    %286 = vmatpush1.msra.mxu0 0.0
    %287 = vmatprep.subr.mxu0 0.0
    %288 = vmatpush1.msra.mxu0 0.0
    %289 = vmatprep.subr.mxu0 0.0
    %290 = vmatpush1.msra.mxu0 0.0
    %291 = vmatprep.subr.mxu0 0.0
    %292 = vmatpush1.msra.mxu0 0.0
    %293 = vmatprep.subr.mxu0 0.0
    %294 = vmatpush1.msra.mxu0 0.0
    %295 = vmatprep.subr.mxu0 0.0
    %296 = vmatpush1.msra.mxu0 0.0
    %297 = vmatprep.subr.mxu0 0.0
    %298 = vmatpush1.msra.mxu0 0.0
    %299 = vmatprep.subr.mxu0 0.0
    %300 = vmatpush1.msra.mxu0 0.0
    %301 = vmatprep.mubr.f32.mxu0 0.0
    %302 = vmatmul.mubr.f32.gmra.mrb[0].mxu0 %v153
    %v303 = vpop.f32.mrb[0].mxu0
    %v304 = vadd.f32 0.0, %v303
    %v305 = vpop.f32.mrb[0].mxu0
    %v306 = vadd.f32 0.0, %v305
    %307 = vmatprep.mubr.f32.mxu0 0.0
    %308 = vmatmul.mubr.f32.gmra.mrb[0].mxu0 %v156
    %v309 = vpop.f32.mrb[0].mxu0
    %v310 = vadd.f32 0.0, %v309
    %v311 = vpop.f32.mrb[0].mxu0
    %v312 = vadd.f32 0.0, %v311
    %313 = vmatprep.mubr.f32.mxu0 0.0
    %314 = vmatmul.mubr.f32.gmra.mrb[0].mxu0 %v159
    %v315 = vpop.f32.mrb[0].mxu0
    %v316 = vadd.f32 0.0, %v315
    %v317 = vpop.f32.mrb[0].mxu0
    %v318 = vadd.f32 0.0, %v317
    %319 = vmatprep.mubr.f32.mxu0 0.0
    %320 = vmatmul.mubr.f32.gmra.mrb[0].mxu0 %v162
    %v321 = vpop.f32.mrb[0].mxu0
    %v322 = vadd.f32 0.0, %v321
    %v323 = vpop.f32.mrb[0].mxu0
    %v324 = vadd.f32 0.0, %v323
    %325 = vmatprep.mubr.f32.mxu0 0.0
    %326 = vmatmul.mubr.f32.gmra.mrb[0].mxu0 %v165
    %v327 = vpop.f32.mrb[0].mxu0
    %v328 = vadd.f32 0.0, %v327
    %v329 = vpop.f32.mrb[0].mxu0
    %v330 = vadd.f32 0.0, %v329
    %331 = vmatprep.mubr.f32.mxu0 0.0
    %332 = vmatmul.mubr.f32.gmra.mrb[0].mxu0 %v168
    %v333 = vpop.f32.mrb[0].mxu0
    %v334 = vadd.f32 0.0, %v333
    %v335 = vpop.f32.mrb[0].mxu0
    %v336 = vadd.f32 0.0, %v335
    %337 = vmatprep.mubr.f32.mxu0 0.0
    %338 = vmatmul.mubr.f32.gmra.mrb[0].mxu0 %v171
    %v339 = vpop.f32.mrb[0].mxu0
    %v340 = vadd.f32 0.0, %v339
    %v341 = vpop.f32.mrb[0].mxu0
    %v342 = vadd.f32 0.0, %v341
    %343 = vmatprep.mubr.f32.mxu0 0.0
    %344 = vmatmul.mubr.f32.gmra.mrb[0].mxu0 %v174
    %v345 = vpop.f32.mrb[0].mxu0
    %v346 = vadd.f32 0.0, %v345
    %v347 = vpop.f32.mrb[0].mxu0
    %v348 = vadd.f32 0.0, %v347
    %349 = vmatprep.mubr.f32.mxu0 0.0
    %350 = vmatmul.mubr.f32.gmra.mrb[0].mxu0 %v177
    %v351 = vpop.f32.mrb[0].mxu0
    %v352 = vadd.f32 0.0, %v351
    %v353 = vpop.f32.mrb[0].mxu0
    %v354 = vadd.f32 0.0, %v353
    %355 = vmatprep.mubr.f32.mxu0 0.0
    %356 = vmatmul.mubr.f32.gmra.mrb[0].mxu0 %v180
    %v357 = vpop.f32.mrb[0].mxu0
    %v358 = vadd.f32 0.0, %v357
    %v359 = vpop.f32.mrb[0].mxu0
    %v360 = vadd.f32 0.0, %v359
    %361 = vmatprep.mubr.f32.mxu0 0.0
    %362 = vmatmul.mubr.f32.gmra.mrb[0].mxu0 %v183
    %v363 = vpop.f32.mrb[0].mxu0
    %v364 = vadd.f32 0.0, %v363
    %v365 = vpop.f32.mrb[0].mxu0
    %v366 = vadd.f32 0.0, %v365
    %367 = vmatprep.mubr.f32.mxu0 0.0
    %368 = vmatmul.mubr.f32.gmra.mrb[0].mxu0 %v186
    %v369 = vpop.f32.mrb[0].mxu0
    %v370 = vadd.f32 0.0, %v369
    %v371 = vpop.f32.mrb[0].mxu0
    %v372 = vadd.f32 0.0, %v371
    %373 = vmatprep.mubr.f32.mxu0 0.0
    %374 = vmatmul.mubr.f32.gmra.mrb[0].mxu0 %v189
    %v375 = vpop.f32.mrb[0].mxu0
    %v376 = vadd.f32 0.0, %v375
    %v377 = vpop.f32.mrb[0].mxu0
    %v378 = vadd.f32 0.0, %v377
    %379 = vmatprep.mubr.f32.mxu0 0.0
    %380 = vmatmul.mubr.f32.gmra.mrb[0].mxu0 %v192
    %v381 = vpop.f32.mrb[0].mxu0
    %v382 = vadd.f32 0.0, %v381
    %v383 = vpop.f32.mrb[0].mxu0
    %v384 = vadd.f32 0.0, %v383
    %385 = vmatprep.mubr.f32.mxu0 0.0
    %386 = vmatmul.mubr.f32.gmra.mrb[0].mxu0 %v195
    %v387 = vpop.f32.mrb[0].mxu0
    %v388 = vadd.f32 0.0, %v387
    %v389 = vpop.f32.mrb[0].mxu0
    %v390 = vadd.f32 0.0, %v389
    %391 = vmatprep.mubr.f32.mxu0 0.0
    %392 = vmatmul.mubr.f32.gmra.mrb[0].mxu0 %v198
    %v393 = vpop.f32.mrb[0].mxu0
    %v394 = vadd.f32 0.0, %v393
    %v395 = vpop.f32.mrb[0].mxu0
    %v396 = vadd.f32 0.0, %v395
    %397 = vmatprep.mubr.f32.mxu0 0.0
    %398 = vmatmul.mubr.f32.gmra.mrb[0].mxu0 %v201
    %v399 = vpop.f32.mrb[0].mxu0
    %v400 = vadd.f32 0.0, %v399
    %v401 = vpop.f32.mrb[0].mxu0
    %v402 = vadd.f32 0.0, %v401
    %403 = vmatprep.mubr.f32.mxu0 0.0
    %404 = vmatmul.mubr.f32.gmra.mrb[0].mxu0 %v204
    %v405 = vpop.f32.mrb[0].mxu0
    %v406 = vadd.f32 0.0, %v405
    %v407 = vpop.f32.mrb[0].mxu0
    %v408 = vadd.f32 0.0, %v407
    %409 = vmatprep.mubr.f32.mxu0 0.0
    %410 = vmatmul.mubr.f32.gmra.mrb[0].mxu0 %v207
    %v411 = vpop.f32.mrb[0].mxu0
    %v412 = vadd.f32 0.0, %v411
    %v413 = vpop.f32.mrb[0].mxu0
    %v414 = vadd.f32 0.0, %v413
    %415 = vmatprep.mubr.f32.mxu0 0.0
    %416 = vmatmul.mubr.f32.gmra.mrb[0].mxu0 %v210
    %v417 = vpop.f32.mrb[0].mxu0
    %v418 = vadd.f32 0.0, %v417
    %v419 = vpop.f32.mrb[0].mxu0
    %v420 = vadd.f32 0.0, %v419
    %421 = vmatprep.mubr.f32.mxu0 0.0
    %422 = vmatmul.mubr.f32.gmra.mrb[0].mxu0 %v213
    %v423 = vpop.f32.mrb[0].mxu0
    %v424 = vadd.f32 0.0, %v423
    %v425 = vpop.f32.mrb[0].mxu0
    %v426 = vadd.f32 0.0, %v425
    %427 = vmatprep.mubr.f32.mxu0 0.0
    %428 = vmatmul.mubr.f32.gmra.mrb[0].mxu0 %v216
    %v429 = vpop.f32.mrb[0].mxu0
    %v430 = vadd.f32 0.0, %v429
    %v431 = vpop.f32.mrb[0].mxu0
    %v432 = vadd.f32 0.0, %v431
    %433 = vmatprep.mubr.f32.mxu0 0.0
    %434 = vmatmul.mubr.f32.gmra.mrb[0].mxu0 %v219
    %v435 = vpop.f32.mrb[0].mxu0
    %v436 = vadd.f32 0.0, %v435
    %v437 = vpop.f32.mrb[0].mxu0
    %v438 = vadd.f32 0.0, %v437
    %439 = vmatprep.mubr.f32.mxu0 0.0
    %440 = vmatmul.mubr.f32.gmra.mrb[0].mxu0 %v222
    %v441 = vpop.f32.mrb[0].mxu0
    %v442 = vadd.f32 0.0, %v441
    %v443 = vpop.f32.mrb[0].mxu0
    %v444 = vadd.f32 0.0, %v443
    %445 = vmatprep.mubr.f32.mxu0 0.0
    %446 = vmatmul.mubr.f32.gmra.mrb[0].mxu0 %v225
    %v447 = vpop.f32.mrb[0].mxu0
    %v448 = vadd.f32 0.0, %v447
    %v449 = vpop.f32.mrb[0].mxu0
    %v450 = vadd.f32 0.0, %v449
    %451 = vmatprep.mubr.f32.mxu0 0.0
    %452 = vmatmul.mubr.f32.gmra.mrb[0].mxu0 %v228
    %v453 = vpop.f32.mrb[0].mxu0
    %v454 = vadd.f32 0.0, %v453
    %v455 = vpop.f32.mrb[0].mxu0
    %v456 = vadd.f32 0.0, %v455
    %457 = vdwg.mxu0
    %s458 = scalar_lea.vmem [#allocation2], 64
    %v459 = vld [vmem:[%s458] sm:$0xff]
    %v460 = vld [vmem:[%s458 + $0x8] sm:$0xff]
    %v461 = vld [vmem:[%s458 + $0x10] sm:$0xff]
    %v462 = vld [vmem:[%s458 + $0x18] sm:$0xff]
    %v463 = vld [vmem:[%s458 + $0x20] sm:$0xff]
    %v464 = vld [vmem:[%s458 + $0x28] sm:$0xff]
    %v465 = vld [vmem:[%s458 + $0x30] sm:$0xf]
    %v466 = vld [vmem:[%s458 + $0x38] sm:$0xf]
    %v468 = vsel %vm151, %v86, 0
    %v471 = vsel %vm151, %v87, 0
    %v474 = vsel %vm151, %v90, 0
    %v477 = vsel %vm151, %v91, 0
    %v480 = vsel %vm151, %v94, 0
    %v483 = vsel %vm151, %v95, 0
    %v486 = vsel %vm151, %v98, 0
    %v489 = vsel %vm151, %v99, 0
    %v492 = vsel %vm151, %v102, 0
    %v495 = vsel %vm151, %v103, 0
    %v498 = vsel %vm151, %v106, 0
    %v501 = vsel %vm151, %v107, 0
    %v504 = vsel %vm151, %v110, 0
    %v507 = vsel %vm151, %v111, 0
    %v510 = vsel %vm151, %v114, 0
    %v513 = vsel %vm151, %v115, 0
    %v516 = vsel %vm151, %v118, 0
    %v519 = vsel %vm151, %v119, 0
    %v522 = vsel %vm151, %v122, 0
    %v525 = vsel %vm151, %v123, 0
    %v528 = vsel %vm151, %v126, 0
    %v531 = vsel %vm151, %v127, 0
    %v534 = vsel %vm151, %v130, 0
    %v537 = vsel %vm151, %v131, 0
    %v540 = vsel %vm151, %v134, 0
    %v543 = vsel %vm151, %v135, 0
    %v546 = vsel %vm151, %v138, 0
    %v549 = vsel %vm151, %v139, 0
    %v552 = vsel %vm230, %v465, 0
    %v555 = vsel %vm230, %v466, 0
    %557 = vmatprep.subr.mxu0 %v460
    %558 = vmatpush1.msra.mxu0 %v459
    %559 = vmatprep.subr.mxu0 %v462
    %560 = vmatpush1.msra.mxu0 %v461
    %561 = vmatprep.subr.mxu0 %v464
    %562 = vmatpush1.msra.mxu0 %v463
    %563 = vmatprep.subr.mxu0 %v555
    %564 = vmatpush1.msra.mxu0 %v552
    %565 = vmatprep.subr.mxu0 0.0
    %566 = vmatpush1.msra.mxu0 0.0
    %567 = vmatprep.subr.mxu0 0.0
    %568 = vmatpush1.msra.mxu0 0.0
    %569 = vmatprep.subr.mxu0 0.0
    %570 = vmatpush1.msra.mxu0 0.0
    %571 = vmatprep.subr.mxu0 0.0
    %572 = vmatpush1.msra.mxu0 0.0
    %573 = vmatprep.subr.mxu0 0.0
    %574 = vmatpush1.msra.mxu0 0.0
    %575 = vmatprep.subr.mxu0 0.0
    %576 = vmatpush1.msra.mxu0 0.0
    %577 = vmatprep.subr.mxu0 0.0
    %578 = vmatpush1.msra.mxu0 0.0
    %579 = vmatprep.subr.mxu0 0.0
    %580 = vmatpush1.msra.mxu0 0.0
    %581 = vmatprep.subr.mxu0 0.0
    %582 = vmatpush1.msra.mxu0 0.0
    %583 = vmatprep.subr.mxu0 0.0
    %584 = vmatpush1.msra.mxu0 0.0
    %585 = vmatprep.subr.mxu0 0.0
    %586 = vmatpush1.msra.mxu0 0.0
    %587 = vmatprep.subr.mxu0 0.0
    %588 = vmatpush1.msra.mxu0 0.0
    %589 = vmatprep.subr.mxu0 0.0
    %590 = vmatpush1.msra.mxu0 0.0
    %591 = vmatprep.subr.mxu0 0.0
    %592 = vmatpush1.msra.mxu0 0.0
    %593 = vmatprep.subr.mxu0 0.0
    %594 = vmatpush1.msra.mxu0 0.0
    %595 = vmatprep.subr.mxu0 0.0
    %596 = vmatpush1.msra.mxu0 0.0
    %597 = vmatprep.subr.mxu0 0.0
    %598 = vmatpush1.msra.mxu0 0.0
    %599 = vmatprep.subr.mxu0 0.0
    %600 = vmatpush1.msra.mxu0 0.0
    %601 = vmatprep.subr.mxu0 0.0
    %602 = vmatpush1.msra.mxu0 0.0
    %603 = vmatprep.subr.mxu0 0.0
    %604 = vmatpush1.msra.mxu0 0.0
    %605 = vmatprep.subr.mxu0 0.0
    %606 = vmatpush1.msra.mxu0 0.0
    %607 = vmatprep.subr.mxu0 0.0
    %608 = vmatpush1.msra.mxu0 0.0
    %609 = vmatprep.subr.mxu0 0.0
    %610 = vmatpush1.msra.mxu0 0.0
    %611 = vmatprep.subr.mxu0 0.0
    %612 = vmatpush1.msra.mxu0 0.0
    %613 = vmatprep.subr.mxu0 0.0
    %614 = vmatpush1.msra.mxu0 0.0
    %615 = vmatprep.subr.mxu0 0.0
    %616 = vmatpush1.msra.mxu0 0.0
    %617 = vmatprep.subr.mxu0 0.0
    %618 = vmatpush1.msra.mxu0 0.0
    %619 = vmatprep.subr.mxu0 0.0
    %620 = vmatpush1.msra.mxu0 0.0
    %621 = vmatprep.mubr.f32.mxu0 0.0
    %622 = vmatmul.mubr.f32.gmra.mrb[0].mxu0 %v468
    %v623 = vpop.f32.mrb[0].mxu0
    %v624 = vadd.f32 0.0, %v623
    %v625 = vpop.f32.mrb[0].mxu0
    %v626 = vadd.f32 0.0, %v625
    %627 = vmatprep.mubr.f32.mxu0 0.0
    %628 = vmatmul.mubr.f32.gmra.mrb[0].mxu0 %v471
    %v629 = vpop.f32.mrb[0].mxu0
    %v630 = vadd.f32 0.0, %v629
    %v631 = vpop.f32.mrb[0].mxu0
    %v632 = vadd.f32 0.0, %v631
    %633 = vmatprep.mubr.f32.mxu0 0.0
    %634 = vmatmul.mubr.f32.gmra.mrb[0].mxu0 %v474
    %v635 = vpop.f32.mrb[0].mxu0
    %v636 = vadd.f32 0.0, %v635
    %v637 = vpop.f32.mrb[0].mxu0
    %v638 = vadd.f32 0.0, %v637
    %639 = vmatprep.mubr.f32.mxu0 0.0
    %640 = vmatmul.mubr.f32.gmra.mrb[0].mxu0 %v477
    %v641 = vpop.f32.mrb[0].mxu0
    %v642 = vadd.f32 0.0, %v641
    %v643 = vpop.f32.mrb[0].mxu0
    %v644 = vadd.f32 0.0, %v643
    %645 = vmatprep.mubr.f32.mxu0 0.0
    %646 = vmatmul.mubr.f32.gmra.mrb[0].mxu0 %v480
    %v647 = vpop.f32.mrb[0].mxu0
    %v648 = vadd.f32 0.0, %v647
    %v649 = vpop.f32.mrb[0].mxu0
    %v650 = vadd.f32 0.0, %v649
    %651 = vmatprep.mubr.f32.mxu0 0.0
    %652 = vmatmul.mubr.f32.gmra.mrb[0].mxu0 %v483
    %v653 = vpop.f32.mrb[0].mxu0
    %v654 = vadd.f32 0.0, %v653
    %v655 = vpop.f32.mrb[0].mxu0
    %v656 = vadd.f32 0.0, %v655
    %657 = vmatprep.mubr.f32.mxu0 0.0
    %658 = vmatmul.mubr.f32.gmra.mrb[0].mxu0 %v486
    %v659 = vpop.f32.mrb[0].mxu0
    %v660 = vadd.f32 0.0, %v659
    %v661 = vpop.f32.mrb[0].mxu0
    %v662 = vadd.f32 0.0, %v661
    %663 = vmatprep.mubr.f32.mxu0 0.0
    %664 = vmatmul.mubr.f32.gmra.mrb[0].mxu0 %v489
    %v665 = vpop.f32.mrb[0].mxu0
    %v666 = vadd.f32 0.0, %v665
    %v667 = vpop.f32.mrb[0].mxu0
    %v668 = vadd.f32 0.0, %v667
    %669 = vmatprep.mubr.f32.mxu0 0.0
    %670 = vmatmul.mubr.f32.gmra.mrb[0].mxu0 %v492
    %v671 = vpop.f32.mrb[0].mxu0
    %v672 = vadd.f32 0.0, %v671
    %v673 = vpop.f32.mrb[0].mxu0
    %v674 = vadd.f32 0.0, %v673
    %675 = vmatprep.mubr.f32.mxu0 0.0
    %676 = vmatmul.mubr.f32.gmra.mrb[0].mxu0 %v495
    %v677 = vpop.f32.mrb[0].mxu0
    %v678 = vadd.f32 0.0, %v677
    %v679 = vpop.f32.mrb[0].mxu0
    %v680 = vadd.f32 0.0, %v679
    %681 = vmatprep.mubr.f32.mxu0 0.0
    %682 = vmatmul.mubr.f32.gmra.mrb[0].mxu0 %v498
    %v683 = vpop.f32.mrb[0].mxu0
    %v684 = vadd.f32 0.0, %v683
    %v685 = vpop.f32.mrb[0].mxu0
    %v686 = vadd.f32 0.0, %v685
    %687 = vmatprep.mubr.f32.mxu0 0.0
    %688 = vmatmul.mubr.f32.gmra.mrb[0].mxu0 %v501
    %v689 = vpop.f32.mrb[0].mxu0
    %v690 = vadd.f32 0.0, %v689
    %v691 = vpop.f32.mrb[0].mxu0
    %v692 = vadd.f32 0.0, %v691
    %693 = vmatprep.mubr.f32.mxu0 0.0
    %694 = vmatmul.mubr.f32.gmra.mrb[0].mxu0 %v504
    %v695 = vpop.f32.mrb[0].mxu0
    %v696 = vadd.f32 0.0, %v695
    %v697 = vpop.f32.mrb[0].mxu0
    %v698 = vadd.f32 0.0, %v697
    %699 = vmatprep.mubr.f32.mxu0 0.0
    %700 = vmatmul.mubr.f32.gmra.mrb[0].mxu0 %v507
    %v701 = vpop.f32.mrb[0].mxu0
    %v702 = vadd.f32 0.0, %v701
    %v703 = vpop.f32.mrb[0].mxu0
    %v704 = vadd.f32 0.0, %v703
    %705 = vmatprep.mubr.f32.mxu0 0.0
    %706 = vmatmul.mubr.f32.gmra.mrb[0].mxu0 %v510
    %v707 = vpop.f32.mrb[0].mxu0
    %v708 = vadd.f32 0.0, %v707
    %v709 = vpop.f32.mrb[0].mxu0
    %v710 = vadd.f32 0.0, %v709
    %711 = vmatprep.mubr.f32.mxu0 0.0
    %712 = vmatmul.mubr.f32.gmra.mrb[0].mxu0 %v513
    %v713 = vpop.f32.mrb[0].mxu0
    %v714 = vadd.f32 0.0, %v713
    %v715 = vpop.f32.mrb[0].mxu0
    %v716 = vadd.f32 0.0, %v715
    %717 = vmatprep.mubr.f32.mxu0 0.0
    %718 = vmatmul.mubr.f32.gmra.mrb[0].mxu0 %v516
    %v719 = vpop.f32.mrb[0].mxu0
    %v720 = vadd.f32 0.0, %v719
    %v721 = vpop.f32.mrb[0].mxu0
    %v722 = vadd.f32 0.0, %v721
    %723 = vmatprep.mubr.f32.mxu0 0.0
    %724 = vmatmul.mubr.f32.gmra.mrb[0].mxu0 %v519
    %v725 = vpop.f32.mrb[0].mxu0
    %v726 = vadd.f32 0.0, %v725
    %v727 = vpop.f32.mrb[0].mxu0
    %v728 = vadd.f32 0.0, %v727
    %729 = vmatprep.mubr.f32.mxu0 0.0
    %730 = vmatmul.mubr.f32.gmra.mrb[0].mxu0 %v522
    %v731 = vpop.f32.mrb[0].mxu0
    %v732 = vadd.f32 0.0, %v731
    %v733 = vpop.f32.mrb[0].mxu0
    %v734 = vadd.f32 0.0, %v733
    %735 = vmatprep.mubr.f32.mxu0 0.0
    %736 = vmatmul.mubr.f32.gmra.mrb[0].mxu0 %v525
    %v737 = vpop.f32.mrb[0].mxu0
    %v738 = vadd.f32 0.0, %v737
    %v739 = vpop.f32.mrb[0].mxu0
    %v740 = vadd.f32 0.0, %v739
    %741 = vmatprep.mubr.f32.mxu0 0.0
    %742 = vmatmul.mubr.f32.gmra.mrb[0].mxu0 %v528
    %v743 = vpop.f32.mrb[0].mxu0
    %v744 = vadd.f32 0.0, %v743
    %v745 = vpop.f32.mrb[0].mxu0
    %v746 = vadd.f32 0.0, %v745
    %747 = vmatprep.mubr.f32.mxu0 0.0
    %748 = vmatmul.mubr.f32.gmra.mrb[0].mxu0 %v531
    %v749 = vpop.f32.mrb[0].mxu0
    %v750 = vadd.f32 0.0, %v749
    %v751 = vpop.f32.mrb[0].mxu0
    %v752 = vadd.f32 0.0, %v751
    %753 = vmatprep.mubr.f32.mxu0 0.0
    %754 = vmatmul.mubr.f32.gmra.mrb[0].mxu0 %v534
    %v755 = vpop.f32.mrb[0].mxu0
    %v756 = vadd.f32 0.0, %v755
    %v757 = vpop.f32.mrb[0].mxu0
    %v758 = vadd.f32 0.0, %v757
    %759 = vmatprep.mubr.f32.mxu0 0.0
    %760 = vmatmul.mubr.f32.gmra.mrb[0].mxu0 %v537
    %v761 = vpop.f32.mrb[0].mxu0
    %v762 = vadd.f32 0.0, %v761
    %v763 = vpop.f32.mrb[0].mxu0
    %v764 = vadd.f32 0.0, %v763
    %765 = vmatprep.mubr.f32.mxu0 0.0
    %766 = vmatmul.mubr.f32.gmra.mrb[0].mxu0 %v540
    %v767 = vpop.f32.mrb[0].mxu0
    %v768 = vadd.f32 0.0, %v767
    %v769 = vpop.f32.mrb[0].mxu0
    %v770 = vadd.f32 0.0, %v769
    %771 = vmatprep.mubr.f32.mxu0 0.0
    %772 = vmatmul.mubr.f32.gmra.mrb[0].mxu0 %v543
    %v773 = vpop.f32.mrb[0].mxu0
    %v774 = vadd.f32 0.0, %v773
    %v775 = vpop.f32.mrb[0].mxu0
    %v776 = vadd.f32 0.0, %v775
    %777 = vmatprep.mubr.f32.mxu0 0.0
    %778 = vmatmul.mubr.f32.gmra.mrb[0].mxu0 %v546
    %v779 = vpop.f32.mrb[0].mxu0
    %v780 = vadd.f32 0.0, %v779
    %v781 = vpop.f32.mrb[0].mxu0
    %v782 = vadd.f32 0.0, %v781
    %783 = vmatprep.mubr.f32.mxu0 0.0
    %784 = vmatmul.mubr.f32.gmra.mrb[0].mxu0 %v549
    %v785 = vpop.f32.mrb[0].mxu0
    %v786 = vadd.f32 0.0, %v785
    %v787 = vpop.f32.mrb[0].mxu0
    %v788 = vadd.f32 0.0, %v787
    %789 = vdwg.mxu0
    %s790 = scalar_lea.vmem [#allocation2], 128
    %v791 = vld [vmem:[%s790] sm:$0xff]
    %v792 = vld [vmem:[%s790 + $0x8] sm:$0xff]
    %v793 = vld [vmem:[%s790 + $0x10] sm:$0xff]
    %v794 = vld [vmem:[%s790 + $0x18] sm:$0xff]
    %v795 = vld [vmem:[%s790 + $0x20] sm:$0xff]
    %v796 = vld [vmem:[%s790 + $0x28] sm:$0xff]
    %v797 = vld [vmem:[%s790 + $0x30] sm:$0xf]
    %v798 = vld [vmem:[%s790 + $0x38] sm:$0xf]
    %v800 = vsel %vm151, %v140, 0
    %v803 = vsel %vm151, %v141, 0
    %v806 = vsel %vm230, %v797, 0
    %v809 = vsel %vm230, %v798, 0
    %811 = vmatprep.subr.mxu0 %v792
    %812 = vmatpush1.msra.mxu0 %v791
    %813 = vmatprep.subr.mxu0 %v794
    %814 = vmatpush1.msra.mxu0 %v793
    %815 = vmatprep.subr.mxu0 %v796
    %816 = vmatpush1.msra.mxu0 %v795
    %817 = vmatprep.subr.mxu0 %v809
    %818 = vmatpush1.msra.mxu0 %v806
    %819 = vmatprep.subr.mxu0 0.0
    %820 = vmatpush1.msra.mxu0 0.0
    %821 = vmatprep.subr.mxu0 0.0
    %822 = vmatpush1.msra.mxu0 0.0
    %823 = vmatprep.subr.mxu0 0.0
    %824 = vmatpush1.msra.mxu0 0.0
    %825 = vmatprep.subr.mxu0 0.0
    %826 = vmatpush1.msra.mxu0 0.0
    %827 = vmatprep.subr.mxu0 0.0
    %828 = vmatpush1.msra.mxu0 0.0
    %829 = vmatprep.subr.mxu0 0.0
    %830 = vmatpush1.msra.mxu0 0.0
    %831 = vmatprep.subr.mxu0 0.0
    %832 = vmatpush1.msra.mxu0 0.0
    %833 = vmatprep.subr.mxu0 0.0
    %834 = vmatpush1.msra.mxu0 0.0
    %835 = vmatprep.subr.mxu0 0.0
    %836 = vmatpush1.msra.mxu0 0.0
    %837 = vmatprep.subr.mxu0 0.0
    %838 = vmatpush1.msra.mxu0 0.0
    %839 = vmatprep.subr.mxu0 0.0
    %840 = vmatpush1.msra.mxu0 0.0
    %841 = vmatprep.subr.mxu0 0.0
    %842 = vmatpush1.msra.mxu0 0.0
    %843 = vmatprep.subr.mxu0 0.0
    %844 = vmatpush1.msra.mxu0 0.0
    %845 = vmatprep.subr.mxu0 0.0
    %846 = vmatpush1.msra.mxu0 0.0
    %847 = vmatprep.subr.mxu0 0.0
    %848 = vmatpush1.msra.mxu0 0.0
    %849 = vmatprep.subr.mxu0 0.0
    %850 = vmatpush1.msra.mxu0 0.0
    %851 = vmatprep.subr.mxu0 0.0
    %852 = vmatpush1.msra.mxu0 0.0
    %853 = vmatprep.subr.mxu0 0.0
    %854 = vmatpush1.msra.mxu0 0.0
    %855 = vmatprep.subr.mxu0 0.0
    %856 = vmatpush1.msra.mxu0 0.0
    %857 = vmatprep.subr.mxu0 0.0
    %858 = vmatpush1.msra.mxu0 0.0
    %859 = vmatprep.subr.mxu0 0.0
    %860 = vmatpush1.msra.mxu0 0.0
    %861 = vmatprep.subr.mxu0 0.0
    %862 = vmatpush1.msra.mxu0 0.0
    %863 = vmatprep.subr.mxu0 0.0
    %864 = vmatpush1.msra.mxu0 0.0
    %865 = vmatprep.subr.mxu0 0.0
    %866 = vmatpush1.msra.mxu0 0.0
    %867 = vmatprep.subr.mxu0 0.0
    %868 = vmatpush1.msra.mxu0 0.0
    %869 = vmatprep.subr.mxu0 0.0
    %870 = vmatpush1.msra.mxu0 0.0
    %871 = vmatprep.subr.mxu0 0.0
    %872 = vmatpush1.msra.mxu0 0.0
    %873 = vmatprep.subr.mxu0 0.0
    %874 = vmatpush1.msra.mxu0 0.0
    %875 = vmatprep.mubr.f32.mxu0 0.0
    %876 = vmatmul.mubr.f32.gmra.mrb[0].mxu0 %v153
    %v877 = vpop.f32.mrb[0].mxu0
    %v878 = vadd.f32 0.0, %v877
    %v879 = vpop.f32.mrb[0].mxu0
    %v880 = vadd.f32 0.0, %v879
    %881 = vmatprep.mubr.f32.mxu0 0.0
    %882 = vmatmul.mubr.f32.gmra.mrb[0].mxu0 %v156
    %v883 = vpop.f32.mrb[0].mxu0
    %v884 = vadd.f32 0.0, %v883
    %v885 = vpop.f32.mrb[0].mxu0
    %v886 = vadd.f32 0.0, %v885
    %887 = vmatprep.mubr.f32.mxu0 0.0
    %888 = vmatmul.mubr.f32.gmra.mrb[0].mxu0 %v159
    %v889 = vpop.f32.mrb[0].mxu0
    %v890 = vadd.f32 0.0, %v889
    %v891 = vpop.f32.mrb[0].mxu0
    %v892 = vadd.f32 0.0, %v891
    %893 = vmatprep.mubr.f32.mxu0 0.0
    %894 = vmatmul.mubr.f32.gmra.mrb[0].mxu0 %v162
    %v895 = vpop.f32.mrb[0].mxu0
    %v896 = vadd.f32 0.0, %v895
    %v897 = vpop.f32.mrb[0].mxu0
    %v898 = vadd.f32 0.0, %v897
    %899 = vmatprep.mubr.f32.mxu0 0.0
    %900 = vmatmul.mubr.f32.gmra.mrb[0].mxu0 %v165
    %v901 = vpop.f32.mrb[0].mxu0
    %v902 = vadd.f32 0.0, %v901
    %v903 = vpop.f32.mrb[0].mxu0
    %v904 = vadd.f32 0.0, %v903
    %905 = vmatprep.mubr.f32.mxu0 0.0
    %906 = vmatmul.mubr.f32.gmra.mrb[0].mxu0 %v168
    %v907 = vpop.f32.mrb[0].mxu0
    %v908 = vadd.f32 0.0, %v907
    %v909 = vpop.f32.mrb[0].mxu0
    %v910 = vadd.f32 0.0, %v909
    %911 = vmatprep.mubr.f32.mxu0 0.0
    %912 = vmatmul.mubr.f32.gmra.mrb[0].mxu0 %v171
    %v913 = vpop.f32.mrb[0].mxu0
    %v914 = vadd.f32 0.0, %v913
    %v915 = vpop.f32.mrb[0].mxu0
    %v916 = vadd.f32 0.0, %v915
    %917 = vmatprep.mubr.f32.mxu0 0.0
    %918 = vmatmul.mubr.f32.gmra.mrb[0].mxu0 %v174
    %v919 = vpop.f32.mrb[0].mxu0
    %v920 = vadd.f32 0.0, %v919
    %v921 = vpop.f32.mrb[0].mxu0
    %v922 = vadd.f32 0.0, %v921
    %923 = vmatprep.mubr.f32.mxu0 0.0
    %924 = vmatmul.mubr.f32.gmra.mrb[0].mxu0 %v177
    %v925 = vpop.f32.mrb[0].mxu0
    %v926 = vadd.f32 0.0, %v925
    %v927 = vpop.f32.mrb[0].mxu0
    %v928 = vadd.f32 0.0, %v927
    %929 = vmatprep.mubr.f32.mxu0 0.0
    %930 = vmatmul.mubr.f32.gmra.mrb[0].mxu0 %v180
    %v931 = vpop.f32.mrb[0].mxu0
    %v932 = vadd.f32 0.0, %v931
    %v933 = vpop.f32.mrb[0].mxu0
    %v934 = vadd.f32 0.0, %v933
    %935 = vmatprep.mubr.f32.mxu0 0.0
    %936 = vmatmul.mubr.f32.gmra.mrb[0].mxu0 %v183
    %v937 = vpop.f32.mrb[0].mxu0
    %v938 = vadd.f32 0.0, %v937
    %v939 = vpop.f32.mrb[0].mxu0
    %v940 = vadd.f32 0.0, %v939
    %941 = vmatprep.mubr.f32.mxu0 0.0
    %942 = vmatmul.mubr.f32.gmra.mrb[0].mxu0 %v186
    %v943 = vpop.f32.mrb[0].mxu0
    %v944 = vadd.f32 0.0, %v943
    %v945 = vpop.f32.mrb[0].mxu0
    %v946 = vadd.f32 0.0, %v945
    %947 = vmatprep.mubr.f32.mxu0 0.0
    %948 = vmatmul.mubr.f32.gmra.mrb[0].mxu0 %v189
    %v949 = vpop.f32.mrb[0].mxu0
    %v950 = vadd.f32 0.0, %v949
    %v951 = vpop.f32.mrb[0].mxu0
    %v952 = vadd.f32 0.0, %v951
    %953 = vmatprep.mubr.f32.mxu0 0.0
    %954 = vmatmul.mubr.f32.gmra.mrb[0].mxu0 %v192
    %v955 = vpop.f32.mrb[0].mxu0
    %v956 = vadd.f32 0.0, %v955
    %v957 = vpop.f32.mrb[0].mxu0
    %v958 = vadd.f32 0.0, %v957
    %959 = vmatprep.mubr.f32.mxu0 0.0
    %960 = vmatmul.mubr.f32.gmra.mrb[0].mxu0 %v195
    %v961 = vpop.f32.mrb[0].mxu0
    %v962 = vadd.f32 0.0, %v961
    %v963 = vpop.f32.mrb[0].mxu0
    %v964 = vadd.f32 0.0, %v963
    %965 = vmatprep.mubr.f32.mxu0 0.0
    %966 = vmatmul.mubr.f32.gmra.mrb[0].mxu0 %v198
    %v967 = vpop.f32.mrb[0].mxu0
    %v968 = vadd.f32 0.0, %v967
    %v969 = vpop.f32.mrb[0].mxu0
    %v970 = vadd.f32 0.0, %v969
    %971 = vmatprep.mubr.f32.mxu0 0.0
    %972 = vmatmul.mubr.f32.gmra.mrb[0].mxu0 %v201
    %v973 = vpop.f32.mrb[0].mxu0
    %v974 = vadd.f32 0.0, %v973
    %v975 = vpop.f32.mrb[0].mxu0
    %v976 = vadd.f32 0.0, %v975
    %977 = vmatprep.mubr.f32.mxu0 0.0
    %978 = vmatmul.mubr.f32.gmra.mrb[0].mxu0 %v204
    %v979 = vpop.f32.mrb[0].mxu0
    %v980 = vadd.f32 0.0, %v979
    %v981 = vpop.f32.mrb[0].mxu0
    %v982 = vadd.f32 0.0, %v981
    %983 = vmatprep.mubr.f32.mxu0 0.0
    %984 = vmatmul.mubr.f32.gmra.mrb[0].mxu0 %v207
    %v985 = vpop.f32.mrb[0].mxu0
    %v986 = vadd.f32 0.0, %v985
    %v987 = vpop.f32.mrb[0].mxu0
    %v988 = vadd.f32 0.0, %v987
    %989 = vmatprep.mubr.f32.mxu0 0.0
    %990 = vmatmul.mubr.f32.gmra.mrb[0].mxu0 %v210
    %v991 = vpop.f32.mrb[0].mxu0
    %v992 = vadd.f32 0.0, %v991
    %v993 = vpop.f32.mrb[0].mxu0
    %v994 = vadd.f32 0.0, %v993
    %995 = vmatprep.mubr.f32.mxu0 0.0
    %996 = vmatmul.mubr.f32.gmra.mrb[0].mxu0 %v213
    %v997 = vpop.f32.mrb[0].mxu0
    %v998 = vadd.f32 0.0, %v997
    %v999 = vpop.f32.mrb[0].mxu0
    %v1000 = vadd.f32 0.0, %v999
    %1001 = vmatprep.mubr.f32.mxu0 0.0
    %1002 = vmatmul.mubr.f32.gmra.mrb[0].mxu0 %v216
    %v1003 = vpop.f32.mrb[0].mxu0
    %v1004 = vadd.f32 0.0, %v1003
    %v1005 = vpop.f32.mrb[0].mxu0
    %v1006 = vadd.f32 0.0, %v1005
    %1007 = vmatprep.mubr.f32.mxu0 0.0
    %1008 = vmatmul.mubr.f32.gmra.mrb[0].mxu0 %v219
    %v1009 = vpop.f32.mrb[0].mxu0
    %v1010 = vadd.f32 0.0, %v1009
    %v1011 = vpop.f32.mrb[0].mxu0
    %v1012 = vadd.f32 0.0, %v1011
    %1013 = vmatprep.mubr.f32.mxu0 0.0
    %1014 = vmatmul.mubr.f32.gmra.mrb[0].mxu0 %v222
    %v1015 = vpop.f32.mrb[0].mxu0
    %v1016 = vadd.f32 0.0, %v1015
    %v1017 = vpop.f32.mrb[0].mxu0
    %v1018 = vadd.f32 0.0, %v1017
    %1019 = vmatprep.mubr.f32.mxu0 0.0
    %1020 = vmatmul.mubr.f32.gmra.mrb[0].mxu0 %v225
    %v1021 = vpop.f32.mrb[0].mxu0
    %v1022 = vadd.f32 0.0, %v1021
    %v1023 = vpop.f32.mrb[0].mxu0
    %v1024 = vadd.f32 0.0, %v1023
    %1025 = vmatprep.mubr.f32.mxu0 0.0
    %1026 = vmatmul.mubr.f32.gmra.mrb[0].mxu0 %v228
    %v1027 = vpop.f32.mrb[0].mxu0
    %v1028 = vadd.f32 0.0, %v1027
    %v1029 = vpop.f32.mrb[0].mxu0
    %v1030 = vadd.f32 0.0, %v1029
    %1031 = vmatprep.mubr.f32.mxu0 0.0
    %1032 = vmatmul.mubr.f32.gmra.mrb[0].mxu0 %v800
    %v1033 = vpop.f32.mrb[0].mxu0
    %v1034 = vadd.f32 0.0, %v1033
    %v1035 = vpop.f32.mrb[0].mxu0
    %v1036 = vadd.f32 0.0, %v1035
    %1037 = vmatprep.mubr.f32.mxu0 0.0
    %1038 = vmatmul.mubr.f32.gmra.mrb[0].mxu0 %v803
    %v1039 = vpop.f32.mrb[0].mxu0
    %v1040 = vadd.f32 0.0, %v1039
    %v1041 = vpop.f32.mrb[0].mxu0
    %v1042 = vadd.f32 0.0, %v1041
    %1043 = vdwg.mxu0
    %v1045 = vlaneseq
    %v1046 = vshrl.u32 %v1045, 7
    %v1047 = vsub.s32 0, %v1046
    %v1048 = vrot.slane %v142, %v1047
    %v1049 = vlaneseq
    %v1050 = vshrl.u32 %v1049, 7
    %v1051 = vsub.s32 1, %v1050
    %v1052 = vrot.slane %v142, %v1051
    %v1055 = vadd.f32 %v1048, %v624
    %v1056 = vadd.f32 %v1052, %v626
    %v1057 = vadd.f32 %v1048, %v630
    %v1058 = vadd.f32 %v1052, %v632
    %v1059 = vadd.f32 %v1055, %v878
    %v1060 = vadd.f32 %v1056, %v880
    %v1061 = vadd.f32 %v1057, %v884
    %v1062 = vadd.f32 %v1058, %v886
    %v1063 = vmax.f32 %v1059, 0.0
    %v1064 = vmax.f32 %v1060, 0.0
    %v1065 = vmax.f32 %v1061, 0.0
    %v1066 = vmax.f32 %v1062, 0.0
    %v1067 = vadd.f32 %v1048, %v304
    %v1068 = vadd.f32 %v1052, %v306
    %v1069 = vadd.f32 %v1048, %v310
    %v1070 = vadd.f32 %v1052, %v312
    %v1071 = vadd.f32 %v1067, %v636
    %v1072 = vadd.f32 %v1068, %v638
    %v1073 = vadd.f32 %v1069, %v642
    %v1074 = vadd.f32 %v1070, %v644
    %v1075 = vadd.f32 %v1071, %v890
    %v1076 = vadd.f32 %v1072, %v892
    %v1077 = vadd.f32 %v1073, %v896
    %v1078 = vadd.f32 %v1074, %v898
    %v1079 = vmax.f32 %v1075, 0.0
    %v1080 = vmax.f32 %v1076, 0.0
    %v1081 = vmax.f32 %v1077, 0.0
    %v1082 = vmax.f32 %v1078, 0.0
    %v1083 = vadd.f32 %v1048, %v316
    %v1084 = vadd.f32 %v1052, %v318
    %v1085 = vadd.f32 %v1048, %v322
    %v1086 = vadd.f32 %v1052, %v324
    %v1087 = vadd.f32 %v1083, %v648
    %v1088 = vadd.f32 %v1084, %v650
    %v1089 = vadd.f32 %v1085, %v654
    %v1090 = vadd.f32 %v1086, %v656
    %v1091 = vadd.f32 %v1087, %v902
    %v1092 = vadd.f32 %v1088, %v904
    %v1093 = vadd.f32 %v1089, %v908
    %v1094 = vadd.f32 %v1090, %v910
    %v1095 = vmax.f32 %v1091, 0.0
    %v1096 = vmax.f32 %v1092, 0.0
    %v1097 = vmax.f32 %v1093, 0.0
    %v1098 = vmax.f32 %v1094, 0.0
    %v1099 = vadd.f32 %v1048, %v328
    %v1100 = vadd.f32 %v1052, %v330
    %v1101 = vadd.f32 %v1048, %v334
    %v1102 = vadd.f32 %v1052, %v336
    %v1103 = vadd.f32 %v1099, %v660
    %v1104 = vadd.f32 %v1100, %v662
    %v1105 = vadd.f32 %v1101, %v666
    %v1106 = vadd.f32 %v1102, %v668
    %v1107 = vadd.f32 %v1103, %v914
    %v1108 = vadd.f32 %v1104, %v916
    %v1109 = vadd.f32 %v1105, %v920
    %v1110 = vadd.f32 %v1106, %v922
    %v1111 = vmax.f32 %v1107, 0.0
    %v1112 = vmax.f32 %v1108, 0.0
    %v1113 = vmax.f32 %v1109, 0.0
    %v1114 = vmax.f32 %v1110, 0.0
    %v1115 = vadd.f32 %v1048, %v340
    %v1116 = vadd.f32 %v1052, %v342
    %v1117 = vadd.f32 %v1048, %v346
    %v1118 = vadd.f32 %v1052, %v348
    %v1119 = vadd.f32 %v1115, %v672
    %v1120 = vadd.f32 %v1116, %v674
    %v1121 = vadd.f32 %v1117, %v678
    %v1122 = vadd.f32 %v1118, %v680
    %v1123 = vadd.f32 %v1119, %v926
    %v1124 = vadd.f32 %v1120, %v928
    %v1125 = vadd.f32 %v1121, %v932
    %v1126 = vadd.f32 %v1122, %v934
    %v1127 = vmax.f32 %v1123, 0.0
    %v1128 = vmax.f32 %v1124, 0.0
    %v1129 = vmax.f32 %v1125, 0.0
    %v1130 = vmax.f32 %v1126, 0.0
    %v1131 = vadd.f32 %v1048, %v352
    %v1132 = vadd.f32 %v1052, %v354
    %v1133 = vadd.f32 %v1048, %v358
    %v1134 = vadd.f32 %v1052, %v360
    %v1135 = vadd.f32 %v1131, %v684
    %v1136 = vadd.f32 %v1132, %v686
    %v1137 = vadd.f32 %v1133, %v690
    %v1138 = vadd.f32 %v1134, %v692
    %v1139 = vadd.f32 %v1135, %v938
    %v1140 = vadd.f32 %v1136, %v940
    %v1141 = vadd.f32 %v1137, %v944
    %v1142 = vadd.f32 %v1138, %v946
    %v1143 = vmax.f32 %v1139, 0.0
    %v1144 = vmax.f32 %v1140, 0.0
    %v1145 = vmax.f32 %v1141, 0.0
    %v1146 = vmax.f32 %v1142, 0.0
    %v1147 = vadd.f32 %v1048, %v364
    %v1148 = vadd.f32 %v1052, %v366
    %v1149 = vadd.f32 %v1048, %v370
    %v1150 = vadd.f32 %v1052, %v372
    %v1151 = vadd.f32 %v1147, %v696
    %v1152 = vadd.f32 %v1148, %v698
    %v1153 = vadd.f32 %v1149, %v702
    %v1154 = vadd.f32 %v1150, %v704
    %v1155 = vadd.f32 %v1151, %v950
    %v1156 = vadd.f32 %v1152, %v952
    %v1157 = vadd.f32 %v1153, %v956
    %v1158 = vadd.f32 %v1154, %v958
    %v1159 = vmax.f32 %v1155, 0.0
    %v1160 = vmax.f32 %v1156, 0.0
    %v1161 = vmax.f32 %v1157, 0.0
    %v1162 = vmax.f32 %v1158, 0.0
    %v1163 = vadd.f32 %v1048, %v376
    %v1164 = vadd.f32 %v1052, %v378
    %v1165 = vadd.f32 %v1048, %v382
    %v1166 = vadd.f32 %v1052, %v384
    %v1167 = vadd.f32 %v1163, %v708
    %v1168 = vadd.f32 %v1164, %v710
    %v1169 = vadd.f32 %v1165, %v714
    %v1170 = vadd.f32 %v1166, %v716
    %v1171 = vadd.f32 %v1167, %v962
    %v1172 = vadd.f32 %v1168, %v964
    %v1173 = vadd.f32 %v1169, %v968
    %v1174 = vadd.f32 %v1170, %v970
    %v1175 = vmax.f32 %v1171, 0.0
    %v1176 = vmax.f32 %v1172, 0.0
    %v1177 = vmax.f32 %v1173, 0.0
    %v1178 = vmax.f32 %v1174, 0.0
    %v1179 = vadd.f32 %v1048, %v388
    %v1180 = vadd.f32 %v1052, %v390
    %v1181 = vadd.f32 %v1048, %v394
    %v1182 = vadd.f32 %v1052, %v396
    %v1183 = vadd.f32 %v1179, %v720
    %v1184 = vadd.f32 %v1180, %v722
    %v1185 = vadd.f32 %v1181, %v726
    %v1186 = vadd.f32 %v1182, %v728
    %v1187 = vadd.f32 %v1183, %v974
    %v1188 = vadd.f32 %v1184, %v976
    %v1189 = vadd.f32 %v1185, %v980
    %v1190 = vadd.f32 %v1186, %v982
    %v1191 = vmax.f32 %v1187, 0.0
    %v1192 = vmax.f32 %v1188, 0.0
    %v1193 = vmax.f32 %v1189, 0.0
    %v1194 = vmax.f32 %v1190, 0.0
    %v1195 = vadd.f32 %v1048, %v400
    %v1196 = vadd.f32 %v1052, %v402
    %v1197 = vadd.f32 %v1048, %v406
    %v1198 = vadd.f32 %v1052, %v408
    %v1199 = vadd.f32 %v1195, %v732
    %v1200 = vadd.f32 %v1196, %v734
    %v1201 = vadd.f32 %v1197, %v738
    %v1202 = vadd.f32 %v1198, %v740
    %v1203 = vadd.f32 %v1199, %v986
    %v1204 = vadd.f32 %v1200, %v988
    %v1205 = vadd.f32 %v1201, %v992
    %v1206 = vadd.f32 %v1202, %v994
    %v1207 = vmax.f32 %v1203, 0.0
    %v1208 = vmax.f32 %v1204, 0.0
    %v1209 = vmax.f32 %v1205, 0.0
    %v1210 = vmax.f32 %v1206, 0.0
    %v1211 = vadd.f32 %v1048, %v412
    %v1212 = vadd.f32 %v1052, %v414
    %v1213 = vadd.f32 %v1048, %v418
    %v1214 = vadd.f32 %v1052, %v420
    %v1215 = vadd.f32 %v1211, %v744
    %v1216 = vadd.f32 %v1212, %v746
    %v1217 = vadd.f32 %v1213, %v750
    %v1218 = vadd.f32 %v1214, %v752
    %v1219 = vadd.f32 %v1215, %v998
    %v1220 = vadd.f32 %v1216, %v1000
    %v1221 = vadd.f32 %v1217, %v1004
    %v1222 = vadd.f32 %v1218, %v1006
    %v1223 = vmax.f32 %v1219, 0.0
    %v1224 = vmax.f32 %v1220, 0.0
    %v1225 = vmax.f32 %v1221, 0.0
    %v1226 = vmax.f32 %v1222, 0.0
    %v1227 = vadd.f32 %v1048, %v424
    %v1228 = vadd.f32 %v1052, %v426
    %v1229 = vadd.f32 %v1048, %v430
    %v1230 = vadd.f32 %v1052, %v432
    %v1231 = vadd.f32 %v1227, %v756
    %v1232 = vadd.f32 %v1228, %v758
    %v1233 = vadd.f32 %v1229, %v762
    %v1234 = vadd.f32 %v1230, %v764
    %v1235 = vadd.f32 %v1231, %v1010
    %v1236 = vadd.f32 %v1232, %v1012
    %v1237 = vadd.f32 %v1233, %v1016
    %v1238 = vadd.f32 %v1234, %v1018
    %v1239 = vmax.f32 %v1235, 0.0
    %v1240 = vmax.f32 %v1236, 0.0
    %v1241 = vmax.f32 %v1237, 0.0
    %v1242 = vmax.f32 %v1238, 0.0
    %v1243 = vadd.f32 %v1048, %v436
    %v1244 = vadd.f32 %v1052, %v438
    %v1245 = vadd.f32 %v1048, %v442
    %v1246 = vadd.f32 %v1052, %v444
    %v1247 = vadd.f32 %v1243, %v768
    %v1248 = vadd.f32 %v1244, %v770
    %v1249 = vadd.f32 %v1245, %v774
    %v1250 = vadd.f32 %v1246, %v776
    %v1251 = vadd.f32 %v1247, %v1022
    %v1252 = vadd.f32 %v1248, %v1024
    %v1253 = vadd.f32 %v1249, %v1028
    %v1254 = vadd.f32 %v1250, %v1030
    %v1255 = vmax.f32 %v1251, 0.0
    %v1256 = vmax.f32 %v1252, 0.0
    %v1257 = vmax.f32 %v1253, 0.0
    %v1258 = vmax.f32 %v1254, 0.0
    %v1259 = vadd.f32 %v1048, %v448
    %v1260 = vadd.f32 %v1052, %v450
    %v1261 = vadd.f32 %v1048, %v454
    %v1262 = vadd.f32 %v1052, %v456
    %v1263 = vadd.f32 %v1259, %v780
    %v1264 = vadd.f32 %v1260, %v782
    %v1265 = vadd.f32 %v1261, %v786
    %v1266 = vadd.f32 %v1262, %v788
    %v1267 = vadd.f32 %v1263, %v1034
    %v1268 = vadd.f32 %v1264, %v1036
    %v1269 = vadd.f32 %v1265, %v1040
    %v1270 = vadd.f32 %v1266, %v1042
    %v1271 = vmax.f32 %v1267, 0.0
    %v1272 = vmax.f32 %v1268, 0.0
    %v1273 = vmax.f32 %v1269, 0.0
    %v1274 = vmax.f32 %v1270, 0.0
    %v1275 = vld [vmem:[%s4] sm:$0x3]
    %v1276 = vld [vmem:[%s3] sm:$0xff]
    %v1277 = vld [vmem:[%s3 + $0x8] sm:$0xff]
    %v1278 = vld [vmem:[%s3 + $0x10] sm:$0xff]
    %v1279 = vld [vmem:[%s3 + $0x18] sm:$0xff]
    %v1280 = vld [vmem:[%s3 + $0x20] sm:$0xff]
    %v1281 = vld [vmem:[%s3 + $0x28] sm:$0xff]
    %v1282 = vld [vmem:[%s3 + $0x30] sm:$0xff]
    %v1283 = vld [vmem:[%s3 + $0x38] sm:$0xff]
    %v1284 = vld [vmem:[%s3 + $0x40] sm:$0xff]
    %v1285 = vld [vmem:[%s3 + $0x48] sm:$0xff]
    %v1286 = vld [vmem:[%s3 + $0x50] sm:$0xff]
    %v1287 = vld [vmem:[%s3 + $0x58] sm:$0xff]
    %v1288 = vld [vmem:[%s3 + $0x60] sm:$0xff]
    %v1289 = vld [vmem:[%s3 + $0x68] sm:$0xff]
    %v1290 = vld [vmem:[%s3 + $0x70] sm:$0xff]
    %v1291 = vld [vmem:[%s3 + $0x78] sm:$0xff]
    %v1292 = vld [vmem:[%s3 + $0x80] sm:$0xff]
    %v1293 = vld [vmem:[%s3 + $0x88] sm:$0xff]
    %v1294 = vld [vmem:[%s3 + $0x90] sm:$0xff]
    %v1295 = vld [vmem:[%s3 + $0x98] sm:$0xff]
    %v1296 = vld [vmem:[%s3 + $0xa0] sm:$0xff]
    %v1297 = vld [vmem:[%s3 + $0xa8] sm:$0xff]
    %v1298 = vld [vmem:[%s3 + $0xb0] sm:$0xff]
    %v1299 = vld [vmem:[%s3 + $0xb8] sm:$0xff]
    %v1300 = vld [vmem:[%s3 + $0xc0] sm:$0xff]
    %v1301 = vld [vmem:[%s3 + $0xc8] sm:$0xff]
    %v1302 = vld [vmem:[%s3 + $0xd0] sm:$0xff]
    %v1303 = vld [vmem:[%s3 + $0xd8] sm:$0xff]
    %v1304 = vld [vmem:[%s3 + $0xe0] sm:$0xff]
    %v1305 = vld [vmem:[%s3 + $0xe8] sm:$0xff]
    %v1306 = vld [vmem:[%s3 + $0xf0] sm:$0xff]
    %v1307 = vld [vmem:[%s3 + $0xf8] sm:$0xff]
    %v1308 = vld [vmem:[%s3 + $0x100] sm:$0xff]
    %v1309 = vld [vmem:[%s3 + $0x108] sm:$0xff]
    %v1310 = vld [vmem:[%s3 + $0x110] sm:$0xff]
    %v1311 = vld [vmem:[%s3 + $0x118] sm:$0xff]
    %v1312 = vld [vmem:[%s3 + $0x120] sm:$0xff]
    %v1313 = vld [vmem:[%s3 + $0x128] sm:$0xff]
    %v1314 = vld [vmem:[%s3 + $0x130] sm:$0xff]
    %v1315 = vld [vmem:[%s3 + $0x138] sm:$0xff]
    %v1316 = vld [vmem:[%s3 + $0x140] sm:$0xff]
    %v1317 = vld [vmem:[%s3 + $0x148] sm:$0xff]
    %v1318 = vld [vmem:[%s3 + $0x150] sm:$0xff]
    %v1319 = vld [vmem:[%s3 + $0x158] sm:$0xff]
    %v1320 = vld [vmem:[%s3 + $0x160] sm:$0xff]
    %v1321 = vld [vmem:[%s3 + $0x168] sm:$0xff]
    %v1322 = vld [vmem:[%s3 + $0x170] sm:$0xff]
    %v1323 = vld [vmem:[%s3 + $0x178] sm:$0xff]
    %v1324 = vld [vmem:[%s3 + $0x180] sm:$0xff]
    %v1325 = vld [vmem:[%s3 + $0x188] sm:$0xff]
    %v1326 = vld [vmem:[%s3 + $0x190] sm:$0xff]
    %v1327 = vld [vmem:[%s3 + $0x198] sm:$0xff]
    %v1328 = vld [vmem:[%s3 + $0x1a0] sm:$0xff]
    %v1329 = vld [vmem:[%s3 + $0x1a8] sm:$0xff]
    %v1330 = vld [vmem:[%s3 + $0x1b0] sm:$0xff]
    %v1331 = vld [vmem:[%s3 + $0x1b8] sm:$0xff]
    %vm1332 = vcmask 785408
    %v1334 = vsel %vm1332, %v1080, 0
    %v1337 = vsel %vm1332, %v1082, 0
    %v1340 = vsel %vm1332, %v1112, 0
    %v1343 = vsel %vm1332, %v1114, 0
    %v1346 = vsel %vm1332, %v1144, 0
    %v1349 = vsel %vm1332, %v1146, 0
    %v1352 = vsel %vm1332, %v1176, 0
    %v1355 = vsel %vm1332, %v1178, 0
    %v1358 = vsel %vm1332, %v1208, 0
    %v1361 = vsel %vm1332, %v1210, 0
    %v1364 = vsel %vm1332, %v1240, 0
    %v1367 = vsel %vm1332, %v1242, 0
    %1369 = vmatprep.subr.mxu0 %v1277
    %1370 = vmatpush1.msra.mxu0 %v1276
    %1371 = vmatprep.subr.mxu0 %v1279
    %1372 = vmatpush1.msra.mxu0 %v1278
    %1373 = vmatprep.subr.mxu0 %v1281
    %1374 = vmatpush1.msra.mxu0 %v1280
    %1375 = vmatprep.subr.mxu0 %v1283
    %1376 = vmatpush1.msra.mxu0 %v1282
    %1377 = vmatprep.subr.mxu0 %v1285
    %1378 = vmatpush1.msra.mxu0 %v1284
    %1379 = vmatprep.subr.mxu0 %v1287
    %1380 = vmatpush1.msra.mxu0 %v1286
    %1381 = vmatprep.subr.mxu0 %v1289
    %1382 = vmatpush1.msra.mxu0 %v1288
    %1383 = vmatprep.subr.mxu0 %v1291
    %1384 = vmatpush1.msra.mxu0 %v1290
    %1385 = vmatprep.subr.mxu0 %v1293
    %1386 = vmatpush1.msra.mxu0 %v1292
    %1387 = vmatprep.subr.mxu0 %v1295
    %1388 = vmatpush1.msra.mxu0 %v1294
    %1389 = vmatprep.subr.mxu0 %v1297
    %1390 = vmatpush1.msra.mxu0 %v1296
    %1391 = vmatprep.subr.mxu0 %v1299
    %1392 = vmatpush1.msra.mxu0 %v1298
    %1393 = vmatprep.subr.mxu0 %v1301
    %1394 = vmatpush1.msra.mxu0 %v1300
    %1395 = vmatprep.subr.mxu0 %v1303
    %1396 = vmatpush1.msra.mxu0 %v1302
    %1397 = vmatprep.subr.mxu0 %v1305
    %1398 = vmatpush1.msra.mxu0 %v1304
    %1399 = vmatprep.subr.mxu0 %v1307
    %1400 = vmatpush1.msra.mxu0 %v1306
    %1401 = vmatprep.subr.mxu0 %v1309
    %1402 = vmatpush1.msra.mxu0 %v1308
    %1403 = vmatprep.subr.mxu0 %v1311
    %1404 = vmatpush1.msra.mxu0 %v1310
    %1405 = vmatprep.subr.mxu0 %v1313
    %1406 = vmatpush1.msra.mxu0 %v1312
    %1407 = vmatprep.subr.mxu0 %v1315
    %1408 = vmatpush1.msra.mxu0 %v1314
    %1409 = vmatprep.subr.mxu0 %v1317
    %1410 = vmatpush1.msra.mxu0 %v1316
    %1411 = vmatprep.subr.mxu0 %v1319
    %1412 = vmatpush1.msra.mxu0 %v1318
    %1413 = vmatprep.subr.mxu0 %v1321
    %1414 = vmatpush1.msra.mxu0 %v1320
    %1415 = vmatprep.subr.mxu0 %v1323
    %1416 = vmatpush1.msra.mxu0 %v1322
    %1417 = vmatprep.subr.mxu0 %v1325
    %1418 = vmatpush1.msra.mxu0 %v1324
    %1419 = vmatprep.subr.mxu0 %v1327
    %1420 = vmatpush1.msra.mxu0 %v1326
    %1421 = vmatprep.subr.mxu0 %v1329
    %1422 = vmatpush1.msra.mxu0 %v1328
    %1423 = vmatprep.subr.mxu0 %v1331
    %1424 = vmatpush1.msra.mxu0 %v1330
    %1425 = vmatprep.subr.mxu0 0.0
    %1426 = vmatpush1.msra.mxu0 0.0
    %1427 = vmatprep.subr.mxu0 0.0
    %1428 = vmatpush1.msra.mxu0 0.0
    %1429 = vmatprep.subr.mxu0 0.0
    %1430 = vmatpush1.msra.mxu0 0.0
    %1431 = vmatprep.subr.mxu0 0.0
    %1432 = vmatpush1.msra.mxu0 0.0
    %1433 = vmatprep.mubr.f32.mxu0 %v1334
    %1434 = vmatmul.mubr.f32.gmra.mrb[0].mxu0 %v1079
    %v1435 = vpop.f32.mrb[0].mxu0
    %v1436 = vadd.f32 0.0, %v1435
    %v1437 = vpop.f32.mrb[0].mxu0
    %v1438 = vadd.f32 0.0, %v1437
    %1439 = vmatprep.mubr.f32.mxu0 %v1337
    %1440 = vmatmul.mubr.f32.gmra.mrb[0].mxu0 %v1081
    %v1441 = vpop.f32.mrb[0].mxu0
    %v1442 = vadd.f32 0.0, %v1441
    %v1443 = vpop.f32.mrb[0].mxu0
    %v1444 = vadd.f32 0.0, %v1443
    %1445 = vmatprep.mubr.f32.mxu0 %v1340
    %1446 = vmatmul.mubr.f32.gmra.mrb[0].mxu0 %v1111
    %v1447 = vpop.f32.mrb[0].mxu0
    %v1448 = vadd.f32 0.0, %v1447
    %v1449 = vpop.f32.mrb[0].mxu0
    %v1450 = vadd.f32 0.0, %v1449
    %1451 = vmatprep.mubr.f32.mxu0 %v1343
    %1452 = vmatmul.mubr.f32.gmra.mrb[0].mxu0 %v1113
    %v1453 = vpop.f32.mrb[0].mxu0
    %v1454 = vadd.f32 0.0, %v1453
    %v1455 = vpop.f32.mrb[0].mxu0
    %v1456 = vadd.f32 0.0, %v1455
    %1457 = vmatprep.mubr.f32.mxu0 %v1346
    %1458 = vmatmul.mubr.f32.gmra.mrb[0].mxu0 %v1143
    %v1459 = vpop.f32.mrb[0].mxu0
    %v1460 = vadd.f32 0.0, %v1459
    %v1461 = vpop.f32.mrb[0].mxu0
    %v1462 = vadd.f32 0.0, %v1461
    %1463 = vmatprep.mubr.f32.mxu0 %v1349
    %1464 = vmatmul.mubr.f32.gmra.mrb[0].mxu0 %v1145
    %v1465 = vpop.f32.mrb[0].mxu0
    %v1466 = vadd.f32 0.0, %v1465
    %v1467 = vpop.f32.mrb[0].mxu0
    %v1468 = vadd.f32 0.0, %v1467
    %1469 = vmatprep.mubr.f32.mxu0 %v1352
    %1470 = vmatmul.mubr.f32.gmra.mrb[0].mxu0 %v1175
    %v1471 = vpop.f32.mrb[0].mxu0
    %v1472 = vadd.f32 0.0, %v1471
    %v1473 = vpop.f32.mrb[0].mxu0
    %v1474 = vadd.f32 0.0, %v1473
    %1475 = vmatprep.mubr.f32.mxu0 %v1355
    %1476 = vmatmul.mubr.f32.gmra.mrb[0].mxu0 %v1177
    %v1477 = vpop.f32.mrb[0].mxu0
    %v1478 = vadd.f32 0.0, %v1477
    %v1479 = vpop.f32.mrb[0].mxu0
    %v1480 = vadd.f32 0.0, %v1479
    %1481 = vmatprep.mubr.f32.mxu0 %v1358
    %1482 = vmatmul.mubr.f32.gmra.mrb[0].mxu0 %v1207
    %v1483 = vpop.f32.mrb[0].mxu0
    %v1484 = vadd.f32 0.0, %v1483
    %v1485 = vpop.f32.mrb[0].mxu0
    %v1486 = vadd.f32 0.0, %v1485
    %1487 = vmatprep.mubr.f32.mxu0 %v1361
    %1488 = vmatmul.mubr.f32.gmra.mrb[0].mxu0 %v1209
    %v1489 = vpop.f32.mrb[0].mxu0
    %v1490 = vadd.f32 0.0, %v1489
    %v1491 = vpop.f32.mrb[0].mxu0
    %v1492 = vadd.f32 0.0, %v1491
    %1493 = vmatprep.mubr.f32.mxu0 %v1364
    %1494 = vmatmul.mubr.f32.gmra.mrb[0].mxu0 %v1239
    %v1495 = vpop.f32.mrb[0].mxu0
    %v1496 = vadd.f32 0.0, %v1495
    %v1497 = vpop.f32.mrb[0].mxu0
    %v1498 = vadd.f32 0.0, %v1497
    %1499 = vmatprep.mubr.f32.mxu0 %v1367
    %1500 = vmatmul.mubr.f32.gmra.mrb[0].mxu0 %v1241
    %v1501 = vpop.f32.mrb[0].mxu0
    %v1502 = vadd.f32 0.0, %v1501
    %v1503 = vpop.f32.mrb[0].mxu0
    %v1504 = vadd.f32 0.0, %v1503
    %1505 = vdwg.mxu0
    %s1506 = scalar_lea.vmem %s3, 448
    %v1507 = vld [vmem:[%s1506] sm:$0xff]
    %v1508 = vld [vmem:[%s1506 + $0x8] sm:$0xff]
    %v1509 = vld [vmem:[%s1506 + $0x10] sm:$0xff]
    %v1510 = vld [vmem:[%s1506 + $0x18] sm:$0xff]
    %v1511 = vld [vmem:[%s1506 + $0x20] sm:$0xff]
    %v1512 = vld [vmem:[%s1506 + $0x28] sm:$0xff]
    %v1513 = vld [vmem:[%s1506 + $0x30] sm:$0xff]
    %v1514 = vld [vmem:[%s1506 + $0x38] sm:$0xff]
    %v1515 = vld [vmem:[%s1506 + $0x40] sm:$0xff]
    %v1516 = vld [vmem:[%s1506 + $0x48] sm:$0xff]
    %v1517 = vld [vmem:[%s1506 + $0x50] sm:$0xff]
    %v1518 = vld [vmem:[%s1506 + $0x58] sm:$0xff]
    %v1519 = vld [vmem:[%s1506 + $0x60] sm:$0xff]
    %v1520 = vld [vmem:[%s1506 + $0x68] sm:$0xff]
    %v1521 = vld [vmem:[%s1506 + $0x70] sm:$0xff]
    %v1522 = vld [vmem:[%s1506 + $0x78] sm:$0xff]
    %v1523 = vld [vmem:[%s1506 + $0x80] sm:$0xff]
    %v1524 = vld [vmem:[%s1506 + $0x88] sm:$0xff]
    %v1525 = vld [vmem:[%s1506 + $0x90] sm:$0xff]
    %v1526 = vld [vmem:[%s1506 + $0x98] sm:$0xff]
    %v1527 = vld [vmem:[%s1506 + $0xa0] sm:$0xff]
    %v1528 = vld [vmem:[%s1506 + $0xa8] sm:$0xff]
    %v1529 = vld [vmem:[%s1506 + $0xb0] sm:$0xff]
    %v1530 = vld [vmem:[%s1506 + $0xb8] sm:$0xff]
    %v1531 = vld [vmem:[%s1506 + $0xc0] sm:$0xff]
    %v1532 = vld [vmem:[%s1506 + $0xc8] sm:$0xff]
    %v1533 = vld [vmem:[%s1506 + $0xd0] sm:$0xff]
    %v1534 = vld [vmem:[%s1506 + $0xd8] sm:$0xff]
    %v1535 = vld [vmem:[%s1506 + $0xe0] sm:$0xff]
    %v1536 = vld [vmem:[%s1506 + $0xe8] sm:$0xff]
    %v1537 = vld [vmem:[%s1506 + $0xf0] sm:$0xff]
    %v1538 = vld [vmem:[%s1506 + $0xf8] sm:$0xff]
    %v1539 = vld [vmem:[%s1506 + $0x100] sm:$0xff]
    %v1540 = vld [vmem:[%s1506 + $0x108] sm:$0xff]
    %v1541 = vld [vmem:[%s1506 + $0x110] sm:$0xff]
    %v1542 = vld [vmem:[%s1506 + $0x118] sm:$0xff]
    %v1543 = vld [vmem:[%s1506 + $0x120] sm:$0xff]
    %v1544 = vld [vmem:[%s1506 + $0x128] sm:$0xff]
    %v1545 = vld [vmem:[%s1506 + $0x130] sm:$0xff]
    %v1546 = vld [vmem:[%s1506 + $0x138] sm:$0xff]
    %v1547 = vld [vmem:[%s1506 + $0x140] sm:$0xff]
    %v1548 = vld [vmem:[%s1506 + $0x148] sm:$0xff]
    %v1549 = vld [vmem:[%s1506 + $0x150] sm:$0xff]
    %v1550 = vld [vmem:[%s1506 + $0x158] sm:$0xff]
    %v1551 = vld [vmem:[%s1506 + $0x160] sm:$0xff]
    %v1552 = vld [vmem:[%s1506 + $0x168] sm:$0xff]
    %v1553 = vld [vmem:[%s1506 + $0x170] sm:$0xff]
    %v1554 = vld [vmem:[%s1506 + $0x178] sm:$0xff]
    %v1555 = vld [vmem:[%s1506 + $0x180] sm:$0xff]
    %v1556 = vld [vmem:[%s1506 + $0x188] sm:$0xff]
    %v1557 = vld [vmem:[%s1506 + $0x190] sm:$0xff]
    %v1558 = vld [vmem:[%s1506 + $0x198] sm:$0xff]
    %v1559 = vld [vmem:[%s1506 + $0x1a0] sm:$0xff]
    %v1560 = vld [vmem:[%s1506 + $0x1a8] sm:$0xff]
    %v1561 = vld [vmem:[%s1506 + $0x1b0] sm:$0xff]
    %v1562 = vld [vmem:[%s1506 + $0x1b8] sm:$0xff]
    %v1564 = vsel %vm1332, %v1064, 0
    %v1567 = vsel %vm1332, %v1066, 0
    %v1570 = vsel %vm1332, %v1096, 0
    %v1573 = vsel %vm1332, %v1098, 0
    %v1576 = vsel %vm1332, %v1128, 0
    %v1579 = vsel %vm1332, %v1130, 0
    %v1582 = vsel %vm1332, %v1160, 0
    %v1585 = vsel %vm1332, %v1162, 0
    %v1588 = vsel %vm1332, %v1192, 0
    %v1591 = vsel %vm1332, %v1194, 0
    %v1594 = vsel %vm1332, %v1224, 0
    %v1597 = vsel %vm1332, %v1226, 0
    %v1600 = vsel %vm1332, %v1256, 0
    %v1603 = vsel %vm1332, %v1258, 0
    %1605 = vmatprep.subr.mxu0 %v1508
    %1606 = vmatpush1.msra.mxu0 %v1507
    %1607 = vmatprep.subr.mxu0 %v1510
    %1608 = vmatpush1.msra.mxu0 %v1509
    %1609 = vmatprep.subr.mxu0 %v1512
    %1610 = vmatpush1.msra.mxu0 %v1511
    %1611 = vmatprep.subr.mxu0 %v1514
    %1612 = vmatpush1.msra.mxu0 %v1513
    %1613 = vmatprep.subr.mxu0 %v1516
    %1614 = vmatpush1.msra.mxu0 %v1515
    %1615 = vmatprep.subr.mxu0 %v1518
    %1616 = vmatpush1.msra.mxu0 %v1517
    %1617 = vmatprep.subr.mxu0 %v1520
    %1618 = vmatpush1.msra.mxu0 %v1519
    %1619 = vmatprep.subr.mxu0 %v1522
    %1620 = vmatpush1.msra.mxu0 %v1521
    %1621 = vmatprep.subr.mxu0 %v1524
    %1622 = vmatpush1.msra.mxu0 %v1523
    %1623 = vmatprep.subr.mxu0 %v1526
    %1624 = vmatpush1.msra.mxu0 %v1525
    %1625 = vmatprep.subr.mxu0 %v1528
    %1626 = vmatpush1.msra.mxu0 %v1527
    %1627 = vmatprep.subr.mxu0 %v1530
    %1628 = vmatpush1.msra.mxu0 %v1529
    %1629 = vmatprep.subr.mxu0 %v1532
    %1630 = vmatpush1.msra.mxu0 %v1531
    %1631 = vmatprep.subr.mxu0 %v1534
    %1632 = vmatpush1.msra.mxu0 %v1533
    %1633 = vmatprep.subr.mxu0 %v1536
    %1634 = vmatpush1.msra.mxu0 %v1535
    %1635 = vmatprep.subr.mxu0 %v1538
    %1636 = vmatpush1.msra.mxu0 %v1537
    %1637 = vmatprep.subr.mxu0 %v1540
    %1638 = vmatpush1.msra.mxu0 %v1539
    %1639 = vmatprep.subr.mxu0 %v1542
    %1640 = vmatpush1.msra.mxu0 %v1541
    %1641 = vmatprep.subr.mxu0 %v1544
    %1642 = vmatpush1.msra.mxu0 %v1543
    %1643 = vmatprep.subr.mxu0 %v1546
    %1644 = vmatpush1.msra.mxu0 %v1545
    %1645 = vmatprep.subr.mxu0 %v1548
    %1646 = vmatpush1.msra.mxu0 %v1547
    %1647 = vmatprep.subr.mxu0 %v1550
    %1648 = vmatpush1.msra.mxu0 %v1549
    %1649 = vmatprep.subr.mxu0 %v1552
    %1650 = vmatpush1.msra.mxu0 %v1551
    %1651 = vmatprep.subr.mxu0 %v1554
    %1652 = vmatpush1.msra.mxu0 %v1553
    %1653 = vmatprep.subr.mxu0 %v1556
    %1654 = vmatpush1.msra.mxu0 %v1555
    %1655 = vmatprep.subr.mxu0 %v1558
    %1656 = vmatpush1.msra.mxu0 %v1557
    %1657 = vmatprep.subr.mxu0 %v1560
    %1658 = vmatpush1.msra.mxu0 %v1559
    %1659 = vmatprep.subr.mxu0 %v1562
    %1660 = vmatpush1.msra.mxu0 %v1561
    %1661 = vmatprep.subr.mxu0 0.0
    %1662 = vmatpush1.msra.mxu0 0.0
    %1663 = vmatprep.subr.mxu0 0.0
    %1664 = vmatpush1.msra.mxu0 0.0
    %1665 = vmatprep.subr.mxu0 0.0
    %1666 = vmatpush1.msra.mxu0 0.0
    %1667 = vmatprep.subr.mxu0 0.0
    %1668 = vmatpush1.msra.mxu0 0.0
    %1669 = vmatprep.mubr.f32.mxu0 %v1564
    %1670 = vmatmul.mubr.f32.gmra.mrb[0].mxu0 %v1063
    %v1671 = vpop.f32.mrb[0].mxu0
    %v1672 = vadd.f32 0.0, %v1671
    %v1673 = vpop.f32.mrb[0].mxu0
    %v1674 = vadd.f32 0.0, %v1673
    %1675 = vmatprep.mubr.f32.mxu0 %v1567
    %1676 = vmatmul.mubr.f32.gmra.mrb[0].mxu0 %v1065
    %v1677 = vpop.f32.mrb[0].mxu0
    %v1678 = vadd.f32 0.0, %v1677
    %v1679 = vpop.f32.mrb[0].mxu0
    %v1680 = vadd.f32 0.0, %v1679
    %1681 = vmatprep.mubr.f32.mxu0 %v1570
    %1682 = vmatmul.mubr.f32.gmra.mrb[0].mxu0 %v1095
    %v1683 = vpop.f32.mrb[0].mxu0
    %v1684 = vadd.f32 0.0, %v1683
    %v1685 = vpop.f32.mrb[0].mxu0
    %v1686 = vadd.f32 0.0, %v1685
    %1687 = vmatprep.mubr.f32.mxu0 %v1573
    %1688 = vmatmul.mubr.f32.gmra.mrb[0].mxu0 %v1097
    %v1689 = vpop.f32.mrb[0].mxu0
    %v1690 = vadd.f32 0.0, %v1689
    %v1691 = vpop.f32.mrb[0].mxu0
    %v1692 = vadd.f32 0.0, %v1691
    %1693 = vmatprep.mubr.f32.mxu0 %v1576
    %1694 = vmatmul.mubr.f32.gmra.mrb[0].mxu0 %v1127
    %v1695 = vpop.f32.mrb[0].mxu0
    %v1696 = vadd.f32 0.0, %v1695
    %v1697 = vpop.f32.mrb[0].mxu0
    %v1698 = vadd.f32 0.0, %v1697
    %1699 = vmatprep.mubr.f32.mxu0 %v1579
    %1700 = vmatmul.mubr.f32.gmra.mrb[0].mxu0 %v1129
    %v1701 = vpop.f32.mrb[0].mxu0
    %v1702 = vadd.f32 0.0, %v1701
    %v1703 = vpop.f32.mrb[0].mxu0
    %v1704 = vadd.f32 0.0, %v1703
    %1705 = vmatprep.mubr.f32.mxu0 %v1582
    %1706 = vmatmul.mubr.f32.gmra.mrb[0].mxu0 %v1159
    %v1707 = vpop.f32.mrb[0].mxu0
    %v1708 = vadd.f32 0.0, %v1707
    %v1709 = vpop.f32.mrb[0].mxu0
    %v1710 = vadd.f32 0.0, %v1709
    %1711 = vmatprep.mubr.f32.mxu0 %v1585
    %1712 = vmatmul.mubr.f32.gmra.mrb[0].mxu0 %v1161
    %v1713 = vpop.f32.mrb[0].mxu0
    %v1714 = vadd.f32 0.0, %v1713
    %v1715 = vpop.f32.mrb[0].mxu0
    %v1716 = vadd.f32 0.0, %v1715
    %1717 = vmatprep.mubr.f32.mxu0 %v1588
    %1718 = vmatmul.mubr.f32.gmra.mrb[0].mxu0 %v1191
    %v1719 = vpop.f32.mrb[0].mxu0
    %v1720 = vadd.f32 0.0, %v1719
    %v1721 = vpop.f32.mrb[0].mxu0
    %v1722 = vadd.f32 0.0, %v1721
    %1723 = vmatprep.mubr.f32.mxu0 %v1591
    %1724 = vmatmul.mubr.f32.gmra.mrb[0].mxu0 %v1193
    %v1725 = vpop.f32.mrb[0].mxu0
    %v1726 = vadd.f32 0.0, %v1725
    %v1727 = vpop.f32.mrb[0].mxu0
    %v1728 = vadd.f32 0.0, %v1727
    %1729 = vmatprep.mubr.f32.mxu0 %v1594
    %1730 = vmatmul.mubr.f32.gmra.mrb[0].mxu0 %v1223
    %v1731 = vpop.f32.mrb[0].mxu0
    %v1732 = vadd.f32 0.0, %v1731
    %v1733 = vpop.f32.mrb[0].mxu0
    %v1734 = vadd.f32 0.0, %v1733
    %1735 = vmatprep.mubr.f32.mxu0 %v1597
    %1736 = vmatmul.mubr.f32.gmra.mrb[0].mxu0 %v1225
    %v1737 = vpop.f32.mrb[0].mxu0
    %v1738 = vadd.f32 0.0, %v1737
    %v1739 = vpop.f32.mrb[0].mxu0
    %v1740 = vadd.f32 0.0, %v1739
    %1741 = vmatprep.mubr.f32.mxu0 %v1600
    %1742 = vmatmul.mubr.f32.gmra.mrb[0].mxu0 %v1255
    %v1743 = vpop.f32.mrb[0].mxu0
    %v1744 = vadd.f32 0.0, %v1743
    %v1745 = vpop.f32.mrb[0].mxu0
    %v1746 = vadd.f32 0.0, %v1745
    %1747 = vmatprep.mubr.f32.mxu0 %v1603
    %1748 = vmatmul.mubr.f32.gmra.mrb[0].mxu0 %v1257
    %v1749 = vpop.f32.mrb[0].mxu0
    %v1750 = vadd.f32 0.0, %v1749
    %v1751 = vpop.f32.mrb[0].mxu0
    %v1752 = vadd.f32 0.0, %v1751
    %1753 = vdwg.mxu0
    %s1754 = scalar_lea.vmem %s3, 896
    %v1755 = vld [vmem:[%s1754] sm:$0xff]
    %v1756 = vld [vmem:[%s1754 + $0x8] sm:$0xff]
    %v1757 = vld [vmem:[%s1754 + $0x10] sm:$0xff]
    %v1758 = vld [vmem:[%s1754 + $0x18] sm:$0xff]
    %v1759 = vld [vmem:[%s1754 + $0x20] sm:$0xff]
    %v1760 = vld [vmem:[%s1754 + $0x28] sm:$0xff]
    %v1761 = vld [vmem:[%s1754 + $0x30] sm:$0xff]
    %v1762 = vld [vmem:[%s1754 + $0x38] sm:$0xff]
    %v1763 = vld [vmem:[%s1754 + $0x40] sm:$0xff]
    %v1764 = vld [vmem:[%s1754 + $0x48] sm:$0xff]
    %v1765 = vld [vmem:[%s1754 + $0x50] sm:$0xff]
    %v1766 = vld [vmem:[%s1754 + $0x58] sm:$0xff]
    %v1767 = vld [vmem:[%s1754 + $0x60] sm:$0xff]
    %v1768 = vld [vmem:[%s1754 + $0x68] sm:$0xff]
    %v1769 = vld [vmem:[%s1754 + $0x70] sm:$0xff]
    %v1770 = vld [vmem:[%s1754 + $0x78] sm:$0xff]
    %v1771 = vld [vmem:[%s1754 + $0x80] sm:$0xff]
    %v1772 = vld [vmem:[%s1754 + $0x88] sm:$0xff]
    %v1773 = vld [vmem:[%s1754 + $0x90] sm:$0xff]
    %v1774 = vld [vmem:[%s1754 + $0x98] sm:$0xff]
    %v1775 = vld [vmem:[%s1754 + $0xa0] sm:$0xff]
    %v1776 = vld [vmem:[%s1754 + $0xa8] sm:$0xff]
    %v1777 = vld [vmem:[%s1754 + $0xb0] sm:$0xff]
    %v1778 = vld [vmem:[%s1754 + $0xb8] sm:$0xff]
    %v1779 = vld [vmem:[%s1754 + $0xc0] sm:$0xff]
    %v1780 = vld [vmem:[%s1754 + $0xc8] sm:$0xff]
    %v1781 = vld [vmem:[%s1754 + $0xd0] sm:$0xff]
    %v1782 = vld [vmem:[%s1754 + $0xd8] sm:$0xff]
    %v1783 = vld [vmem:[%s1754 + $0xe0] sm:$0xff]
    %v1784 = vld [vmem:[%s1754 + $0xe8] sm:$0xff]
    %v1785 = vld [vmem:[%s1754 + $0xf0] sm:$0xff]
    %v1786 = vld [vmem:[%s1754 + $0xf8] sm:$0xff]
    %v1787 = vld [vmem:[%s1754 + $0x100] sm:$0xff]
    %v1788 = vld [vmem:[%s1754 + $0x108] sm:$0xff]
    %v1789 = vld [vmem:[%s1754 + $0x110] sm:$0xff]
    %v1790 = vld [vmem:[%s1754 + $0x118] sm:$0xff]
    %v1791 = vld [vmem:[%s1754 + $0x120] sm:$0xff]
    %v1792 = vld [vmem:[%s1754 + $0x128] sm:$0xff]
    %v1793 = vld [vmem:[%s1754 + $0x130] sm:$0xff]
    %v1794 = vld [vmem:[%s1754 + $0x138] sm:$0xff]
    %v1795 = vld [vmem:[%s1754 + $0x140] sm:$0xff]
    %v1796 = vld [vmem:[%s1754 + $0x148] sm:$0xff]
    %v1797 = vld [vmem:[%s1754 + $0x150] sm:$0xff]
    %v1798 = vld [vmem:[%s1754 + $0x158] sm:$0xff]
    %v1799 = vld [vmem:[%s1754 + $0x160] sm:$0xff]
    %v1800 = vld [vmem:[%s1754 + $0x168] sm:$0xff]
    %v1801 = vld [vmem:[%s1754 + $0x170] sm:$0xff]
    %v1802 = vld [vmem:[%s1754 + $0x178] sm:$0xff]
    %v1803 = vld [vmem:[%s1754 + $0x180] sm:$0xff]
    %v1804 = vld [vmem:[%s1754 + $0x188] sm:$0xff]
    %v1805 = vld [vmem:[%s1754 + $0x190] sm:$0xff]
    %v1806 = vld [vmem:[%s1754 + $0x198] sm:$0xff]
    %v1807 = vld [vmem:[%s1754 + $0x1a0] sm:$0xff]
    %v1808 = vld [vmem:[%s1754 + $0x1a8] sm:$0xff]
    %v1809 = vld [vmem:[%s1754 + $0x1b0] sm:$0xff]
    %v1810 = vld [vmem:[%s1754 + $0x1b8] sm:$0xff]
    %v1812 = vsel %vm1332, %v1272, 0
    %v1815 = vsel %vm1332, %v1274, 0
    %1817 = vmatprep.subr.mxu0 %v1756
    %1818 = vmatpush1.msra.mxu0 %v1755
    %1819 = vmatprep.subr.mxu0 %v1758
    %1820 = vmatpush1.msra.mxu0 %v1757
    %1821 = vmatprep.subr.mxu0 %v1760
    %1822 = vmatpush1.msra.mxu0 %v1759
    %1823 = vmatprep.subr.mxu0 %v1762
    %1824 = vmatpush1.msra.mxu0 %v1761
    %1825 = vmatprep.subr.mxu0 %v1764
    %1826 = vmatpush1.msra.mxu0 %v1763
    %1827 = vmatprep.subr.mxu0 %v1766
    %1828 = vmatpush1.msra.mxu0 %v1765
    %1829 = vmatprep.subr.mxu0 %v1768
    %1830 = vmatpush1.msra.mxu0 %v1767
    %1831 = vmatprep.subr.mxu0 %v1770
    %1832 = vmatpush1.msra.mxu0 %v1769
    %1833 = vmatprep.subr.mxu0 %v1772
    %1834 = vmatpush1.msra.mxu0 %v1771
    %1835 = vmatprep.subr.mxu0 %v1774
    %1836 = vmatpush1.msra.mxu0 %v1773
    %1837 = vmatprep.subr.mxu0 %v1776
    %1838 = vmatpush1.msra.mxu0 %v1775
    %1839 = vmatprep.subr.mxu0 %v1778
    %1840 = vmatpush1.msra.mxu0 %v1777
    %1841 = vmatprep.subr.mxu0 %v1780
    %1842 = vmatpush1.msra.mxu0 %v1779
    %1843 = vmatprep.subr.mxu0 %v1782
    %1844 = vmatpush1.msra.mxu0 %v1781
    %1845 = vmatprep.subr.mxu0 %v1784
    %1846 = vmatpush1.msra.mxu0 %v1783
    %1847 = vmatprep.subr.mxu0 %v1786
    %1848 = vmatpush1.msra.mxu0 %v1785
    %1849 = vmatprep.subr.mxu0 %v1788
    %1850 = vmatpush1.msra.mxu0 %v1787
    %1851 = vmatprep.subr.mxu0 %v1790
    %1852 = vmatpush1.msra.mxu0 %v1789
    %1853 = vmatprep.subr.mxu0 %v1792
    %1854 = vmatpush1.msra.mxu0 %v1791
    %1855 = vmatprep.subr.mxu0 %v1794
    %1856 = vmatpush1.msra.mxu0 %v1793
    %1857 = vmatprep.subr.mxu0 %v1796
    %1858 = vmatpush1.msra.mxu0 %v1795
    %1859 = vmatprep.subr.mxu0 %v1798
    %1860 = vmatpush1.msra.mxu0 %v1797
    %1861 = vmatprep.subr.mxu0 %v1800
    %1862 = vmatpush1.msra.mxu0 %v1799
    %1863 = vmatprep.subr.mxu0 %v1802
    %1864 = vmatpush1.msra.mxu0 %v1801
    %1865 = vmatprep.subr.mxu0 %v1804
    %1866 = vmatpush1.msra.mxu0 %v1803
    %1867 = vmatprep.subr.mxu0 %v1806
    %1868 = vmatpush1.msra.mxu0 %v1805
    %1869 = vmatprep.subr.mxu0 %v1808
    %1870 = vmatpush1.msra.mxu0 %v1807
    %1871 = vmatprep.subr.mxu0 %v1810
    %1872 = vmatpush1.msra.mxu0 %v1809
    %1873 = vmatprep.subr.mxu0 0.0
    %1874 = vmatpush1.msra.mxu0 0.0
    %1875 = vmatprep.subr.mxu0 0.0
    %1876 = vmatpush1.msra.mxu0 0.0
    %1877 = vmatprep.subr.mxu0 0.0
    %1878 = vmatpush1.msra.mxu0 0.0
    %1879 = vmatprep.subr.mxu0 0.0
    %1880 = vmatpush1.msra.mxu0 0.0
    %1881 = vmatprep.mubr.f32.mxu0 %v1334
    %1882 = vmatmul.mubr.f32.gmra.mrb[0].mxu0 %v1079
    %v1883 = vpop.f32.mrb[0].mxu0
    %v1884 = vadd.f32 0.0, %v1883
    %v1885 = vpop.f32.mrb[0].mxu0
    %v1886 = vadd.f32 0.0, %v1885
    %1887 = vmatprep.mubr.f32.mxu0 %v1337
    %1888 = vmatmul.mubr.f32.gmra.mrb[0].mxu0 %v1081
    %v1889 = vpop.f32.mrb[0].mxu0
    %v1890 = vadd.f32 0.0, %v1889
    %v1891 = vpop.f32.mrb[0].mxu0
    %v1892 = vadd.f32 0.0, %v1891
    %1893 = vmatprep.mubr.f32.mxu0 %v1340
    %1894 = vmatmul.mubr.f32.gmra.mrb[0].mxu0 %v1111
    %v1895 = vpop.f32.mrb[0].mxu0
    %v1896 = vadd.f32 0.0, %v1895
    %v1897 = vpop.f32.mrb[0].mxu0
    %v1898 = vadd.f32 0.0, %v1897
    %1899 = vmatprep.mubr.f32.mxu0 %v1343
    %1900 = vmatmul.mubr.f32.gmra.mrb[0].mxu0 %v1113
    %v1901 = vpop.f32.mrb[0].mxu0
    %v1902 = vadd.f32 0.0, %v1901
    %v1903 = vpop.f32.mrb[0].mxu0
    %v1904 = vadd.f32 0.0, %v1903
    %1905 = vmatprep.mubr.f32.mxu0 %v1346
    %1906 = vmatmul.mubr.f32.gmra.mrb[0].mxu0 %v1143
    %v1907 = vpop.f32.mrb[0].mxu0
    %v1908 = vadd.f32 0.0, %v1907
    %v1909 = vpop.f32.mrb[0].mxu0
    %v1910 = vadd.f32 0.0, %v1909
    %1911 = vmatprep.mubr.f32.mxu0 %v1349
    %1912 = vmatmul.mubr.f32.gmra.mrb[0].mxu0 %v1145
    %v1913 = vpop.f32.mrb[0].mxu0
    %v1914 = vadd.f32 0.0, %v1913
    %v1915 = vpop.f32.mrb[0].mxu0
    %v1916 = vadd.f32 0.0, %v1915
    %1917 = vmatprep.mubr.f32.mxu0 %v1352
    %1918 = vmatmul.mubr.f32.gmra.mrb[0].mxu0 %v1175
    %v1919 = vpop.f32.mrb[0].mxu0
    %v1920 = vadd.f32 0.0, %v1919
    %v1921 = vpop.f32.mrb[0].mxu0
    %v1922 = vadd.f32 0.0, %v1921
    %1923 = vmatprep.mubr.f32.mxu0 %v1355
    %1924 = vmatmul.mubr.f32.gmra.mrb[0].mxu0 %v1177
    %v1925 = vpop.f32.mrb[0].mxu0
    %v1926 = vadd.f32 0.0, %v1925
    %v1927 = vpop.f32.mrb[0].mxu0
    %v1928 = vadd.f32 0.0, %v1927
    %1929 = vmatprep.mubr.f32.mxu0 %v1358
    %1930 = vmatmul.mubr.f32.gmra.mrb[0].mxu0 %v1207
    %v1931 = vpop.f32.mrb[0].mxu0
    %v1932 = vadd.f32 0.0, %v1931
    %v1933 = vpop.f32.mrb[0].mxu0
    %v1934 = vadd.f32 0.0, %v1933
    %1935 = vmatprep.mubr.f32.mxu0 %v1361
    %1936 = vmatmul.mubr.f32.gmra.mrb[0].mxu0 %v1209
    %v1937 = vpop.f32.mrb[0].mxu0
    %v1938 = vadd.f32 0.0, %v1937
    %v1939 = vpop.f32.mrb[0].mxu0
    %v1940 = vadd.f32 0.0, %v1939
    %1941 = vmatprep.mubr.f32.mxu0 %v1364
    %1942 = vmatmul.mubr.f32.gmra.mrb[0].mxu0 %v1239
    %v1943 = vpop.f32.mrb[0].mxu0
    %v1944 = vadd.f32 0.0, %v1943
    %v1945 = vpop.f32.mrb[0].mxu0
    %v1946 = vadd.f32 0.0, %v1945
    %1947 = vmatprep.mubr.f32.mxu0 %v1367
    %1948 = vmatmul.mubr.f32.gmra.mrb[0].mxu0 %v1241
    %v1949 = vpop.f32.mrb[0].mxu0
    %v1950 = vadd.f32 0.0, %v1949
    %v1951 = vpop.f32.mrb[0].mxu0
    %v1952 = vadd.f32 0.0, %v1951
    %1953 = vmatprep.mubr.f32.mxu0 %v1812
    %1954 = vmatmul.mubr.f32.gmra.mrb[0].mxu0 %v1271
    %v1955 = vpop.f32.mrb[0].mxu0
    %v1956 = vadd.f32 0.0, %v1955
    %v1957 = vpop.f32.mrb[0].mxu0
    %v1958 = vadd.f32 0.0, %v1957
    %1959 = vmatprep.mubr.f32.mxu0 %v1815
    %1960 = vmatmul.mubr.f32.gmra.mrb[0].mxu0 %v1273
    %v1961 = vpop.f32.mrb[0].mxu0
    %v1962 = vadd.f32 0.0, %v1961
    %v1963 = vpop.f32.mrb[0].mxu0
    %v1964 = vadd.f32 0.0, %v1963
    %1965 = vdwg.mxu0
    %v1967 = vlaneseq
    %v1968 = vshrl.u32 %v1967, 7
    %v1969 = vsub.s32 0, %v1968
    %v1970 = vrot.slane %v1275, %v1969
    %v1971 = vlaneseq
    %v1972 = vshrl.u32 %v1971, 7
    %v1973 = vsub.s32 1, %v1972
    %v1974 = vrot.slane %v1275, %v1973
    %v1977 = vadd.f32 %v1970, %v1672
    %v1978 = vadd.f32 %v1974, %v1674
    %v1979 = vadd.f32 %v1970, %v1678
    %v1980 = vadd.f32 %v1974, %v1680
    %v1981 = vadd.f32 %v1977, %v1884
    %v1982 = vadd.f32 %v1978, %v1886
    %v1983 = vadd.f32 %v1979, %v1890
    %v1984 = vadd.f32 %v1980, %v1892
    %v1985 = vmax.f32 %v1981, 0.0
    %v1986 = vmax.f32 %v1982, 0.0
    %v1987 = vmax.f32 %v1983, 0.0
    %v1988 = vmax.f32 %v1984, 0.0
    %v1989 = vadd.f32 %v1970, %v1436
    %v1990 = vadd.f32 %v1974, %v1438
    %v1991 = vadd.f32 %v1970, %v1442
    %v1992 = vadd.f32 %v1974, %v1444
    %v1993 = vadd.f32 %v1989, %v1684
    %v1994 = vadd.f32 %v1990, %v1686
    %v1995 = vadd.f32 %v1991, %v1690
    %v1996 = vadd.f32 %v1992, %v1692
    %v1997 = vadd.f32 %v1993, %v1896
    %v1998 = vadd.f32 %v1994, %v1898
    %v1999 = vadd.f32 %v1995, %v1902
    %v2000 = vadd.f32 %v1996, %v1904
    %v2001 = vmax.f32 %v1997, 0.0
    %v2002 = vmax.f32 %v1998, 0.0
    %v2003 = vmax.f32 %v1999, 0.0
    %v2004 = vmax.f32 %v2000, 0.0
    %v2005 = vadd.f32 %v1970, %v1448
    %v2006 = vadd.f32 %v1974, %v1450
    %v2007 = vadd.f32 %v1970, %v1454
    %v2008 = vadd.f32 %v1974, %v1456
    %v2009 = vadd.f32 %v2005, %v1696
    %v2010 = vadd.f32 %v2006, %v1698
    %v2011 = vadd.f32 %v2007, %v1702
    %v2012 = vadd.f32 %v2008, %v1704
    %v2013 = vadd.f32 %v2009, %v1908
    %v2014 = vadd.f32 %v2010, %v1910
    %v2015 = vadd.f32 %v2011, %v1914
    %v2016 = vadd.f32 %v2012, %v1916
    %v2017 = vmax.f32 %v2013, 0.0
    %v2018 = vmax.f32 %v2014, 0.0
    %v2019 = vmax.f32 %v2015, 0.0
    %v2020 = vmax.f32 %v2016, 0.0
    %v2021 = vadd.f32 %v1970, %v1460
    %v2022 = vadd.f32 %v1974, %v1462
    %v2023 = vadd.f32 %v1970, %v1466
    %v2024 = vadd.f32 %v1974, %v1468
    %v2025 = vadd.f32 %v2021, %v1708
    %v2026 = vadd.f32 %v2022, %v1710
    %v2027 = vadd.f32 %v2023, %v1714
    %v2028 = vadd.f32 %v2024, %v1716
    %v2029 = vadd.f32 %v2025, %v1920
    %v2030 = vadd.f32 %v2026, %v1922
    %v2031 = vadd.f32 %v2027, %v1926
    %v2032 = vadd.f32 %v2028, %v1928
    %v2033 = vmax.f32 %v2029, 0.0
    %v2034 = vmax.f32 %v2030, 0.0
    %v2035 = vmax.f32 %v2031, 0.0
    %v2036 = vmax.f32 %v2032, 0.0
    %v2037 = vadd.f32 %v1970, %v1472
    %v2038 = vadd.f32 %v1974, %v1474
    %v2039 = vadd.f32 %v1970, %v1478
    %v2040 = vadd.f32 %v1974, %v1480
    %v2041 = vadd.f32 %v2037, %v1720
    %v2042 = vadd.f32 %v2038, %v1722
    %v2043 = vadd.f32 %v2039, %v1726
    %v2044 = vadd.f32 %v2040, %v1728
    %v2045 = vadd.f32 %v2041, %v1932
    %v2046 = vadd.f32 %v2042, %v1934
    %v2047 = vadd.f32 %v2043, %v1938
    %v2048 = vadd.f32 %v2044, %v1940
    %v2049 = vmax.f32 %v2045, 0.0
    %v2050 = vmax.f32 %v2046, 0.0
    %v2051 = vmax.f32 %v2047, 0.0
    %v2052 = vmax.f32 %v2048, 0.0
    %v2053 = vadd.f32 %v1970, %v1484
    %v2054 = vadd.f32 %v1974, %v1486
    %v2055 = vadd.f32 %v1970, %v1490
    %v2056 = vadd.f32 %v1974, %v1492
    %v2057 = vadd.f32 %v2053, %v1732
    %v2058 = vadd.f32 %v2054, %v1734
    %v2059 = vadd.f32 %v2055, %v1738
    %v2060 = vadd.f32 %v2056, %v1740
    %v2061 = vadd.f32 %v2057, %v1944
    %v2062 = vadd.f32 %v2058, %v1946
    %v2063 = vadd.f32 %v2059, %v1950
    %v2064 = vadd.f32 %v2060, %v1952
    %v2065 = vmax.f32 %v2061, 0.0
    %v2066 = vmax.f32 %v2062, 0.0
    %v2067 = vmax.f32 %v2063, 0.0
    %v2068 = vmax.f32 %v2064, 0.0
    %v2069 = vadd.f32 %v1970, %v1496
    %v2070 = vadd.f32 %v1974, %v1498
    %v2071 = vadd.f32 %v1970, %v1502
    %v2072 = vadd.f32 %v1974, %v1504
    %v2073 = vadd.f32 %v2069, %v1744
    %v2074 = vadd.f32 %v2070, %v1746
    %v2075 = vadd.f32 %v2071, %v1750
    %v2076 = vadd.f32 %v2072, %v1752
    %v2077 = vadd.f32 %v2073, %v1956
    %v2078 = vadd.f32 %v2074, %v1958
    %v2079 = vadd.f32 %v2075, %v1962
    %v2080 = vadd.f32 %v2076, %v1964
    %v2081 = vmax.f32 %v2077, 0.0
    %v2082 = vmax.f32 %v2078, 0.0
    %v2083 = vmax.f32 %v2079, 0.0
    %v2084 = vmax.f32 %v2080, 0.0
    %v2085 = vld [vmem:[%s6] sm:$0x3]
    %v2086 = vld [vmem:[%s5] sm:$0xff]
    %v2087 = vld [vmem:[%s5 + $0x8] sm:$0xff]
    %v2088 = vld [vmem:[%s5 + $0x10] sm:$0xff]
    %v2089 = vld [vmem:[%s5 + $0x18] sm:$0xff]
    %v2090 = vld [vmem:[%s5 + $0x20] sm:$0xff]
    %v2091 = vld [vmem:[%s5 + $0x28] sm:$0xff]
    %v2092 = vld [vmem:[%s5 + $0x30] sm:$0xff]
    %v2093 = vld [vmem:[%s5 + $0x38] sm:$0xff]
    %v2094 = vld [vmem:[%s5 + $0x40] sm:$0xff]
    %v2095 = vld [vmem:[%s5 + $0x48] sm:$0xff]
    %v2096 = vld [vmem:[%s5 + $0x50] sm:$0xff]
    %v2097 = vld [vmem:[%s5 + $0x58] sm:$0xff]
    %v2098 = vld [vmem:[%s5 + $0x60] sm:$0xff]
    %v2099 = vld [vmem:[%s5 + $0x68] sm:$0xff]
    %v2100 = vld [vmem:[%s5 + $0x70] sm:$0xff]
    %v2101 = vld [vmem:[%s5 + $0x78] sm:$0xff]
    %v2102 = vld [vmem:[%s5 + $0x80] sm:$0xff]
    %v2103 = vld [vmem:[%s5 + $0x88] sm:$0xff]
    %v2104 = vld [vmem:[%s5 + $0x90] sm:$0xff]
    %v2105 = vld [vmem:[%s5 + $0x98] sm:$0xff]
    %v2106 = vld [vmem:[%s5 + $0xa0] sm:$0xff]
    %v2107 = vld [vmem:[%s5 + $0xa8] sm:$0xff]
    %v2108 = vld [vmem:[%s5 + $0xb0] sm:$0xff]
    %v2109 = vld [vmem:[%s5 + $0xb8] sm:$0xff]
    %v2110 = vld [vmem:[%s5 + $0xc0] sm:$0xff]
    %v2111 = vld [vmem:[%s5 + $0xc8] sm:$0xff]
    %v2112 = vld [vmem:[%s5 + $0xd0] sm:$0xff]
    %v2113 = vld [vmem:[%s5 + $0xd8] sm:$0xff]
    %v2114 = vld [vmem:[%s5 + $0xe0] sm:$0xff]
    %v2115 = vld [vmem:[%s5 + $0xe8] sm:$0xff]
    %v2116 = vld [vmem:[%s5 + $0xf0] sm:$0xff]
    %v2117 = vld [vmem:[%s5 + $0xf8] sm:$0xff]
    %v2118 = vld [vmem:[%s5 + $0x100] sm:$0xff]
    %v2119 = vld [vmem:[%s5 + $0x108] sm:$0xff]
    %v2120 = vld [vmem:[%s5 + $0x110] sm:$0xff]
    %v2121 = vld [vmem:[%s5 + $0x118] sm:$0xff]
    %v2122 = vld [vmem:[%s5 + $0x120] sm:$0xff]
    %v2123 = vld [vmem:[%s5 + $0x128] sm:$0xff]
    %v2124 = vld [vmem:[%s5 + $0x130] sm:$0xff]
    %v2125 = vld [vmem:[%s5 + $0x138] sm:$0xff]
    %v2126 = vld [vmem:[%s5 + $0x140] sm:$0xff]
    %v2127 = vld [vmem:[%s5 + $0x148] sm:$0xff]
    %v2128 = vld [vmem:[%s5 + $0x150] sm:$0xff]
    %v2129 = vld [vmem:[%s5 + $0x158] sm:$0xff]
    %v2130 = vld [vmem:[%s5 + $0x160] sm:$0xff]
    %v2131 = vld [vmem:[%s5 + $0x168] sm:$0xff]
    %v2132 = vld [vmem:[%s5 + $0x170] sm:$0xff]
    %v2133 = vld [vmem:[%s5 + $0x178] sm:$0xff]
    %v2134 = vld [vmem:[%s5 + $0x180] sm:$0xff]
    %v2135 = vld [vmem:[%s5 + $0x188] sm:$0xff]
    %v2136 = vld [vmem:[%s5 + $0x190] sm:$0xff]
    %v2137 = vld [vmem:[%s5 + $0x198] sm:$0xff]
    %v2138 = vld [vmem:[%s5 + $0x1a0] sm:$0xff]
    %v2139 = vld [vmem:[%s5 + $0x1a8] sm:$0xff]
    %v2140 = vld [vmem:[%s5 + $0x1b0] sm:$0xff]
    %v2141 = vld [vmem:[%s5 + $0x1b8] sm:$0xff]
    %v2143 = vsel %vm1332, %v1986, 0
    %v2146 = vsel %vm1332, %v1988, 0
    %v2149 = vsel %vm1332, %v2018, 0
    %v2152 = vsel %vm1332, %v2020, 0
    %v2155 = vsel %vm1332, %v2050, 0
    %v2158 = vsel %vm1332, %v2052, 0
    %2160 = vmatprep.subr.mxu0 %v2087
    %2161 = vmatpush1.msra.mxu0 %v2086
    %2162 = vmatprep.subr.mxu0 %v2089
    %2163 = vmatpush1.msra.mxu0 %v2088
    %2164 = vmatprep.subr.mxu0 %v2091
    %2165 = vmatpush1.msra.mxu0 %v2090
    %2166 = vmatprep.subr.mxu0 %v2093
    %2167 = vmatpush1.msra.mxu0 %v2092
    %2168 = vmatprep.subr.mxu0 %v2095
    %2169 = vmatpush1.msra.mxu0 %v2094
    %2170 = vmatprep.subr.mxu0 %v2097
    %2171 = vmatpush1.msra.mxu0 %v2096
    %2172 = vmatprep.subr.mxu0 %v2099
    %2173 = vmatpush1.msra.mxu0 %v2098
    %2174 = vmatprep.subr.mxu0 %v2101
    %2175 = vmatpush1.msra.mxu0 %v2100
    %2176 = vmatprep.subr.mxu0 %v2103
    %2177 = vmatpush1.msra.mxu0 %v2102
    %2178 = vmatprep.subr.mxu0 %v2105
    %2179 = vmatpush1.msra.mxu0 %v2104
    %2180 = vmatprep.subr.mxu0 %v2107
    %2181 = vmatpush1.msra.mxu0 %v2106
    %2182 = vmatprep.subr.mxu0 %v2109
    %2183 = vmatpush1.msra.mxu0 %v2108
    %2184 = vmatprep.subr.mxu0 %v2111
    %2185 = vmatpush1.msra.mxu0 %v2110
    %2186 = vmatprep.subr.mxu0 %v2113
    %2187 = vmatpush1.msra.mxu0 %v2112
    %2188 = vmatprep.subr.mxu0 %v2115
    %2189 = vmatpush1.msra.mxu0 %v2114
    %2190 = vmatprep.subr.mxu0 %v2117
    %2191 = vmatpush1.msra.mxu0 %v2116
    %2192 = vmatprep.subr.mxu0 %v2119
    %2193 = vmatpush1.msra.mxu0 %v2118
    %2194 = vmatprep.subr.mxu0 %v2121
    %2195 = vmatpush1.msra.mxu0 %v2120
    %2196 = vmatprep.subr.mxu0 %v2123
    %2197 = vmatpush1.msra.mxu0 %v2122
    %2198 = vmatprep.subr.mxu0 %v2125
    %2199 = vmatpush1.msra.mxu0 %v2124
    %2200 = vmatprep.subr.mxu0 %v2127
    %2201 = vmatpush1.msra.mxu0 %v2126
    %2202 = vmatprep.subr.mxu0 %v2129
    %2203 = vmatpush1.msra.mxu0 %v2128
    %2204 = vmatprep.subr.mxu0 %v2131
    %2205 = vmatpush1.msra.mxu0 %v2130
    %2206 = vmatprep.subr.mxu0 %v2133
    %2207 = vmatpush1.msra.mxu0 %v2132
    %2208 = vmatprep.subr.mxu0 %v2135
    %2209 = vmatpush1.msra.mxu0 %v2134
    %2210 = vmatprep.subr.mxu0 %v2137
    %2211 = vmatpush1.msra.mxu0 %v2136
    %2212 = vmatprep.subr.mxu0 %v2139
    %2213 = vmatpush1.msra.mxu0 %v2138
    %2214 = vmatprep.subr.mxu0 %v2141
    %2215 = vmatpush1.msra.mxu0 %v2140
    %2216 = vmatprep.subr.mxu0 0.0
    %2217 = vmatpush1.msra.mxu0 0.0
    %2218 = vmatprep.subr.mxu0 0.0
    %2219 = vmatpush1.msra.mxu0 0.0
    %2220 = vmatprep.subr.mxu0 0.0
    %2221 = vmatpush1.msra.mxu0 0.0
    %2222 = vmatprep.subr.mxu0 0.0
    %2223 = vmatpush1.msra.mxu0 0.0
    %2224 = vmatprep.mubr.f32.mxu0 %v2143
    %2225 = vmatmul.mubr.f32.gmra.mrb[0].mxu0 %v1985
    %v2226 = vpop.f32.mrb[0].mxu0
    %v2227 = vadd.f32 0.0, %v2226
    %v2228 = vpop.f32.mrb[0].mxu0
    %v2229 = vadd.f32 0.0, %v2228
    %2230 = vmatprep.mubr.f32.mxu0 %v2146
    %2231 = vmatmul.mubr.f32.gmra.mrb[0].mxu0 %v1987
    %v2232 = vpop.f32.mrb[0].mxu0
    %v2233 = vadd.f32 0.0, %v2232
    %v2234 = vpop.f32.mrb[0].mxu0
    %v2235 = vadd.f32 0.0, %v2234
    %2236 = vmatprep.mubr.f32.mxu0 %v2149
    %2237 = vmatmul.mubr.f32.gmra.mrb[0].mxu0 %v2017
    %v2238 = vpop.f32.mrb[0].mxu0
    %v2239 = vadd.f32 0.0, %v2238
    %v2240 = vpop.f32.mrb[0].mxu0
    %v2241 = vadd.f32 0.0, %v2240
    %2242 = vmatprep.mubr.f32.mxu0 %v2152
    %2243 = vmatmul.mubr.f32.gmra.mrb[0].mxu0 %v2019
    %v2244 = vpop.f32.mrb[0].mxu0
    %v2245 = vadd.f32 0.0, %v2244
    %v2246 = vpop.f32.mrb[0].mxu0
    %v2247 = vadd.f32 0.0, %v2246
    %2248 = vmatprep.mubr.f32.mxu0 %v2155
    %2249 = vmatmul.mubr.f32.gmra.mrb[0].mxu0 %v2049
    %v2250 = vpop.f32.mrb[0].mxu0
    %v2251 = vadd.f32 0.0, %v2250
    %v2252 = vpop.f32.mrb[0].mxu0
    %v2253 = vadd.f32 0.0, %v2252
    %2254 = vmatprep.mubr.f32.mxu0 %v2158
    %2255 = vmatmul.mubr.f32.gmra.mrb[0].mxu0 %v2051
    %v2256 = vpop.f32.mrb[0].mxu0
    %v2257 = vadd.f32 0.0, %v2256
    %v2258 = vpop.f32.mrb[0].mxu0
    %v2259 = vadd.f32 0.0, %v2258
    %2260 = vdwg.mxu0
    %s2261 = scalar_lea.vmem %s5, 448
    %v2262 = vld [vmem:[%s2261] sm:$0xff]
    %v2263 = vld [vmem:[%s2261 + $0x8] sm:$0xff]
    %v2264 = vld [vmem:[%s2261 + $0x10] sm:$0xff]
    %v2265 = vld [vmem:[%s2261 + $0x18] sm:$0xff]
    %v2266 = vld [vmem:[%s2261 + $0x20] sm:$0xff]
    %v2267 = vld [vmem:[%s2261 + $0x28] sm:$0xff]
    %v2268 = vld [vmem:[%s2261 + $0x30] sm:$0xff]
    %v2269 = vld [vmem:[%s2261 + $0x38] sm:$0xff]
    %v2270 = vld [vmem:[%s2261 + $0x40] sm:$0xff]
    %v2271 = vld [vmem:[%s2261 + $0x48] sm:$0xff]
    %v2272 = vld [vmem:[%s2261 + $0x50] sm:$0xff]
    %v2273 = vld [vmem:[%s2261 + $0x58] sm:$0xff]
    %v2274 = vld [vmem:[%s2261 + $0x60] sm:$0xff]
    %v2275 = vld [vmem:[%s2261 + $0x68] sm:$0xff]
    %v2276 = vld [vmem:[%s2261 + $0x70] sm:$0xff]
    %v2277 = vld [vmem:[%s2261 + $0x78] sm:$0xff]
    %v2278 = vld [vmem:[%s2261 + $0x80] sm:$0xff]
    %v2279 = vld [vmem:[%s2261 + $0x88] sm:$0xff]
    %v2280 = vld [vmem:[%s2261 + $0x90] sm:$0xff]
    %v2281 = vld [vmem:[%s2261 + $0x98] sm:$0xff]
    %v2282 = vld [vmem:[%s2261 + $0xa0] sm:$0xff]
    %v2283 = vld [vmem:[%s2261 + $0xa8] sm:$0xff]
    %v2284 = vld [vmem:[%s2261 + $0xb0] sm:$0xff]
    %v2285 = vld [vmem:[%s2261 + $0xb8] sm:$0xff]
    %v2286 = vld [vmem:[%s2261 + $0xc0] sm:$0xff]
    %v2287 = vld [vmem:[%s2261 + $0xc8] sm:$0xff]
    %v2288 = vld [vmem:[%s2261 + $0xd0] sm:$0xff]
    %v2289 = vld [vmem:[%s2261 + $0xd8] sm:$0xff]
    %v2290 = vld [vmem:[%s2261 + $0xe0] sm:$0xff]
    %v2291 = vld [vmem:[%s2261 + $0xe8] sm:$0xff]
    %v2292 = vld [vmem:[%s2261 + $0xf0] sm:$0xff]
    %v2293 = vld [vmem:[%s2261 + $0xf8] sm:$0xff]
    %v2294 = vld [vmem:[%s2261 + $0x100] sm:$0xff]
    %v2295 = vld [vmem:[%s2261 + $0x108] sm:$0xff]
    %v2296 = vld [vmem:[%s2261 + $0x110] sm:$0xff]
    %v2297 = vld [vmem:[%s2261 + $0x118] sm:$0xff]
    %v2298 = vld [vmem:[%s2261 + $0x120] sm:$0xff]
    %v2299 = vld [vmem:[%s2261 + $0x128] sm:$0xff]
    %v2300 = vld [vmem:[%s2261 + $0x130] sm:$0xff]
    %v2301 = vld [vmem:[%s2261 + $0x138] sm:$0xff]
    %v2302 = vld [vmem:[%s2261 + $0x140] sm:$0xff]
    %v2303 = vld [vmem:[%s2261 + $0x148] sm:$0xff]
    %v2304 = vld [vmem:[%s2261 + $0x150] sm:$0xff]
    %v2305 = vld [vmem:[%s2261 + $0x158] sm:$0xff]
    %v2306 = vld [vmem:[%s2261 + $0x160] sm:$0xff]
    %v2307 = vld [vmem:[%s2261 + $0x168] sm:$0xff]
    %v2308 = vld [vmem:[%s2261 + $0x170] sm:$0xff]
    %v2309 = vld [vmem:[%s2261 + $0x178] sm:$0xff]
    %v2310 = vld [vmem:[%s2261 + $0x180] sm:$0xff]
    %v2311 = vld [vmem:[%s2261 + $0x188] sm:$0xff]
    %v2312 = vld [vmem:[%s2261 + $0x190] sm:$0xff]
    %v2313 = vld [vmem:[%s2261 + $0x198] sm:$0xff]
    %v2314 = vld [vmem:[%s2261 + $0x1a0] sm:$0xff]
    %v2315 = vld [vmem:[%s2261 + $0x1a8] sm:$0xff]
    %v2316 = vld [vmem:[%s2261 + $0x1b0] sm:$0xff]
    %v2317 = vld [vmem:[%s2261 + $0x1b8] sm:$0xff]
    %v2319 = vsel %vm1332, %v2002, 0
    %v2322 = vsel %vm1332, %v2004, 0
    %v2325 = vsel %vm1332, %v2034, 0
    %v2328 = vsel %vm1332, %v2036, 0
    %v2331 = vsel %vm1332, %v2066, 0
    %v2334 = vsel %vm1332, %v2068, 0
    %2336 = vmatprep.subr.mxu0 %v2263
    %2337 = vmatpush1.msra.mxu0 %v2262
    %2338 = vmatprep.subr.mxu0 %v2265
    %2339 = vmatpush1.msra.mxu0 %v2264
    %2340 = vmatprep.subr.mxu0 %v2267
    %2341 = vmatpush1.msra.mxu0 %v2266
    %2342 = vmatprep.subr.mxu0 %v2269
    %2343 = vmatpush1.msra.mxu0 %v2268
    %2344 = vmatprep.subr.mxu0 %v2271
    %2345 = vmatpush1.msra.mxu0 %v2270
    %2346 = vmatprep.subr.mxu0 %v2273
    %2347 = vmatpush1.msra.mxu0 %v2272
    %2348 = vmatprep.subr.mxu0 %v2275
    %2349 = vmatpush1.msra.mxu0 %v2274
    %2350 = vmatprep.subr.mxu0 %v2277
    %2351 = vmatpush1.msra.mxu0 %v2276
    %2352 = vmatprep.subr.mxu0 %v2279
    %2353 = vmatpush1.msra.mxu0 %v2278
    %2354 = vmatprep.subr.mxu0 %v2281
    %2355 = vmatpush1.msra.mxu0 %v2280
    %2356 = vmatprep.subr.mxu0 %v2283
    %2357 = vmatpush1.msra.mxu0 %v2282
    %2358 = vmatprep.subr.mxu0 %v2285
    %2359 = vmatpush1.msra.mxu0 %v2284
    %2360 = vmatprep.subr.mxu0 %v2287
    %2361 = vmatpush1.msra.mxu0 %v2286
    %2362 = vmatprep.subr.mxu0 %v2289
    %2363 = vmatpush1.msra.mxu0 %v2288
    %2364 = vmatprep.subr.mxu0 %v2291
    %2365 = vmatpush1.msra.mxu0 %v2290
    %2366 = vmatprep.subr.mxu0 %v2293
    %2367 = vmatpush1.msra.mxu0 %v2292
    %2368 = vmatprep.subr.mxu0 %v2295
    %2369 = vmatpush1.msra.mxu0 %v2294
    %2370 = vmatprep.subr.mxu0 %v2297
    %2371 = vmatpush1.msra.mxu0 %v2296
    %2372 = vmatprep.subr.mxu0 %v2299
    %2373 = vmatpush1.msra.mxu0 %v2298
    %2374 = vmatprep.subr.mxu0 %v2301
    %2375 = vmatpush1.msra.mxu0 %v2300
    %2376 = vmatprep.subr.mxu0 %v2303
    %2377 = vmatpush1.msra.mxu0 %v2302
    %2378 = vmatprep.subr.mxu0 %v2305
    %2379 = vmatpush1.msra.mxu0 %v2304
    %2380 = vmatprep.subr.mxu0 %v2307
    %2381 = vmatpush1.msra.mxu0 %v2306
    %2382 = vmatprep.subr.mxu0 %v2309
    %2383 = vmatpush1.msra.mxu0 %v2308
    %2384 = vmatprep.subr.mxu0 %v2311
    %2385 = vmatpush1.msra.mxu0 %v2310
    %2386 = vmatprep.subr.mxu0 %v2313
    %2387 = vmatpush1.msra.mxu0 %v2312
    %2388 = vmatprep.subr.mxu0 %v2315
    %2389 = vmatpush1.msra.mxu0 %v2314
    %2390 = vmatprep.subr.mxu0 %v2317
    %2391 = vmatpush1.msra.mxu0 %v2316
    %2392 = vmatprep.subr.mxu0 0.0
    %2393 = vmatpush1.msra.mxu0 0.0
    %2394 = vmatprep.subr.mxu0 0.0
    %2395 = vmatpush1.msra.mxu0 0.0
    %2396 = vmatprep.subr.mxu0 0.0
    %2397 = vmatpush1.msra.mxu0 0.0
    %2398 = vmatprep.subr.mxu0 0.0
    %2399 = vmatpush1.msra.mxu0 0.0
    %2400 = vmatprep.mubr.f32.mxu0 %v2319
    %2401 = vmatmul.mubr.f32.gmra.mrb[0].mxu0 %v2001
    %v2402 = vpop.f32.mrb[0].mxu0
    %v2403 = vadd.f32 0.0, %v2402
    %v2404 = vpop.f32.mrb[0].mxu0
    %v2405 = vadd.f32 0.0, %v2404
    %2406 = vmatprep.mubr.f32.mxu0 %v2322
    %2407 = vmatmul.mubr.f32.gmra.mrb[0].mxu0 %v2003
    %v2408 = vpop.f32.mrb[0].mxu0
    %v2409 = vadd.f32 0.0, %v2408
    %v2410 = vpop.f32.mrb[0].mxu0
    %v2411 = vadd.f32 0.0, %v2410
    %2412 = vmatprep.mubr.f32.mxu0 %v2325
    %2413 = vmatmul.mubr.f32.gmra.mrb[0].mxu0 %v2033
    %v2414 = vpop.f32.mrb[0].mxu0
    %v2415 = vadd.f32 0.0, %v2414
    %v2416 = vpop.f32.mrb[0].mxu0
    %v2417 = vadd.f32 0.0, %v2416
    %2418 = vmatprep.mubr.f32.mxu0 %v2328
    %2419 = vmatmul.mubr.f32.gmra.mrb[0].mxu0 %v2035
    %v2420 = vpop.f32.mrb[0].mxu0
    %v2421 = vadd.f32 0.0, %v2420
    %v2422 = vpop.f32.mrb[0].mxu0
    %v2423 = vadd.f32 0.0, %v2422
    %2424 = vmatprep.mubr.f32.mxu0 %v2331
    %2425 = vmatmul.mubr.f32.gmra.mrb[0].mxu0 %v2065
    %v2426 = vpop.f32.mrb[0].mxu0
    %v2427 = vadd.f32 0.0, %v2426
    %v2428 = vpop.f32.mrb[0].mxu0
    %v2429 = vadd.f32 0.0, %v2428
    %2430 = vmatprep.mubr.f32.mxu0 %v2334
    %2431 = vmatmul.mubr.f32.gmra.mrb[0].mxu0 %v2067
    %v2432 = vpop.f32.mrb[0].mxu0
    %v2433 = vadd.f32 0.0, %v2432
    %v2434 = vpop.f32.mrb[0].mxu0
    %v2435 = vadd.f32 0.0, %v2434
    %2436 = vdwg.mxu0
    %s2437 = scalar_lea.vmem %s5, 896
    %v2438 = vld [vmem:[%s2437] sm:$0xff]
    %v2439 = vld [vmem:[%s2437 + $0x8] sm:$0xff]
    %v2440 = vld [vmem:[%s2437 + $0x10] sm:$0xff]
    %v2441 = vld [vmem:[%s2437 + $0x18] sm:$0xff]
    %v2442 = vld [vmem:[%s2437 + $0x20] sm:$0xff]
    %v2443 = vld [vmem:[%s2437 + $0x28] sm:$0xff]
    %v2444 = vld [vmem:[%s2437 + $0x30] sm:$0xff]
    %v2445 = vld [vmem:[%s2437 + $0x38] sm:$0xff]
    %v2446 = vld [vmem:[%s2437 + $0x40] sm:$0xff]
    %v2447 = vld [vmem:[%s2437 + $0x48] sm:$0xff]
    %v2448 = vld [vmem:[%s2437 + $0x50] sm:$0xff]
    %v2449 = vld [vmem:[%s2437 + $0x58] sm:$0xff]
    %v2450 = vld [vmem:[%s2437 + $0x60] sm:$0xff]
    %v2451 = vld [vmem:[%s2437 + $0x68] sm:$0xff]
    %v2452 = vld [vmem:[%s2437 + $0x70] sm:$0xff]
    %v2453 = vld [vmem:[%s2437 + $0x78] sm:$0xff]
    %v2454 = vld [vmem:[%s2437 + $0x80] sm:$0xff]
    %v2455 = vld [vmem:[%s2437 + $0x88] sm:$0xff]
    %v2456 = vld [vmem:[%s2437 + $0x90] sm:$0xff]
    %v2457 = vld [vmem:[%s2437 + $0x98] sm:$0xff]
    %v2458 = vld [vmem:[%s2437 + $0xa0] sm:$0xff]
    %v2459 = vld [vmem:[%s2437 + $0xa8] sm:$0xff]
    %v2460 = vld [vmem:[%s2437 + $0xb0] sm:$0xff]
    %v2461 = vld [vmem:[%s2437 + $0xb8] sm:$0xff]
    %v2462 = vld [vmem:[%s2437 + $0xc0] sm:$0xff]
    %v2463 = vld [vmem:[%s2437 + $0xc8] sm:$0xff]
    %v2464 = vld [vmem:[%s2437 + $0xd0] sm:$0xff]
    %v2465 = vld [vmem:[%s2437 + $0xd8] sm:$0xff]
    %v2466 = vld [vmem:[%s2437 + $0xe0] sm:$0xff]
    %v2467 = vld [vmem:[%s2437 + $0xe8] sm:$0xff]
    %v2468 = vld [vmem:[%s2437 + $0xf0] sm:$0xff]
    %v2469 = vld [vmem:[%s2437 + $0xf8] sm:$0xff]
    %v2470 = vld [vmem:[%s2437 + $0x100] sm:$0xff]
    %v2471 = vld [vmem:[%s2437 + $0x108] sm:$0xff]
    %v2472 = vld [vmem:[%s2437 + $0x110] sm:$0xff]
    %v2473 = vld [vmem:[%s2437 + $0x118] sm:$0xff]
    %v2474 = vld [vmem:[%s2437 + $0x120] sm:$0xff]
    %v2475 = vld [vmem:[%s2437 + $0x128] sm:$0xff]
    %v2476 = vld [vmem:[%s2437 + $0x130] sm:$0xff]
    %v2477 = vld [vmem:[%s2437 + $0x138] sm:$0xff]
    %v2478 = vld [vmem:[%s2437 + $0x140] sm:$0xff]
    %v2479 = vld [vmem:[%s2437 + $0x148] sm:$0xff]
    %v2480 = vld [vmem:[%s2437 + $0x150] sm:$0xff]
    %v2481 = vld [vmem:[%s2437 + $0x158] sm:$0xff]
    %v2482 = vld [vmem:[%s2437 + $0x160] sm:$0xff]
    %v2483 = vld [vmem:[%s2437 + $0x168] sm:$0xff]
    %v2484 = vld [vmem:[%s2437 + $0x170] sm:$0xff]
    %v2485 = vld [vmem:[%s2437 + $0x178] sm:$0xff]
    %v2486 = vld [vmem:[%s2437 + $0x180] sm:$0xff]
    %v2487 = vld [vmem:[%s2437 + $0x188] sm:$0xff]
    %v2488 = vld [vmem:[%s2437 + $0x190] sm:$0xff]
    %v2489 = vld [vmem:[%s2437 + $0x198] sm:$0xff]
    %v2490 = vld [vmem:[%s2437 + $0x1a0] sm:$0xff]
    %v2491 = vld [vmem:[%s2437 + $0x1a8] sm:$0xff]
    %v2492 = vld [vmem:[%s2437 + $0x1b0] sm:$0xff]
    %v2493 = vld [vmem:[%s2437 + $0x1b8] sm:$0xff]
    %v2495 = vsel %vm1332, %v2082, 0
    %v2498 = vsel %vm1332, %v2084, 0
    %2500 = vmatprep.subr.mxu0 %v2439
    %2501 = vmatpush1.msra.mxu0 %v2438
    %2502 = vmatprep.subr.mxu0 %v2441
    %2503 = vmatpush1.msra.mxu0 %v2440
    %2504 = vmatprep.subr.mxu0 %v2443
    %2505 = vmatpush1.msra.mxu0 %v2442
    %2506 = vmatprep.subr.mxu0 %v2445
    %2507 = vmatpush1.msra.mxu0 %v2444
    %2508 = vmatprep.subr.mxu0 %v2447
    %2509 = vmatpush1.msra.mxu0 %v2446
    %2510 = vmatprep.subr.mxu0 %v2449
    %2511 = vmatpush1.msra.mxu0 %v2448
    %2512 = vmatprep.subr.mxu0 %v2451
    %2513 = vmatpush1.msra.mxu0 %v2450
    %2514 = vmatprep.subr.mxu0 %v2453
    %2515 = vmatpush1.msra.mxu0 %v2452
    %2516 = vmatprep.subr.mxu0 %v2455
    %2517 = vmatpush1.msra.mxu0 %v2454
    %2518 = vmatprep.subr.mxu0 %v2457
    %2519 = vmatpush1.msra.mxu0 %v2456
    %2520 = vmatprep.subr.mxu0 %v2459
    %2521 = vmatpush1.msra.mxu0 %v2458
    %2522 = vmatprep.subr.mxu0 %v2461
    %2523 = vmatpush1.msra.mxu0 %v2460
    %2524 = vmatprep.subr.mxu0 %v2463
    %2525 = vmatpush1.msra.mxu0 %v2462
    %2526 = vmatprep.subr.mxu0 %v2465
    %2527 = vmatpush1.msra.mxu0 %v2464
    %2528 = vmatprep.subr.mxu0 %v2467
    %2529 = vmatpush1.msra.mxu0 %v2466
    %2530 = vmatprep.subr.mxu0 %v2469
    %2531 = vmatpush1.msra.mxu0 %v2468
    %2532 = vmatprep.subr.mxu0 %v2471
    %2533 = vmatpush1.msra.mxu0 %v2470
    %2534 = vmatprep.subr.mxu0 %v2473
    %2535 = vmatpush1.msra.mxu0 %v2472
    %2536 = vmatprep.subr.mxu0 %v2475
    %2537 = vmatpush1.msra.mxu0 %v2474
    %2538 = vmatprep.subr.mxu0 %v2477
    %2539 = vmatpush1.msra.mxu0 %v2476
    %2540 = vmatprep.subr.mxu0 %v2479
    %2541 = vmatpush1.msra.mxu0 %v2478
    %2542 = vmatprep.subr.mxu0 %v2481
    %2543 = vmatpush1.msra.mxu0 %v2480
    %2544 = vmatprep.subr.mxu0 %v2483
    %2545 = vmatpush1.msra.mxu0 %v2482
    %2546 = vmatprep.subr.mxu0 %v2485
    %2547 = vmatpush1.msra.mxu0 %v2484
    %2548 = vmatprep.subr.mxu0 %v2487
    %2549 = vmatpush1.msra.mxu0 %v2486
    %2550 = vmatprep.subr.mxu0 %v2489
    %2551 = vmatpush1.msra.mxu0 %v2488
    %2552 = vmatprep.subr.mxu0 %v2491
    %2553 = vmatpush1.msra.mxu0 %v2490
    %2554 = vmatprep.subr.mxu0 %v2493
    %2555 = vmatpush1.msra.mxu0 %v2492
    %2556 = vmatprep.subr.mxu0 0.0
    %2557 = vmatpush1.msra.mxu0 0.0
    %2558 = vmatprep.subr.mxu0 0.0
    %2559 = vmatpush1.msra.mxu0 0.0
    %2560 = vmatprep.subr.mxu0 0.0
    %2561 = vmatpush1.msra.mxu0 0.0
    %2562 = vmatprep.subr.mxu0 0.0
    %2563 = vmatpush1.msra.mxu0 0.0
    %2564 = vmatprep.mubr.f32.mxu0 %v2149
    %2565 = vmatmul.mubr.f32.gmra.mrb[0].mxu0 %v2017
    %v2566 = vpop.f32.mrb[0].mxu0
    %v2567 = vadd.f32 0.0, %v2566
    %v2568 = vpop.f32.mrb[0].mxu0
    %v2569 = vadd.f32 0.0, %v2568
    %2570 = vmatprep.mubr.f32.mxu0 %v2152
    %2571 = vmatmul.mubr.f32.gmra.mrb[0].mxu0 %v2019
    %v2572 = vpop.f32.mrb[0].mxu0
    %v2573 = vadd.f32 0.0, %v2572
    %v2574 = vpop.f32.mrb[0].mxu0
    %v2575 = vadd.f32 0.0, %v2574
    %2576 = vmatprep.mubr.f32.mxu0 %v2155
    %2577 = vmatmul.mubr.f32.gmra.mrb[0].mxu0 %v2049
    %v2578 = vpop.f32.mrb[0].mxu0
    %v2579 = vadd.f32 0.0, %v2578
    %v2580 = vpop.f32.mrb[0].mxu0
    %v2581 = vadd.f32 0.0, %v2580
    %2582 = vmatprep.mubr.f32.mxu0 %v2158
    %2583 = vmatmul.mubr.f32.gmra.mrb[0].mxu0 %v2051
    %v2584 = vpop.f32.mrb[0].mxu0
    %v2585 = vadd.f32 0.0, %v2584
    %v2586 = vpop.f32.mrb[0].mxu0
    %v2587 = vadd.f32 0.0, %v2586
    %2588 = vmatprep.mubr.f32.mxu0 %v2495
    %2589 = vmatmul.mubr.f32.gmra.mrb[0].mxu0 %v2081
    %v2590 = vpop.f32.mrb[0].mxu0
    %v2591 = vadd.f32 0.0, %v2590
    %v2592 = vpop.f32.mrb[0].mxu0
    %v2593 = vadd.f32 0.0, %v2592
    %2594 = vmatprep.mubr.f32.mxu0 %v2498
    %2595 = vmatmul.mubr.f32.gmra.mrb[0].mxu0 %v2083
    %v2596 = vpop.f32.mrb[0].mxu0
    %v2597 = vadd.f32 0.0, %v2596
    %v2598 = vpop.f32.mrb[0].mxu0
    %v2599 = vadd.f32 0.0, %v2598
    %2600 = vdwg.mxu0
    %v2602 = vlaneseq
    %v2603 = vshrl.u32 %v2602, 7
    %v2604 = vsub.s32 0, %v2603
    %v2605 = vrot.slane %v2085, %v2604
    %v2606 = vlaneseq
    %v2607 = vshrl.u32 %v2606, 7
    %v2608 = vsub.s32 1, %v2607
    %v2609 = vrot.slane %v2085, %v2608
    %v2612 = vadd.f32 %v2605, %v2227
    %v2613 = vadd.f32 %v2609, %v2229
    %v2614 = vadd.f32 %v2605, %v2233
    %v2615 = vadd.f32 %v2609, %v2235
    %v2616 = vadd.f32 %v2612, %v2403
    %v2617 = vadd.f32 %v2613, %v2405
    %v2618 = vadd.f32 %v2614, %v2409
    %v2619 = vadd.f32 %v2615, %v2411
    %v2620 = vadd.f32 %v2616, %v2567
    %v2621 = vadd.f32 %v2617, %v2569
    %v2622 = vadd.f32 %v2618, %v2573
    %v2623 = vadd.f32 %v2619, %v2575
    %v2624 = vmax.f32 %v2620, 0.0
    %v2625 = vmax.f32 %v2621, 0.0
    %v2626 = vmax.f32 %v2622, 0.0
    %v2627 = vmax.f32 %v2623, 0.0
    %v2628 = vadd.f32 %v2605, %v2239
    %v2629 = vadd.f32 %v2609, %v2241
    %v2630 = vadd.f32 %v2605, %v2245
    %v2631 = vadd.f32 %v2609, %v2247
    %v2632 = vadd.f32 %v2628, %v2415
    %v2633 = vadd.f32 %v2629, %v2417
    %v2634 = vadd.f32 %v2630, %v2421
    %v2635 = vadd.f32 %v2631, %v2423
    %v2636 = vadd.f32 %v2632, %v2579
    %v2637 = vadd.f32 %v2633, %v2581
    %v2638 = vadd.f32 %v2634, %v2585
    %v2639 = vadd.f32 %v2635, %v2587
    %v2640 = vmax.f32 %v2636, 0.0
    %v2641 = vmax.f32 %v2637, 0.0
    %v2642 = vmax.f32 %v2638, 0.0
    %v2643 = vmax.f32 %v2639, 0.0
    %v2644 = vadd.f32 %v2605, %v2251
    %v2645 = vadd.f32 %v2609, %v2253
    %v2646 = vadd.f32 %v2605, %v2257
    %v2647 = vadd.f32 %v2609, %v2259
    %v2648 = vadd.f32 %v2644, %v2427
    %v2649 = vadd.f32 %v2645, %v2429
    %v2650 = vadd.f32 %v2646, %v2433
    %v2651 = vadd.f32 %v2647, %v2435
    %v2652 = vadd.f32 %v2648, %v2591
    %v2653 = vadd.f32 %v2649, %v2593
    %v2654 = vadd.f32 %v2650, %v2597
    %v2655 = vadd.f32 %v2651, %v2599
    %v2656 = vmax.f32 %v2652, 0.0
    %v2657 = vmax.f32 %v2653, 0.0
    %v2658 = vmax.f32 %v2654, 0.0
    %v2659 = vmax.f32 %v2655, 0.0
    %v2660 = vld [vmem:[%s8] sm:$0x1]
    %v2661 = vld [vmem:[%s7] sm:$0xff]
    %v2662 = vld [vmem:[%s7 + $0x8] sm:$0xff]
    %v2663 = vld [vmem:[%s7 + $0x10] sm:$0xff]
    %v2664 = vld [vmem:[%s7 + $0x18] sm:$0xff]
    %v2665 = vld [vmem:[%s7 + $0x20] sm:$0xff]
    %v2666 = vld [vmem:[%s7 + $0x28] sm:$0xff]
    %v2667 = vld [vmem:[%s7 + $0x30] sm:$0xff]
    %v2668 = vld [vmem:[%s7 + $0x38] sm:$0xff]
    %v2669 = vld [vmem:[%s7 + $0x40] sm:$0xff]
    %v2670 = vld [vmem:[%s7 + $0x48] sm:$0xff]
    %v2671 = vld [vmem:[%s7 + $0x50] sm:$0xff]
    %v2672 = vld [vmem:[%s7 + $0x58] sm:$0xff]
    %v2673 = vld [vmem:[%s7 + $0x60] sm:$0xff]
    %v2674 = vld [vmem:[%s7 + $0x68] sm:$0xff]
    %v2675 = vld [vmem:[%s7 + $0x70] sm:$0xff]
    %v2676 = vld [vmem:[%s7 + $0x78] sm:$0xff]
    %v2677 = vld [vmem:[%s7 + $0x80] sm:$0xff]
    %v2678 = vld [vmem:[%s7 + $0x88] sm:$0xff]
    %v2679 = vld [vmem:[%s7 + $0x90] sm:$0xff]
    %v2680 = vld [vmem:[%s7 + $0x98] sm:$0xff]
    %v2681 = vld [vmem:[%s7 + $0xa0] sm:$0xff]
    %v2682 = vld [vmem:[%s7 + $0xa8] sm:$0xff]
    %v2683 = vld [vmem:[%s7 + $0xb0] sm:$0xff]
    %v2684 = vld [vmem:[%s7 + $0xb8] sm:$0xff]
    %vm2685 = vcmask 523264
    %v2687 = vsel %vm2685, %v2625, 0
    %v2690 = vsel %vm2685, %v2627, 0
    %2692 = vmatprep.subr.mxu0 0.0
    %2693 = vmatpush1.msra.mxu0 %v2661
    %2694 = vmatprep.subr.mxu0 0.0
    %2695 = vmatpush1.msra.mxu0 %v2662
    %2696 = vmatprep.subr.mxu0 0.0
    %2697 = vmatpush1.msra.mxu0 %v2663
    %2698 = vmatprep.subr.mxu0 0.0
    %2699 = vmatpush1.msra.mxu0 %v2664
    %2700 = vmatprep.subr.mxu0 0.0
    %2701 = vmatpush1.msra.mxu0 %v2665
    %2702 = vmatprep.subr.mxu0 0.0
    %2703 = vmatpush1.msra.mxu0 %v2666
    %2704 = vmatprep.subr.mxu0 0.0
    %2705 = vmatpush1.msra.mxu0 %v2667
    %2706 = vmatprep.subr.mxu0 0.0
    %2707 = vmatpush1.msra.mxu0 %v2668
    %2708 = vmatprep.subr.mxu0 0.0
    %2709 = vmatpush1.msra.mxu0 %v2669
    %2710 = vmatprep.subr.mxu0 0.0
    %2711 = vmatpush1.msra.mxu0 %v2670
    %2712 = vmatprep.subr.mxu0 0.0
    %2713 = vmatpush1.msra.mxu0 %v2671
    %2714 = vmatprep.subr.mxu0 0.0
    %2715 = vmatpush1.msra.mxu0 %v2672
    %2716 = vmatprep.subr.mxu0 0.0
    %2717 = vmatpush1.msra.mxu0 %v2673
    %2718 = vmatprep.subr.mxu0 0.0
    %2719 = vmatpush1.msra.mxu0 %v2674
    %2720 = vmatprep.subr.mxu0 0.0
    %2721 = vmatpush1.msra.mxu0 %v2675
    %2722 = vmatprep.subr.mxu0 0.0
    %2723 = vmatpush1.msra.mxu0 %v2676
    %2724 = vmatprep.subr.mxu0 0.0
    %2725 = vmatpush1.msra.mxu0 %v2677
    %2726 = vmatprep.subr.mxu0 0.0
    %2727 = vmatpush1.msra.mxu0 %v2678
    %2728 = vmatprep.subr.mxu0 0.0
    %2729 = vmatpush1.msra.mxu0 %v2679
    %2730 = vmatprep.subr.mxu0 0.0
    %2731 = vmatpush1.msra.mxu0 %v2680
    %2732 = vmatprep.subr.mxu0 0.0
    %2733 = vmatpush1.msra.mxu0 %v2681
    %2734 = vmatprep.subr.mxu0 0.0
    %2735 = vmatpush1.msra.mxu0 %v2682
    %2736 = vmatprep.subr.mxu0 0.0
    %2737 = vmatpush1.msra.mxu0 %v2683
    %2738 = vmatprep.subr.mxu0 0.0
    %2739 = vmatpush1.msra.mxu0 %v2684
    %2740 = vmatprep.subr.mxu0 0.0
    %2741 = vmatpush1.msra.mxu0 0.0
    %2742 = vmatprep.subr.mxu0 0.0
    %2743 = vmatpush1.msra.mxu0 0.0
    %2744 = vmatprep.subr.mxu0 0.0
    %2745 = vmatpush1.msra.mxu0 0.0
    %2746 = vmatprep.subr.mxu0 0.0
    %2747 = vmatpush1.msra.mxu0 0.0
    %2748 = vmatprep.subr.mxu0 0.0
    %2749 = vmatpush1.msra.mxu0 0.0
    %2750 = vmatprep.subr.mxu0 0.0
    %2751 = vmatpush1.msra.mxu0 0.0
    %2752 = vmatprep.subr.mxu0 0.0
    %2753 = vmatpush1.msra.mxu0 0.0
    %2754 = vmatprep.subr.mxu0 0.0
    %2755 = vmatpush1.msra.mxu0 0.0
    %2756 = vmatprep.mubr.f32.mxu0 %v2687
    %2757 = vmatmul.mubr.f32.gmra.mrb[0].mxu0 %v2624
    %v2758 = vpop.f32.mrb[0].mxu0
    %v2759 = vadd.f32 0.0, %v2758
    %v2760 = vpop.f32.mrb[0].mxu0
    %2761 = vmatprep.mubr.f32.mxu0 %v2690
    %2762 = vmatmul.mubr.f32.gmra.mrb[0].mxu0 %v2626
    %v2763 = vpop.f32.mrb[0].mxu0
    %v2764 = vadd.f32 0.0, %v2763
    %v2765 = vpop.f32.mrb[0].mxu0
    %2766 = vdwg.mxu0
    %v2768 = vlaneseq
    %v2769 = vshrl.u32 %v2768, 7
    %v2770 = vsub.s32 0, %v2769
    %v2771 = vrot.slane %v2660, %v2770
    %v2773 = vadd.f32 %v2771, %v2759
    %v2774 = vadd.f32 %v2771, %v2764
    %s2775 = scalar_lea.vmem %s7, 192
    %v2776 = vld [vmem:[%s2775] sm:$0xff]
    %v2777 = vld [vmem:[%s2775 + $0x8] sm:$0xff]
    %v2778 = vld [vmem:[%s2775 + $0x10] sm:$0xff]
    %v2779 = vld [vmem:[%s2775 + $0x18] sm:$0xff]
    %v2780 = vld [vmem:[%s2775 + $0x20] sm:$0xff]
    %v2781 = vld [vmem:[%s2775 + $0x28] sm:$0xff]
    %v2782 = vld [vmem:[%s2775 + $0x30] sm:$0xff]
    %v2783 = vld [vmem:[%s2775 + $0x38] sm:$0xff]
    %v2784 = vld [vmem:[%s2775 + $0x40] sm:$0xff]
    %v2785 = vld [vmem:[%s2775 + $0x48] sm:$0xff]
    %v2786 = vld [vmem:[%s2775 + $0x50] sm:$0xff]
    %v2787 = vld [vmem:[%s2775 + $0x58] sm:$0xff]
    %v2788 = vld [vmem:[%s2775 + $0x60] sm:$0xff]
    %v2789 = vld [vmem:[%s2775 + $0x68] sm:$0xff]
    %v2790 = vld [vmem:[%s2775 + $0x70] sm:$0xff]
    %v2791 = vld [vmem:[%s2775 + $0x78] sm:$0xff]
    %v2792 = vld [vmem:[%s2775 + $0x80] sm:$0xff]
    %v2793 = vld [vmem:[%s2775 + $0x88] sm:$0xff]
    %v2794 = vld [vmem:[%s2775 + $0x90] sm:$0xff]
    %v2795 = vld [vmem:[%s2775 + $0x98] sm:$0xff]
    %v2796 = vld [vmem:[%s2775 + $0xa0] sm:$0xff]
    %v2797 = vld [vmem:[%s2775 + $0xa8] sm:$0xff]
    %v2798 = vld [vmem:[%s2775 + $0xb0] sm:$0xff]
    %v2799 = vld [vmem:[%s2775 + $0xb8] sm:$0xff]
    %v2801 = vsel %vm2685, %v2641, 0
    %v2804 = vsel %vm2685, %v2643, 0
    %2806 = vmatprep.subr.mxu0 0.0
    %2807 = vmatpush1.msra.mxu0 %v2776
    %2808 = vmatprep.subr.mxu0 0.0
    %2809 = vmatpush1.msra.mxu0 %v2777
    %2810 = vmatprep.subr.mxu0 0.0
    %2811 = vmatpush1.msra.mxu0 %v2778
    %2812 = vmatprep.subr.mxu0 0.0
    %2813 = vmatpush1.msra.mxu0 %v2779
    %2814 = vmatprep.subr.mxu0 0.0
    %2815 = vmatpush1.msra.mxu0 %v2780
    %2816 = vmatprep.subr.mxu0 0.0
    %2817 = vmatpush1.msra.mxu0 %v2781
    %2818 = vmatprep.subr.mxu0 0.0
    %2819 = vmatpush1.msra.mxu0 %v2782
    %2820 = vmatprep.subr.mxu0 0.0
    %2821 = vmatpush1.msra.mxu0 %v2783
    %2822 = vmatprep.subr.mxu0 0.0
    %2823 = vmatpush1.msra.mxu0 %v2784
    %2824 = vmatprep.subr.mxu0 0.0
    %2825 = vmatpush1.msra.mxu0 %v2785
    %2826 = vmatprep.subr.mxu0 0.0
    %2827 = vmatpush1.msra.mxu0 %v2786
    %2828 = vmatprep.subr.mxu0 0.0
    %2829 = vmatpush1.msra.mxu0 %v2787
    %2830 = vmatprep.subr.mxu0 0.0
    %2831 = vmatpush1.msra.mxu0 %v2788
    %2832 = vmatprep.subr.mxu0 0.0
    %2833 = vmatpush1.msra.mxu0 %v2789
    %2834 = vmatprep.subr.mxu0 0.0
    %2835 = vmatpush1.msra.mxu0 %v2790
    %2836 = vmatprep.subr.mxu0 0.0
    %2837 = vmatpush1.msra.mxu0 %v2791
    %2838 = vmatprep.subr.mxu0 0.0
    %2839 = vmatpush1.msra.mxu0 %v2792
    %2840 = vmatprep.subr.mxu0 0.0
    %2841 = vmatpush1.msra.mxu0 %v2793
    %2842 = vmatprep.subr.mxu0 0.0
    %2843 = vmatpush1.msra.mxu0 %v2794
    %2844 = vmatprep.subr.mxu0 0.0
    %2845 = vmatpush1.msra.mxu0 %v2795
    %2846 = vmatprep.subr.mxu0 0.0
    %2847 = vmatpush1.msra.mxu0 %v2796
    %2848 = vmatprep.subr.mxu0 0.0
    %2849 = vmatpush1.msra.mxu0 %v2797
    %2850 = vmatprep.subr.mxu0 0.0
    %2851 = vmatpush1.msra.mxu0 %v2798
    %2852 = vmatprep.subr.mxu0 0.0
    %2853 = vmatpush1.msra.mxu0 %v2799
    %2854 = vmatprep.subr.mxu0 0.0
    %2855 = vmatpush1.msra.mxu0 0.0
    %2856 = vmatprep.subr.mxu0 0.0
    %2857 = vmatpush1.msra.mxu0 0.0
    %2858 = vmatprep.subr.mxu0 0.0
    %2859 = vmatpush1.msra.mxu0 0.0
    %2860 = vmatprep.subr.mxu0 0.0
    %2861 = vmatpush1.msra.mxu0 0.0
    %2862 = vmatprep.subr.mxu0 0.0
    %2863 = vmatpush1.msra.mxu0 0.0
    %2864 = vmatprep.subr.mxu0 0.0
    %2865 = vmatpush1.msra.mxu0 0.0
    %2866 = vmatprep.subr.mxu0 0.0
    %2867 = vmatpush1.msra.mxu0 0.0
    %2868 = vmatprep.subr.mxu0 0.0
    %2869 = vmatpush1.msra.mxu0 0.0
    %2870 = vmatprep.mubr.f32.mxu0 %v2801
    %2871 = vmatmul.mubr.f32.gmra.mrb[0].mxu0 %v2640
    %v2872 = vpop.f32.mrb[0].mxu0
    %v2873 = vadd.f32 0.0, %v2872
    %v2874 = vpop.f32.mrb[0].mxu0
    %2875 = vmatprep.mubr.f32.mxu0 %v2804
    %2876 = vmatmul.mubr.f32.gmra.mrb[0].mxu0 %v2642
    %v2877 = vpop.f32.mrb[0].mxu0
    %v2878 = vadd.f32 0.0, %v2877
    %v2879 = vpop.f32.mrb[0].mxu0
    %2880 = vdwg.mxu0
    %v2881 = vadd.f32 %v2773, %v2873
    %v2882 = vadd.f32 %v2774, %v2878
    %s2883 = scalar_lea.vmem %s7, 384
    %v2884 = vld [vmem:[%s2883] sm:$0xff]
    %v2885 = vld [vmem:[%s2883 + $0x8] sm:$0xff]
    %v2886 = vld [vmem:[%s2883 + $0x10] sm:$0xff]
    %v2887 = vld [vmem:[%s2883 + $0x18] sm:$0xff]
    %v2888 = vld [vmem:[%s2883 + $0x20] sm:$0xff]
    %v2889 = vld [vmem:[%s2883 + $0x28] sm:$0xff]
    %v2890 = vld [vmem:[%s2883 + $0x30] sm:$0xff]
    %v2891 = vld [vmem:[%s2883 + $0x38] sm:$0xff]
    %v2892 = vld [vmem:[%s2883 + $0x40] sm:$0xff]
    %v2893 = vld [vmem:[%s2883 + $0x48] sm:$0xff]
    %v2894 = vld [vmem:[%s2883 + $0x50] sm:$0xff]
    %v2895 = vld [vmem:[%s2883 + $0x58] sm:$0xff]
    %v2896 = vld [vmem:[%s2883 + $0x60] sm:$0xff]
    %v2897 = vld [vmem:[%s2883 + $0x68] sm:$0xff]
    %v2898 = vld [vmem:[%s2883 + $0x70] sm:$0xff]
    %v2899 = vld [vmem:[%s2883 + $0x78] sm:$0xff]
    %v2900 = vld [vmem:[%s2883 + $0x80] sm:$0xff]
    %v2901 = vld [vmem:[%s2883 + $0x88] sm:$0xff]
    %v2902 = vld [vmem:[%s2883 + $0x90] sm:$0xff]
    %v2903 = vld [vmem:[%s2883 + $0x98] sm:$0xff]
    %v2904 = vld [vmem:[%s2883 + $0xa0] sm:$0xff]
    %v2905 = vld [vmem:[%s2883 + $0xa8] sm:$0xff]
    %v2906 = vld [vmem:[%s2883 + $0xb0] sm:$0xff]
    %v2907 = vld [vmem:[%s2883 + $0xb8] sm:$0xff]
    %v2909 = vsel %vm2685, %v2657, 0
    %v2912 = vsel %vm2685, %v2659, 0
    %2914 = vmatprep.subr.mxu0 0.0
    %2915 = vmatpush1.msra.mxu0 %v2884
    %2916 = vmatprep.subr.mxu0 0.0
    %2917 = vmatpush1.msra.mxu0 %v2885
    %2918 = vmatprep.subr.mxu0 0.0
    %2919 = vmatpush1.msra.mxu0 %v2886
    %2920 = vmatprep.subr.mxu0 0.0
    %2921 = vmatpush1.msra.mxu0 %v2887
    %2922 = vmatprep.subr.mxu0 0.0
    %2923 = vmatpush1.msra.mxu0 %v2888
    %2924 = vmatprep.subr.mxu0 0.0
    %2925 = vmatpush1.msra.mxu0 %v2889
    %2926 = vmatprep.subr.mxu0 0.0
    %2927 = vmatpush1.msra.mxu0 %v2890
    %2928 = vmatprep.subr.mxu0 0.0
    %2929 = vmatpush1.msra.mxu0 %v2891
    %2930 = vmatprep.subr.mxu0 0.0
    %2931 = vmatpush1.msra.mxu0 %v2892
    %2932 = vmatprep.subr.mxu0 0.0
    %2933 = vmatpush1.msra.mxu0 %v2893
    %2934 = vmatprep.subr.mxu0 0.0
    %2935 = vmatpush1.msra.mxu0 %v2894
    %2936 = vmatprep.subr.mxu0 0.0
    %2937 = vmatpush1.msra.mxu0 %v2895
    %2938 = vmatprep.subr.mxu0 0.0
    %2939 = vmatpush1.msra.mxu0 %v2896
    %2940 = vmatprep.subr.mxu0 0.0
    %2941 = vmatpush1.msra.mxu0 %v2897
    %2942 = vmatprep.subr.mxu0 0.0
    %2943 = vmatpush1.msra.mxu0 %v2898
    %2944 = vmatprep.subr.mxu0 0.0
    %2945 = vmatpush1.msra.mxu0 %v2899
    %2946 = vmatprep.subr.mxu0 0.0
    %2947 = vmatpush1.msra.mxu0 %v2900
    %2948 = vmatprep.subr.mxu0 0.0
    %2949 = vmatpush1.msra.mxu0 %v2901
    %2950 = vmatprep.subr.mxu0 0.0
    %2951 = vmatpush1.msra.mxu0 %v2902
    %2952 = vmatprep.subr.mxu0 0.0
    %2953 = vmatpush1.msra.mxu0 %v2903
    %2954 = vmatprep.subr.mxu0 0.0
    %2955 = vmatpush1.msra.mxu0 %v2904
    %2956 = vmatprep.subr.mxu0 0.0
    %2957 = vmatpush1.msra.mxu0 %v2905
    %2958 = vmatprep.subr.mxu0 0.0
    %2959 = vmatpush1.msra.mxu0 %v2906
    %2960 = vmatprep.subr.mxu0 0.0
    %2961 = vmatpush1.msra.mxu0 %v2907
    %2962 = vmatprep.subr.mxu0 0.0
    %2963 = vmatpush1.msra.mxu0 0.0
    %2964 = vmatprep.subr.mxu0 0.0
    %2965 = vmatpush1.msra.mxu0 0.0
    %2966 = vmatprep.subr.mxu0 0.0
    %2967 = vmatpush1.msra.mxu0 0.0
    %2968 = vmatprep.subr.mxu0 0.0
    %2969 = vmatpush1.msra.mxu0 0.0
    %2970 = vmatprep.subr.mxu0 0.0
    %2971 = vmatpush1.msra.mxu0 0.0
    %2972 = vmatprep.subr.mxu0 0.0
    %2973 = vmatpush1.msra.mxu0 0.0
    %2974 = vmatprep.subr.mxu0 0.0
    %2975 = vmatpush1.msra.mxu0 0.0
    %2976 = vmatprep.subr.mxu0 0.0
    %2977 = vmatpush1.msra.mxu0 0.0
    %2978 = vmatprep.mubr.f32.mxu0 %v2909
    %2979 = vmatmul.mubr.f32.gmra.mrb[0].mxu0 %v2656
    %v2980 = vpop.f32.mrb[0].mxu0
    %v2981 = vadd.f32 0.0, %v2980
    %v2982 = vpop.f32.mrb[0].mxu0
    %2983 = vmatprep.mubr.f32.mxu0 %v2912
    %2984 = vmatmul.mubr.f32.gmra.mrb[0].mxu0 %v2658
    %v2985 = vpop.f32.mrb[0].mxu0
    %v2986 = vadd.f32 0.0, %v2985
    %v2987 = vpop.f32.mrb[0].mxu0
    %2988 = vdwg.mxu0
    %v2989 = vadd.f32 %v2881, %v2981
    %v2990 = vadd.f32 %v2882, %v2986
    %2991 = vst.msk [vmem:[%s18] sm:$0xff] %vm2685, %v2989
    %2992 = vst.msk [vmem:[%s18 + $0x8] sm:$0xff] %vm2685, %v2990
    %v2993 = vld [vmem:[%s9] sm:$0xff]
    %v2994 = vld [vmem:[%s9 + $0x8] sm:$0xff]
    %v2995 = vld [vmem:[%s9 + $0x10] sm:$0xff]
    %v2996 = vld [vmem:[%s9 + $0x18] sm:$0xff]
    %v2997 = vld [vmem:[%s9 + $0x20] sm:$0xff]
    %v2998 = vld [vmem:[%s9 + $0x28] sm:$0xff]
    %v2999 = vld [vmem:[%s9 + $0x30] sm:$0xff]
    %v3000 = vld [vmem:[%s9 + $0x38] sm:$0xff]
    %v3001 = vld [vmem:[%s9 + $0x40] sm:$0xff]
    %v3002 = vld [vmem:[%s9 + $0x48] sm:$0xff]
    %v3003 = vld [vmem:[%s9 + $0x50] sm:$0xff]
    %v3004 = vld [vmem:[%s9 + $0x58] sm:$0xff]
    %v3005 = vld [vmem:[%s9 + $0x60] sm:$0xff]
    %v3006 = vld [vmem:[%s9 + $0x68] sm:$0xff]
    %v3007 = vld [vmem:[%s9 + $0x70] sm:$0xff]
    %v3008 = vld [vmem:[%s9 + $0x78] sm:$0xff]
    %v3009 = vld [vmem:[%s10] sm:$0x3]
    %v3011 = vlaneseq
    %v3012 = vshrl.u32 %v3011, 7
    %v3013 = vsub.s32 0, %v3012
    %v3014 = vrot.slane %v3009, %v3013
    %v3015 = vlaneseq
    %v3016 = vshrl.u32 %v3015, 7
    %v3017 = vsub.s32 1, %v3016
    %v3018 = vrot.slane %v3009, %v3017
    %v3022 = vsel %vm2685, %v2989, 0
    %v3025 = vsel %vm2685, %v2990, 0
    %3027 = vmatprep.subr.mxu0 %v2994
    %3028 = vmatpush1.msra.mxu0 %v2993
    %3029 = vmatprep.subr.mxu0 %v2996
    %3030 = vmatpush1.msra.mxu0 %v2995
    %3031 = vmatprep.subr.mxu0 %v2998
    %3032 = vmatpush1.msra.mxu0 %v2997
    %3033 = vmatprep.subr.mxu0 %v3000
    %3034 = vmatpush1.msra.mxu0 %v2999
    %3035 = vmatprep.subr.mxu0 %v3002
    %3036 = vmatpush1.msra.mxu0 %v3001
    %3037 = vmatprep.subr.mxu0 %v3004
    %3038 = vmatpush1.msra.mxu0 %v3003
    %3039 = vmatprep.subr.mxu0 %v3006
    %3040 = vmatpush1.msra.mxu0 %v3005
    %3041 = vmatprep.subr.mxu0 %v3008
    %3042 = vmatpush1.msra.mxu0 %v3007
    %3043 = vmatprep.subr.mxu0 0.0
    %3044 = vmatpush1.msra.mxu0 0.0
    %3045 = vmatprep.subr.mxu0 0.0
    %3046 = vmatpush1.msra.mxu0 0.0
    %3047 = vmatprep.subr.mxu0 0.0
    %3048 = vmatpush1.msra.mxu0 0.0
    %3049 = vmatprep.subr.mxu0 0.0
    %3050 = vmatpush1.msra.mxu0 0.0
    %3051 = vmatprep.subr.mxu0 0.0
    %3052 = vmatpush1.msra.mxu0 0.0
    %3053 = vmatprep.subr.mxu0 0.0
    %3054 = vmatpush1.msra.mxu0 0.0
    %3055 = vmatprep.subr.mxu0 0.0
    %3056 = vmatpush1.msra.mxu0 0.0
    %3057 = vmatprep.subr.mxu0 0.0
    %3058 = vmatpush1.msra.mxu0 0.0
    %3059 = vmatprep.subr.mxu0 0.0
    %3060 = vmatpush1.msra.mxu0 0.0
    %3061 = vmatprep.subr.mxu0 0.0
    %3062 = vmatpush1.msra.mxu0 0.0
    %3063 = vmatprep.subr.mxu0 0.0
    %3064 = vmatpush1.msra.mxu0 0.0
    %3065 = vmatprep.subr.mxu0 0.0
    %3066 = vmatpush1.msra.mxu0 0.0
    %3067 = vmatprep.subr.mxu0 0.0
    %3068 = vmatpush1.msra.mxu0 0.0
    %3069 = vmatprep.subr.mxu0 0.0
    %3070 = vmatpush1.msra.mxu0 0.0
    %3071 = vmatprep.subr.mxu0 0.0
    %3072 = vmatpush1.msra.mxu0 0.0
    %3073 = vmatprep.subr.mxu0 0.0
    %3074 = vmatpush1.msra.mxu0 0.0
    %3075 = vmatprep.subr.mxu0 0.0
    %3076 = vmatpush1.msra.mxu0 0.0
    %3077 = vmatprep.subr.mxu0 0.0
    %3078 = vmatpush1.msra.mxu0 0.0
    %3079 = vmatprep.subr.mxu0 0.0
    %3080 = vmatpush1.msra.mxu0 0.0
    %3081 = vmatprep.subr.mxu0 0.0
    %3082 = vmatpush1.msra.mxu0 0.0
    %3083 = vmatprep.subr.mxu0 0.0
    %3084 = vmatpush1.msra.mxu0 0.0
    %3085 = vmatprep.subr.mxu0 0.0
    %3086 = vmatpush1.msra.mxu0 0.0
    %3087 = vmatprep.subr.mxu0 0.0
    %3088 = vmatpush1.msra.mxu0 0.0
    %3089 = vmatprep.subr.mxu0 0.0
    %3090 = vmatpush1.msra.mxu0 0.0
    %3091 = vmatprep.mubr.f32.mxu0 0.0
    %3092 = vmatmul.mubr.f32.gmra.mrb[0].mxu0 %v3022
    %v3093 = vpop.f32.mrb[0].mxu0
    %v3094 = vadd.f32 %v3014, %v3093
    %v3095 = vpop.f32.mrb[0].mxu0
    %v3096 = vadd.f32 %v3018, %v3095
    %3097 = vmatprep.mubr.f32.mxu0 0.0
    %3098 = vmatmul.mubr.f32.gmra.mrb[0].mxu0 %v3025
    %v3099 = vpop.f32.mrb[0].mxu0
    %v3100 = vadd.f32 %v3014, %v3099
    %v3101 = vpop.f32.mrb[0].mxu0
    %v3102 = vadd.f32 %v3018, %v3101
    %3103 = vdwg.mxu0
    %s3104 = scalar_lea.vmem %s9, 128
    %v3105 = vld [vmem:[%s3104] sm:$0xff]
    %v3106 = vld [vmem:[%s3104 + $0x8] sm:$0xff]
    %v3107 = vld [vmem:[%s3104 + $0x10] sm:$0xff]
    %v3108 = vld [vmem:[%s3104 + $0x18] sm:$0xff]
    %v3109 = vld [vmem:[%s3104 + $0x20] sm:$0xff]
    %v3110 = vld [vmem:[%s3104 + $0x28] sm:$0xff]
    %v3111 = vld [vmem:[%s3104 + $0x30] sm:$0xff]
    %v3112 = vld [vmem:[%s3104 + $0x38] sm:$0xff]
    %v3113 = vld [vmem:[%s3104 + $0x40] sm:$0xff]
    %v3114 = vld [vmem:[%s3104 + $0x48] sm:$0xff]
    %v3115 = vld [vmem:[%s3104 + $0x50] sm:$0xff]
    %v3116 = vld [vmem:[%s3104 + $0x58] sm:$0xff]
    %v3117 = vld [vmem:[%s3104 + $0x60] sm:$0xff]
    %v3118 = vld [vmem:[%s3104 + $0x68] sm:$0xff]
    %v3119 = vld [vmem:[%s3104 + $0x70] sm:$0xff]
    %v3120 = vld [vmem:[%s3104 + $0x78] sm:$0xff]
    %s3121 = scalar_lea.vmem %s10, 2
    %v3122 = vld [vmem:[%s3121] sm:$0x3]
    %v3124 = vlaneseq
    %v3125 = vshrl.u32 %v3124, 7
    %v3126 = vsub.s32 0, %v3125
    %v3127 = vrot.slane %v3122, %v3126
    %v3128 = vlaneseq
    %v3129 = vshrl.u32 %v3128, 7
    %v3130 = vsub.s32 1, %v3129
    %v3131 = vrot.slane %v3122, %v3130
    %3134 = vmatprep.subr.mxu0 %v3106
    %3135 = vmatpush1.msra.mxu0 %v3105
    %3136 = vmatprep.subr.mxu0 %v3108
    %3137 = vmatpush1.msra.mxu0 %v3107
    %3138 = vmatprep.subr.mxu0 %v3110
    %3139 = vmatpush1.msra.mxu0 %v3109
    %3140 = vmatprep.subr.mxu0 %v3112
    %3141 = vmatpush1.msra.mxu0 %v3111
    %3142 = vmatprep.subr.mxu0 %v3114
    %3143 = vmatpush1.msra.mxu0 %v3113
    %3144 = vmatprep.subr.mxu0 %v3116
    %3145 = vmatpush1.msra.mxu0 %v3115
    %3146 = vmatprep.subr.mxu0 %v3118
    %3147 = vmatpush1.msra.mxu0 %v3117
    %3148 = vmatprep.subr.mxu0 %v3120
    %3149 = vmatpush1.msra.mxu0 %v3119
    %3150 = vmatprep.subr.mxu0 0.0
    %3151 = vmatpush1.msra.mxu0 0.0
    %3152 = vmatprep.subr.mxu0 0.0
    %3153 = vmatpush1.msra.mxu0 0.0
    %3154 = vmatprep.subr.mxu0 0.0
    %3155 = vmatpush1.msra.mxu0 0.0
    %3156 = vmatprep.subr.mxu0 0.0
    %3157 = vmatpush1.msra.mxu0 0.0
    %3158 = vmatprep.subr.mxu0 0.0
    %3159 = vmatpush1.msra.mxu0 0.0
    %3160 = vmatprep.subr.mxu0 0.0
    %3161 = vmatpush1.msra.mxu0 0.0
    %3162 = vmatprep.subr.mxu0 0.0
    %3163 = vmatpush1.msra.mxu0 0.0
    %3164 = vmatprep.subr.mxu0 0.0
    %3165 = vmatpush1.msra.mxu0 0.0
    %3166 = vmatprep.subr.mxu0 0.0
    %3167 = vmatpush1.msra.mxu0 0.0
    %3168 = vmatprep.subr.mxu0 0.0
    %3169 = vmatpush1.msra.mxu0 0.0
    %3170 = vmatprep.subr.mxu0 0.0
    %3171 = vmatpush1.msra.mxu0 0.0
    %3172 = vmatprep.subr.mxu0 0.0
    %3173 = vmatpush1.msra.mxu0 0.0
    %3174 = vmatprep.subr.mxu0 0.0
    %3175 = vmatpush1.msra.mxu0 0.0
    %3176 = vmatprep.subr.mxu0 0.0
    %3177 = vmatpush1.msra.mxu0 0.0
    %3178 = vmatprep.subr.mxu0 0.0
    %3179 = vmatpush1.msra.mxu0 0.0
    %3180 = vmatprep.subr.mxu0 0.0
    %3181 = vmatpush1.msra.mxu0 0.0
    %3182 = vmatprep.subr.mxu0 0.0
    %3183 = vmatpush1.msra.mxu0 0.0
    %3184 = vmatprep.subr.mxu0 0.0
    %3185 = vmatpush1.msra.mxu0 0.0
    %3186 = vmatprep.subr.mxu0 0.0
    %3187 = vmatpush1.msra.mxu0 0.0
    %3188 = vmatprep.subr.mxu0 0.0
    %3189 = vmatpush1.msra.mxu0 0.0
    %3190 = vmatprep.subr.mxu0 0.0
    %3191 = vmatpush1.msra.mxu0 0.0
    %3192 = vmatprep.subr.mxu0 0.0
    %3193 = vmatpush1.msra.mxu0 0.0
    %3194 = vmatprep.subr.mxu0 0.0
    %3195 = vmatpush1.msra.mxu0 0.0
    %3196 = vmatprep.subr.mxu0 0.0
    %3197 = vmatpush1.msra.mxu0 0.0
    %3198 = vmatprep.mubr.f32.mxu0 0.0
    %3199 = vmatmul.mubr.f32.gmra.mrb[0].mxu0 %v3022
    %v3200 = vpop.f32.mrb[0].mxu0
    %v3201 = vadd.f32 %v3127, %v3200
    %v3202 = vpop.f32.mrb[0].mxu0
    %v3203 = vadd.f32 %v3131, %v3202
    %3204 = vmatprep.mubr.f32.mxu0 0.0
    %3205 = vmatmul.mubr.f32.gmra.mrb[0].mxu0 %v3025
    %v3206 = vpop.f32.mrb[0].mxu0
    %v3207 = vadd.f32 %v3127, %v3206
    %v3208 = vpop.f32.mrb[0].mxu0
    %v3209 = vadd.f32 %v3131, %v3208
    %3210 = vdwg.mxu0
    %s3211 = scalar_lea.vmem %s9, 256
    %v3212 = vld [vmem:[%s3211] sm:$0xff]
    %v3213 = vld [vmem:[%s3211 + $0x8] sm:$0xff]
    %v3214 = vld [vmem:[%s3211 + $0x10] sm:$0xff]
    %v3215 = vld [vmem:[%s3211 + $0x18] sm:$0xff]
    %v3216 = vld [vmem:[%s3211 + $0x20] sm:$0xff]
    %v3217 = vld [vmem:[%s3211 + $0x28] sm:$0xff]
    %v3218 = vld [vmem:[%s3211 + $0x30] sm:$0xff]
    %v3219 = vld [vmem:[%s3211 + $0x38] sm:$0xff]
    %v3220 = vld [vmem:[%s3211 + $0x40] sm:$0xff]
    %v3221 = vld [vmem:[%s3211 + $0x48] sm:$0xff]
    %v3222 = vld [vmem:[%s3211 + $0x50] sm:$0xff]
    %v3223 = vld [vmem:[%s3211 + $0x58] sm:$0xff]
    %v3224 = vld [vmem:[%s3211 + $0x60] sm:$0xff]
    %v3225 = vld [vmem:[%s3211 + $0x68] sm:$0xff]
    %v3226 = vld [vmem:[%s3211 + $0x70] sm:$0xff]
    %v3227 = vld [vmem:[%s3211 + $0x78] sm:$0xff]
    %s3228 = scalar_lea.vmem %s10, 4
    %v3229 = vld [vmem:[%s3228] sm:$0x3]
    %v3231 = vlaneseq
    %v3232 = vshrl.u32 %v3231, 7
    %v3233 = vsub.s32 0, %v3232
    %v3234 = vrot.slane %v3229, %v3233
    %v3235 = vlaneseq
    %v3236 = vshrl.u32 %v3235, 7
    %v3237 = vsub.s32 1, %v3236
    %v3238 = vrot.slane %v3229, %v3237
    %3241 = vmatprep.subr.mxu0 %v3213
    %3242 = vmatpush1.msra.mxu0 %v3212
    %3243 = vmatprep.subr.mxu0 %v3215
    %3244 = vmatpush1.msra.mxu0 %v3214
    %3245 = vmatprep.subr.mxu0 %v3217
    %3246 = vmatpush1.msra.mxu0 %v3216
    %3247 = vmatprep.subr.mxu0 %v3219
    %3248 = vmatpush1.msra.mxu0 %v3218
    %3249 = vmatprep.subr.mxu0 %v3221
    %3250 = vmatpush1.msra.mxu0 %v3220
    %3251 = vmatprep.subr.mxu0 %v3223
    %3252 = vmatpush1.msra.mxu0 %v3222
    %3253 = vmatprep.subr.mxu0 %v3225
    %3254 = vmatpush1.msra.mxu0 %v3224
    %3255 = vmatprep.subr.mxu0 %v3227
    %3256 = vmatpush1.msra.mxu0 %v3226
    %3257 = vmatprep.subr.mxu0 0.0
    %3258 = vmatpush1.msra.mxu0 0.0
    %3259 = vmatprep.subr.mxu0 0.0
    %3260 = vmatpush1.msra.mxu0 0.0
    %3261 = vmatprep.subr.mxu0 0.0
    %3262 = vmatpush1.msra.mxu0 0.0
    %3263 = vmatprep.subr.mxu0 0.0
    %3264 = vmatpush1.msra.mxu0 0.0
    %3265 = vmatprep.subr.mxu0 0.0
    %3266 = vmatpush1.msra.mxu0 0.0
    %3267 = vmatprep.subr.mxu0 0.0
    %3268 = vmatpush1.msra.mxu0 0.0
    %3269 = vmatprep.subr.mxu0 0.0
    %3270 = vmatpush1.msra.mxu0 0.0
    %3271 = vmatprep.subr.mxu0 0.0
    %3272 = vmatpush1.msra.mxu0 0.0
    %3273 = vmatprep.subr.mxu0 0.0
    %3274 = vmatpush1.msra.mxu0 0.0
    %3275 = vmatprep.subr.mxu0 0.0
    %3276 = vmatpush1.msra.mxu0 0.0
    %3277 = vmatprep.subr.mxu0 0.0
    %3278 = vmatpush1.msra.mxu0 0.0
    %3279 = vmatprep.subr.mxu0 0.0
    %3280 = vmatpush1.msra.mxu0 0.0
    %3281 = vmatprep.subr.mxu0 0.0
    %3282 = vmatpush1.msra.mxu0 0.0
    %3283 = vmatprep.subr.mxu0 0.0
    %3284 = vmatpush1.msra.mxu0 0.0
    %3285 = vmatprep.subr.mxu0 0.0
    %3286 = vmatpush1.msra.mxu0 0.0
    %3287 = vmatprep.subr.mxu0 0.0
    %3288 = vmatpush1.msra.mxu0 0.0
    %3289 = vmatprep.subr.mxu0 0.0
    %3290 = vmatpush1.msra.mxu0 0.0
    %3291 = vmatprep.subr.mxu0 0.0
    %3292 = vmatpush1.msra.mxu0 0.0
    %3293 = vmatprep.subr.mxu0 0.0
    %3294 = vmatpush1.msra.mxu0 0.0
    %3295 = vmatprep.subr.mxu0 0.0
    %3296 = vmatpush1.msra.mxu0 0.0
    %3297 = vmatprep.subr.mxu0 0.0
    %3298 = vmatpush1.msra.mxu0 0.0
    %3299 = vmatprep.subr.mxu0 0.0
    %3300 = vmatpush1.msra.mxu0 0.0
    %3301 = vmatprep.subr.mxu0 0.0
    %3302 = vmatpush1.msra.mxu0 0.0
    %3303 = vmatprep.subr.mxu0 0.0
    %3304 = vmatpush1.msra.mxu0 0.0
    %3305 = vmatprep.mubr.f32.mxu0 0.0
    %3306 = vmatmul.mubr.f32.gmra.mrb[0].mxu0 %v3022
    %v3307 = vpop.f32.mrb[0].mxu0
    %v3308 = vadd.f32 %v3234, %v3307
    %v3309 = vpop.f32.mrb[0].mxu0
    %v3310 = vadd.f32 %v3238, %v3309
    %3311 = vmatprep.mubr.f32.mxu0 0.0
    %3312 = vmatmul.mubr.f32.gmra.mrb[0].mxu0 %v3025
    %v3313 = vpop.f32.mrb[0].mxu0
    %v3314 = vadd.f32 %v3234, %v3313
    %v3315 = vpop.f32.mrb[0].mxu0
    %v3316 = vadd.f32 %v3238, %v3315
    %3317 = vdwg.mxu0
    %v3318 = vld [vmem:[%s12] sm:$0x3]
    %v3319 = vld [vmem:[#allocation4] sm:$0xff]
    %v3320 = vld [vmem:[#allocation4 + $0x8] sm:$0xff]
    %v3321 = vld [vmem:[#allocation4 + $0x10] sm:$0xff]
    %v3322 = vld [vmem:[#allocation4 + $0x18] sm:$0xff]
    %v3323 = vld [vmem:[#allocation4 + $0x20] sm:$0xff]
    %v3324 = vld [vmem:[#allocation4 + $0x28] sm:$0xff]
    %v3325 = vld [vmem:[#allocation4 + $0x30] sm:$0xff]
    %v3326 = vld [vmem:[#allocation4 + $0x38] sm:$0xff]
    %v3327 = vld [vmem:[#allocation4 + $0x40] sm:$0xff]
    %v3328 = vld [vmem:[#allocation4 + $0x48] sm:$0xff]
    %v3329 = vld [vmem:[#allocation4 + $0x50] sm:$0xff]
    %v3330 = vld [vmem:[#allocation4 + $0x58] sm:$0xff]
    %v3331 = vld [vmem:[#allocation4 + $0x60] sm:$0xff]
    %v3332 = vld [vmem:[#allocation4 + $0x68] sm:$0xff]
    %v3333 = vld [vmem:[#allocation4 + $0x70] sm:$0xff]
    %v3334 = vld [vmem:[#allocation4 + $0x78] sm:$0xff]
    %v3335 = vld [vmem:[#allocation4 + $0x80] sm:$0xff]
    %v3336 = vld [vmem:[#allocation4 + $0x88] sm:$0xff]
    %v3337 = vld [vmem:[#allocation4 + $0x90] sm:$0xff]
    %v3338 = vld [vmem:[#allocation4 + $0x98] sm:$0xff]
    %v3339 = vld [vmem:[#allocation4 + $0xa0] sm:$0xff]
    %v3340 = vld [vmem:[#allocation4 + $0xa8] sm:$0xff]
    %v3341 = vld [vmem:[#allocation4 + $0xb0] sm:$0xff]
    %v3342 = vld [vmem:[#allocation4 + $0xb8] sm:$0xff]
    %v3343 = vld [vmem:[#allocation4 + $0xc0] sm:$0xff]
    %v3344 = vld [vmem:[#allocation4 + $0xc8] sm:$0xff]
    %v3345 = vld [vmem:[#allocation4 + $0xd0] sm:$0xff]
    %v3346 = vld [vmem:[#allocation4 + $0xd8] sm:$0xff]
    %v3347 = vld [vmem:[#allocation4 + $0xe0] sm:$0xff]
    %v3348 = vld [vmem:[#allocation4 + $0xe8] sm:$0xff]
    %v3349 = vld [vmem:[#allocation4 + $0xf0] sm:$0xff]
    %v3350 = vld [vmem:[#allocation4 + $0xf8] sm:$0xff]
    %v3351 = vld [vmem:[#allocation4 + $0x100] sm:$0xff]
    %v3352 = vld [vmem:[#allocation4 + $0x108] sm:$0xff]
    %v3353 = vld [vmem:[#allocation4 + $0x110] sm:$0xff]
    %v3354 = vld [vmem:[#allocation4 + $0x118] sm:$0xff]
    %v3355 = vld [vmem:[#allocation4 + $0x120] sm:$0xff]
    %v3356 = vld [vmem:[#allocation4 + $0x128] sm:$0xff]
    %v3357 = vld [vmem:[#allocation4 + $0x130] sm:$0xff]
    %v3358 = vld [vmem:[#allocation4 + $0x138] sm:$0xff]
    %v3359 = vld [vmem:[#allocation4 + $0x140] sm:$0xff]
    %v3360 = vld [vmem:[#allocation4 + $0x148] sm:$0xff]
    %v3361 = vld [vmem:[#allocation4 + $0x150] sm:$0xff]
    %v3362 = vld [vmem:[#allocation4 + $0x158] sm:$0xff]
    %v3363 = vld [vmem:[#allocation4 + $0x160] sm:$0xff]
    %v3364 = vld [vmem:[#allocation4 + $0x168] sm:$0xff]
    %v3365 = vld [vmem:[#allocation4 + $0x170] sm:$0xff]
    %v3366 = vld [vmem:[#allocation4 + $0x178] sm:$0xff]
    %v3368 = vsel %vm2685, %v3096, 0
    %v3371 = vsel %vm2685, %v3102, 0
    %v3374 = vsel %vm2685, %v3203, 0
    %v3377 = vsel %vm2685, %v3209, 0
    %v3380 = vsel %vm2685, %v3310, 0
    %v3383 = vsel %vm2685, %v3316, 0
    %3385 = vmatprep.subr.mxu0 %v3320
    %3386 = vmatpush1.msra.mxu0 %v3319
    %3387 = vmatprep.subr.mxu0 %v3322
    %3388 = vmatpush1.msra.mxu0 %v3321
    %3389 = vmatprep.subr.mxu0 %v3324
    %3390 = vmatpush1.msra.mxu0 %v3323
    %3391 = vmatprep.subr.mxu0 %v3326
    %3392 = vmatpush1.msra.mxu0 %v3325
    %3393 = vmatprep.subr.mxu0 %v3328
    %3394 = vmatpush1.msra.mxu0 %v3327
    %3395 = vmatprep.subr.mxu0 %v3330
    %3396 = vmatpush1.msra.mxu0 %v3329
    %3397 = vmatprep.subr.mxu0 %v3332
    %3398 = vmatpush1.msra.mxu0 %v3331
    %3399 = vmatprep.subr.mxu0 %v3334
    %3400 = vmatpush1.msra.mxu0 %v3333
    %3401 = vmatprep.subr.mxu0 %v3336
    %3402 = vmatpush1.msra.mxu0 %v3335
    %3403 = vmatprep.subr.mxu0 %v3338
    %3404 = vmatpush1.msra.mxu0 %v3337
    %3405 = vmatprep.subr.mxu0 %v3340
    %3406 = vmatpush1.msra.mxu0 %v3339
    %3407 = vmatprep.subr.mxu0 %v3342
    %3408 = vmatpush1.msra.mxu0 %v3341
    %3409 = vmatprep.subr.mxu0 %v3344
    %3410 = vmatpush1.msra.mxu0 %v3343
    %3411 = vmatprep.subr.mxu0 %v3346
    %3412 = vmatpush1.msra.mxu0 %v3345
    %3413 = vmatprep.subr.mxu0 %v3348
    %3414 = vmatpush1.msra.mxu0 %v3347
    %3415 = vmatprep.subr.mxu0 %v3350
    %3416 = vmatpush1.msra.mxu0 %v3349
    %3417 = vmatprep.subr.mxu0 %v3352
    %3418 = vmatpush1.msra.mxu0 %v3351
    %3419 = vmatprep.subr.mxu0 %v3354
    %3420 = vmatpush1.msra.mxu0 %v3353
    %3421 = vmatprep.subr.mxu0 %v3356
    %3422 = vmatpush1.msra.mxu0 %v3355
    %3423 = vmatprep.subr.mxu0 %v3358
    %3424 = vmatpush1.msra.mxu0 %v3357
    %3425 = vmatprep.subr.mxu0 %v3360
    %3426 = vmatpush1.msra.mxu0 %v3359
    %3427 = vmatprep.subr.mxu0 %v3362
    %3428 = vmatpush1.msra.mxu0 %v3361
    %3429 = vmatprep.subr.mxu0 %v3364
    %3430 = vmatpush1.msra.mxu0 %v3363
    %3431 = vmatprep.subr.mxu0 %v3366
    %3432 = vmatpush1.msra.mxu0 %v3365
    %3433 = vmatprep.subr.mxu0 0.0
    %3434 = vmatpush1.msra.mxu0 0.0
    %3435 = vmatprep.subr.mxu0 0.0
    %3436 = vmatpush1.msra.mxu0 0.0
    %3437 = vmatprep.subr.mxu0 0.0
    %3438 = vmatpush1.msra.mxu0 0.0
    %3439 = vmatprep.subr.mxu0 0.0
    %3440 = vmatpush1.msra.mxu0 0.0
    %3441 = vmatprep.subr.mxu0 0.0
    %3442 = vmatpush1.msra.mxu0 0.0
    %3443 = vmatprep.subr.mxu0 0.0
    %3444 = vmatpush1.msra.mxu0 0.0
    %3445 = vmatprep.subr.mxu0 0.0
    %3446 = vmatpush1.msra.mxu0 0.0
    %3447 = vmatprep.subr.mxu0 0.0
    %3448 = vmatpush1.msra.mxu0 0.0
    %3449 = vmatprep.mubr.f32.mxu0 %v3368
    %3450 = vmatmul.mubr.f32.gmra.mrb[0].mxu0 %v3094
    %v3451 = vpop.f32.mrb[0].mxu0
    %v3452 = vadd.f32 0.0, %v3451
    %v3453 = vpop.f32.mrb[0].mxu0
    %v3454 = vadd.f32 0.0, %v3453
    %3455 = vmatprep.mubr.f32.mxu0 %v3371
    %3456 = vmatmul.mubr.f32.gmra.mrb[0].mxu0 %v3100
    %v3457 = vpop.f32.mrb[0].mxu0
    %v3458 = vadd.f32 0.0, %v3457
    %v3459 = vpop.f32.mrb[0].mxu0
    %v3460 = vadd.f32 0.0, %v3459
    %3461 = vmatprep.mubr.f32.mxu0 %v3374
    %3462 = vmatmul.mubr.f32.gmra.mrb[0].mxu0 %v3201
    %v3463 = vpop.f32.mrb[0].mxu0
    %v3464 = vadd.f32 0.0, %v3463
    %v3465 = vpop.f32.mrb[0].mxu0
    %v3466 = vadd.f32 0.0, %v3465
    %3467 = vmatprep.mubr.f32.mxu0 %v3377
    %3468 = vmatmul.mubr.f32.gmra.mrb[0].mxu0 %v3207
    %v3469 = vpop.f32.mrb[0].mxu0
    %v3470 = vadd.f32 0.0, %v3469
    %v3471 = vpop.f32.mrb[0].mxu0
    %v3472 = vadd.f32 0.0, %v3471
    %3473 = vmatprep.mubr.f32.mxu0 %v3380
    %3474 = vmatmul.mubr.f32.gmra.mrb[0].mxu0 %v3308
    %v3475 = vpop.f32.mrb[0].mxu0
    %v3476 = vadd.f32 0.0, %v3475
    %v3477 = vpop.f32.mrb[0].mxu0
    %v3478 = vadd.f32 0.0, %v3477
    %3479 = vmatprep.mubr.f32.mxu0 %v3383
    %3480 = vmatmul.mubr.f32.gmra.mrb[0].mxu0 %v3314
    %v3481 = vpop.f32.mrb[0].mxu0
    %v3482 = vadd.f32 0.0, %v3481
    %v3483 = vpop.f32.mrb[0].mxu0
    %v3484 = vadd.f32 0.0, %v3483
    %3485 = vdwg.mxu0
    %s3486 = scalar_lea.vmem [#allocation4], 384
    %v3487 = vld [vmem:[%s3486] sm:$0xff]
    %v3488 = vld [vmem:[%s3486 + $0x8] sm:$0xff]
    %v3489 = vld [vmem:[%s3486 + $0x10] sm:$0xff]
    %v3490 = vld [vmem:[%s3486 + $0x18] sm:$0xff]
    %v3491 = vld [vmem:[%s3486 + $0x20] sm:$0xff]
    %v3492 = vld [vmem:[%s3486 + $0x28] sm:$0xff]
    %v3493 = vld [vmem:[%s3486 + $0x30] sm:$0xff]
    %v3494 = vld [vmem:[%s3486 + $0x38] sm:$0xff]
    %v3495 = vld [vmem:[%s3486 + $0x40] sm:$0xff]
    %v3496 = vld [vmem:[%s3486 + $0x48] sm:$0xff]
    %v3497 = vld [vmem:[%s3486 + $0x50] sm:$0xff]
    %v3498 = vld [vmem:[%s3486 + $0x58] sm:$0xff]
    %v3499 = vld [vmem:[%s3486 + $0x60] sm:$0xff]
    %v3500 = vld [vmem:[%s3486 + $0x68] sm:$0xff]
    %v3501 = vld [vmem:[%s3486 + $0x70] sm:$0xff]
    %v3502 = vld [vmem:[%s3486 + $0x78] sm:$0xff]
    %v3503 = vld [vmem:[%s3486 + $0x80] sm:$0xff]
    %v3504 = vld [vmem:[%s3486 + $0x88] sm:$0xff]
    %v3505 = vld [vmem:[%s3486 + $0x90] sm:$0xff]
    %v3506 = vld [vmem:[%s3486 + $0x98] sm:$0xff]
    %v3507 = vld [vmem:[%s3486 + $0xa0] sm:$0xff]
    %v3508 = vld [vmem:[%s3486 + $0xa8] sm:$0xff]
    %v3509 = vld [vmem:[%s3486 + $0xb0] sm:$0xff]
    %v3510 = vld [vmem:[%s3486 + $0xb8] sm:$0xff]
    %v3511 = vld [vmem:[%s3486 + $0xc0] sm:$0xff]
    %v3512 = vld [vmem:[%s3486 + $0xc8] sm:$0xff]
    %v3513 = vld [vmem:[%s3486 + $0xd0] sm:$0xff]
    %v3514 = vld [vmem:[%s3486 + $0xd8] sm:$0xff]
    %v3515 = vld [vmem:[%s3486 + $0xe0] sm:$0xff]
    %v3516 = vld [vmem:[%s3486 + $0xe8] sm:$0xff]
    %v3517 = vld [vmem:[%s3486 + $0xf0] sm:$0xff]
    %v3518 = vld [vmem:[%s3486 + $0xf8] sm:$0xff]
    %v3519 = vld [vmem:[%s3486 + $0x100] sm:$0xff]
    %v3520 = vld [vmem:[%s3486 + $0x108] sm:$0xff]
    %v3521 = vld [vmem:[%s3486 + $0x110] sm:$0xff]
    %v3522 = vld [vmem:[%s3486 + $0x118] sm:$0xff]
    %v3523 = vld [vmem:[%s3486 + $0x120] sm:$0xff]
    %v3524 = vld [vmem:[%s3486 + $0x128] sm:$0xff]
    %v3525 = vld [vmem:[%s3486 + $0x130] sm:$0xff]
    %v3526 = vld [vmem:[%s3486 + $0x138] sm:$0xff]
    %v3527 = vld [vmem:[%s3486 + $0x140] sm:$0xff]
    %v3528 = vld [vmem:[%s3486 + $0x148] sm:$0xff]
    %v3529 = vld [vmem:[%s3486 + $0x150] sm:$0xff]
    %v3530 = vld [vmem:[%s3486 + $0x158] sm:$0xff]
    %v3531 = vld [vmem:[%s3486 + $0x160] sm:$0xff]
    %v3532 = vld [vmem:[%s3486 + $0x168] sm:$0xff]
    %v3533 = vld [vmem:[%s3486 + $0x170] sm:$0xff]
    %v3534 = vld [vmem:[%s3486 + $0x178] sm:$0xff]
    %3535 = vmatprep.subr.mxu0 %v3488
    %3536 = vmatpush1.msra.mxu0 %v3487
    %3537 = vmatprep.subr.mxu0 %v3490
    %3538 = vmatpush1.msra.mxu0 %v3489
    %3539 = vmatprep.subr.mxu0 %v3492
    %3540 = vmatpush1.msra.mxu0 %v3491
    %3541 = vmatprep.subr.mxu0 %v3494
    %3542 = vmatpush1.msra.mxu0 %v3493
    %3543 = vmatprep.subr.mxu0 %v3496
    %3544 = vmatpush1.msra.mxu0 %v3495
    %3545 = vmatprep.subr.mxu0 %v3498
    %3546 = vmatpush1.msra.mxu0 %v3497
    %3547 = vmatprep.subr.mxu0 %v3500
    %3548 = vmatpush1.msra.mxu0 %v3499
    %3549 = vmatprep.subr.mxu0 %v3502
    %3550 = vmatpush1.msra.mxu0 %v3501
    %3551 = vmatprep.subr.mxu0 %v3504
    %3552 = vmatpush1.msra.mxu0 %v3503
    %3553 = vmatprep.subr.mxu0 %v3506
    %3554 = vmatpush1.msra.mxu0 %v3505
    %3555 = vmatprep.subr.mxu0 %v3508
    %3556 = vmatpush1.msra.mxu0 %v3507
    %3557 = vmatprep.subr.mxu0 %v3510
    %3558 = vmatpush1.msra.mxu0 %v3509
    %3559 = vmatprep.subr.mxu0 %v3512
    %3560 = vmatpush1.msra.mxu0 %v3511
    %3561 = vmatprep.subr.mxu0 %v3514
    %3562 = vmatpush1.msra.mxu0 %v3513
    %3563 = vmatprep.subr.mxu0 %v3516
    %3564 = vmatpush1.msra.mxu0 %v3515
    %3565 = vmatprep.subr.mxu0 %v3518
    %3566 = vmatpush1.msra.mxu0 %v3517
    %3567 = vmatprep.subr.mxu0 %v3520
    %3568 = vmatpush1.msra.mxu0 %v3519
    %3569 = vmatprep.subr.mxu0 %v3522
    %3570 = vmatpush1.msra.mxu0 %v3521
    %3571 = vmatprep.subr.mxu0 %v3524
    %3572 = vmatpush1.msra.mxu0 %v3523
    %3573 = vmatprep.subr.mxu0 %v3526
    %3574 = vmatpush1.msra.mxu0 %v3525
    %3575 = vmatprep.subr.mxu0 %v3528
    %3576 = vmatpush1.msra.mxu0 %v3527
    %3577 = vmatprep.subr.mxu0 %v3530
    %3578 = vmatpush1.msra.mxu0 %v3529
    %3579 = vmatprep.subr.mxu0 %v3532
    %3580 = vmatpush1.msra.mxu0 %v3531
    %3581 = vmatprep.subr.mxu0 %v3534
    %3582 = vmatpush1.msra.mxu0 %v3533
    %3583 = vmatprep.subr.mxu0 0.0
    %3584 = vmatpush1.msra.mxu0 0.0
    %3585 = vmatprep.subr.mxu0 0.0
    %3586 = vmatpush1.msra.mxu0 0.0
    %3587 = vmatprep.subr.mxu0 0.0
    %3588 = vmatpush1.msra.mxu0 0.0
    %3589 = vmatprep.subr.mxu0 0.0
    %3590 = vmatpush1.msra.mxu0 0.0
    %3591 = vmatprep.subr.mxu0 0.0
    %3592 = vmatpush1.msra.mxu0 0.0
    %3593 = vmatprep.subr.mxu0 0.0
    %3594 = vmatpush1.msra.mxu0 0.0
    %3595 = vmatprep.subr.mxu0 0.0
    %3596 = vmatpush1.msra.mxu0 0.0
    %3597 = vmatprep.subr.mxu0 0.0
    %3598 = vmatpush1.msra.mxu0 0.0
    %3599 = vmatprep.mubr.f32.mxu0 %v3368
    %3600 = vmatmul.mubr.f32.gmra.mrb[0].mxu0 %v3094
    %v3601 = vpop.f32.mrb[0].mxu0
    %v3602 = vadd.f32 0.0, %v3601
    %v3603 = vpop.f32.mrb[0].mxu0
    %v3604 = vadd.f32 0.0, %v3603
    %3605 = vmatprep.mubr.f32.mxu0 %v3371
    %3606 = vmatmul.mubr.f32.gmra.mrb[0].mxu0 %v3100
    %v3607 = vpop.f32.mrb[0].mxu0
    %v3608 = vadd.f32 0.0, %v3607
    %v3609 = vpop.f32.mrb[0].mxu0
    %v3610 = vadd.f32 0.0, %v3609
    %3611 = vmatprep.mubr.f32.mxu0 %v3374
    %3612 = vmatmul.mubr.f32.gmra.mrb[0].mxu0 %v3201
    %v3613 = vpop.f32.mrb[0].mxu0
    %v3614 = vadd.f32 0.0, %v3613
    %v3615 = vpop.f32.mrb[0].mxu0
    %v3616 = vadd.f32 0.0, %v3615
    %3617 = vmatprep.mubr.f32.mxu0 %v3377
    %3618 = vmatmul.mubr.f32.gmra.mrb[0].mxu0 %v3207
    %v3619 = vpop.f32.mrb[0].mxu0
    %v3620 = vadd.f32 0.0, %v3619
    %v3621 = vpop.f32.mrb[0].mxu0
    %v3622 = vadd.f32 0.0, %v3621
    %3623 = vmatprep.mubr.f32.mxu0 %v3380
    %3624 = vmatmul.mubr.f32.gmra.mrb[0].mxu0 %v3308
    %v3625 = vpop.f32.mrb[0].mxu0
    %v3626 = vadd.f32 0.0, %v3625
    %v3627 = vpop.f32.mrb[0].mxu0
    %v3628 = vadd.f32 0.0, %v3627
    %3629 = vmatprep.mubr.f32.mxu0 %v3383
    %3630 = vmatmul.mubr.f32.gmra.mrb[0].mxu0 %v3314
    %v3631 = vpop.f32.mrb[0].mxu0
    %v3632 = vadd.f32 0.0, %v3631
    %v3633 = vpop.f32.mrb[0].mxu0
    %v3634 = vadd.f32 0.0, %v3633
    %3635 = vdwg.mxu0
    %s3636 = scalar_lea.vmem [#allocation4], 768
    %v3637 = vld [vmem:[%s3636] sm:$0xff]
    %v3638 = vld [vmem:[%s3636 + $0x8] sm:$0xff]
    %v3639 = vld [vmem:[%s3636 + $0x10] sm:$0xff]
    %v3640 = vld [vmem:[%s3636 + $0x18] sm:$0xff]
    %v3641 = vld [vmem:[%s3636 + $0x20] sm:$0xff]
    %v3642 = vld [vmem:[%s3636 + $0x28] sm:$0xff]
    %v3643 = vld [vmem:[%s3636 + $0x30] sm:$0xff]
    %v3644 = vld [vmem:[%s3636 + $0x38] sm:$0xff]
    %v3645 = vld [vmem:[%s3636 + $0x40] sm:$0xff]
    %v3646 = vld [vmem:[%s3636 + $0x48] sm:$0xff]
    %v3647 = vld [vmem:[%s3636 + $0x50] sm:$0xff]
    %v3648 = vld [vmem:[%s3636 + $0x58] sm:$0xff]
    %v3649 = vld [vmem:[%s3636 + $0x60] sm:$0xff]
    %v3650 = vld [vmem:[%s3636 + $0x68] sm:$0xff]
    %v3651 = vld [vmem:[%s3636 + $0x70] sm:$0xff]
    %v3652 = vld [vmem:[%s3636 + $0x78] sm:$0xff]
    %v3653 = vld [vmem:[%s3636 + $0x80] sm:$0xff]
    %v3654 = vld [vmem:[%s3636 + $0x88] sm:$0xff]
    %v3655 = vld [vmem:[%s3636 + $0x90] sm:$0xff]
    %v3656 = vld [vmem:[%s3636 + $0x98] sm:$0xff]
    %v3657 = vld [vmem:[%s3636 + $0xa0] sm:$0xff]
    %v3658 = vld [vmem:[%s3636 + $0xa8] sm:$0xff]
    %v3659 = vld [vmem:[%s3636 + $0xb0] sm:$0xff]
    %v3660 = vld [vmem:[%s3636 + $0xb8] sm:$0xff]
    %v3661 = vld [vmem:[%s3636 + $0xc0] sm:$0xff]
    %v3662 = vld [vmem:[%s3636 + $0xc8] sm:$0xff]
    %v3663 = vld [vmem:[%s3636 + $0xd0] sm:$0xff]
    %v3664 = vld [vmem:[%s3636 + $0xd8] sm:$0xff]
    %v3665 = vld [vmem:[%s3636 + $0xe0] sm:$0xff]
    %v3666 = vld [vmem:[%s3636 + $0xe8] sm:$0xff]
    %v3667 = vld [vmem:[%s3636 + $0xf0] sm:$0xff]
    %v3668 = vld [vmem:[%s3636 + $0xf8] sm:$0xff]
    %v3669 = vld [vmem:[%s3636 + $0x100] sm:$0xff]
    %v3670 = vld [vmem:[%s3636 + $0x108] sm:$0xff]
    %v3671 = vld [vmem:[%s3636 + $0x110] sm:$0xff]
    %v3672 = vld [vmem:[%s3636 + $0x118] sm:$0xff]
    %v3673 = vld [vmem:[%s3636 + $0x120] sm:$0xff]
    %v3674 = vld [vmem:[%s3636 + $0x128] sm:$0xff]
    %v3675 = vld [vmem:[%s3636 + $0x130] sm:$0xff]
    %v3676 = vld [vmem:[%s3636 + $0x138] sm:$0xff]
    %v3677 = vld [vmem:[%s3636 + $0x140] sm:$0xff]
    %v3678 = vld [vmem:[%s3636 + $0x148] sm:$0xff]
    %v3679 = vld [vmem:[%s3636 + $0x150] sm:$0xff]
    %v3680 = vld [vmem:[%s3636 + $0x158] sm:$0xff]
    %v3681 = vld [vmem:[%s3636 + $0x160] sm:$0xff]
    %v3682 = vld [vmem:[%s3636 + $0x168] sm:$0xff]
    %v3683 = vld [vmem:[%s3636 + $0x170] sm:$0xff]
    %v3684 = vld [vmem:[%s3636 + $0x178] sm:$0xff]
    %3685 = vmatprep.subr.mxu0 %v3638
    %3686 = vmatpush1.msra.mxu0 %v3637
    %3687 = vmatprep.subr.mxu0 %v3640
    %3688 = vmatpush1.msra.mxu0 %v3639
    %3689 = vmatprep.subr.mxu0 %v3642
    %3690 = vmatpush1.msra.mxu0 %v3641
    %3691 = vmatprep.subr.mxu0 %v3644
    %3692 = vmatpush1.msra.mxu0 %v3643
    %3693 = vmatprep.subr.mxu0 %v3646
    %3694 = vmatpush1.msra.mxu0 %v3645
    %3695 = vmatprep.subr.mxu0 %v3648
    %3696 = vmatpush1.msra.mxu0 %v3647
    %3697 = vmatprep.subr.mxu0 %v3650
    %3698 = vmatpush1.msra.mxu0 %v3649
    %3699 = vmatprep.subr.mxu0 %v3652
    %3700 = vmatpush1.msra.mxu0 %v3651
    %3701 = vmatprep.subr.mxu0 %v3654
    %3702 = vmatpush1.msra.mxu0 %v3653
    %3703 = vmatprep.subr.mxu0 %v3656
    %3704 = vmatpush1.msra.mxu0 %v3655
    %3705 = vmatprep.subr.mxu0 %v3658
    %3706 = vmatpush1.msra.mxu0 %v3657
    %3707 = vmatprep.subr.mxu0 %v3660
    %3708 = vmatpush1.msra.mxu0 %v3659
    %3709 = vmatprep.subr.mxu0 %v3662
    %3710 = vmatpush1.msra.mxu0 %v3661
    %3711 = vmatprep.subr.mxu0 %v3664
    %3712 = vmatpush1.msra.mxu0 %v3663
    %3713 = vmatprep.subr.mxu0 %v3666
    %3714 = vmatpush1.msra.mxu0 %v3665
    %3715 = vmatprep.subr.mxu0 %v3668
    %3716 = vmatpush1.msra.mxu0 %v3667
    %3717 = vmatprep.subr.mxu0 %v3670
    %3718 = vmatpush1.msra.mxu0 %v3669
    %3719 = vmatprep.subr.mxu0 %v3672
    %3720 = vmatpush1.msra.mxu0 %v3671
    %3721 = vmatprep.subr.mxu0 %v3674
    %3722 = vmatpush1.msra.mxu0 %v3673
    %3723 = vmatprep.subr.mxu0 %v3676
    %3724 = vmatpush1.msra.mxu0 %v3675
    %3725 = vmatprep.subr.mxu0 %v3678
    %3726 = vmatpush1.msra.mxu0 %v3677
    %3727 = vmatprep.subr.mxu0 %v3680
    %3728 = vmatpush1.msra.mxu0 %v3679
    %3729 = vmatprep.subr.mxu0 %v3682
    %3730 = vmatpush1.msra.mxu0 %v3681
    %3731 = vmatprep.subr.mxu0 %v3684
    %3732 = vmatpush1.msra.mxu0 %v3683
    %3733 = vmatprep.subr.mxu0 0.0
    %3734 = vmatpush1.msra.mxu0 0.0
    %3735 = vmatprep.subr.mxu0 0.0
    %3736 = vmatpush1.msra.mxu0 0.0
    %3737 = vmatprep.subr.mxu0 0.0
    %3738 = vmatpush1.msra.mxu0 0.0
    %3739 = vmatprep.subr.mxu0 0.0
    %3740 = vmatpush1.msra.mxu0 0.0
    %3741 = vmatprep.subr.mxu0 0.0
    %3742 = vmatpush1.msra.mxu0 0.0
    %3743 = vmatprep.subr.mxu0 0.0
    %3744 = vmatpush1.msra.mxu0 0.0
    %3745 = vmatprep.subr.mxu0 0.0
    %3746 = vmatpush1.msra.mxu0 0.0
    %3747 = vmatprep.subr.mxu0 0.0
    %3748 = vmatpush1.msra.mxu0 0.0
    %3749 = vmatprep.mubr.f32.mxu0 %v3368
    %3750 = vmatmul.mubr.f32.gmra.mrb[0].mxu0 %v3094
    %v3751 = vpop.f32.mrb[0].mxu0
    %v3752 = vadd.f32 0.0, %v3751
    %v3753 = vpop.f32.mrb[0].mxu0
    %v3754 = vadd.f32 0.0, %v3753
    %3755 = vmatprep.mubr.f32.mxu0 %v3371
    %3756 = vmatmul.mubr.f32.gmra.mrb[0].mxu0 %v3100
    %v3757 = vpop.f32.mrb[0].mxu0
    %v3758 = vadd.f32 0.0, %v3757
    %v3759 = vpop.f32.mrb[0].mxu0
    %v3760 = vadd.f32 0.0, %v3759
    %3761 = vmatprep.mubr.f32.mxu0 %v3374
    %3762 = vmatmul.mubr.f32.gmra.mrb[0].mxu0 %v3201
    %v3763 = vpop.f32.mrb[0].mxu0
    %v3764 = vadd.f32 0.0, %v3763
    %v3765 = vpop.f32.mrb[0].mxu0
    %v3766 = vadd.f32 0.0, %v3765
    %3767 = vmatprep.mubr.f32.mxu0 %v3377
    %3768 = vmatmul.mubr.f32.gmra.mrb[0].mxu0 %v3207
    %v3769 = vpop.f32.mrb[0].mxu0
    %v3770 = vadd.f32 0.0, %v3769
    %v3771 = vpop.f32.mrb[0].mxu0
    %v3772 = vadd.f32 0.0, %v3771
    %3773 = vmatprep.mubr.f32.mxu0 %v3380
    %3774 = vmatmul.mubr.f32.gmra.mrb[0].mxu0 %v3308
    %v3775 = vpop.f32.mrb[0].mxu0
    %v3776 = vadd.f32 0.0, %v3775
    %v3777 = vpop.f32.mrb[0].mxu0
    %v3778 = vadd.f32 0.0, %v3777
    %3779 = vmatprep.mubr.f32.mxu0 %v3383
    %3780 = vmatmul.mubr.f32.gmra.mrb[0].mxu0 %v3314
    %v3781 = vpop.f32.mrb[0].mxu0
    %v3782 = vadd.f32 0.0, %v3781
    %v3783 = vpop.f32.mrb[0].mxu0
    %v3784 = vadd.f32 0.0, %v3783
    %3785 = vdwg.mxu0
    %v3787 = vlaneseq
    %v3788 = vshrl.u32 %v3787, 7
    %v3789 = vsub.s32 0, %v3788
    %v3790 = vrot.slane %v3318, %v3789
    %v3791 = vlaneseq
    %v3792 = vshrl.u32 %v3791, 7
    %v3793 = vsub.s32 1, %v3792
    %v3794 = vrot.slane %v3318, %v3793
    %v3797 = vadd.f32 %v3790, %v3752
    %v3798 = vadd.f32 %v3794, %v3754
    %v3799 = vadd.f32 %v3790, %v3758
    %v3800 = vadd.f32 %v3794, %v3760
    %v3801 = vmax.f32 %v3797, 0.0
    %v3802 = vmax.f32 %v3798, 0.0
    %v3803 = vmax.f32 %v3799, 0.0
    %v3804 = vmax.f32 %v3800, 0.0
    %v3805 = vadd.f32 %v3790, %v3602
    %v3806 = vadd.f32 %v3794, %v3604
    %v3807 = vadd.f32 %v3790, %v3608
    %v3808 = vadd.f32 %v3794, %v3610
    %v3809 = vmax.f32 %v3805, 0.0
    %v3810 = vmax.f32 %v3806, 0.0
    %v3811 = vmax.f32 %v3807, 0.0
    %v3812 = vmax.f32 %v3808, 0.0
    %v3813 = vadd.f32 %v3790, %v3452
    %v3814 = vadd.f32 %v3794, %v3454
    %v3815 = vadd.f32 %v3790, %v3458
    %v3816 = vadd.f32 %v3794, %v3460
    %v3817 = vadd.f32 %v3813, %v3764
    %v3818 = vadd.f32 %v3814, %v3766
    %v3819 = vadd.f32 %v3815, %v3770
    %v3820 = vadd.f32 %v3816, %v3772
    %v3821 = vmax.f32 %v3817, 0.0
    %v3822 = vmax.f32 %v3818, 0.0
    %v3823 = vmax.f32 %v3819, 0.0
    %v3824 = vmax.f32 %v3820, 0.0
    %v3825 = vadd.f32 %v3790, %v3614
    %v3826 = vadd.f32 %v3794, %v3616
    %v3827 = vadd.f32 %v3790, %v3620
    %v3828 = vadd.f32 %v3794, %v3622
    %v3829 = vmax.f32 %v3825, 0.0
    %v3830 = vmax.f32 %v3826, 0.0
    %v3831 = vmax.f32 %v3827, 0.0
    %v3832 = vmax.f32 %v3828, 0.0
    %v3833 = vadd.f32 %v3790, %v3464
    %v3834 = vadd.f32 %v3794, %v3466
    %v3835 = vadd.f32 %v3790, %v3470
    %v3836 = vadd.f32 %v3794, %v3472
    %v3837 = vadd.f32 %v3833, %v3776
    %v3838 = vadd.f32 %v3834, %v3778
    %v3839 = vadd.f32 %v3835, %v3782
    %v3840 = vadd.f32 %v3836, %v3784
    %v3841 = vmax.f32 %v3837, 0.0
    %v3842 = vmax.f32 %v3838, 0.0
    %v3843 = vmax.f32 %v3839, 0.0
    %v3844 = vmax.f32 %v3840, 0.0
    %v3845 = vadd.f32 %v3790, %v3626
    %v3846 = vadd.f32 %v3794, %v3628
    %v3847 = vadd.f32 %v3790, %v3632
    %v3848 = vadd.f32 %v3794, %v3634
    %v3849 = vmax.f32 %v3845, 0.0
    %v3850 = vmax.f32 %v3846, 0.0
    %v3851 = vmax.f32 %v3847, 0.0
    %v3852 = vmax.f32 %v3848, 0.0
    %v3853 = vadd.f32 %v3790, %v3476
    %v3854 = vadd.f32 %v3794, %v3478
    %v3855 = vadd.f32 %v3790, %v3482
    %v3856 = vadd.f32 %v3794, %v3484
    %v3857 = vmax.f32 %v3853, 0.0
    %v3858 = vmax.f32 %v3854, 0.0
    %v3859 = vmax.f32 %v3855, 0.0
    %v3860 = vmax.f32 %v3856, 0.0
    %v3861 = vld [vmem:[%s14] sm:$0x3]
    %v3862 = vld [vmem:[%s13] sm:$0xff]
    %v3863 = vld [vmem:[%s13 + $0x8] sm:$0xff]
    %v3864 = vld [vmem:[%s13 + $0x10] sm:$0xff]
    %v3865 = vld [vmem:[%s13 + $0x18] sm:$0xff]
    %v3866 = vld [vmem:[%s13 + $0x20] sm:$0xff]
    %v3867 = vld [vmem:[%s13 + $0x28] sm:$0xff]
    %v3868 = vld [vmem:[%s13 + $0x30] sm:$0xff]
    %v3869 = vld [vmem:[%s13 + $0x38] sm:$0xff]
    %v3870 = vld [vmem:[%s13 + $0x40] sm:$0xff]
    %v3871 = vld [vmem:[%s13 + $0x48] sm:$0xff]
    %v3872 = vld [vmem:[%s13 + $0x50] sm:$0xff]
    %v3873 = vld [vmem:[%s13 + $0x58] sm:$0xff]
    %v3874 = vld [vmem:[%s13 + $0x60] sm:$0xff]
    %v3875 = vld [vmem:[%s13 + $0x68] sm:$0xff]
    %v3876 = vld [vmem:[%s13 + $0x70] sm:$0xff]
    %v3877 = vld [vmem:[%s13 + $0x78] sm:$0xff]
    %v3878 = vld [vmem:[%s13 + $0x80] sm:$0xff]
    %v3879 = vld [vmem:[%s13 + $0x88] sm:$0xff]
    %v3880 = vld [vmem:[%s13 + $0x90] sm:$0xff]
    %v3881 = vld [vmem:[%s13 + $0x98] sm:$0xff]
    %v3882 = vld [vmem:[%s13 + $0xa0] sm:$0xff]
    %v3883 = vld [vmem:[%s13 + $0xa8] sm:$0xff]
    %v3884 = vld [vmem:[%s13 + $0xb0] sm:$0xff]
    %v3885 = vld [vmem:[%s13 + $0xb8] sm:$0xff]
    %v3886 = vld [vmem:[%s13 + $0xc0] sm:$0xff]
    %v3887 = vld [vmem:[%s13 + $0xc8] sm:$0xff]
    %v3888 = vld [vmem:[%s13 + $0xd0] sm:$0xff]
    %v3889 = vld [vmem:[%s13 + $0xd8] sm:$0xff]
    %v3890 = vld [vmem:[%s13 + $0xe0] sm:$0xff]
    %v3891 = vld [vmem:[%s13 + $0xe8] sm:$0xff]
    %v3892 = vld [vmem:[%s13 + $0xf0] sm:$0xff]
    %v3893 = vld [vmem:[%s13 + $0xf8] sm:$0xff]
    %v3894 = vld [vmem:[%s13 + $0x100] sm:$0xff]
    %v3895 = vld [vmem:[%s13 + $0x108] sm:$0xff]
    %v3896 = vld [vmem:[%s13 + $0x110] sm:$0xff]
    %v3897 = vld [vmem:[%s13 + $0x118] sm:$0xff]
    %v3898 = vld [vmem:[%s13 + $0x120] sm:$0xff]
    %v3899 = vld [vmem:[%s13 + $0x128] sm:$0xff]
    %v3900 = vld [vmem:[%s13 + $0x130] sm:$0xff]
    %v3901 = vld [vmem:[%s13 + $0x138] sm:$0xff]
    %v3902 = vld [vmem:[%s13 + $0x140] sm:$0xff]
    %v3903 = vld [vmem:[%s13 + $0x148] sm:$0xff]
    %v3904 = vld [vmem:[%s13 + $0x150] sm:$0xff]
    %v3905 = vld [vmem:[%s13 + $0x158] sm:$0xff]
    %v3906 = vld [vmem:[%s13 + $0x160] sm:$0xff]
    %v3907 = vld [vmem:[%s13 + $0x168] sm:$0xff]
    %v3908 = vld [vmem:[%s13 + $0x170] sm:$0xff]
    %v3909 = vld [vmem:[%s13 + $0x178] sm:$0xff]
    %v3910 = vld [vmem:[%s13 + $0x180] sm:$0xff]
    %v3911 = vld [vmem:[%s13 + $0x188] sm:$0xff]
    %v3912 = vld [vmem:[%s13 + $0x190] sm:$0xff]
    %v3913 = vld [vmem:[%s13 + $0x198] sm:$0xff]
    %v3914 = vld [vmem:[%s13 + $0x1a0] sm:$0xff]
    %v3915 = vld [vmem:[%s13 + $0x1a8] sm:$0xff]
    %v3916 = vld [vmem:[%s13 + $0x1b0] sm:$0xff]
    %v3917 = vld [vmem:[%s13 + $0x1b8] sm:$0xff]
    %v3919 = vsel %vm1332, %v3802, 0
    %v3922 = vsel %vm1332, %v3804, 0
    %v3925 = vsel %vm1332, %v3810, 0
    %v3928 = vsel %vm1332, %v3812, 0
    %v3931 = vsel %vm1332, %v3822, 0
    %v3934 = vsel %vm1332, %v3824, 0
    %v3937 = vsel %vm1332, %v3830, 0
    %v3940 = vsel %vm1332, %v3832, 0
    %v3943 = vsel %vm1332, %v3842, 0
    %v3946 = vsel %vm1332, %v3844, 0
    %v3949 = vsel %vm1332, %v3850, 0
    %v3952 = vsel %vm1332, %v3852, 0
    %v3955 = vsel %vm1332, %v3858, 0
    %v3958 = vsel %vm1332, %v3860, 0
    %3960 = vmatprep.subr.mxu0 %v3863
    %3961 = vmatpush1.msra.mxu0 %v3862
    %3962 = vmatprep.subr.mxu0 %v3865
    %3963 = vmatpush1.msra.mxu0 %v3864
    %3964 = vmatprep.subr.mxu0 %v3867
    %3965 = vmatpush1.msra.mxu0 %v3866
    %3966 = vmatprep.subr.mxu0 %v3869
    %3967 = vmatpush1.msra.mxu0 %v3868
    %3968 = vmatprep.subr.mxu0 %v3871
    %3969 = vmatpush1.msra.mxu0 %v3870
    %3970 = vmatprep.subr.mxu0 %v3873
    %3971 = vmatpush1.msra.mxu0 %v3872
    %3972 = vmatprep.subr.mxu0 %v3875
    %3973 = vmatpush1.msra.mxu0 %v3874
    %3974 = vmatprep.subr.mxu0 %v3877
    %3975 = vmatpush1.msra.mxu0 %v3876
    %3976 = vmatprep.subr.mxu0 %v3879
    %3977 = vmatpush1.msra.mxu0 %v3878
    %3978 = vmatprep.subr.mxu0 %v3881
    %3979 = vmatpush1.msra.mxu0 %v3880
    %3980 = vmatprep.subr.mxu0 %v3883
    %3981 = vmatpush1.msra.mxu0 %v3882
    %3982 = vmatprep.subr.mxu0 %v3885
    %3983 = vmatpush1.msra.mxu0 %v3884
    %3984 = vmatprep.subr.mxu0 %v3887
    %3985 = vmatpush1.msra.mxu0 %v3886
    %3986 = vmatprep.subr.mxu0 %v3889
    %3987 = vmatpush1.msra.mxu0 %v3888
    %3988 = vmatprep.subr.mxu0 %v3891
    %3989 = vmatpush1.msra.mxu0 %v3890
    %3990 = vmatprep.subr.mxu0 %v3893
    %3991 = vmatpush1.msra.mxu0 %v3892
    %3992 = vmatprep.subr.mxu0 %v3895
    %3993 = vmatpush1.msra.mxu0 %v3894
    %3994 = vmatprep.subr.mxu0 %v3897
    %3995 = vmatpush1.msra.mxu0 %v3896
    %3996 = vmatprep.subr.mxu0 %v3899
    %3997 = vmatpush1.msra.mxu0 %v3898
    %3998 = vmatprep.subr.mxu0 %v3901
    %3999 = vmatpush1.msra.mxu0 %v3900
    %4000 = vmatprep.subr.mxu0 %v3903
    %4001 = vmatpush1.msra.mxu0 %v3902
    %4002 = vmatprep.subr.mxu0 %v3905
    %4003 = vmatpush1.msra.mxu0 %v3904
    %4004 = vmatprep.subr.mxu0 %v3907
    %4005 = vmatpush1.msra.mxu0 %v3906
    %4006 = vmatprep.subr.mxu0 %v3909
    %4007 = vmatpush1.msra.mxu0 %v3908
    %4008 = vmatprep.subr.mxu0 %v3911
    %4009 = vmatpush1.msra.mxu0 %v3910
    %4010 = vmatprep.subr.mxu0 %v3913
    %4011 = vmatpush1.msra.mxu0 %v3912
    %4012 = vmatprep.subr.mxu0 %v3915
    %4013 = vmatpush1.msra.mxu0 %v3914
    %4014 = vmatprep.subr.mxu0 %v3917
    %4015 = vmatpush1.msra.mxu0 %v3916
    %4016 = vmatprep.subr.mxu0 0.0
    %4017 = vmatpush1.msra.mxu0 0.0
    %4018 = vmatprep.subr.mxu0 0.0
    %4019 = vmatpush1.msra.mxu0 0.0
    %4020 = vmatprep.subr.mxu0 0.0
    %4021 = vmatpush1.msra.mxu0 0.0
    %4022 = vmatprep.subr.mxu0 0.0
    %4023 = vmatpush1.msra.mxu0 0.0
    %4024 = vmatprep.mubr.f32.mxu0 %v3919
    %4025 = vmatmul.mubr.f32.gmra.mrb[0].mxu0 %v3801
    %v4026 = vpop.f32.mrb[0].mxu0
    %v4027 = vadd.f32 0.0, %v4026
    %v4028 = vpop.f32.mrb[0].mxu0
    %v4029 = vadd.f32 0.0, %v4028
    %4030 = vmatprep.mubr.f32.mxu0 %v3922
    %4031 = vmatmul.mubr.f32.gmra.mrb[0].mxu0 %v3803
    %v4032 = vpop.f32.mrb[0].mxu0
    %v4033 = vadd.f32 0.0, %v4032
    %v4034 = vpop.f32.mrb[0].mxu0
    %v4035 = vadd.f32 0.0, %v4034
    %4036 = vmatprep.mubr.f32.mxu0 %v3925
    %4037 = vmatmul.mubr.f32.gmra.mrb[0].mxu0 %v3809
    %v4038 = vpop.f32.mrb[0].mxu0
    %v4039 = vadd.f32 0.0, %v4038
    %v4040 = vpop.f32.mrb[0].mxu0
    %v4041 = vadd.f32 0.0, %v4040
    %4042 = vmatprep.mubr.f32.mxu0 %v3928
    %4043 = vmatmul.mubr.f32.gmra.mrb[0].mxu0 %v3811
    %v4044 = vpop.f32.mrb[0].mxu0
    %v4045 = vadd.f32 0.0, %v4044
    %v4046 = vpop.f32.mrb[0].mxu0
    %v4047 = vadd.f32 0.0, %v4046
    %4048 = vmatprep.mubr.f32.mxu0 %v3931
    %4049 = vmatmul.mubr.f32.gmra.mrb[0].mxu0 %v3821
    %v4050 = vpop.f32.mrb[0].mxu0
    %v4051 = vadd.f32 0.0, %v4050
    %v4052 = vpop.f32.mrb[0].mxu0
    %v4053 = vadd.f32 0.0, %v4052
    %4054 = vmatprep.mubr.f32.mxu0 %v3934
    %4055 = vmatmul.mubr.f32.gmra.mrb[0].mxu0 %v3823
    %v4056 = vpop.f32.mrb[0].mxu0
    %v4057 = vadd.f32 0.0, %v4056
    %v4058 = vpop.f32.mrb[0].mxu0
    %v4059 = vadd.f32 0.0, %v4058
    %4060 = vmatprep.mubr.f32.mxu0 %v3937
    %4061 = vmatmul.mubr.f32.gmra.mrb[0].mxu0 %v3829
    %v4062 = vpop.f32.mrb[0].mxu0
    %v4063 = vadd.f32 0.0, %v4062
    %v4064 = vpop.f32.mrb[0].mxu0
    %v4065 = vadd.f32 0.0, %v4064
    %4066 = vmatprep.mubr.f32.mxu0 %v3940
    %4067 = vmatmul.mubr.f32.gmra.mrb[0].mxu0 %v3831
    %v4068 = vpop.f32.mrb[0].mxu0
    %v4069 = vadd.f32 0.0, %v4068
    %v4070 = vpop.f32.mrb[0].mxu0
    %v4071 = vadd.f32 0.0, %v4070
    %4072 = vmatprep.mubr.f32.mxu0 %v3943
    %4073 = vmatmul.mubr.f32.gmra.mrb[0].mxu0 %v3841
    %v4074 = vpop.f32.mrb[0].mxu0
    %v4075 = vadd.f32 0.0, %v4074
    %v4076 = vpop.f32.mrb[0].mxu0
    %v4077 = vadd.f32 0.0, %v4076
    %4078 = vmatprep.mubr.f32.mxu0 %v3946
    %4079 = vmatmul.mubr.f32.gmra.mrb[0].mxu0 %v3843
    %v4080 = vpop.f32.mrb[0].mxu0
    %v4081 = vadd.f32 0.0, %v4080
    %v4082 = vpop.f32.mrb[0].mxu0
    %v4083 = vadd.f32 0.0, %v4082
    %4084 = vmatprep.mubr.f32.mxu0 %v3949
    %4085 = vmatmul.mubr.f32.gmra.mrb[0].mxu0 %v3849
    %v4086 = vpop.f32.mrb[0].mxu0
    %v4087 = vadd.f32 0.0, %v4086
    %v4088 = vpop.f32.mrb[0].mxu0
    %v4089 = vadd.f32 0.0, %v4088
    %4090 = vmatprep.mubr.f32.mxu0 %v3952
    %4091 = vmatmul.mubr.f32.gmra.mrb[0].mxu0 %v3851
    %v4092 = vpop.f32.mrb[0].mxu0
    %v4093 = vadd.f32 0.0, %v4092
    %v4094 = vpop.f32.mrb[0].mxu0
    %v4095 = vadd.f32 0.0, %v4094
    %4096 = vmatprep.mubr.f32.mxu0 %v3955
    %4097 = vmatmul.mubr.f32.gmra.mrb[0].mxu0 %v3857
    %v4098 = vpop.f32.mrb[0].mxu0
    %v4099 = vadd.f32 0.0, %v4098
    %v4100 = vpop.f32.mrb[0].mxu0
    %v4101 = vadd.f32 0.0, %v4100
    %4102 = vmatprep.mubr.f32.mxu0 %v3958
    %4103 = vmatmul.mubr.f32.gmra.mrb[0].mxu0 %v3859
    %v4104 = vpop.f32.mrb[0].mxu0
    %v4105 = vadd.f32 0.0, %v4104
    %v4106 = vpop.f32.mrb[0].mxu0
    %v4107 = vadd.f32 0.0, %v4106
    %4108 = vdwg.mxu0
    %s4109 = scalar_lea.vmem %s13, 448
    %v4110 = vld [vmem:[%s4109] sm:$0xff]
    %v4111 = vld [vmem:[%s4109 + $0x8] sm:$0xff]
    %v4112 = vld [vmem:[%s4109 + $0x10] sm:$0xff]
    %v4113 = vld [vmem:[%s4109 + $0x18] sm:$0xff]
    %v4114 = vld [vmem:[%s4109 + $0x20] sm:$0xff]
    %v4115 = vld [vmem:[%s4109 + $0x28] sm:$0xff]
    %v4116 = vld [vmem:[%s4109 + $0x30] sm:$0xff]
    %v4117 = vld [vmem:[%s4109 + $0x38] sm:$0xff]
    %v4118 = vld [vmem:[%s4109 + $0x40] sm:$0xff]
    %v4119 = vld [vmem:[%s4109 + $0x48] sm:$0xff]
    %v4120 = vld [vmem:[%s4109 + $0x50] sm:$0xff]
    %v4121 = vld [vmem:[%s4109 + $0x58] sm:$0xff]
    %v4122 = vld [vmem:[%s4109 + $0x60] sm:$0xff]
    %v4123 = vld [vmem:[%s4109 + $0x68] sm:$0xff]
    %v4124 = vld [vmem:[%s4109 + $0x70] sm:$0xff]
    %v4125 = vld [vmem:[%s4109 + $0x78] sm:$0xff]
    %v4126 = vld [vmem:[%s4109 + $0x80] sm:$0xff]
    %v4127 = vld [vmem:[%s4109 + $0x88] sm:$0xff]
    %v4128 = vld [vmem:[%s4109 + $0x90] sm:$0xff]
    %v4129 = vld [vmem:[%s4109 + $0x98] sm:$0xff]
    %v4130 = vld [vmem:[%s4109 + $0xa0] sm:$0xff]
    %v4131 = vld [vmem:[%s4109 + $0xa8] sm:$0xff]
    %v4132 = vld [vmem:[%s4109 + $0xb0] sm:$0xff]
    %v4133 = vld [vmem:[%s4109 + $0xb8] sm:$0xff]
    %v4134 = vld [vmem:[%s4109 + $0xc0] sm:$0xff]
    %v4135 = vld [vmem:[%s4109 + $0xc8] sm:$0xff]
    %v4136 = vld [vmem:[%s4109 + $0xd0] sm:$0xff]
    %v4137 = vld [vmem:[%s4109 + $0xd8] sm:$0xff]
    %v4138 = vld [vmem:[%s4109 + $0xe0] sm:$0xff]
    %v4139 = vld [vmem:[%s4109 + $0xe8] sm:$0xff]
    %v4140 = vld [vmem:[%s4109 + $0xf0] sm:$0xff]
    %v4141 = vld [vmem:[%s4109 + $0xf8] sm:$0xff]
    %v4142 = vld [vmem:[%s4109 + $0x100] sm:$0xff]
    %v4143 = vld [vmem:[%s4109 + $0x108] sm:$0xff]
    %v4144 = vld [vmem:[%s4109 + $0x110] sm:$0xff]
    %v4145 = vld [vmem:[%s4109 + $0x118] sm:$0xff]
    %v4146 = vld [vmem:[%s4109 + $0x120] sm:$0xff]
    %v4147 = vld [vmem:[%s4109 + $0x128] sm:$0xff]
    %v4148 = vld [vmem:[%s4109 + $0x130] sm:$0xff]
    %v4149 = vld [vmem:[%s4109 + $0x138] sm:$0xff]
    %v4150 = vld [vmem:[%s4109 + $0x140] sm:$0xff]
    %v4151 = vld [vmem:[%s4109 + $0x148] sm:$0xff]
    %v4152 = vld [vmem:[%s4109 + $0x150] sm:$0xff]
    %v4153 = vld [vmem:[%s4109 + $0x158] sm:$0xff]
    %v4154 = vld [vmem:[%s4109 + $0x160] sm:$0xff]
    %v4155 = vld [vmem:[%s4109 + $0x168] sm:$0xff]
    %v4156 = vld [vmem:[%s4109 + $0x170] sm:$0xff]
    %v4157 = vld [vmem:[%s4109 + $0x178] sm:$0xff]
    %v4158 = vld [vmem:[%s4109 + $0x180] sm:$0xff]
    %v4159 = vld [vmem:[%s4109 + $0x188] sm:$0xff]
    %v4160 = vld [vmem:[%s4109 + $0x190] sm:$0xff]
    %v4161 = vld [vmem:[%s4109 + $0x198] sm:$0xff]
    %v4162 = vld [vmem:[%s4109 + $0x1a0] sm:$0xff]
    %v4163 = vld [vmem:[%s4109 + $0x1a8] sm:$0xff]
    %v4164 = vld [vmem:[%s4109 + $0x1b0] sm:$0xff]
    %v4165 = vld [vmem:[%s4109 + $0x1b8] sm:$0xff]
    %4166 = vmatprep.subr.mxu0 %v4111
    %4167 = vmatpush1.msra.mxu0 %v4110
    %4168 = vmatprep.subr.mxu0 %v4113
    %4169 = vmatpush1.msra.mxu0 %v4112
    %4170 = vmatprep.subr.mxu0 %v4115
    %4171 = vmatpush1.msra.mxu0 %v4114
    %4172 = vmatprep.subr.mxu0 %v4117
    %4173 = vmatpush1.msra.mxu0 %v4116
    %4174 = vmatprep.subr.mxu0 %v4119
    %4175 = vmatpush1.msra.mxu0 %v4118
    %4176 = vmatprep.subr.mxu0 %v4121
    %4177 = vmatpush1.msra.mxu0 %v4120
    %4178 = vmatprep.subr.mxu0 %v4123
    %4179 = vmatpush1.msra.mxu0 %v4122
    %4180 = vmatprep.subr.mxu0 %v4125
    %4181 = vmatpush1.msra.mxu0 %v4124
    %4182 = vmatprep.subr.mxu0 %v4127
    %4183 = vmatpush1.msra.mxu0 %v4126
    %4184 = vmatprep.subr.mxu0 %v4129
    %4185 = vmatpush1.msra.mxu0 %v4128
    %4186 = vmatprep.subr.mxu0 %v4131
    %4187 = vmatpush1.msra.mxu0 %v4130
    %4188 = vmatprep.subr.mxu0 %v4133
    %4189 = vmatpush1.msra.mxu0 %v4132
    %4190 = vmatprep.subr.mxu0 %v4135
    %4191 = vmatpush1.msra.mxu0 %v4134
    %4192 = vmatprep.subr.mxu0 %v4137
    %4193 = vmatpush1.msra.mxu0 %v4136
    %4194 = vmatprep.subr.mxu0 %v4139
    %4195 = vmatpush1.msra.mxu0 %v4138
    %4196 = vmatprep.subr.mxu0 %v4141
    %4197 = vmatpush1.msra.mxu0 %v4140
    %4198 = vmatprep.subr.mxu0 %v4143
    %4199 = vmatpush1.msra.mxu0 %v4142
    %4200 = vmatprep.subr.mxu0 %v4145
    %4201 = vmatpush1.msra.mxu0 %v4144
    %4202 = vmatprep.subr.mxu0 %v4147
    %4203 = vmatpush1.msra.mxu0 %v4146
    %4204 = vmatprep.subr.mxu0 %v4149
    %4205 = vmatpush1.msra.mxu0 %v4148
    %4206 = vmatprep.subr.mxu0 %v4151
    %4207 = vmatpush1.msra.mxu0 %v4150
    %4208 = vmatprep.subr.mxu0 %v4153
    %4209 = vmatpush1.msra.mxu0 %v4152
    %4210 = vmatprep.subr.mxu0 %v4155
    %4211 = vmatpush1.msra.mxu0 %v4154
    %4212 = vmatprep.subr.mxu0 %v4157
    %4213 = vmatpush1.msra.mxu0 %v4156
    %4214 = vmatprep.subr.mxu0 %v4159
    %4215 = vmatpush1.msra.mxu0 %v4158
    %4216 = vmatprep.subr.mxu0 %v4161
    %4217 = vmatpush1.msra.mxu0 %v4160
    %4218 = vmatprep.subr.mxu0 %v4163
    %4219 = vmatpush1.msra.mxu0 %v4162
    %4220 = vmatprep.subr.mxu0 %v4165
    %4221 = vmatpush1.msra.mxu0 %v4164
    %4222 = vmatprep.subr.mxu0 0.0
    %4223 = vmatpush1.msra.mxu0 0.0
    %4224 = vmatprep.subr.mxu0 0.0
    %4225 = vmatpush1.msra.mxu0 0.0
    %4226 = vmatprep.subr.mxu0 0.0
    %4227 = vmatpush1.msra.mxu0 0.0
    %4228 = vmatprep.subr.mxu0 0.0
    %4229 = vmatpush1.msra.mxu0 0.0
    %4230 = vmatprep.mubr.f32.mxu0 %v3919
    %4231 = vmatmul.mubr.f32.gmra.mrb[0].mxu0 %v3801
    %v4232 = vpop.f32.mrb[0].mxu0
    %v4233 = vadd.f32 0.0, %v4232
    %v4234 = vpop.f32.mrb[0].mxu0
    %v4235 = vadd.f32 0.0, %v4234
    %4236 = vmatprep.mubr.f32.mxu0 %v3922
    %4237 = vmatmul.mubr.f32.gmra.mrb[0].mxu0 %v3803
    %v4238 = vpop.f32.mrb[0].mxu0
    %v4239 = vadd.f32 0.0, %v4238
    %v4240 = vpop.f32.mrb[0].mxu0
    %v4241 = vadd.f32 0.0, %v4240
    %4242 = vmatprep.mubr.f32.mxu0 %v3925
    %4243 = vmatmul.mubr.f32.gmra.mrb[0].mxu0 %v3809
    %v4244 = vpop.f32.mrb[0].mxu0
    %v4245 = vadd.f32 0.0, %v4244
    %v4246 = vpop.f32.mrb[0].mxu0
    %v4247 = vadd.f32 0.0, %v4246
    %4248 = vmatprep.mubr.f32.mxu0 %v3928
    %4249 = vmatmul.mubr.f32.gmra.mrb[0].mxu0 %v3811
    %v4250 = vpop.f32.mrb[0].mxu0
    %v4251 = vadd.f32 0.0, %v4250
    %v4252 = vpop.f32.mrb[0].mxu0
    %v4253 = vadd.f32 0.0, %v4252
    %4254 = vmatprep.mubr.f32.mxu0 %v3931
    %4255 = vmatmul.mubr.f32.gmra.mrb[0].mxu0 %v3821
    %v4256 = vpop.f32.mrb[0].mxu0
    %v4257 = vadd.f32 0.0, %v4256
    %v4258 = vpop.f32.mrb[0].mxu0
    %v4259 = vadd.f32 0.0, %v4258
    %4260 = vmatprep.mubr.f32.mxu0 %v3934
    %4261 = vmatmul.mubr.f32.gmra.mrb[0].mxu0 %v3823
    %v4262 = vpop.f32.mrb[0].mxu0
    %v4263 = vadd.f32 0.0, %v4262
    %v4264 = vpop.f32.mrb[0].mxu0
    %v4265 = vadd.f32 0.0, %v4264
    %4266 = vmatprep.mubr.f32.mxu0 %v3937
    %4267 = vmatmul.mubr.f32.gmra.mrb[0].mxu0 %v3829
    %v4268 = vpop.f32.mrb[0].mxu0
    %v4269 = vadd.f32 0.0, %v4268
    %v4270 = vpop.f32.mrb[0].mxu0
    %v4271 = vadd.f32 0.0, %v4270
    %4272 = vmatprep.mubr.f32.mxu0 %v3940
    %4273 = vmatmul.mubr.f32.gmra.mrb[0].mxu0 %v3831
    %v4274 = vpop.f32.mrb[0].mxu0
    %v4275 = vadd.f32 0.0, %v4274
    %v4276 = vpop.f32.mrb[0].mxu0
    %v4277 = vadd.f32 0.0, %v4276
    %4278 = vmatprep.mubr.f32.mxu0 %v3943
    %4279 = vmatmul.mubr.f32.gmra.mrb[0].mxu0 %v3841
    %v4280 = vpop.f32.mrb[0].mxu0
    %v4281 = vadd.f32 0.0, %v4280
    %v4282 = vpop.f32.mrb[0].mxu0
    %v4283 = vadd.f32 0.0, %v4282
    %4284 = vmatprep.mubr.f32.mxu0 %v3946
    %4285 = vmatmul.mubr.f32.gmra.mrb[0].mxu0 %v3843
    %v4286 = vpop.f32.mrb[0].mxu0
    %v4287 = vadd.f32 0.0, %v4286
    %v4288 = vpop.f32.mrb[0].mxu0
    %v4289 = vadd.f32 0.0, %v4288
    %4290 = vmatprep.mubr.f32.mxu0 %v3949
    %4291 = vmatmul.mubr.f32.gmra.mrb[0].mxu0 %v3849
    %v4292 = vpop.f32.mrb[0].mxu0
    %v4293 = vadd.f32 0.0, %v4292
    %v4294 = vpop.f32.mrb[0].mxu0
    %v4295 = vadd.f32 0.0, %v4294
    %4296 = vmatprep.mubr.f32.mxu0 %v3952
    %4297 = vmatmul.mubr.f32.gmra.mrb[0].mxu0 %v3851
    %v4298 = vpop.f32.mrb[0].mxu0
    %v4299 = vadd.f32 0.0, %v4298
    %v4300 = vpop.f32.mrb[0].mxu0
    %v4301 = vadd.f32 0.0, %v4300
    %4302 = vmatprep.mubr.f32.mxu0 %v3955
    %4303 = vmatmul.mubr.f32.gmra.mrb[0].mxu0 %v3857
    %v4304 = vpop.f32.mrb[0].mxu0
    %v4305 = vadd.f32 0.0, %v4304
    %v4306 = vpop.f32.mrb[0].mxu0
    %v4307 = vadd.f32 0.0, %v4306
    %4308 = vmatprep.mubr.f32.mxu0 %v3958
    %4309 = vmatmul.mubr.f32.gmra.mrb[0].mxu0 %v3859
    %v4310 = vpop.f32.mrb[0].mxu0
    %v4311 = vadd.f32 0.0, %v4310
    %v4312 = vpop.f32.mrb[0].mxu0
    %v4313 = vadd.f32 0.0, %v4312
    %4314 = vdwg.mxu0
    %s4315 = scalar_lea.vmem %s13, 896
    %v4316 = vld [vmem:[%s4315] sm:$0xff]
    %v4317 = vld [vmem:[%s4315 + $0x8] sm:$0xff]
    %v4318 = vld [vmem:[%s4315 + $0x10] sm:$0xff]
    %v4319 = vld [vmem:[%s4315 + $0x18] sm:$0xff]
    %v4320 = vld [vmem:[%s4315 + $0x20] sm:$0xff]
    %v4321 = vld [vmem:[%s4315 + $0x28] sm:$0xff]
    %v4322 = vld [vmem:[%s4315 + $0x30] sm:$0xff]
    %v4323 = vld [vmem:[%s4315 + $0x38] sm:$0xff]
    %v4324 = vld [vmem:[%s4315 + $0x40] sm:$0xff]
    %v4325 = vld [vmem:[%s4315 + $0x48] sm:$0xff]
    %v4326 = vld [vmem:[%s4315 + $0x50] sm:$0xff]
    %v4327 = vld [vmem:[%s4315 + $0x58] sm:$0xff]
    %v4328 = vld [vmem:[%s4315 + $0x60] sm:$0xff]
    %v4329 = vld [vmem:[%s4315 + $0x68] sm:$0xff]
    %v4330 = vld [vmem:[%s4315 + $0x70] sm:$0xff]
    %v4331 = vld [vmem:[%s4315 + $0x78] sm:$0xff]
    %v4332 = vld [vmem:[%s4315 + $0x80] sm:$0xff]
    %v4333 = vld [vmem:[%s4315 + $0x88] sm:$0xff]
    %v4334 = vld [vmem:[%s4315 + $0x90] sm:$0xff]
    %v4335 = vld [vmem:[%s4315 + $0x98] sm:$0xff]
    %v4336 = vld [vmem:[%s4315 + $0xa0] sm:$0xff]
    %v4337 = vld [vmem:[%s4315 + $0xa8] sm:$0xff]
    %v4338 = vld [vmem:[%s4315 + $0xb0] sm:$0xff]
    %v4339 = vld [vmem:[%s4315 + $0xb8] sm:$0xff]
    %v4340 = vld [vmem:[%s4315 + $0xc0] sm:$0xff]
    %v4341 = vld [vmem:[%s4315 + $0xc8] sm:$0xff]
    %v4342 = vld [vmem:[%s4315 + $0xd0] sm:$0xff]
    %v4343 = vld [vmem:[%s4315 + $0xd8] sm:$0xff]
    %v4344 = vld [vmem:[%s4315 + $0xe0] sm:$0xff]
    %v4345 = vld [vmem:[%s4315 + $0xe8] sm:$0xff]
    %v4346 = vld [vmem:[%s4315 + $0xf0] sm:$0xff]
    %v4347 = vld [vmem:[%s4315 + $0xf8] sm:$0xff]
    %v4348 = vld [vmem:[%s4315 + $0x100] sm:$0xff]
    %v4349 = vld [vmem:[%s4315 + $0x108] sm:$0xff]
    %v4350 = vld [vmem:[%s4315 + $0x110] sm:$0xff]
    %v4351 = vld [vmem:[%s4315 + $0x118] sm:$0xff]
    %v4352 = vld [vmem:[%s4315 + $0x120] sm:$0xff]
    %v4353 = vld [vmem:[%s4315 + $0x128] sm:$0xff]
    %v4354 = vld [vmem:[%s4315 + $0x130] sm:$0xff]
    %v4355 = vld [vmem:[%s4315 + $0x138] sm:$0xff]
    %v4356 = vld [vmem:[%s4315 + $0x140] sm:$0xff]
    %v4357 = vld [vmem:[%s4315 + $0x148] sm:$0xff]
    %v4358 = vld [vmem:[%s4315 + $0x150] sm:$0xff]
    %v4359 = vld [vmem:[%s4315 + $0x158] sm:$0xff]
    %v4360 = vld [vmem:[%s4315 + $0x160] sm:$0xff]
    %v4361 = vld [vmem:[%s4315 + $0x168] sm:$0xff]
    %v4362 = vld [vmem:[%s4315 + $0x170] sm:$0xff]
    %v4363 = vld [vmem:[%s4315 + $0x178] sm:$0xff]
    %v4364 = vld [vmem:[%s4315 + $0x180] sm:$0xff]
    %v4365 = vld [vmem:[%s4315 + $0x188] sm:$0xff]
    %v4366 = vld [vmem:[%s4315 + $0x190] sm:$0xff]
    %v4367 = vld [vmem:[%s4315 + $0x198] sm:$0xff]
    %v4368 = vld [vmem:[%s4315 + $0x1a0] sm:$0xff]
    %v4369 = vld [vmem:[%s4315 + $0x1a8] sm:$0xff]
    %v4370 = vld [vmem:[%s4315 + $0x1b0] sm:$0xff]
    %v4371 = vld [vmem:[%s4315 + $0x1b8] sm:$0xff]
    %4372 = vmatprep.subr.mxu0 %v4317
    %4373 = vmatpush1.msra.mxu0 %v4316
    %4374 = vmatprep.subr.mxu0 %v4319
    %4375 = vmatpush1.msra.mxu0 %v4318
    %4376 = vmatprep.subr.mxu0 %v4321
    %4377 = vmatpush1.msra.mxu0 %v4320
    %4378 = vmatprep.subr.mxu0 %v4323
    %4379 = vmatpush1.msra.mxu0 %v4322
    %4380 = vmatprep.subr.mxu0 %v4325
    %4381 = vmatpush1.msra.mxu0 %v4324
    %4382 = vmatprep.subr.mxu0 %v4327
    %4383 = vmatpush1.msra.mxu0 %v4326
    %4384 = vmatprep.subr.mxu0 %v4329
    %4385 = vmatpush1.msra.mxu0 %v4328
    %4386 = vmatprep.subr.mxu0 %v4331
    %4387 = vmatpush1.msra.mxu0 %v4330
    %4388 = vmatprep.subr.mxu0 %v4333
    %4389 = vmatpush1.msra.mxu0 %v4332
    %4390 = vmatprep.subr.mxu0 %v4335
    %4391 = vmatpush1.msra.mxu0 %v4334
    %4392 = vmatprep.subr.mxu0 %v4337
    %4393 = vmatpush1.msra.mxu0 %v4336
    %4394 = vmatprep.subr.mxu0 %v4339
    %4395 = vmatpush1.msra.mxu0 %v4338
    %4396 = vmatprep.subr.mxu0 %v4341
    %4397 = vmatpush1.msra.mxu0 %v4340
    %4398 = vmatprep.subr.mxu0 %v4343
    %4399 = vmatpush1.msra.mxu0 %v4342
    %4400 = vmatprep.subr.mxu0 %v4345
    %4401 = vmatpush1.msra.mxu0 %v4344
    %4402 = vmatprep.subr.mxu0 %v4347
    %4403 = vmatpush1.msra.mxu0 %v4346
    %4404 = vmatprep.subr.mxu0 %v4349
    %4405 = vmatpush1.msra.mxu0 %v4348
    %4406 = vmatprep.subr.mxu0 %v4351
    %4407 = vmatpush1.msra.mxu0 %v4350
    %4408 = vmatprep.subr.mxu0 %v4353
    %4409 = vmatpush1.msra.mxu0 %v4352
    %4410 = vmatprep.subr.mxu0 %v4355
    %4411 = vmatpush1.msra.mxu0 %v4354
    %4412 = vmatprep.subr.mxu0 %v4357
    %4413 = vmatpush1.msra.mxu0 %v4356
    %4414 = vmatprep.subr.mxu0 %v4359
    %4415 = vmatpush1.msra.mxu0 %v4358
    %4416 = vmatprep.subr.mxu0 %v4361
    %4417 = vmatpush1.msra.mxu0 %v4360
    %4418 = vmatprep.subr.mxu0 %v4363
    %4419 = vmatpush1.msra.mxu0 %v4362
    %4420 = vmatprep.subr.mxu0 %v4365
    %4421 = vmatpush1.msra.mxu0 %v4364
    %4422 = vmatprep.subr.mxu0 %v4367
    %4423 = vmatpush1.msra.mxu0 %v4366
    %4424 = vmatprep.subr.mxu0 %v4369
    %4425 = vmatpush1.msra.mxu0 %v4368
    %4426 = vmatprep.subr.mxu0 %v4371
    %4427 = vmatpush1.msra.mxu0 %v4370
    %4428 = vmatprep.subr.mxu0 0.0
    %4429 = vmatpush1.msra.mxu0 0.0
    %4430 = vmatprep.subr.mxu0 0.0
    %4431 = vmatpush1.msra.mxu0 0.0
    %4432 = vmatprep.subr.mxu0 0.0
    %4433 = vmatpush1.msra.mxu0 0.0
    %4434 = vmatprep.subr.mxu0 0.0
    %4435 = vmatpush1.msra.mxu0 0.0
    %4436 = vmatprep.mubr.f32.mxu0 %v3919
    %4437 = vmatmul.mubr.f32.gmra.mrb[0].mxu0 %v3801
    %v4438 = vpop.f32.mrb[0].mxu0
    %v4439 = vpop.f32.mrb[0].mxu0
    %4440 = vmatprep.mubr.f32.mxu0 %v3922
    %4441 = vmatmul.mubr.f32.gmra.mrb[0].mxu0 %v3803
    %v4442 = vpop.f32.mrb[0].mxu0
    %v4443 = vpop.f32.mrb[0].mxu0
    %4444 = vmatprep.mubr.f32.mxu0 %v3925
    %4445 = vmatmul.mubr.f32.gmra.mrb[0].mxu0 %v3809
    %v4446 = vpop.f32.mrb[0].mxu0
    %v4447 = vadd.f32 0.0, %v4446
    %v4448 = vpop.f32.mrb[0].mxu0
    %v4449 = vadd.f32 0.0, %v4448
    %4450 = vmatprep.mubr.f32.mxu0 %v3928
    %4451 = vmatmul.mubr.f32.gmra.mrb[0].mxu0 %v3811
    %v4452 = vpop.f32.mrb[0].mxu0
    %v4453 = vadd.f32 0.0, %v4452
    %v4454 = vpop.f32.mrb[0].mxu0
    %v4455 = vadd.f32 0.0, %v4454
    %4456 = vmatprep.mubr.f32.mxu0 %v3931
    %4457 = vmatmul.mubr.f32.gmra.mrb[0].mxu0 %v3821
    %v4458 = vpop.f32.mrb[0].mxu0
    %v4459 = vadd.f32 0.0, %v4458
    %v4460 = vpop.f32.mrb[0].mxu0
    %v4461 = vadd.f32 0.0, %v4460
    %4462 = vmatprep.mubr.f32.mxu0 %v3934
    %4463 = vmatmul.mubr.f32.gmra.mrb[0].mxu0 %v3823
    %v4464 = vpop.f32.mrb[0].mxu0
    %v4465 = vadd.f32 0.0, %v4464
    %v4466 = vpop.f32.mrb[0].mxu0
    %v4467 = vadd.f32 0.0, %v4466
    %4468 = vmatprep.mubr.f32.mxu0 %v3937
    %4469 = vmatmul.mubr.f32.gmra.mrb[0].mxu0 %v3829
    %v4470 = vpop.f32.mrb[0].mxu0
    %v4471 = vadd.f32 0.0, %v4470
    %v4472 = vpop.f32.mrb[0].mxu0
    %v4473 = vadd.f32 0.0, %v4472
    %4474 = vmatprep.mubr.f32.mxu0 %v3940
    %4475 = vmatmul.mubr.f32.gmra.mrb[0].mxu0 %v3831
    %v4476 = vpop.f32.mrb[0].mxu0
    %v4477 = vadd.f32 0.0, %v4476
    %v4478 = vpop.f32.mrb[0].mxu0
    %v4479 = vadd.f32 0.0, %v4478
    %4480 = vmatprep.mubr.f32.mxu0 %v3943
    %4481 = vmatmul.mubr.f32.gmra.mrb[0].mxu0 %v3841
    %v4482 = vpop.f32.mrb[0].mxu0
    %v4483 = vadd.f32 0.0, %v4482
    %v4484 = vpop.f32.mrb[0].mxu0
    %v4485 = vadd.f32 0.0, %v4484
    %4486 = vmatprep.mubr.f32.mxu0 %v3946
    %4487 = vmatmul.mubr.f32.gmra.mrb[0].mxu0 %v3843
    %v4488 = vpop.f32.mrb[0].mxu0
    %v4489 = vadd.f32 0.0, %v4488
    %v4490 = vpop.f32.mrb[0].mxu0
    %v4491 = vadd.f32 0.0, %v4490
    %4492 = vmatprep.mubr.f32.mxu0 %v3949
    %4493 = vmatmul.mubr.f32.gmra.mrb[0].mxu0 %v3849
    %v4494 = vpop.f32.mrb[0].mxu0
    %v4495 = vadd.f32 0.0, %v4494
    %v4496 = vpop.f32.mrb[0].mxu0
    %v4497 = vadd.f32 0.0, %v4496
    %4498 = vmatprep.mubr.f32.mxu0 %v3952
    %4499 = vmatmul.mubr.f32.gmra.mrb[0].mxu0 %v3851
    %v4500 = vpop.f32.mrb[0].mxu0
    %v4501 = vadd.f32 0.0, %v4500
    %v4502 = vpop.f32.mrb[0].mxu0
    %v4503 = vadd.f32 0.0, %v4502
    %4504 = vmatprep.mubr.f32.mxu0 %v3955
    %4505 = vmatmul.mubr.f32.gmra.mrb[0].mxu0 %v3857
    %v4506 = vpop.f32.mrb[0].mxu0
    %v4507 = vadd.f32 0.0, %v4506
    %v4508 = vpop.f32.mrb[0].mxu0
    %v4509 = vadd.f32 0.0, %v4508
    %4510 = vmatprep.mubr.f32.mxu0 %v3958
    %4511 = vmatmul.mubr.f32.gmra.mrb[0].mxu0 %v3859
    %v4512 = vpop.f32.mrb[0].mxu0
    %v4513 = vadd.f32 0.0, %v4512
    %v4514 = vpop.f32.mrb[0].mxu0
    %v4515 = vadd.f32 0.0, %v4514
    %4516 = vdwg.mxu0
    %v4518 = vlaneseq
    %v4519 = vshrl.u32 %v4518, 7
    %v4520 = vsub.s32 0, %v4519
    %v4521 = vrot.slane %v3861, %v4520
    %v4522 = vlaneseq
    %v4523 = vshrl.u32 %v4522, 7
    %v4524 = vsub.s32 1, %v4523
    %v4525 = vrot.slane %v3861, %v4524
    %v4528 = vadd.f32 %v4521, %v4233
    %v4529 = vadd.f32 %v4525, %v4235
    %v4530 = vadd.f32 %v4521, %v4239
    %v4531 = vadd.f32 %v4525, %v4241
    %v4532 = vmax.f32 %v4528, 0.0
    %v4533 = vmax.f32 %v4529, 0.0
    %v4534 = vmax.f32 %v4530, 0.0
    %v4535 = vmax.f32 %v4531, 0.0
    %v4536 = vadd.f32 %v4521, %v4027
    %v4537 = vadd.f32 %v4525, %v4029
    %v4538 = vadd.f32 %v4521, %v4033
    %v4539 = vadd.f32 %v4525, %v4035
    %v4540 = vadd.f32 %v4536, %v4447
    %v4541 = vadd.f32 %v4537, %v4449
    %v4542 = vadd.f32 %v4538, %v4453
    %v4543 = vadd.f32 %v4539, %v4455
    %v4544 = vmax.f32 %v4540, 0.0
    %v4545 = vmax.f32 %v4541, 0.0
    %v4546 = vmax.f32 %v4542, 0.0
    %v4547 = vmax.f32 %v4543, 0.0
    %v4548 = vadd.f32 %v4521, %v4245
    %v4549 = vadd.f32 %v4525, %v4247
    %v4550 = vadd.f32 %v4521, %v4251
    %v4551 = vadd.f32 %v4525, %v4253
    %v4552 = vmax.f32 %v4548, 0.0
    %v4553 = vmax.f32 %v4549, 0.0
    %v4554 = vmax.f32 %v4550, 0.0
    %v4555 = vmax.f32 %v4551, 0.0
    %v4556 = vadd.f32 %v4521, %v4039
    %v4557 = vadd.f32 %v4525, %v4041
    %v4558 = vadd.f32 %v4521, %v4045
    %v4559 = vadd.f32 %v4525, %v4047
    %v4560 = vadd.f32 %v4556, %v4459
    %v4561 = vadd.f32 %v4557, %v4461
    %v4562 = vadd.f32 %v4558, %v4465
    %v4563 = vadd.f32 %v4559, %v4467
    %v4564 = vmax.f32 %v4560, 0.0
    %v4565 = vmax.f32 %v4561, 0.0
    %v4566 = vmax.f32 %v4562, 0.0
    %v4567 = vmax.f32 %v4563, 0.0
    %v4568 = vadd.f32 %v4521, %v4257
    %v4569 = vadd.f32 %v4525, %v4259
    %v4570 = vadd.f32 %v4521, %v4263
    %v4571 = vadd.f32 %v4525, %v4265
    %v4572 = vmax.f32 %v4568, 0.0
    %v4573 = vmax.f32 %v4569, 0.0
    %v4574 = vmax.f32 %v4570, 0.0
    %v4575 = vmax.f32 %v4571, 0.0
    %v4576 = vadd.f32 %v4521, %v4051
    %v4577 = vadd.f32 %v4525, %v4053
    %v4578 = vadd.f32 %v4521, %v4057
    %v4579 = vadd.f32 %v4525, %v4059
    %v4580 = vadd.f32 %v4576, %v4471
    %v4581 = vadd.f32 %v4577, %v4473
    %v4582 = vadd.f32 %v4578, %v4477
    %v4583 = vadd.f32 %v4579, %v4479
    %v4584 = vmax.f32 %v4580, 0.0
    %v4585 = vmax.f32 %v4581, 0.0
    %v4586 = vmax.f32 %v4582, 0.0
    %v4587 = vmax.f32 %v4583, 0.0
    %v4588 = vadd.f32 %v4521, %v4269
    %v4589 = vadd.f32 %v4525, %v4271
    %v4590 = vadd.f32 %v4521, %v4275
    %v4591 = vadd.f32 %v4525, %v4277
    %v4592 = vmax.f32 %v4588, 0.0
    %v4593 = vmax.f32 %v4589, 0.0
    %v4594 = vmax.f32 %v4590, 0.0
    %v4595 = vmax.f32 %v4591, 0.0
    %v4596 = vadd.f32 %v4521, %v4063
    %v4597 = vadd.f32 %v4525, %v4065
    %v4598 = vadd.f32 %v4521, %v4069
    %v4599 = vadd.f32 %v4525, %v4071
    %v4600 = vadd.f32 %v4596, %v4483
    %v4601 = vadd.f32 %v4597, %v4485
    %v4602 = vadd.f32 %v4598, %v4489
    %v4603 = vadd.f32 %v4599, %v4491
    %v4604 = vmax.f32 %v4600, 0.0
    %v4605 = vmax.f32 %v4601, 0.0
    %v4606 = vmax.f32 %v4602, 0.0
    %v4607 = vmax.f32 %v4603, 0.0
    %v4608 = vadd.f32 %v4521, %v4281
    %v4609 = vadd.f32 %v4525, %v4283
    %v4610 = vadd.f32 %v4521, %v4287
    %v4611 = vadd.f32 %v4525, %v4289
    %v4612 = vmax.f32 %v4608, 0.0
    %v4613 = vmax.f32 %v4609, 0.0
    %v4614 = vmax.f32 %v4610, 0.0
    %v4615 = vmax.f32 %v4611, 0.0
    %v4616 = vadd.f32 %v4521, %v4075
    %v4617 = vadd.f32 %v4525, %v4077
    %v4618 = vadd.f32 %v4521, %v4081
    %v4619 = vadd.f32 %v4525, %v4083
    %v4620 = vadd.f32 %v4616, %v4495
    %v4621 = vadd.f32 %v4617, %v4497
    %v4622 = vadd.f32 %v4618, %v4501
    %v4623 = vadd.f32 %v4619, %v4503
    %v4624 = vmax.f32 %v4620, 0.0
    %v4625 = vmax.f32 %v4621, 0.0
    %v4626 = vmax.f32 %v4622, 0.0
    %v4627 = vmax.f32 %v4623, 0.0
    %v4628 = vadd.f32 %v4521, %v4293
    %v4629 = vadd.f32 %v4525, %v4295
    %v4630 = vadd.f32 %v4521, %v4299
    %v4631 = vadd.f32 %v4525, %v4301
    %v4632 = vmax.f32 %v4628, 0.0
    %v4633 = vmax.f32 %v4629, 0.0
    %v4634 = vmax.f32 %v4630, 0.0
    %v4635 = vmax.f32 %v4631, 0.0
    %v4636 = vadd.f32 %v4521, %v4087
    %v4637 = vadd.f32 %v4525, %v4089
    %v4638 = vadd.f32 %v4521, %v4093
    %v4639 = vadd.f32 %v4525, %v4095
    %v4640 = vadd.f32 %v4636, %v4507
    %v4641 = vadd.f32 %v4637, %v4509
    %v4642 = vadd.f32 %v4638, %v4513
    %v4643 = vadd.f32 %v4639, %v4515
    %v4644 = vmax.f32 %v4640, 0.0
    %v4645 = vmax.f32 %v4641, 0.0
    %v4646 = vmax.f32 %v4642, 0.0
    %v4647 = vmax.f32 %v4643, 0.0
    %v4648 = vadd.f32 %v4521, %v4305
    %v4649 = vadd.f32 %v4525, %v4307
    %v4650 = vadd.f32 %v4521, %v4311
    %v4651 = vadd.f32 %v4525, %v4313
    %v4652 = vmax.f32 %v4648, 0.0
    %v4653 = vmax.f32 %v4649, 0.0
    %v4654 = vmax.f32 %v4650, 0.0
    %v4655 = vmax.f32 %v4651, 0.0
    %v4656 = vadd.f32 %v4521, %v4099
    %v4657 = vadd.f32 %v4525, %v4101
    %v4658 = vadd.f32 %v4521, %v4105
    %v4659 = vadd.f32 %v4525, %v4107
    %v4660 = vmax.f32 %v4656, 0.0
    %v4661 = vmax.f32 %v4657, 0.0
    %v4662 = vmax.f32 %v4658, 0.0
    %v4663 = vmax.f32 %v4659, 0.0
    %v4664 = vld [vmem:[%s16] sm:$0x1]
    %v4665 = vld [vmem:[%s15] sm:$0xff]
    %v4666 = vld [vmem:[%s15 + $0x8] sm:$0xff]
    %v4667 = vld [vmem:[%s15 + $0x10] sm:$0xff]
    %v4668 = vld [vmem:[%s15 + $0x18] sm:$0xff]
    %v4669 = vld [vmem:[%s15 + $0x20] sm:$0xff]
    %v4670 = vld [vmem:[%s15 + $0x28] sm:$0xff]
    %v4671 = vld [vmem:[%s15 + $0x30] sm:$0xff]
    %v4672 = vld [vmem:[%s15 + $0x38] sm:$0xff]
    %v4673 = vld [vmem:[%s15 + $0x40] sm:$0xff]
    %v4674 = vld [vmem:[%s15 + $0x48] sm:$0xff]
    %v4675 = vld [vmem:[%s15 + $0x50] sm:$0xff]
    %v4676 = vld [vmem:[%s15 + $0x58] sm:$0xff]
    %v4677 = vld [vmem:[%s15 + $0x60] sm:$0xff]
    %v4678 = vld [vmem:[%s15 + $0x68] sm:$0xff]
    %v4679 = vld [vmem:[%s15 + $0x70] sm:$0xff]
    %v4680 = vld [vmem:[%s15 + $0x78] sm:$0xff]
    %v4681 = vld [vmem:[%s15 + $0x80] sm:$0xff]
    %v4682 = vld [vmem:[%s15 + $0x88] sm:$0xff]
    %v4683 = vld [vmem:[%s15 + $0x90] sm:$0xff]
    %v4684 = vld [vmem:[%s15 + $0x98] sm:$0xff]
    %v4685 = vld [vmem:[%s15 + $0xa0] sm:$0xff]
    %v4686 = vld [vmem:[%s15 + $0xa8] sm:$0xff]
    %v4687 = vld [vmem:[%s15 + $0xb0] sm:$0xff]
    %v4688 = vld [vmem:[%s15 + $0xb8] sm:$0xff]
    %v4689 = vld [vmem:[%s15 + $0xc0] sm:$0xff]
    %v4690 = vld [vmem:[%s15 + $0xc8] sm:$0xff]
    %v4691 = vld [vmem:[%s15 + $0xd0] sm:$0xff]
    %v4692 = vld [vmem:[%s15 + $0xd8] sm:$0xff]
    %v4694 = vsel %vm1332, %v4533, 0
    %v4697 = vsel %vm1332, %v4535, 0
    %v4700 = vsel %vm1332, %v4545, 0
    %v4703 = vsel %vm1332, %v4547, 0
    %v4706 = vsel %vm1332, %v4553, 0
    %v4709 = vsel %vm1332, %v4555, 0
    %v4712 = vsel %vm1332, %v4565, 0
    %v4715 = vsel %vm1332, %v4567, 0
    %v4718 = vsel %vm1332, %v4573, 0
    %v4721 = vsel %vm1332, %v4575, 0
    %v4724 = vsel %vm1332, %v4585, 0
    %v4727 = vsel %vm1332, %v4587, 0
    %v4730 = vsel %vm1332, %v4593, 0
    %v4733 = vsel %vm1332, %v4595, 0
    %v4736 = vsel %vm1332, %v4605, 0
    %v4739 = vsel %vm1332, %v4607, 0
    %v4742 = vsel %vm1332, %v4613, 0
    %v4745 = vsel %vm1332, %v4615, 0
    %v4748 = vsel %vm1332, %v4625, 0
    %v4751 = vsel %vm1332, %v4627, 0
    %v4754 = vsel %vm1332, %v4633, 0
    %v4757 = vsel %vm1332, %v4635, 0
    %v4760 = vsel %vm1332, %v4645, 0
    %v4763 = vsel %vm1332, %v4647, 0
    %v4766 = vsel %vm1332, %v4653, 0
    %v4769 = vsel %vm1332, %v4655, 0
    %v4772 = vsel %vm1332, %v4661, 0
    %v4775 = vsel %vm1332, %v4663, 0
    %4777 = vmatprep.subr.mxu0 0.0
    %4778 = vmatpush1.msra.mxu0 %v4665
    %4779 = vmatprep.subr.mxu0 0.0
    %4780 = vmatpush1.msra.mxu0 %v4666
    %4781 = vmatprep.subr.mxu0 0.0
    %4782 = vmatpush1.msra.mxu0 %v4667
    %4783 = vmatprep.subr.mxu0 0.0
    %4784 = vmatpush1.msra.mxu0 %v4668
    %4785 = vmatprep.subr.mxu0 0.0
    %4786 = vmatpush1.msra.mxu0 %v4669
    %4787 = vmatprep.subr.mxu0 0.0
    %4788 = vmatpush1.msra.mxu0 %v4670
    %4789 = vmatprep.subr.mxu0 0.0
    %4790 = vmatpush1.msra.mxu0 %v4671
    %4791 = vmatprep.subr.mxu0 0.0
    %4792 = vmatpush1.msra.mxu0 %v4672
    %4793 = vmatprep.subr.mxu0 0.0
    %4794 = vmatpush1.msra.mxu0 %v4673
    %4795 = vmatprep.subr.mxu0 0.0
    %4796 = vmatpush1.msra.mxu0 %v4674
    %4797 = vmatprep.subr.mxu0 0.0
    %4798 = vmatpush1.msra.mxu0 %v4675
    %4799 = vmatprep.subr.mxu0 0.0
    %4800 = vmatpush1.msra.mxu0 %v4676
    %4801 = vmatprep.subr.mxu0 0.0
    %4802 = vmatpush1.msra.mxu0 %v4677
    %4803 = vmatprep.subr.mxu0 0.0
    %4804 = vmatpush1.msra.mxu0 %v4678
    %4805 = vmatprep.subr.mxu0 0.0
    %4806 = vmatpush1.msra.mxu0 %v4679
    %4807 = vmatprep.subr.mxu0 0.0
    %4808 = vmatpush1.msra.mxu0 %v4680
    %4809 = vmatprep.subr.mxu0 0.0
    %4810 = vmatpush1.msra.mxu0 %v4681
    %4811 = vmatprep.subr.mxu0 0.0
    %4812 = vmatpush1.msra.mxu0 %v4682
    %4813 = vmatprep.subr.mxu0 0.0
    %4814 = vmatpush1.msra.mxu0 %v4683
    %4815 = vmatprep.subr.mxu0 0.0
    %4816 = vmatpush1.msra.mxu0 %v4684
    %4817 = vmatprep.subr.mxu0 0.0
    %4818 = vmatpush1.msra.mxu0 %v4685
    %4819 = vmatprep.subr.mxu0 0.0
    %4820 = vmatpush1.msra.mxu0 %v4686
    %4821 = vmatprep.subr.mxu0 0.0
    %4822 = vmatpush1.msra.mxu0 %v4687
    %4823 = vmatprep.subr.mxu0 0.0
    %4824 = vmatpush1.msra.mxu0 %v4688
    %4825 = vmatprep.subr.mxu0 0.0
    %4826 = vmatpush1.msra.mxu0 %v4689
    %4827 = vmatprep.subr.mxu0 0.0
    %4828 = vmatpush1.msra.mxu0 %v4690
    %4829 = vmatprep.subr.mxu0 0.0
    %4830 = vmatpush1.msra.mxu0 %v4691
    %4831 = vmatprep.subr.mxu0 0.0
    %4832 = vmatpush1.msra.mxu0 %v4692
    %4833 = vmatprep.subr.mxu0 0.0
    %4834 = vmatpush1.msra.mxu0 0.0
    %4835 = vmatprep.subr.mxu0 0.0
    %4836 = vmatpush1.msra.mxu0 0.0
    %4837 = vmatprep.subr.mxu0 0.0
    %4838 = vmatpush1.msra.mxu0 0.0
    %4839 = vmatprep.subr.mxu0 0.0
    %4840 = vmatpush1.msra.mxu0 0.0
    %4841 = vmatprep.mubr.f32.mxu0 %v4694
    %4842 = vmatmul.mubr.f32.gmra.mrb[0].mxu0 %v4532
    %v4843 = vpop.f32.mrb[0].mxu0
    %v4844 = vadd.f32 0.0, %v4843
    %v4845 = vpop.f32.mrb[0].mxu0
    %4846 = vmatprep.mubr.f32.mxu0 %v4697
    %4847 = vmatmul.mubr.f32.gmra.mrb[0].mxu0 %v4534
    %v4848 = vpop.f32.mrb[0].mxu0
    %v4849 = vadd.f32 0.0, %v4848
    %v4850 = vpop.f32.mrb[0].mxu0
    %4851 = vmatprep.mubr.f32.mxu0 %v4700
    %4852 = vmatmul.mubr.f32.gmra.mrb[0].mxu0 %v4544
    %v4853 = vpop.f32.mrb[0].mxu0
    %v4854 = vadd.f32 0.0, %v4853
    %v4855 = vpop.f32.mrb[0].mxu0
    %4856 = vmatprep.mubr.f32.mxu0 %v4703
    %4857 = vmatmul.mubr.f32.gmra.mrb[0].mxu0 %v4546
    %v4858 = vpop.f32.mrb[0].mxu0
    %v4859 = vadd.f32 0.0, %v4858
    %v4860 = vpop.f32.mrb[0].mxu0
    %4861 = vmatprep.mubr.f32.mxu0 %v4706
    %4862 = vmatmul.mubr.f32.gmra.mrb[0].mxu0 %v4552
    %v4863 = vpop.f32.mrb[0].mxu0
    %v4864 = vadd.f32 0.0, %v4863
    %v4865 = vpop.f32.mrb[0].mxu0
    %4866 = vmatprep.mubr.f32.mxu0 %v4709
    %4867 = vmatmul.mubr.f32.gmra.mrb[0].mxu0 %v4554
    %v4868 = vpop.f32.mrb[0].mxu0
    %v4869 = vadd.f32 0.0, %v4868
    %v4870 = vpop.f32.mrb[0].mxu0
    %4871 = vmatprep.mubr.f32.mxu0 %v4712
    %4872 = vmatmul.mubr.f32.gmra.mrb[0].mxu0 %v4564
    %v4873 = vpop.f32.mrb[0].mxu0
    %v4874 = vadd.f32 0.0, %v4873
    %v4875 = vpop.f32.mrb[0].mxu0
    %4876 = vmatprep.mubr.f32.mxu0 %v4715
    %4877 = vmatmul.mubr.f32.gmra.mrb[0].mxu0 %v4566
    %v4878 = vpop.f32.mrb[0].mxu0
    %v4879 = vadd.f32 0.0, %v4878
    %v4880 = vpop.f32.mrb[0].mxu0
    %4881 = vmatprep.mubr.f32.mxu0 %v4718
    %4882 = vmatmul.mubr.f32.gmra.mrb[0].mxu0 %v4572
    %v4883 = vpop.f32.mrb[0].mxu0
    %v4884 = vadd.f32 0.0, %v4883
    %v4885 = vpop.f32.mrb[0].mxu0
    %4886 = vmatprep.mubr.f32.mxu0 %v4721
    %4887 = vmatmul.mubr.f32.gmra.mrb[0].mxu0 %v4574
    %v4888 = vpop.f32.mrb[0].mxu0
    %v4889 = vadd.f32 0.0, %v4888
    %v4890 = vpop.f32.mrb[0].mxu0
    %4891 = vmatprep.mubr.f32.mxu0 %v4724
    %4892 = vmatmul.mubr.f32.gmra.mrb[0].mxu0 %v4584
    %v4893 = vpop.f32.mrb[0].mxu0
    %v4894 = vadd.f32 0.0, %v4893
    %v4895 = vpop.f32.mrb[0].mxu0
    %4896 = vmatprep.mubr.f32.mxu0 %v4727
    %4897 = vmatmul.mubr.f32.gmra.mrb[0].mxu0 %v4586
    %v4898 = vpop.f32.mrb[0].mxu0
    %v4899 = vadd.f32 0.0, %v4898
    %v4900 = vpop.f32.mrb[0].mxu0
    %4901 = vmatprep.mubr.f32.mxu0 %v4730
    %4902 = vmatmul.mubr.f32.gmra.mrb[0].mxu0 %v4592
    %v4903 = vpop.f32.mrb[0].mxu0
    %v4904 = vadd.f32 0.0, %v4903
    %v4905 = vpop.f32.mrb[0].mxu0
    %4906 = vmatprep.mubr.f32.mxu0 %v4733
    %4907 = vmatmul.mubr.f32.gmra.mrb[0].mxu0 %v4594
    %v4908 = vpop.f32.mrb[0].mxu0
    %v4909 = vadd.f32 0.0, %v4908
    %v4910 = vpop.f32.mrb[0].mxu0
    %4911 = vmatprep.mubr.f32.mxu0 %v4736
    %4912 = vmatmul.mubr.f32.gmra.mrb[0].mxu0 %v4604
    %v4913 = vpop.f32.mrb[0].mxu0
    %v4914 = vadd.f32 0.0, %v4913
    %v4915 = vpop.f32.mrb[0].mxu0
    %4916 = vmatprep.mubr.f32.mxu0 %v4739
    %4917 = vmatmul.mubr.f32.gmra.mrb[0].mxu0 %v4606
    %v4918 = vpop.f32.mrb[0].mxu0
    %v4919 = vadd.f32 0.0, %v4918
    %v4920 = vpop.f32.mrb[0].mxu0
    %4921 = vmatprep.mubr.f32.mxu0 %v4742
    %4922 = vmatmul.mubr.f32.gmra.mrb[0].mxu0 %v4612
    %v4923 = vpop.f32.mrb[0].mxu0
    %v4924 = vadd.f32 0.0, %v4923
    %v4925 = vpop.f32.mrb[0].mxu0
    %4926 = vmatprep.mubr.f32.mxu0 %v4745
    %4927 = vmatmul.mubr.f32.gmra.mrb[0].mxu0 %v4614
    %v4928 = vpop.f32.mrb[0].mxu0
    %v4929 = vadd.f32 0.0, %v4928
    %v4930 = vpop.f32.mrb[0].mxu0
    %4931 = vmatprep.mubr.f32.mxu0 %v4748
    %4932 = vmatmul.mubr.f32.gmra.mrb[0].mxu0 %v4624
    %v4933 = vpop.f32.mrb[0].mxu0
    %v4934 = vadd.f32 0.0, %v4933
    %v4935 = vpop.f32.mrb[0].mxu0
    %4936 = vmatprep.mubr.f32.mxu0 %v4751
    %4937 = vmatmul.mubr.f32.gmra.mrb[0].mxu0 %v4626
    %v4938 = vpop.f32.mrb[0].mxu0
    %v4939 = vadd.f32 0.0, %v4938
    %v4940 = vpop.f32.mrb[0].mxu0
    %4941 = vmatprep.mubr.f32.mxu0 %v4754
    %4942 = vmatmul.mubr.f32.gmra.mrb[0].mxu0 %v4632
    %v4943 = vpop.f32.mrb[0].mxu0
    %v4944 = vadd.f32 0.0, %v4943
    %v4945 = vpop.f32.mrb[0].mxu0
    %4946 = vmatprep.mubr.f32.mxu0 %v4757
    %4947 = vmatmul.mubr.f32.gmra.mrb[0].mxu0 %v4634
    %v4948 = vpop.f32.mrb[0].mxu0
    %v4949 = vadd.f32 0.0, %v4948
    %v4950 = vpop.f32.mrb[0].mxu0
    %4951 = vmatprep.mubr.f32.mxu0 %v4760
    %4952 = vmatmul.mubr.f32.gmra.mrb[0].mxu0 %v4644
    %v4953 = vpop.f32.mrb[0].mxu0
    %v4954 = vadd.f32 0.0, %v4953
    %v4955 = vpop.f32.mrb[0].mxu0
    %4956 = vmatprep.mubr.f32.mxu0 %v4763
    %4957 = vmatmul.mubr.f32.gmra.mrb[0].mxu0 %v4646
    %v4958 = vpop.f32.mrb[0].mxu0
    %v4959 = vadd.f32 0.0, %v4958
    %v4960 = vpop.f32.mrb[0].mxu0
    %4961 = vmatprep.mubr.f32.mxu0 %v4766
    %4962 = vmatmul.mubr.f32.gmra.mrb[0].mxu0 %v4652
    %v4963 = vpop.f32.mrb[0].mxu0
    %v4964 = vadd.f32 0.0, %v4963
    %v4965 = vpop.f32.mrb[0].mxu0
    %4966 = vmatprep.mubr.f32.mxu0 %v4769
    %4967 = vmatmul.mubr.f32.gmra.mrb[0].mxu0 %v4654
    %v4968 = vpop.f32.mrb[0].mxu0
    %v4969 = vadd.f32 0.0, %v4968
    %v4970 = vpop.f32.mrb[0].mxu0
    %4971 = vmatprep.mubr.f32.mxu0 %v4772
    %4972 = vmatmul.mubr.f32.gmra.mrb[0].mxu0 %v4660
    %v4973 = vpop.f32.mrb[0].mxu0
    %v4974 = vadd.f32 0.0, %v4973
    %v4975 = vpop.f32.mrb[0].mxu0
    %4976 = vmatprep.mubr.f32.mxu0 %v4775
    %4977 = vmatmul.mubr.f32.gmra.mrb[0].mxu0 %v4662
    %v4978 = vpop.f32.mrb[0].mxu0
    %v4979 = vadd.f32 0.0, %v4978
    %v4980 = vpop.f32.mrb[0].mxu0
    %4981 = vdwg.mxu0
    %s4982 = scalar_lea.vmem %s15, 224
    %v4983 = vld [vmem:[%s4982] sm:$0xff]
    %v4984 = vld [vmem:[%s4982 + $0x8] sm:$0xff]
    %v4985 = vld [vmem:[%s4982 + $0x10] sm:$0xff]
    %v4986 = vld [vmem:[%s4982 + $0x18] sm:$0xff]
    %v4987 = vld [vmem:[%s4982 + $0x20] sm:$0xff]
    %v4988 = vld [vmem:[%s4982 + $0x28] sm:$0xff]
    %v4989 = vld [vmem:[%s4982 + $0x30] sm:$0xff]
    %v4990 = vld [vmem:[%s4982 + $0x38] sm:$0xff]
    %v4991 = vld [vmem:[%s4982 + $0x40] sm:$0xff]
    %v4992 = vld [vmem:[%s4982 + $0x48] sm:$0xff]
    %v4993 = vld [vmem:[%s4982 + $0x50] sm:$0xff]
    %v4994 = vld [vmem:[%s4982 + $0x58] sm:$0xff]
    %v4995 = vld [vmem:[%s4982 + $0x60] sm:$0xff]
    %v4996 = vld [vmem:[%s4982 + $0x68] sm:$0xff]
    %v4997 = vld [vmem:[%s4982 + $0x70] sm:$0xff]
    %v4998 = vld [vmem:[%s4982 + $0x78] sm:$0xff]
    %v4999 = vld [vmem:[%s4982 + $0x80] sm:$0xff]
    %v5000 = vld [vmem:[%s4982 + $0x88] sm:$0xff]
    %v5001 = vld [vmem:[%s4982 + $0x90] sm:$0xff]
    %v5002 = vld [vmem:[%s4982 + $0x98] sm:$0xff]
    %v5003 = vld [vmem:[%s4982 + $0xa0] sm:$0xff]
    %v5004 = vld [vmem:[%s4982 + $0xa8] sm:$0xff]
    %v5005 = vld [vmem:[%s4982 + $0xb0] sm:$0xff]
    %v5006 = vld [vmem:[%s4982 + $0xb8] sm:$0xff]
    %v5007 = vld [vmem:[%s4982 + $0xc0] sm:$0xff]
    %v5008 = vld [vmem:[%s4982 + $0xc8] sm:$0xff]
    %v5009 = vld [vmem:[%s4982 + $0xd0] sm:$0xff]
    %v5010 = vld [vmem:[%s4982 + $0xd8] sm:$0xff]
    %5011 = vmatprep.subr.mxu0 0.0
    %5012 = vmatpush1.msra.mxu0 %v4983
    %5013 = vmatprep.subr.mxu0 0.0
    %5014 = vmatpush1.msra.mxu0 %v4984
    %5015 = vmatprep.subr.mxu0 0.0
    %5016 = vmatpush1.msra.mxu0 %v4985
    %5017 = vmatprep.subr.mxu0 0.0
    %5018 = vmatpush1.msra.mxu0 %v4986
    %5019 = vmatprep.subr.mxu0 0.0
    %5020 = vmatpush1.msra.mxu0 %v4987
    %5021 = vmatprep.subr.mxu0 0.0
    %5022 = vmatpush1.msra.mxu0 %v4988
    %5023 = vmatprep.subr.mxu0 0.0
    %5024 = vmatpush1.msra.mxu0 %v4989
    %5025 = vmatprep.subr.mxu0 0.0
    %5026 = vmatpush1.msra.mxu0 %v4990
    %5027 = vmatprep.subr.mxu0 0.0
    %5028 = vmatpush1.msra.mxu0 %v4991
    %5029 = vmatprep.subr.mxu0 0.0
    %5030 = vmatpush1.msra.mxu0 %v4992
    %5031 = vmatprep.subr.mxu0 0.0
    %5032 = vmatpush1.msra.mxu0 %v4993
    %5033 = vmatprep.subr.mxu0 0.0
    %5034 = vmatpush1.msra.mxu0 %v4994
    %5035 = vmatprep.subr.mxu0 0.0
    %5036 = vmatpush1.msra.mxu0 %v4995
    %5037 = vmatprep.subr.mxu0 0.0
    %5038 = vmatpush1.msra.mxu0 %v4996
    %5039 = vmatprep.subr.mxu0 0.0
    %5040 = vmatpush1.msra.mxu0 %v4997
    %5041 = vmatprep.subr.mxu0 0.0
    %5042 = vmatpush1.msra.mxu0 %v4998
    %5043 = vmatprep.subr.mxu0 0.0
    %5044 = vmatpush1.msra.mxu0 %v4999
    %5045 = vmatprep.subr.mxu0 0.0
    %5046 = vmatpush1.msra.mxu0 %v5000
    %5047 = vmatprep.subr.mxu0 0.0
    %5048 = vmatpush1.msra.mxu0 %v5001
    %5049 = vmatprep.subr.mxu0 0.0
    %5050 = vmatpush1.msra.mxu0 %v5002
    %5051 = vmatprep.subr.mxu0 0.0
    %5052 = vmatpush1.msra.mxu0 %v5003
    %5053 = vmatprep.subr.mxu0 0.0
    %5054 = vmatpush1.msra.mxu0 %v5004
    %5055 = vmatprep.subr.mxu0 0.0
    %5056 = vmatpush1.msra.mxu0 %v5005
    %5057 = vmatprep.subr.mxu0 0.0
    %5058 = vmatpush1.msra.mxu0 %v5006
    %5059 = vmatprep.subr.mxu0 0.0
    %5060 = vmatpush1.msra.mxu0 %v5007
    %5061 = vmatprep.subr.mxu0 0.0
    %5062 = vmatpush1.msra.mxu0 %v5008
    %5063 = vmatprep.subr.mxu0 0.0
    %5064 = vmatpush1.msra.mxu0 %v5009
    %5065 = vmatprep.subr.mxu0 0.0
    %5066 = vmatpush1.msra.mxu0 %v5010
    %5067 = vmatprep.subr.mxu0 0.0
    %5068 = vmatpush1.msra.mxu0 0.0
    %5069 = vmatprep.subr.mxu0 0.0
    %5070 = vmatpush1.msra.mxu0 0.0
    %5071 = vmatprep.subr.mxu0 0.0
    %5072 = vmatpush1.msra.mxu0 0.0
    %5073 = vmatprep.subr.mxu0 0.0
    %5074 = vmatpush1.msra.mxu0 0.0
    %5075 = vmatprep.mubr.f32.mxu0 %v4694
    %5076 = vmatmul.mubr.f32.gmra.mrb[0].mxu0 %v4532
    %v5077 = vpop.f32.mrb[0].mxu0
    %v5078 = vadd.f32 0.0, %v5077
    %v5079 = vpop.f32.mrb[0].mxu0
    %5080 = vmatprep.mubr.f32.mxu0 %v4697
    %5081 = vmatmul.mubr.f32.gmra.mrb[0].mxu0 %v4534
    %v5082 = vpop.f32.mrb[0].mxu0
    %v5083 = vadd.f32 0.0, %v5082
    %v5084 = vpop.f32.mrb[0].mxu0
    %5085 = vmatprep.mubr.f32.mxu0 %v4700
    %5086 = vmatmul.mubr.f32.gmra.mrb[0].mxu0 %v4544
    %v5087 = vpop.f32.mrb[0].mxu0
    %v5088 = vadd.f32 0.0, %v5087
    %v5089 = vpop.f32.mrb[0].mxu0
    %5090 = vmatprep.mubr.f32.mxu0 %v4703
    %5091 = vmatmul.mubr.f32.gmra.mrb[0].mxu0 %v4546
    %v5092 = vpop.f32.mrb[0].mxu0
    %v5093 = vadd.f32 0.0, %v5092
    %v5094 = vpop.f32.mrb[0].mxu0
    %5095 = vmatprep.mubr.f32.mxu0 %v4706
    %5096 = vmatmul.mubr.f32.gmra.mrb[0].mxu0 %v4552
    %v5097 = vpop.f32.mrb[0].mxu0
    %v5098 = vadd.f32 0.0, %v5097
    %v5099 = vpop.f32.mrb[0].mxu0
    %5100 = vmatprep.mubr.f32.mxu0 %v4709
    %5101 = vmatmul.mubr.f32.gmra.mrb[0].mxu0 %v4554
    %v5102 = vpop.f32.mrb[0].mxu0
    %v5103 = vadd.f32 0.0, %v5102
    %v5104 = vpop.f32.mrb[0].mxu0
    %5105 = vmatprep.mubr.f32.mxu0 %v4712
    %5106 = vmatmul.mubr.f32.gmra.mrb[0].mxu0 %v4564
    %v5107 = vpop.f32.mrb[0].mxu0
    %v5108 = vadd.f32 0.0, %v5107
    %v5109 = vpop.f32.mrb[0].mxu0
    %5110 = vmatprep.mubr.f32.mxu0 %v4715
    %5111 = vmatmul.mubr.f32.gmra.mrb[0].mxu0 %v4566
    %v5112 = vpop.f32.mrb[0].mxu0
    %v5113 = vadd.f32 0.0, %v5112
    %v5114 = vpop.f32.mrb[0].mxu0
    %5115 = vmatprep.mubr.f32.mxu0 %v4718
    %5116 = vmatmul.mubr.f32.gmra.mrb[0].mxu0 %v4572
    %v5117 = vpop.f32.mrb[0].mxu0
    %v5118 = vadd.f32 0.0, %v5117
    %v5119 = vpop.f32.mrb[0].mxu0
    %5120 = vmatprep.mubr.f32.mxu0 %v4721
    %5121 = vmatmul.mubr.f32.gmra.mrb[0].mxu0 %v4574
    %v5122 = vpop.f32.mrb[0].mxu0
    %v5123 = vadd.f32 0.0, %v5122
    %v5124 = vpop.f32.mrb[0].mxu0
    %5125 = vmatprep.mubr.f32.mxu0 %v4724
    %5126 = vmatmul.mubr.f32.gmra.mrb[0].mxu0 %v4584
    %v5127 = vpop.f32.mrb[0].mxu0
    %v5128 = vadd.f32 0.0, %v5127
    %v5129 = vpop.f32.mrb[0].mxu0
    %5130 = vmatprep.mubr.f32.mxu0 %v4727
    %5131 = vmatmul.mubr.f32.gmra.mrb[0].mxu0 %v4586
    %v5132 = vpop.f32.mrb[0].mxu0
    %v5133 = vadd.f32 0.0, %v5132
    %v5134 = vpop.f32.mrb[0].mxu0
    %5135 = vmatprep.mubr.f32.mxu0 %v4730
    %5136 = vmatmul.mubr.f32.gmra.mrb[0].mxu0 %v4592
    %v5137 = vpop.f32.mrb[0].mxu0
    %v5138 = vadd.f32 0.0, %v5137
    %v5139 = vpop.f32.mrb[0].mxu0
    %5140 = vmatprep.mubr.f32.mxu0 %v4733
    %5141 = vmatmul.mubr.f32.gmra.mrb[0].mxu0 %v4594
    %v5142 = vpop.f32.mrb[0].mxu0
    %v5143 = vadd.f32 0.0, %v5142
    %v5144 = vpop.f32.mrb[0].mxu0
    %5145 = vmatprep.mubr.f32.mxu0 %v4736
    %5146 = vmatmul.mubr.f32.gmra.mrb[0].mxu0 %v4604
    %v5147 = vpop.f32.mrb[0].mxu0
    %v5148 = vadd.f32 0.0, %v5147
    %v5149 = vpop.f32.mrb[0].mxu0
    %5150 = vmatprep.mubr.f32.mxu0 %v4739
    %5151 = vmatmul.mubr.f32.gmra.mrb[0].mxu0 %v4606
    %v5152 = vpop.f32.mrb[0].mxu0
    %v5153 = vadd.f32 0.0, %v5152
    %v5154 = vpop.f32.mrb[0].mxu0
    %5155 = vmatprep.mubr.f32.mxu0 %v4742
    %5156 = vmatmul.mubr.f32.gmra.mrb[0].mxu0 %v4612
    %v5157 = vpop.f32.mrb[0].mxu0
    %v5158 = vadd.f32 0.0, %v5157
    %v5159 = vpop.f32.mrb[0].mxu0
    %5160 = vmatprep.mubr.f32.mxu0 %v4745
    %5161 = vmatmul.mubr.f32.gmra.mrb[0].mxu0 %v4614
    %v5162 = vpop.f32.mrb[0].mxu0
    %v5163 = vadd.f32 0.0, %v5162
    %v5164 = vpop.f32.mrb[0].mxu0
    %5165 = vmatprep.mubr.f32.mxu0 %v4748
    %5166 = vmatmul.mubr.f32.gmra.mrb[0].mxu0 %v4624
    %v5167 = vpop.f32.mrb[0].mxu0
    %v5168 = vadd.f32 0.0, %v5167
    %v5169 = vpop.f32.mrb[0].mxu0
    %5170 = vmatprep.mubr.f32.mxu0 %v4751
    %5171 = vmatmul.mubr.f32.gmra.mrb[0].mxu0 %v4626
    %v5172 = vpop.f32.mrb[0].mxu0
    %v5173 = vadd.f32 0.0, %v5172
    %v5174 = vpop.f32.mrb[0].mxu0
    %5175 = vmatprep.mubr.f32.mxu0 %v4754
    %5176 = vmatmul.mubr.f32.gmra.mrb[0].mxu0 %v4632
    %v5177 = vpop.f32.mrb[0].mxu0
    %v5178 = vadd.f32 0.0, %v5177
    %v5179 = vpop.f32.mrb[0].mxu0
    %5180 = vmatprep.mubr.f32.mxu0 %v4757
    %5181 = vmatmul.mubr.f32.gmra.mrb[0].mxu0 %v4634
    %v5182 = vpop.f32.mrb[0].mxu0
    %v5183 = vadd.f32 0.0, %v5182
    %v5184 = vpop.f32.mrb[0].mxu0
    %5185 = vmatprep.mubr.f32.mxu0 %v4760
    %5186 = vmatmul.mubr.f32.gmra.mrb[0].mxu0 %v4644
    %v5187 = vpop.f32.mrb[0].mxu0
    %v5188 = vadd.f32 0.0, %v5187
    %v5189 = vpop.f32.mrb[0].mxu0
    %5190 = vmatprep.mubr.f32.mxu0 %v4763
    %5191 = vmatmul.mubr.f32.gmra.mrb[0].mxu0 %v4646
    %v5192 = vpop.f32.mrb[0].mxu0
    %v5193 = vadd.f32 0.0, %v5192
    %v5194 = vpop.f32.mrb[0].mxu0
    %5195 = vmatprep.mubr.f32.mxu0 %v4766
    %5196 = vmatmul.mubr.f32.gmra.mrb[0].mxu0 %v4652
    %v5197 = vpop.f32.mrb[0].mxu0
    %v5198 = vadd.f32 0.0, %v5197
    %v5199 = vpop.f32.mrb[0].mxu0
    %5200 = vmatprep.mubr.f32.mxu0 %v4769
    %5201 = vmatmul.mubr.f32.gmra.mrb[0].mxu0 %v4654
    %v5202 = vpop.f32.mrb[0].mxu0
    %v5203 = vadd.f32 0.0, %v5202
    %v5204 = vpop.f32.mrb[0].mxu0
    %5205 = vmatprep.mubr.f32.mxu0 %v4772
    %5206 = vmatmul.mubr.f32.gmra.mrb[0].mxu0 %v4660
    %v5207 = vpop.f32.mrb[0].mxu0
    %v5208 = vadd.f32 0.0, %v5207
    %v5209 = vpop.f32.mrb[0].mxu0
    %5210 = vmatprep.mubr.f32.mxu0 %v4775
    %5211 = vmatmul.mubr.f32.gmra.mrb[0].mxu0 %v4662
    %v5212 = vpop.f32.mrb[0].mxu0
    %v5213 = vadd.f32 0.0, %v5212
    %v5214 = vpop.f32.mrb[0].mxu0
    %5215 = vdwg.mxu0
    %s5216 = scalar_lea.vmem %s15, 448
    %v5217 = vld [vmem:[%s5216] sm:$0xff]
    %v5218 = vld [vmem:[%s5216 + $0x8] sm:$0xff]
    %v5219 = vld [vmem:[%s5216 + $0x10] sm:$0xff]
    %v5220 = vld [vmem:[%s5216 + $0x18] sm:$0xff]
    %v5221 = vld [vmem:[%s5216 + $0x20] sm:$0xff]
    %v5222 = vld [vmem:[%s5216 + $0x28] sm:$0xff]
    %v5223 = vld [vmem:[%s5216 + $0x30] sm:$0xff]
    %v5224 = vld [vmem:[%s5216 + $0x38] sm:$0xff]
    %v5225 = vld [vmem:[%s5216 + $0x40] sm:$0xff]
    %v5226 = vld [vmem:[%s5216 + $0x48] sm:$0xff]
    %v5227 = vld [vmem:[%s5216 + $0x50] sm:$0xff]
    %v5228 = vld [vmem:[%s5216 + $0x58] sm:$0xff]
    %v5229 = vld [vmem:[%s5216 + $0x60] sm:$0xff]
    %v5230 = vld [vmem:[%s5216 + $0x68] sm:$0xff]
    %v5231 = vld [vmem:[%s5216 + $0x70] sm:$0xff]
    %v5232 = vld [vmem:[%s5216 + $0x78] sm:$0xff]
    %v5233 = vld [vmem:[%s5216 + $0x80] sm:$0xff]
    %v5234 = vld [vmem:[%s5216 + $0x88] sm:$0xff]
    %v5235 = vld [vmem:[%s5216 + $0x90] sm:$0xff]
    %v5236 = vld [vmem:[%s5216 + $0x98] sm:$0xff]
    %v5237 = vld [vmem:[%s5216 + $0xa0] sm:$0xff]
    %v5238 = vld [vmem:[%s5216 + $0xa8] sm:$0xff]
    %v5239 = vld [vmem:[%s5216 + $0xb0] sm:$0xff]
    %v5240 = vld [vmem:[%s5216 + $0xb8] sm:$0xff]
    %v5241 = vld [vmem:[%s5216 + $0xc0] sm:$0xff]
    %v5242 = vld [vmem:[%s5216 + $0xc8] sm:$0xff]
    %v5243 = vld [vmem:[%s5216 + $0xd0] sm:$0xff]
    %v5244 = vld [vmem:[%s5216 + $0xd8] sm:$0xff]
    %5245 = vmatprep.subr.mxu0 0.0
    %5246 = vmatpush1.msra.mxu0 %v5217
    %5247 = vmatprep.subr.mxu0 0.0
    %5248 = vmatpush1.msra.mxu0 %v5218
    %5249 = vmatprep.subr.mxu0 0.0
    %5250 = vmatpush1.msra.mxu0 %v5219
    %5251 = vmatprep.subr.mxu0 0.0
    %5252 = vmatpush1.msra.mxu0 %v5220
    %5253 = vmatprep.subr.mxu0 0.0
    %5254 = vmatpush1.msra.mxu0 %v5221
    %5255 = vmatprep.subr.mxu0 0.0
    %5256 = vmatpush1.msra.mxu0 %v5222
    %5257 = vmatprep.subr.mxu0 0.0
    %5258 = vmatpush1.msra.mxu0 %v5223
    %5259 = vmatprep.subr.mxu0 0.0
    %5260 = vmatpush1.msra.mxu0 %v5224
    %5261 = vmatprep.subr.mxu0 0.0
    %5262 = vmatpush1.msra.mxu0 %v5225
    %5263 = vmatprep.subr.mxu0 0.0
    %5264 = vmatpush1.msra.mxu0 %v5226
    %5265 = vmatprep.subr.mxu0 0.0
    %5266 = vmatpush1.msra.mxu0 %v5227
    %5267 = vmatprep.subr.mxu0 0.0
    %5268 = vmatpush1.msra.mxu0 %v5228
    %5269 = vmatprep.subr.mxu0 0.0
    %5270 = vmatpush1.msra.mxu0 %v5229
    %5271 = vmatprep.subr.mxu0 0.0
    %5272 = vmatpush1.msra.mxu0 %v5230
    %5273 = vmatprep.subr.mxu0 0.0
    %5274 = vmatpush1.msra.mxu0 %v5231
    %5275 = vmatprep.subr.mxu0 0.0
    %5276 = vmatpush1.msra.mxu0 %v5232
    %5277 = vmatprep.subr.mxu0 0.0
    %5278 = vmatpush1.msra.mxu0 %v5233
    %5279 = vmatprep.subr.mxu0 0.0
    %5280 = vmatpush1.msra.mxu0 %v5234
    %5281 = vmatprep.subr.mxu0 0.0
    %5282 = vmatpush1.msra.mxu0 %v5235
    %5283 = vmatprep.subr.mxu0 0.0
    %5284 = vmatpush1.msra.mxu0 %v5236
    %5285 = vmatprep.subr.mxu0 0.0
    %5286 = vmatpush1.msra.mxu0 %v5237
    %5287 = vmatprep.subr.mxu0 0.0
    %5288 = vmatpush1.msra.mxu0 %v5238
    %5289 = vmatprep.subr.mxu0 0.0
    %5290 = vmatpush1.msra.mxu0 %v5239
    %5291 = vmatprep.subr.mxu0 0.0
    %5292 = vmatpush1.msra.mxu0 %v5240
    %5293 = vmatprep.subr.mxu0 0.0
    %5294 = vmatpush1.msra.mxu0 %v5241
    %5295 = vmatprep.subr.mxu0 0.0
    %5296 = vmatpush1.msra.mxu0 %v5242
    %5297 = vmatprep.subr.mxu0 0.0
    %5298 = vmatpush1.msra.mxu0 %v5243
    %5299 = vmatprep.subr.mxu0 0.0
    %5300 = vmatpush1.msra.mxu0 %v5244
    %5301 = vmatprep.subr.mxu0 0.0
    %5302 = vmatpush1.msra.mxu0 0.0
    %5303 = vmatprep.subr.mxu0 0.0
    %5304 = vmatpush1.msra.mxu0 0.0
    %5305 = vmatprep.subr.mxu0 0.0
    %5306 = vmatpush1.msra.mxu0 0.0
    %5307 = vmatprep.subr.mxu0 0.0
    %5308 = vmatpush1.msra.mxu0 0.0
    %5309 = vmatprep.mubr.f32.mxu0 %v4694
    %5310 = vmatmul.mubr.f32.gmra.mrb[0].mxu0 %v4532
    %v5311 = vpop.f32.mrb[0].mxu0
    %v5312 = vpop.f32.mrb[0].mxu0
    %5313 = vmatprep.mubr.f32.mxu0 %v4697
    %5314 = vmatmul.mubr.f32.gmra.mrb[0].mxu0 %v4534
    %v5315 = vpop.f32.mrb[0].mxu0
    %v5316 = vpop.f32.mrb[0].mxu0
    %5317 = vmatprep.mubr.f32.mxu0 %v4700
    %5318 = vmatmul.mubr.f32.gmra.mrb[0].mxu0 %v4544
    %v5319 = vpop.f32.mrb[0].mxu0
    %v5320 = vadd.f32 0.0, %v5319
    %v5321 = vpop.f32.mrb[0].mxu0
    %5322 = vmatprep.mubr.f32.mxu0 %v4703
    %5323 = vmatmul.mubr.f32.gmra.mrb[0].mxu0 %v4546
    %v5324 = vpop.f32.mrb[0].mxu0
    %v5325 = vadd.f32 0.0, %v5324
    %v5326 = vpop.f32.mrb[0].mxu0
    %5327 = vmatprep.mubr.f32.mxu0 %v4706
    %5328 = vmatmul.mubr.f32.gmra.mrb[0].mxu0 %v4552
    %v5329 = vpop.f32.mrb[0].mxu0
    %v5330 = vadd.f32 0.0, %v5329
    %v5331 = vpop.f32.mrb[0].mxu0
    %5332 = vmatprep.mubr.f32.mxu0 %v4709
    %5333 = vmatmul.mubr.f32.gmra.mrb[0].mxu0 %v4554
    %v5334 = vpop.f32.mrb[0].mxu0
    %v5335 = vadd.f32 0.0, %v5334
    %v5336 = vpop.f32.mrb[0].mxu0
    %5337 = vmatprep.mubr.f32.mxu0 %v4712
    %5338 = vmatmul.mubr.f32.gmra.mrb[0].mxu0 %v4564
    %v5339 = vpop.f32.mrb[0].mxu0
    %v5340 = vadd.f32 0.0, %v5339
    %v5341 = vpop.f32.mrb[0].mxu0
    %5342 = vmatprep.mubr.f32.mxu0 %v4715
    %5343 = vmatmul.mubr.f32.gmra.mrb[0].mxu0 %v4566
    %v5344 = vpop.f32.mrb[0].mxu0
    %v5345 = vadd.f32 0.0, %v5344
    %v5346 = vpop.f32.mrb[0].mxu0
    %5347 = vmatprep.mubr.f32.mxu0 %v4718
    %5348 = vmatmul.mubr.f32.gmra.mrb[0].mxu0 %v4572
    %v5349 = vpop.f32.mrb[0].mxu0
    %v5350 = vadd.f32 0.0, %v5349
    %v5351 = vpop.f32.mrb[0].mxu0
    %5352 = vmatprep.mubr.f32.mxu0 %v4721
    %5353 = vmatmul.mubr.f32.gmra.mrb[0].mxu0 %v4574
    %v5354 = vpop.f32.mrb[0].mxu0
    %v5355 = vadd.f32 0.0, %v5354
    %v5356 = vpop.f32.mrb[0].mxu0
    %5357 = vmatprep.mubr.f32.mxu0 %v4724
    %5358 = vmatmul.mubr.f32.gmra.mrb[0].mxu0 %v4584
    %v5359 = vpop.f32.mrb[0].mxu0
    %v5360 = vadd.f32 0.0, %v5359
    %v5361 = vpop.f32.mrb[0].mxu0
    %5362 = vmatprep.mubr.f32.mxu0 %v4727
    %5363 = vmatmul.mubr.f32.gmra.mrb[0].mxu0 %v4586
    %v5364 = vpop.f32.mrb[0].mxu0
    %v5365 = vadd.f32 0.0, %v5364
    %v5366 = vpop.f32.mrb[0].mxu0
    %5367 = vmatprep.mubr.f32.mxu0 %v4730
    %5368 = vmatmul.mubr.f32.gmra.mrb[0].mxu0 %v4592
    %v5369 = vpop.f32.mrb[0].mxu0
    %v5370 = vadd.f32 0.0, %v5369
    %v5371 = vpop.f32.mrb[0].mxu0
    %5372 = vmatprep.mubr.f32.mxu0 %v4733
    %5373 = vmatmul.mubr.f32.gmra.mrb[0].mxu0 %v4594
    %v5374 = vpop.f32.mrb[0].mxu0
    %v5375 = vadd.f32 0.0, %v5374
    %v5376 = vpop.f32.mrb[0].mxu0
    %5377 = vmatprep.mubr.f32.mxu0 %v4736
    %5378 = vmatmul.mubr.f32.gmra.mrb[0].mxu0 %v4604
    %v5379 = vpop.f32.mrb[0].mxu0
    %v5380 = vadd.f32 0.0, %v5379
    %v5381 = vpop.f32.mrb[0].mxu0
    %5382 = vmatprep.mubr.f32.mxu0 %v4739
    %5383 = vmatmul.mubr.f32.gmra.mrb[0].mxu0 %v4606
    %v5384 = vpop.f32.mrb[0].mxu0
    %v5385 = vadd.f32 0.0, %v5384
    %v5386 = vpop.f32.mrb[0].mxu0
    %5387 = vmatprep.mubr.f32.mxu0 %v4742
    %5388 = vmatmul.mubr.f32.gmra.mrb[0].mxu0 %v4612
    %v5389 = vpop.f32.mrb[0].mxu0
    %v5390 = vadd.f32 0.0, %v5389
    %v5391 = vpop.f32.mrb[0].mxu0
    %5392 = vmatprep.mubr.f32.mxu0 %v4745
    %5393 = vmatmul.mubr.f32.gmra.mrb[0].mxu0 %v4614
    %v5394 = vpop.f32.mrb[0].mxu0
    %v5395 = vadd.f32 0.0, %v5394
    %v5396 = vpop.f32.mrb[0].mxu0
    %5397 = vmatprep.mubr.f32.mxu0 %v4748
    %5398 = vmatmul.mubr.f32.gmra.mrb[0].mxu0 %v4624
    %v5399 = vpop.f32.mrb[0].mxu0
    %v5400 = vadd.f32 0.0, %v5399
    %v5401 = vpop.f32.mrb[0].mxu0
    %5402 = vmatprep.mubr.f32.mxu0 %v4751
    %5403 = vmatmul.mubr.f32.gmra.mrb[0].mxu0 %v4626
    %v5404 = vpop.f32.mrb[0].mxu0
    %v5405 = vadd.f32 0.0, %v5404
    %v5406 = vpop.f32.mrb[0].mxu0
    %5407 = vmatprep.mubr.f32.mxu0 %v4754
    %5408 = vmatmul.mubr.f32.gmra.mrb[0].mxu0 %v4632
    %v5409 = vpop.f32.mrb[0].mxu0
    %v5410 = vadd.f32 0.0, %v5409
    %v5411 = vpop.f32.mrb[0].mxu0
    %5412 = vmatprep.mubr.f32.mxu0 %v4757
    %5413 = vmatmul.mubr.f32.gmra.mrb[0].mxu0 %v4634
    %v5414 = vpop.f32.mrb[0].mxu0
    %v5415 = vadd.f32 0.0, %v5414
    %v5416 = vpop.f32.mrb[0].mxu0
    %5417 = vmatprep.mubr.f32.mxu0 %v4760
    %5418 = vmatmul.mubr.f32.gmra.mrb[0].mxu0 %v4644
    %v5419 = vpop.f32.mrb[0].mxu0
    %v5420 = vadd.f32 0.0, %v5419
    %v5421 = vpop.f32.mrb[0].mxu0
    %5422 = vmatprep.mubr.f32.mxu0 %v4763
    %5423 = vmatmul.mubr.f32.gmra.mrb[0].mxu0 %v4646
    %v5424 = vpop.f32.mrb[0].mxu0
    %v5425 = vadd.f32 0.0, %v5424
    %v5426 = vpop.f32.mrb[0].mxu0
    %5427 = vmatprep.mubr.f32.mxu0 %v4766
    %5428 = vmatmul.mubr.f32.gmra.mrb[0].mxu0 %v4652
    %v5429 = vpop.f32.mrb[0].mxu0
    %v5430 = vadd.f32 0.0, %v5429
    %v5431 = vpop.f32.mrb[0].mxu0
    %5432 = vmatprep.mubr.f32.mxu0 %v4769
    %5433 = vmatmul.mubr.f32.gmra.mrb[0].mxu0 %v4654
    %v5434 = vpop.f32.mrb[0].mxu0
    %v5435 = vadd.f32 0.0, %v5434
    %v5436 = vpop.f32.mrb[0].mxu0
    %5437 = vmatprep.mubr.f32.mxu0 %v4772
    %5438 = vmatmul.mubr.f32.gmra.mrb[0].mxu0 %v4660
    %v5439 = vpop.f32.mrb[0].mxu0
    %v5440 = vadd.f32 0.0, %v5439
    %v5441 = vpop.f32.mrb[0].mxu0
    %5442 = vmatprep.mubr.f32.mxu0 %v4775
    %5443 = vmatmul.mubr.f32.gmra.mrb[0].mxu0 %v4662
    %v5444 = vpop.f32.mrb[0].mxu0
    %v5445 = vadd.f32 0.0, %v5444
    %v5446 = vpop.f32.mrb[0].mxu0
    %5447 = vdwg.mxu0
    %v5449 = vlaneseq
    %v5450 = vshrl.u32 %v5449, 7
    %v5451 = vsub.s32 0, %v5450
    %v5452 = vrot.slane %v4664, %v5451
    %v5454 = vadd.f32 %v5452, %v5078
    %v5455 = vadd.f32 %v5452, %v5083
    %v5456 = vmul.f32 %v5454, 0.5
    %v5457 = vmul.f32 %v5455, 0.5
    %v5458 = vtanh.pop %v5456
    %v5459 = vtanh.pop %v5457
    %v5460 = vadd.f32 %v5458, 1.0
    %v5461 = vadd.f32 %v5459, 1.0
    %v5462 = vmul.f32 %v5460, 0.5
    %v5463 = vmul.f32 %v5461, 0.5
    %v5464 = vadd.f32 %v5452, %v4844
    %v5465 = vadd.f32 %v5452, %v4849
    %v5466 = vadd.f32 %v5464, %v5320
    %v5467 = vadd.f32 %v5465, %v5325
    %v5468 = vmul.f32 %v5466, 0.5
    %v5469 = vmul.f32 %v5467, 0.5
    %v5470 = vtanh.pop %v5468
    %v5471 = vtanh.pop %v5469
    %v5472 = vadd.f32 %v5470, 1.0
    %v5473 = vadd.f32 %v5471, 1.0
    %v5474 = vmul.f32 %v5472, 0.5
    %v5475 = vmul.f32 %v5473, 0.5
    %v5476 = vadd.f32 %v5452, %v5088
    %v5477 = vadd.f32 %v5452, %v5093
    %v5478 = vmul.f32 %v5476, 0.5
    %v5479 = vmul.f32 %v5477, 0.5
    %v5480 = vtanh.pop %v5478
    %v5481 = vtanh.pop %v5479
    %v5482 = vadd.f32 %v5480, 1.0
    %v5483 = vadd.f32 %v5481, 1.0
    %v5484 = vmul.f32 %v5482, 0.5
    %v5485 = vmul.f32 %v5483, 0.5
    %v5486 = vadd.f32 %v5452, %v4854
    %v5487 = vadd.f32 %v5452, %v4859
    %v5488 = vadd.f32 %v5486, %v5330
    %v5489 = vadd.f32 %v5487, %v5335
    %v5490 = vmul.f32 %v5488, 0.5
    %v5491 = vmul.f32 %v5489, 0.5
    %v5492 = vtanh.pop %v5490
    %v5493 = vtanh.pop %v5491
    %v5494 = vadd.f32 %v5492, 1.0
    %v5495 = vadd.f32 %v5493, 1.0
    %v5496 = vmul.f32 %v5494, 0.5
    %v5497 = vmul.f32 %v5495, 0.5
    %v5498 = vadd.f32 %v5452, %v5098
    %v5499 = vadd.f32 %v5452, %v5103
    %v5500 = vmul.f32 %v5498, 0.5
    %v5501 = vmul.f32 %v5499, 0.5
    %v5502 = vtanh.pop %v5500
    %v5503 = vtanh.pop %v5501
    %v5504 = vadd.f32 %v5502, 1.0
    %v5505 = vadd.f32 %v5503, 1.0
    %v5506 = vmul.f32 %v5504, 0.5
    %v5507 = vmul.f32 %v5505, 0.5
    %v5508 = vadd.f32 %v5452, %v4864
    %v5509 = vadd.f32 %v5452, %v4869
    %v5510 = vadd.f32 %v5508, %v5340
    %v5511 = vadd.f32 %v5509, %v5345
    %v5512 = vmul.f32 %v5510, 0.5
    %v5513 = vmul.f32 %v5511, 0.5
    %v5514 = vtanh.pop %v5512
    %v5515 = vtanh.pop %v5513
    %v5516 = vadd.f32 %v5514, 1.0
    %v5517 = vadd.f32 %v5515, 1.0
    %v5518 = vmul.f32 %v5516, 0.5
    %v5519 = vmul.f32 %v5517, 0.5
    %v5520 = vadd.f32 %v5452, %v5108
    %v5521 = vadd.f32 %v5452, %v5113
    %v5522 = vmul.f32 %v5520, 0.5
    %v5523 = vmul.f32 %v5521, 0.5
    %v5524 = vtanh.pop %v5522
    %v5525 = vtanh.pop %v5523
    %v5526 = vadd.f32 %v5524, 1.0
    %v5527 = vadd.f32 %v5525, 1.0
    %v5528 = vmul.f32 %v5526, 0.5
    %v5529 = vmul.f32 %v5527, 0.5
    %v5530 = vadd.f32 %v5452, %v4874
    %v5531 = vadd.f32 %v5452, %v4879
    %v5532 = vadd.f32 %v5530, %v5350
    %v5533 = vadd.f32 %v5531, %v5355
    %v5534 = vmul.f32 %v5532, 0.5
    %v5535 = vmul.f32 %v5533, 0.5
    %v5536 = vtanh.pop %v5534
    %v5537 = vtanh.pop %v5535
    %v5538 = vadd.f32 %v5536, 1.0
    %v5539 = vadd.f32 %v5537, 1.0
    %v5540 = vmul.f32 %v5538, 0.5
    %v5541 = vmul.f32 %v5539, 0.5
    %v5542 = vadd.f32 %v5452, %v5118
    %v5543 = vadd.f32 %v5452, %v5123
    %v5544 = vmul.f32 %v5542, 0.5
    %v5545 = vmul.f32 %v5543, 0.5
    %v5546 = vtanh.pop %v5544
    %v5547 = vtanh.pop %v5545
    %v5548 = vadd.f32 %v5546, 1.0
    %v5549 = vadd.f32 %v5547, 1.0
    %v5550 = vmul.f32 %v5548, 0.5
    %v5551 = vmul.f32 %v5549, 0.5
    %v5552 = vadd.f32 %v5452, %v4884
    %v5553 = vadd.f32 %v5452, %v4889
    %v5554 = vadd.f32 %v5552, %v5360
    %v5555 = vadd.f32 %v5553, %v5365
    %v5556 = vmul.f32 %v5554, 0.5
    %v5557 = vmul.f32 %v5555, 0.5
    %v5558 = vtanh.pop %v5556
    %v5559 = vtanh.pop %v5557
    %v5560 = vadd.f32 %v5558, 1.0
    %v5561 = vadd.f32 %v5559, 1.0
    %v5562 = vmul.f32 %v5560, 0.5
    %v5563 = vmul.f32 %v5561, 0.5
    %v5564 = vadd.f32 %v5452, %v5128
    %v5565 = vadd.f32 %v5452, %v5133
    %v5566 = vmul.f32 %v5564, 0.5
    %v5567 = vmul.f32 %v5565, 0.5
    %v5568 = vtanh.pop %v5566
    %v5569 = vtanh.pop %v5567
    %v5570 = vadd.f32 %v5568, 1.0
    %v5571 = vadd.f32 %v5569, 1.0
    %v5572 = vmul.f32 %v5570, 0.5
    %v5573 = vmul.f32 %v5571, 0.5
    %v5574 = vadd.f32 %v5452, %v4894
    %v5575 = vadd.f32 %v5452, %v4899
    %v5576 = vadd.f32 %v5574, %v5370
    %v5577 = vadd.f32 %v5575, %v5375
    %v5578 = vmul.f32 %v5576, 0.5
    %v5579 = vmul.f32 %v5577, 0.5
    %v5580 = vtanh.pop %v5578
    %v5581 = vtanh.pop %v5579
    %v5582 = vadd.f32 %v5580, 1.0
    %v5583 = vadd.f32 %v5581, 1.0
    %v5584 = vmul.f32 %v5582, 0.5
    %v5585 = vmul.f32 %v5583, 0.5
    %v5586 = vadd.f32 %v5452, %v5138
    %v5587 = vadd.f32 %v5452, %v5143
    %v5588 = vmul.f32 %v5586, 0.5
    %v5589 = vmul.f32 %v5587, 0.5
    %v5590 = vtanh.pop %v5588
    %v5591 = vtanh.pop %v5589
    %v5592 = vadd.f32 %v5590, 1.0
    %v5593 = vadd.f32 %v5591, 1.0
    %v5594 = vmul.f32 %v5592, 0.5
    %v5595 = vmul.f32 %v5593, 0.5
    %v5596 = vadd.f32 %v5452, %v4904
    %v5597 = vadd.f32 %v5452, %v4909
    %v5598 = vadd.f32 %v5596, %v5380
    %v5599 = vadd.f32 %v5597, %v5385
    %v5600 = vmul.f32 %v5598, 0.5
    %v5601 = vmul.f32 %v5599, 0.5
    %v5602 = vtanh.pop %v5600
    %v5603 = vtanh.pop %v5601
    %v5604 = vadd.f32 %v5602, 1.0
    %v5605 = vadd.f32 %v5603, 1.0
    %v5606 = vmul.f32 %v5604, 0.5
    %v5607 = vmul.f32 %v5605, 0.5
    %v5608 = vadd.f32 %v5452, %v5148
    %v5609 = vadd.f32 %v5452, %v5153
    %v5610 = vmul.f32 %v5608, 0.5
    %v5611 = vmul.f32 %v5609, 0.5
    %v5612 = vtanh.pop %v5610
    %v5613 = vtanh.pop %v5611
    %v5614 = vadd.f32 %v5612, 1.0
    %v5615 = vadd.f32 %v5613, 1.0
    %v5616 = vmul.f32 %v5614, 0.5
    %v5617 = vmul.f32 %v5615, 0.5
    %v5618 = vadd.f32 %v5452, %v4914
    %v5619 = vadd.f32 %v5452, %v4919
    %v5620 = vadd.f32 %v5618, %v5390
    %v5621 = vadd.f32 %v5619, %v5395
    %v5622 = vmul.f32 %v5620, 0.5
    %v5623 = vmul.f32 %v5621, 0.5
    %v5624 = vtanh.pop %v5622
    %v5625 = vtanh.pop %v5623
    %v5626 = vadd.f32 %v5624, 1.0
    %v5627 = vadd.f32 %v5625, 1.0
    %v5628 = vmul.f32 %v5626, 0.5
    %v5629 = vmul.f32 %v5627, 0.5
    %v5630 = vadd.f32 %v5452, %v5158
    %v5631 = vadd.f32 %v5452, %v5163
    %v5632 = vmul.f32 %v5630, 0.5
    %v5633 = vmul.f32 %v5631, 0.5
    %v5634 = vtanh.pop %v5632
    %v5635 = vtanh.pop %v5633
    %v5636 = vadd.f32 %v5634, 1.0
    %v5637 = vadd.f32 %v5635, 1.0
    %v5638 = vmul.f32 %v5636, 0.5
    %v5639 = vmul.f32 %v5637, 0.5
    %v5640 = vadd.f32 %v5452, %v4924
    %v5641 = vadd.f32 %v5452, %v4929
    %v5642 = vadd.f32 %v5640, %v5400
    %v5643 = vadd.f32 %v5641, %v5405
    %v5644 = vmul.f32 %v5642, 0.5
    %v5645 = vmul.f32 %v5643, 0.5
    %v5646 = vtanh.pop %v5644
    %v5647 = vtanh.pop %v5645
    %v5648 = vadd.f32 %v5646, 1.0
    %v5649 = vadd.f32 %v5647, 1.0
    %v5650 = vmul.f32 %v5648, 0.5
    %v5651 = vmul.f32 %v5649, 0.5
    %v5652 = vadd.f32 %v5452, %v5168
    %v5653 = vadd.f32 %v5452, %v5173
    %v5654 = vmul.f32 %v5652, 0.5
    %v5655 = vmul.f32 %v5653, 0.5
    %v5656 = vtanh.pop %v5654
    %v5657 = vtanh.pop %v5655
    %v5658 = vadd.f32 %v5656, 1.0
    %v5659 = vadd.f32 %v5657, 1.0
    %v5660 = vmul.f32 %v5658, 0.5
    %v5661 = vmul.f32 %v5659, 0.5
    %v5662 = vadd.f32 %v5452, %v4934
    %v5663 = vadd.f32 %v5452, %v4939
    %v5664 = vadd.f32 %v5662, %v5410
    %v5665 = vadd.f32 %v5663, %v5415
    %v5666 = vmul.f32 %v5664, 0.5
    %v5667 = vmul.f32 %v5665, 0.5
    %v5668 = vtanh.pop %v5666
    %v5669 = vtanh.pop %v5667
    %v5670 = vadd.f32 %v5668, 1.0
    %v5671 = vadd.f32 %v5669, 1.0
    %v5672 = vmul.f32 %v5670, 0.5
    %v5673 = vmul.f32 %v5671, 0.5
    %v5674 = vadd.f32 %v5452, %v5178
    %v5675 = vadd.f32 %v5452, %v5183
    %v5676 = vmul.f32 %v5674, 0.5
    %v5677 = vmul.f32 %v5675, 0.5
    %v5678 = vtanh.pop %v5676
    %v5679 = vtanh.pop %v5677
    %v5680 = vadd.f32 %v5678, 1.0
    %v5681 = vadd.f32 %v5679, 1.0
    %v5682 = vmul.f32 %v5680, 0.5
    %v5683 = vmul.f32 %v5681, 0.5
    %v5684 = vadd.f32 %v5452, %v4944
    %v5685 = vadd.f32 %v5452, %v4949
    %v5686 = vadd.f32 %v5684, %v5420
    %v5687 = vadd.f32 %v5685, %v5425
    %v5688 = vmul.f32 %v5686, 0.5
    %v5689 = vmul.f32 %v5687, 0.5
    %v5690 = vtanh.pop %v5688
    %v5691 = vtanh.pop %v5689
    %v5692 = vadd.f32 %v5690, 1.0
    %v5693 = vadd.f32 %v5691, 1.0
    %v5694 = vmul.f32 %v5692, 0.5
    %v5695 = vmul.f32 %v5693, 0.5
    %v5696 = vadd.f32 %v5452, %v5188
    %v5697 = vadd.f32 %v5452, %v5193
    %v5698 = vmul.f32 %v5696, 0.5
    %v5699 = vmul.f32 %v5697, 0.5
    %v5700 = vtanh.pop %v5698
    %v5701 = vtanh.pop %v5699
    %v5702 = vadd.f32 %v5700, 1.0
    %v5703 = vadd.f32 %v5701, 1.0
    %v5704 = vmul.f32 %v5702, 0.5
    %v5705 = vmul.f32 %v5703, 0.5
    %v5706 = vadd.f32 %v5452, %v4954
    %v5707 = vadd.f32 %v5452, %v4959
    %v5708 = vadd.f32 %v5706, %v5430
    %v5709 = vadd.f32 %v5707, %v5435
    %v5710 = vmul.f32 %v5708, 0.5
    %v5711 = vmul.f32 %v5709, 0.5
    %v5712 = vtanh.pop %v5710
    %v5713 = vtanh.pop %v5711
    %v5714 = vadd.f32 %v5712, 1.0
    %v5715 = vadd.f32 %v5713, 1.0
    %v5716 = vmul.f32 %v5714, 0.5
    %v5717 = vmul.f32 %v5715, 0.5
    %v5718 = vadd.f32 %v5452, %v5198
    %v5719 = vadd.f32 %v5452, %v5203
    %v5720 = vmul.f32 %v5718, 0.5
    %v5721 = vmul.f32 %v5719, 0.5
    %v5722 = vtanh.pop %v5720
    %v5723 = vtanh.pop %v5721
    %v5724 = vadd.f32 %v5722, 1.0
    %v5725 = vadd.f32 %v5723, 1.0
    %v5726 = vmul.f32 %v5724, 0.5
    %v5727 = vmul.f32 %v5725, 0.5
    %v5728 = vadd.f32 %v5452, %v4964
    %v5729 = vadd.f32 %v5452, %v4969
    %v5730 = vadd.f32 %v5728, %v5440
    %v5731 = vadd.f32 %v5729, %v5445
    %v5732 = vmul.f32 %v5730, 0.5
    %v5733 = vmul.f32 %v5731, 0.5
    %v5734 = vtanh.pop %v5732
    %v5735 = vtanh.pop %v5733
    %v5736 = vadd.f32 %v5734, 1.0
    %v5737 = vadd.f32 %v5735, 1.0
    %v5738 = vmul.f32 %v5736, 0.5
    %v5739 = vmul.f32 %v5737, 0.5
    %v5740 = vadd.f32 %v5452, %v5208
    %v5741 = vadd.f32 %v5452, %v5213
    %v5742 = vmul.f32 %v5740, 0.5
    %v5743 = vmul.f32 %v5741, 0.5
    %v5744 = vtanh.pop %v5742
    %v5745 = vtanh.pop %v5743
    %v5746 = vadd.f32 %v5744, 1.0
    %v5747 = vadd.f32 %v5745, 1.0
    %v5748 = vmul.f32 %v5746, 0.5
    %v5749 = vmul.f32 %v5747, 0.5
    %v5750 = vadd.f32 %v5452, %v4974
    %v5751 = vadd.f32 %v5452, %v4979
    %v5752 = vmul.f32 %v5750, 0.5
    %v5753 = vmul.f32 %v5751, 0.5
    %v5754 = vtanh.pop %v5752
    %v5755 = vtanh.pop %v5753
    %v5756 = vadd.f32 %v5754, 1.0
    %v5757 = vadd.f32 %v5755, 1.0
    %v5758 = vmul.f32 %v5756, 0.5
    %v5759 = vmul.f32 %v5757, 0.5
    %5760 = vst.msk [vmem:[%s17] sm:$0xff] %vm151, %v5462
    %5761 = vst.msk [vmem:[%s17 + $0x8] sm:$0xff] %vm151, %v5463
    %s5762 = scalar_lea.vmem %s17, 16
    %5763 = vst.msk [vmem:[%s5762] sm:$0xff] %vm151, %v5474
    %5764 = vst.msk [vmem:[%s5762 + $0x8] sm:$0xff] %vm151, %v5475
    %s5765 = scalar_lea.vmem %s17, 32
    %5766 = vst.msk [vmem:[%s5765] sm:$0xff] %vm151, %v5484
    %5767 = vst.msk [vmem:[%s5765 + $0x8] sm:$0xff] %vm151, %v5485
    %s5768 = scalar_lea.vmem %s17, 48
    %5769 = vst.msk [vmem:[%s5768] sm:$0xff] %vm151, %v5496
    %5770 = vst.msk [vmem:[%s5768 + $0x8] sm:$0xff] %vm151, %v5497
    %s5771 = scalar_lea.vmem %s17, 64
    %5772 = vst.msk [vmem:[%s5771] sm:$0xff] %vm151, %v5506
    %5773 = vst.msk [vmem:[%s5771 + $0x8] sm:$0xff] %vm151, %v5507
    %s5774 = scalar_lea.vmem %s17, 80
    %5775 = vst.msk [vmem:[%s5774] sm:$0xff] %vm151, %v5518
    %5776 = vst.msk [vmem:[%s5774 + $0x8] sm:$0xff] %vm151, %v5519
    %s5777 = scalar_lea.vmem %s17, 96
    %5778 = vst.msk [vmem:[%s5777] sm:$0xff] %vm151, %v5528
    %5779 = vst.msk [vmem:[%s5777 + $0x8] sm:$0xff] %vm151, %v5529
    %s5780 = scalar_lea.vmem %s17, 112
    %5781 = vst.msk [vmem:[%s5780] sm:$0xff] %vm151, %v5540
    %5782 = vst.msk [vmem:[%s5780 + $0x8] sm:$0xff] %vm151, %v5541
    %s5783 = scalar_lea.vmem %s17, 128
    %5784 = vst.msk [vmem:[%s5783] sm:$0xff] %vm151, %v5550
    %5785 = vst.msk [vmem:[%s5783 + $0x8] sm:$0xff] %vm151, %v5551
    %s5786 = scalar_lea.vmem %s17, 144
    %5787 = vst.msk [vmem:[%s5786] sm:$0xff] %vm151, %v5562
    %5788 = vst.msk [vmem:[%s5786 + $0x8] sm:$0xff] %vm151, %v5563
    %s5789 = scalar_lea.vmem %s17, 160
    %5790 = vst.msk [vmem:[%s5789] sm:$0xff] %vm151, %v5572
    %5791 = vst.msk [vmem:[%s5789 + $0x8] sm:$0xff] %vm151, %v5573
    %s5792 = scalar_lea.vmem %s17, 176
    %5793 = vst.msk [vmem:[%s5792] sm:$0xff] %vm151, %v5584
    %5794 = vst.msk [vmem:[%s5792 + $0x8] sm:$0xff] %vm151, %v5585
    %s5795 = scalar_lea.vmem %s17, 192
    %5796 = vst.msk [vmem:[%s5795] sm:$0xff] %vm151, %v5594
    %5797 = vst.msk [vmem:[%s5795 + $0x8] sm:$0xff] %vm151, %v5595
    %s5798 = scalar_lea.vmem %s17, 208
    %5799 = vst.msk [vmem:[%s5798] sm:$0xff] %vm151, %v5606
    %5800 = vst.msk [vmem:[%s5798 + $0x8] sm:$0xff] %vm151, %v5607
    %s5801 = scalar_lea.vmem %s17, 224
    %5802 = vst.msk [vmem:[%s5801] sm:$0xff] %vm151, %v5616
    %5803 = vst.msk [vmem:[%s5801 + $0x8] sm:$0xff] %vm151, %v5617
    %s5804 = scalar_lea.vmem %s17, 240
    %5805 = vst.msk [vmem:[%s5804] sm:$0xff] %vm151, %v5628
    %5806 = vst.msk [vmem:[%s5804 + $0x8] sm:$0xff] %vm151, %v5629
    %s5807 = scalar_lea.vmem %s17, 256
    %5808 = vst.msk [vmem:[%s5807] sm:$0xff] %vm151, %v5638
    %5809 = vst.msk [vmem:[%s5807 + $0x8] sm:$0xff] %vm151, %v5639
    %s5810 = scalar_lea.vmem %s17, 272
    %5811 = vst.msk [vmem:[%s5810] sm:$0xff] %vm151, %v5650
    %5812 = vst.msk [vmem:[%s5810 + $0x8] sm:$0xff] %vm151, %v5651
    %s5813 = scalar_lea.vmem %s17, 288
    %5814 = vst.msk [vmem:[%s5813] sm:$0xff] %vm151, %v5660
    %5815 = vst.msk [vmem:[%s5813 + $0x8] sm:$0xff] %vm151, %v5661
    %s5816 = scalar_lea.vmem %s17, 304
    %5817 = vst.msk [vmem:[%s5816] sm:$0xff] %vm151, %v5672
    %5818 = vst.msk [vmem:[%s5816 + $0x8] sm:$0xff] %vm151, %v5673
    %s5819 = scalar_lea.vmem %s17, 320
    %5820 = vst.msk [vmem:[%s5819] sm:$0xff] %vm151, %v5682
    %5821 = vst.msk [vmem:[%s5819 + $0x8] sm:$0xff] %vm151, %v5683
    %s5822 = scalar_lea.vmem %s17, 336
    %5823 = vst.msk [vmem:[%s5822] sm:$0xff] %vm151, %v5694
    %5824 = vst.msk [vmem:[%s5822 + $0x8] sm:$0xff] %vm151, %v5695
    %s5825 = scalar_lea.vmem %s17, 352
    %5826 = vst.msk [vmem:[%s5825] sm:$0xff] %vm151, %v5704
    %5827 = vst.msk [vmem:[%s5825 + $0x8] sm:$0xff] %vm151, %v5705
    %s5828 = scalar_lea.vmem %s17, 368
    %5829 = vst.msk [vmem:[%s5828] sm:$0xff] %vm151, %v5716
    %5830 = vst.msk [vmem:[%s5828 + $0x8] sm:$0xff] %vm151, %v5717
    %s5831 = scalar_lea.vmem %s17, 384
    %5832 = vst.msk [vmem:[%s5831] sm:$0xff] %vm151, %v5726
    %5833 = vst.msk [vmem:[%s5831 + $0x8] sm:$0xff] %vm151, %v5727
    %s5834 = scalar_lea.vmem %s17, 400
    %5835 = vst.msk [vmem:[%s5834] sm:$0xff] %vm151, %v5738
    %5836 = vst.msk [vmem:[%s5834 + $0x8] sm:$0xff] %vm151, %v5739
    %s5837 = scalar_lea.vmem %s17, 416
    %5838 = vst.msk [vmem:[%s5837] sm:$0xff] %vm151, %v5748
    %5839 = vst.msk [vmem:[%s5837 + $0x8] sm:$0xff] %vm151, %v5749
    %s5840 = scalar_lea.vmem %s17, 432
    %5841 = vst.msk [vmem:[%s5840] sm:$0xff] %vm151, %v5758
    %5842 = vst.msk [vmem:[%s5840 + $0x8] sm:$0xff] %vm151, %v5759
    // Predicated region
    $region78: #{conv_autoencoder_forward.1} parent=1 // pred_check
      _
    $region79: #{conv_autoencoder_forward.1} parent=1 // pred_check_branch
      %5844 = sbr.rel (0) target = $region81
    $region80: #{conv_autoencoder_forward.1} parent=1 // pred_region
      _
    $region81: #{conv_autoencoder_forward.1} parent=1 // pred_fallthru
      _
    // Predicated region
    $region82: #{conv_autoencoder_forward.1} parent=1 // pred_check
      _
    $region83: #{conv_autoencoder_forward.1} parent=1 // pred_check_branch
      %5846 = sbr.rel (0) target = $region85
    $region84: #{conv_autoencoder_forward.1} parent=1 // pred_region
      _
    $region85: #{conv_autoencoder_forward.1} parent=1 // pred_fallthru
      _
    // Predicated region
    $region86: #{conv_autoencoder_forward.1} parent=1 // pred_check
      _
    $region87: #{conv_autoencoder_forward.1} parent=1 // pred_check_branch
      %5848 = sbr.rel (0) target = $region89
    $region88: #{conv_autoencoder_forward.1} parent=1 // pred_region
      _
    $region89: #{conv_autoencoder_forward.1} parent=1 // pred_fallthru
      _
    // Predicated region
    $region90: #{conv_autoencoder_forward.1} parent=1 // pred_check
      _
    $region91: #{conv_autoencoder_forward.1} parent=1 // pred_check_branch
      %5850 = sbr.rel (0) target = $region93
    $region92: #{conv_autoencoder_forward.1} parent=1 // pred_region
      _
    $region93: #{conv_autoencoder_forward.1} parent=1 // pred_fallthru
      _
    %5851 = vsyncpa [#allocation3], 1
    %5852 = vsyncpa [#allocation5], 1

</llo_original>
